<compile_context>
chip_gen: v6e
topology: v6e:2x2x1
jax: 0.10.0
libtpu: 0.0.40
codegen_flags: <defaults>
</compile_context>

<pallas_src>
import jax
import jax.numpy as jnp
from jax.experimental import pallas as pl
from jax.experimental.pallas import tpu as pltpu


def embedding_kernel(x_ref, proj_ref, sel_ref, o_ref):
    # x_ref:    (TILE_B, C)     input coordinates for this row tile
    # proj_ref: (C, OUT)        proj[c, j] = freq_j if column j reads channel c else 0
    # sel_ref:  (3, OUT)        0/1 masks: row 0 = identity cols, 1 = sin cols, 2 = cos cols
    # o_ref:    (TILE_B, OUT)
    x = x_ref[...]                                   # (TILE_B, C)
    proj = proj_ref[...]                             # (C, OUT)

    # arg[b, j] = freq_j * x[b, channel_of(j)], built as C rank-1 updates on the
    # VPU (exact f32; avoids MXU precision and lane-width-3 elementwise work).
    arg = x[:, 0:1] * proj[0:1, :]                   # (TILE_B, OUT)
    for c in range(1, x.shape[-1]):                  # C is small & static -> unrolled
        arg = arg + x[:, c:c+1] * proj[c:c+1, :]

    out = (sel_ref[0:1, :] * arg                     # identity columns (raw x)
           + sel_ref[1:2, :] * jnp.sin(arg)          # sin(f_k * x) columns
           + sel_ref[2:3, :] * jnp.cos(arg))         # cos(f_k * x) columns
    o_ref[...] = out.astype(o_ref.dtype)


def _encoding_tables(in_channels, n_freqs, logscale, dtype):
    """Build the (C, OUT) frequency-projection table and (3, OUT) column masks."""
    r = 2 * n_freqs + 1
    if logscale:
        freqs = 2.0 ** jnp.arange(n_freqs, dtype=jnp.float32)
    else:
        freqs = jnp.linspace(1.0, 2.0 ** (n_freqs - 1), n_freqs, dtype=jnp.float32)

    # Output column layout (matches the PyTorch loop order):
    #   group 0: x   | group 1+2k: sin(f_k x) | group 2+2k: cos(f_k x), each of width C.
    group_scale = jnp.concatenate([jnp.ones((1,), jnp.float32), jnp.repeat(freqs, 2)])
    col_scale = jnp.repeat(group_scale, in_channels)                    # (OUT,)
    col_group = jnp.repeat(jnp.arange(r), in_channels)                  # (OUT,)
    col_chan = jnp.tile(jnp.arange(in_channels), r)                     # (OUT,)

    proj = ((col_chan[None, :] == jnp.arange(in_channels)[:, None])
            .astype(jnp.float32) * col_scale[None, :])                  # (C, OUT)
    id_mask = (col_group == 0).astype(jnp.float32)
    sin_mask = (col_group % 2 == 1).astype(jnp.float32)
    cos_mask = ((col_group % 2 == 0) & (col_group > 0)).astype(jnp.float32)
    sel = jnp.stack([id_mask, sin_mask, cos_mask], axis=0)              # (3, OUT)
    return proj.astype(dtype), sel.astype(dtype)


def nerf_embedding(x, n_freqs, logscale=True, *, tile_rows=256):
    """x: (B, in_channels) -> (B, in_channels * (2*n_freqs + 1))."""
    B, C = x.shape
    out_channels = C * (2 * n_freqs + 1)
    proj, sel = _encoding_tables(C, n_freqs, logscale, x.dtype)

    # Row tile: multiple of 8 sublanes; kept small enough for v7x's 64 MiB VMEM,
    # large enough to amortize the ~0.35 us per-grid-step overhead.
    tile_b = min(tile_rows, B)
    if tile_b < B:
        tile_b = max(8, (tile_b // 8) * 8)
    grid = (pl.cdiv(B, tile_b),)

    bytes_accessed = 4 * (B * C + C * out_channels + 3 * out_channels + B * out_channels)
    cost = pl.CostEstimate(
        flops=B * out_channels * (2 * C + 4),
        transcendentals=2 * B * out_channels,        # one sin + one cos per output element
        bytes_accessed=bytes_accessed,
    )

    return pl.pallas_call(
        embedding_kernel,
        out_shape=jax.ShapeDtypeStruct((B, out_channels), x.dtype),
        grid_spec=pltpu.PrefetchScalarGridSpec(
            num_scalar_prefetch=0,
            grid=grid,
            in_specs=[
                pl.BlockSpec((tile_b, C), lambda i: (i, 0)),          # x row tile
                pl.BlockSpec((C, out_channels), lambda i: (0, 0)),    # proj (resident)
                pl.BlockSpec((3, out_channels), lambda i: (0, 0)),    # masks (resident)
            ],
            out_specs=pl.BlockSpec((tile_b, out_channels), lambda i: (i, 0)),
        ),
        compiler_params=pltpu.CompilerParams(
            dimension_semantics=("parallel",),       # shards row tiles across TCs (v7x)
        ),
        cost_estimate=cost,
    )(x, proj, sel)


def embedding_ref(x, n_freqs, logscale=True):
    """Pure-JAX mirror of the PyTorch Embedding.forward."""
    if logscale:
        freqs = 2.0 ** jnp.linspace(0.0, n_freqs - 1, n_freqs)
    else:
        freqs = jnp.linspace(1.0, 2.0 ** (n_freqs - 1), n_freqs)
    outs = [x]
    for k in range(n_freqs):
        f = freqs[k]
        outs.append(jnp.sin(f * x))
        outs.append(jnp.cos(f * x))
    return jnp.concatenate(outs, axis=-1)


if __name__ == "__main__":
    # Canonical NeRF xyz embedding: 3 channels, 10 frequencies -> 63 output channels.
    B, IN_CHANNELS, N_FREQS = 1024, 3, 10

    key = jax.random.PRNGKey(0)
    # NeRF-style normalized coordinates in [-1, 1].
    x = jax.random.uniform(key, (B, IN_CHANNELS), jnp.float32, -1.0, 1.0)

    out = nerf_embedding(x, N_FREQS, logscale=True, tile_rows=256)
    out = jax.block_until_ready(out)

    ref = embedding_ref(x, N_FREQS, logscale=True)
    assert out.shape == (B, IN_CHANNELS * (2 * N_FREQS + 1))
    # Arguments to sin/cos are bit-identical to the reference; tolerance only
    # covers small differences between the Pallas and XLA sin/cos lowerings.
    assert jnp.allclose(out, ref, atol=5e-4, rtol=1e-4), "mismatch vs reference"

    print("KERNEL_OK")
</pallas_src>

<mosaic_0001>
module attributes {stable_mosaic.version = 11 : i64} {
  func.func @embedding_kernel(%arg0: i32, %arg1: memref<256x3xf32, #tpu.memory_space<vmem>>, %arg2: memref<3x63xf32, #tpu.memory_space<vmem>>, %arg3: memref<3x63xf32, #tpu.memory_space<vmem>>, %arg4: memref<256x63xf32, #tpu.memory_space<vmem>>) attributes {dimension_semantics = [#tpu.dimension_semantics<parallel>], iteration_bounds = array<i64: 4>, scalar_prefetch = 0 : i64, scratch_operands = 0 : i64, tpu.core_type = #tpu.core_type<tc>, window_params = [{transform_indices = @transform_0, window_bounds = array<i64: 256, 3>}, {pipeline_mode = #tpu.pipeline_mode<synchronous>, transform_indices = @transform_1, window_bounds = array<i64: 3, 63>}, {pipeline_mode = #tpu.pipeline_mode<synchronous>, transform_indices = @transform_2, window_bounds = array<i64: 3, 63>}, {transform_indices = @transform_3, window_bounds = array<i64: 256, 63>}]} {
    %c0 = arith.constant 0 : index
    %c0_0 = arith.constant 0 : index
    %0 = vector.load %arg1[%c0, %c0_0] : memref<256x3xf32, #tpu.memory_space<vmem>>, vector<256x3xf32>
    %c0_1 = arith.constant 0 : index
    %c0_2 = arith.constant 0 : index
    %1 = vector.load %arg2[%c0_1, %c0_2] : memref<3x63xf32, #tpu.memory_space<vmem>>, vector<3x63xf32>
    %2 = vector.extract_strided_slice %0 {offsets = [0, 0], sizes = [256, 1], strides = [1, 1]} : vector<256x3xf32> to vector<256x1xf32>
    %3 = vector.extract_strided_slice %1 {offsets = [0, 0], sizes = [1, 63], strides = [1, 1]} : vector<3x63xf32> to vector<1x63xf32>
    %4 = vector.broadcast %2 : vector<256x1xf32> to vector<256x63xf32>
    %5 = vector.broadcast %3 : vector<1x63xf32> to vector<256x63xf32>
    %6 = arith.mulf %4, %5 : vector<256x63xf32>
    %7 = vector.extract_strided_slice %0 {offsets = [0, 1], sizes = [256, 1], strides = [1, 1]} : vector<256x3xf32> to vector<256x1xf32>
    %8 = vector.extract_strided_slice %1 {offsets = [1, 0], sizes = [1, 63], strides = [1, 1]} : vector<3x63xf32> to vector<1x63xf32>
    %9 = vector.broadcast %7 : vector<256x1xf32> to vector<256x63xf32>
    %10 = vector.broadcast %8 : vector<1x63xf32> to vector<256x63xf32>
    %11 = arith.mulf %9, %10 : vector<256x63xf32>
    %12 = arith.addf %6, %11 : vector<256x63xf32>
    %13 = vector.extract_strided_slice %0 {offsets = [0, 2], sizes = [256, 1], strides = [1, 1]} : vector<256x3xf32> to vector<256x1xf32>
    %14 = vector.extract_strided_slice %1 {offsets = [2, 0], sizes = [1, 63], strides = [1, 1]} : vector<3x63xf32> to vector<1x63xf32>
    %15 = vector.broadcast %13 : vector<256x1xf32> to vector<256x63xf32>
    %16 = vector.broadcast %14 : vector<1x63xf32> to vector<256x63xf32>
    %17 = arith.mulf %15, %16 : vector<256x63xf32>
    %18 = arith.addf %12, %17 : vector<256x63xf32>
    %c0_3 = arith.constant 0 : index
    %c0_4 = arith.constant 0 : index
    %19 = vector.load %arg3[%c0_3, %c0_4] : memref<3x63xf32, #tpu.memory_space<vmem>>, vector<1x63xf32>
    %20 = vector.broadcast %19 : vector<1x63xf32> to vector<256x63xf32>
    %21 = arith.mulf %20, %18 : vector<256x63xf32>
    %c1 = arith.constant 1 : index
    %c0_5 = arith.constant 0 : index
    %22 = vector.load %arg3[%c1, %c0_5] : memref<3x63xf32, #tpu.memory_space<vmem>>, vector<1x63xf32>
    %23 = math.sin %18 : vector<256x63xf32>
    %24 = vector.broadcast %22 : vector<1x63xf32> to vector<256x63xf32>
    %25 = arith.mulf %24, %23 : vector<256x63xf32>
    %26 = arith.addf %21, %25 : vector<256x63xf32>
    %c2 = arith.constant 2 : index
    %c0_6 = arith.constant 0 : index
    %27 = vector.load %arg3[%c2, %c0_6] : memref<3x63xf32, #tpu.memory_space<vmem>>, vector<1x63xf32>
    %28 = math.cos %18 : vector<256x63xf32>
    %29 = vector.broadcast %27 : vector<1x63xf32> to vector<256x63xf32>
    %30 = arith.mulf %29, %28 : vector<256x63xf32>
    %31 = arith.addf %26, %30 : vector<256x63xf32>
    %c0_7 = arith.constant 0 : index
    %c0_8 = arith.constant 0 : index
    %32 = vector.load %arg4[%c0_7, %c0_8] : memref<256x63xf32, #tpu.memory_space<vmem>>, vector<256x63xf32>
    tpu.vector_store %arg4[%c0_7, %c0_8], %31 {strides = array<i32>} : memref<256x63xf32, #tpu.memory_space<vmem>>, vector<256x63xf32>,
    return
  }
  func.func @transform_0(%arg0: i32) -> (i32, i32) {
    %c0_i32 = arith.constant 0 : i32
    %c0_i32_0 = arith.constant 0 : i32
    return %arg0, %c0_i32 : i32, i32
  }
  func.func @transform_1(%arg0: i32) -> (i32, i32) {
    %c0_i32 = arith.constant 0 : i32
    %c0_i32_0 = arith.constant 0 : i32
    %c0_i32_1 = arith.constant 0 : i32
    return %c0_i32, %c0_i32_0 : i32, i32
  }
  func.func @transform_2(%arg0: i32) -> (i32, i32) {
    %c0_i32 = arith.constant 0 : i32
    %c0_i32_0 = arith.constant 0 : i32
    %c0_i32_1 = arith.constant 0 : i32
    return %c0_i32, %c0_i32_0 : i32, i32
  }
  func.func @transform_3(%arg0: i32) -> (i32, i32) {
    %c0_i32 = arith.constant 0 : i32
    %c0_i32_0 = arith.constant 0 : i32
    return %arg0, %c0_i32 : i32, i32
  }
}

</mosaic_0001>

<llo_original>
// kernel: tpu_custom_call.1
$region0: #{tpu_custom_call.1}
  #allocation0 [shape = 'u32[]', space=smem, size = 0x4, offset = 0x4, fixed_abs, tag = 'smem constant byte address 0x4 - core index']
  #allocation1 [shape = 'u32[144,128]{1,0:T(1,128)}', space=vmem, size = 0x12000, scoped, tag = 'internal scratch']
  %s0 = inlined_call_operand.vmem [shape: f32[1024,3], index: 0, kind: input, shape index: {}]
  %s1 = inlined_call_operand.vmem [shape: f32[3,63], index: 1, kind: input, shape index: {}]
  %s2 = inlined_call_operand.vmem [shape: f32[3,63], index: 2, kind: input, shape index: {}]
  %s3 = inlined_call_operand.vmem [shape: f32[1024,63], index: 3, kind: output, shape index: {}]
  %s4 = sld [smem:[#allocation0]]
  $region45: #{tpu_custom_call.1} parent=0
    _
  %s6 = ssub.s32 1, %s4
  %s7 = scalar_select 0, %s6, %s4
  loop: start=0, step=1, limit=6
  $region2: #{tpu_custom_call.1} parent=0 // loop_pre_header
    _
  $region3: #{tpu_custom_call.1} parent=0 // loop_header
    %s9 = sphi 0, %s13
    %p10 = scmp.ge.s32.totalorder %s9, 6
    %s19 = sphi 0, %s21
    %s22 = sphi 0, %s19
    %s23 = sphi 0, %s22
    %s39 = sphi 0, %s23
    %s43 = sphi 0, %s43
    %s45 = sphi 0, %s43
    %s46 = sphi 0, %s45
    %s60 = sphi 0, %s46
    %s64 = sphi 0, %s64
    %s66 = sphi 0, %s64
    %s67 = sphi 0, %s66
    %s81 = sphi 0, %s67
    %s87 = sphi 0, %s89
    %s90 = sphi 0, %s87
    %s91 = sphi 0, %s90
    %s107 = sphi 0, %s91
  $region4: #{tpu_custom_call.1} parent=0 // loop_header_branch
    %12 = sbr.rel (%p10) target = $region8
  $region5: #{tpu_custom_call.1} parent=0 // loop_body
    %s14 = ssub.s32 %s9, 1
    %s15 = ssub.s32 %s9, 2
    %s16 = sadd.s32 %s9, 1
    %s17 = ssub.s32 %s9, %s16
    %p18 = scmp.eq.s32.totalorder %s17, 0
    %s20 = sadd.s32 %s19, 1
    %s21 = scalar_select %p18, %s19, %s20
    %p24 = pneg %p18
    %p25 = scmp.eq.s32.totalorder %s9, 3
    %p26 = por %p24, %p25
    %p27 = scmp.ne.s32.totalorder %s19, %s22
    %p28 = scmp.eq.s32.totalorder %s9, 0
    %p29 = por %p27, %p28
    %p30 = scmp.ne.s32.totalorder %s19, %s22
    %p31 = scmp.eq.s32.totalorder %s14, 3
    %p32 = por %p30, %p31
    %p33 = scmp.ne.s32.totalorder %s22, %s23
    %p34 = scmp.eq.s32.totalorder %s14, 0
    %p35 = por %p33, %p34
    %p36 = scmp.ne.s32.totalorder %s22, %s23
    %p37 = scmp.eq.s32.totalorder %s15, 3
    %p38 = por %p36, %p37
    %p40 = scmp.ne.s32.totalorder %s23, %s39
    %p41 = scmp.eq.s32.totalorder %s15, 0
    %p42 = por %p40, %p41
    %s44 = sadd.s32 %s43, 1
    %p47 = scmp.eq.s32.totalorder %s9, 3
    %p48 = scmp.ne.s32.totalorder %s43, %s45
    %p49 = scmp.eq.s32.totalorder %s9, 0
    %p50 = por %p48, %p49
    %p51 = scmp.ne.s32.totalorder %s43, %s45
    %p52 = scmp.eq.s32.totalorder %s14, 3
    %p53 = por %p51, %p52
    %p54 = scmp.ne.s32.totalorder %s45, %s46
    %p55 = scmp.eq.s32.totalorder %s14, 0
    %p56 = por %p54, %p55
    %p57 = scmp.ne.s32.totalorder %s45, %s46
    %p58 = scmp.eq.s32.totalorder %s15, 3
    %p59 = por %p57, %p58
    %p61 = scmp.ne.s32.totalorder %s46, %s60
    %p62 = scmp.eq.s32.totalorder %s15, 0
    %p63 = por %p61, %p62
    %s65 = sadd.s32 %s64, 1
    %p68 = scmp.eq.s32.totalorder %s9, 3
    %p69 = scmp.ne.s32.totalorder %s64, %s66
    %p70 = scmp.eq.s32.totalorder %s9, 0
    %p71 = por %p69, %p70
    %p72 = scmp.ne.s32.totalorder %s64, %s66
    %p73 = scmp.eq.s32.totalorder %s14, 3
    %p74 = por %p72, %p73
    %p75 = scmp.ne.s32.totalorder %s66, %s67
    %p76 = scmp.eq.s32.totalorder %s14, 0
    %p77 = por %p75, %p76
    %p78 = scmp.ne.s32.totalorder %s66, %s67
    %p79 = scmp.eq.s32.totalorder %s15, 3
    %p80 = por %p78, %p79
    %p82 = scmp.ne.s32.totalorder %s67, %s81
    %p83 = scmp.eq.s32.totalorder %s15, 0
    %p84 = por %p82, %p83
    %s85 = ssub.s32 %s9, %s16
    %p86 = scmp.eq.s32.totalorder %s85, 0
    %s88 = sadd.s32 %s87, 1
    %s89 = scalar_select %p86, %s87, %s88
    %p92 = pneg %p86
    %p93 = scmp.eq.s32.totalorder %s9, 3
    %p94 = por %p92, %p93
    %p95 = scmp.ne.s32.totalorder %s87, %s90
    %p96 = scmp.eq.s32.totalorder %s9, 0
    %p97 = por %p95, %p96
    %p98 = scmp.ne.s32.totalorder %s87, %s90
    %p99 = scmp.eq.s32.totalorder %s14, 3
    %p100 = por %p98, %p99
    %p101 = scmp.ne.s32.totalorder %s90, %s91
    %p102 = scmp.eq.s32.totalorder %s14, 0
    %p103 = por %p101, %p102
    %p104 = scmp.ne.s32.totalorder %s90, %s91
    %p105 = scmp.eq.s32.totalorder %s15, 3
    %p106 = por %p104, %p105
    %p108 = scmp.ne.s32.totalorder %s91, %s107
    %p109 = scmp.eq.s32.totalorder %s15, 0
    %p110 = por %p108, %p109
    %p111 = scmp.le.s32.totalorder 1, %s9
    %p112 = scmp.lt.s32.totalorder %s9, 5
    %p113 = pnand %p111, %p112
    %p114 = pneg %p113
    // Predicated region
    $region9: #{tpu_custom_call.1} parent=5 // pred_check
      _
    $region10: #{tpu_custom_call.1} parent=5 // pred_check_branch
      %116 = sbr.rel (%p113) target = $region12
    $region11: #{tpu_custom_call.1} parent=5 // pred_region
      %s117 = ssub.s32 %s9, 1
      // Predicated region
      $region13: #{tpu_custom_call.1} parent=11 // pred_check
        %p118 = pneg %p56
      $region14: #{tpu_custom_call.1} parent=11 // pred_check_branch
        %120 = sbr.rel (%p118) target = $region16
      $region15: #{tpu_custom_call.1} parent=11 // pred_region
        _
      $region16: #{tpu_custom_call.1} parent=11 // pred_fallthru
        _
      // Predicated region
      $region17: #{tpu_custom_call.1} parent=11 // pred_check
        %p121 = pneg %p77
      $region18: #{tpu_custom_call.1} parent=11 // pred_check_branch
        %123 = sbr.rel (%p121) target = $region20
      $region19: #{tpu_custom_call.1} parent=11 // pred_region
        _
      $region20: #{tpu_custom_call.1} parent=11 // pred_fallthru
        _
    $region12: #{tpu_custom_call.1} parent=5 // pred_fallthru
      _
    %p124 = scmp.lt.s32.totalorder %s9, 4
    // Predicated region
    $region21: #{tpu_custom_call.1} parent=5 // pred_check
      %p125 = pneg %p124
    $region22: #{tpu_custom_call.1} parent=5 // pred_check_branch
      %127 = sbr.rel (%p125) target = $region24
    $region23: #{tpu_custom_call.1} parent=5 // pred_region
      // Predicated region
      $region25: #{tpu_custom_call.1} parent=23 // pred_check
        %p128 = pneg %p29
      $region26: #{tpu_custom_call.1} parent=23 // pred_check_branch
        %130 = sbr.rel (%p128) target = $region28
      $region27: #{tpu_custom_call.1} parent=23 // pred_region
        %s131 = smul.u32 32, %s9
        %p132 = scmp.lt.s32.totalorder %s131, 127
        %s133 = scalar_select %p132, %s131, 127
        %s134 = smul.addr %s133, 8
        %s135 = scalar_lea.vmem %s0, %s134
        %s136 = smul.u32 32, %s9
      $region28: #{tpu_custom_call.1} parent=23 // pred_fallthru
        _
    $region24: #{tpu_custom_call.1} parent=5 // pred_fallthru
      _
    %p137 = scmp.le.s32.totalorder 1, %s9
    %p138 = scmp.lt.s32.totalorder %s9, 5
    %p139 = pnand %p137, %p138
    %p140 = pneg %p139
    // Predicated region
    $region29: #{tpu_custom_call.1} parent=5 // pred_check
      _
    $region30: #{tpu_custom_call.1} parent=5 // pred_check_branch
      %142 = sbr.rel (%p139) target = $region32
    $region31: #{tpu_custom_call.1} parent=5 // pred_region
      %s143 = ssub.s32 %s9, 1
      %s144 = smul.u32 32, %s14
      %p145 = scmp.lt.s32.totalorder %s144, 127
      %s146 = scalar_select %p145, %s144, 127
      %s147 = smul.addr %s146, 8
      %s148 = scalar_lea.vmem %s0, %s147
      %p149 = pneg %p35
      %p150 = pneg %p32
      %p151 = pneg %p56
      %p152 = pneg %p53
      %p153 = pneg %p77
      %p154 = pneg %p74
      %p155 = pneg %p103
      %p156 = pneg %p100
      %s157 = smul.u32 32, %s14
      %p158 = scmp.lt.s32.totalorder %s157, 127
      %s159 = scalar_select %p158, %s157, 127
      %s160 = smul.addr %s159, 8
      %s161 = scalar_lea.vmem %s3, %s160
      %s162 = smul.u32 32, %s14
      %p163 = scmp.lt.s32.totalorder %s162, 127
      %s164 = scalar_select %p163, %s162, 127
      %s165 = smul.addr %s164, 8
      %s166 = scalar_lea.vmem %s0, %s165
      %s167 = smul.u32 32, %s14
      %s168 = smul.u32 32, %s14
      %p169 = scmp.lt.s32.totalorder %s168, 127
      %s170 = scalar_select %p169, %s168, 127
      %s171 = smul.addr %s170, 8
      %s172 = scalar_lea.vmem %s3, %s171
      %s173 = smul.u32 32, %s14
      %v174 = vld [vmem:[%s166] sm:$0xff]
      %v175 = vld [vmem:[%s166 + $0x8] sm:$0xff]
      %v176 = vld [vmem:[%s166 + $0x10] sm:$0xff]
      %v177 = vld [vmem:[%s166 + $0x18] sm:$0xff]
      %v178 = vld [vmem:[%s166 + $0x20] sm:$0xff]
      %v179 = vld [vmem:[%s166 + $0x28] sm:$0xff]
      %v180 = vld [vmem:[%s166 + $0x30] sm:$0xff]
      %v181 = vld [vmem:[%s166 + $0x38] sm:$0xff]
      %v182 = vld [vmem:[%s166 + $0x40] sm:$0xff]
      %v183 = vld [vmem:[%s166 + $0x48] sm:$0xff]
      %v184 = vld [vmem:[%s166 + $0x50] sm:$0xff]
      %v185 = vld [vmem:[%s166 + $0x58] sm:$0xff]
      %v186 = vld [vmem:[%s166 + $0x60] sm:$0xff]
      %v187 = vld [vmem:[%s166 + $0x68] sm:$0xff]
      %v188 = vld [vmem:[%s166 + $0x70] sm:$0xff]
      %v189 = vld [vmem:[%s166 + $0x78] sm:$0xff]
      %v190 = vld [vmem:[%s166 + $0x80] sm:$0xff]
      %v191 = vld [vmem:[%s166 + $0x88] sm:$0xff]
      %v192 = vld [vmem:[%s166 + $0x90] sm:$0xff]
      %v193 = vld [vmem:[%s166 + $0x98] sm:$0xff]
      %v194 = vld [vmem:[%s166 + $0xa0] sm:$0xff]
      %v195 = vld [vmem:[%s166 + $0xa8] sm:$0xff]
      %v196 = vld [vmem:[%s166 + $0xb0] sm:$0xff]
      %v197 = vld [vmem:[%s166 + $0xb8] sm:$0xff]
      %v198 = vld [vmem:[%s166 + $0xc0] sm:$0xff]
      %v199 = vld [vmem:[%s166 + $0xc8] sm:$0xff]
      %v200 = vld [vmem:[%s166 + $0xd0] sm:$0xff]
      %v201 = vld [vmem:[%s166 + $0xd8] sm:$0xff]
      %v202 = vld [vmem:[%s166 + $0xe0] sm:$0xff]
      %v203 = vld [vmem:[%s166 + $0xe8] sm:$0xff]
      %v204 = vld [vmem:[%s166 + $0xf0] sm:$0xff]
      %v205 = vld [vmem:[%s166 + $0xf8] sm:$0xff]
      %v206 = vld [vmem:[%s1] sm:$0x7]
      %208 = vset.pattern.permute.xlu0 0
      %209 = vperm.xlu0 %208, %v174
      %v210 = vpop.permute.xlu0 %209
      %213 = vset.pattern.permute.xlu0 0
      %214 = vperm.xlu0 %213, %v175
      %v215 = vpop.permute.xlu0 %214
      %218 = vset.pattern.permute.xlu0 0
      %219 = vperm.xlu0 %218, %v176
      %v220 = vpop.permute.xlu0 %219
      %223 = vset.pattern.permute.xlu0 0
      %224 = vperm.xlu0 %223, %v177
      %v225 = vpop.permute.xlu0 %224
      %228 = vset.pattern.permute.xlu0 0
      %229 = vperm.xlu0 %228, %v178
      %v230 = vpop.permute.xlu0 %229
      %233 = vset.pattern.permute.xlu0 0
      %234 = vperm.xlu0 %233, %v179
      %v235 = vpop.permute.xlu0 %234
      %238 = vset.pattern.permute.xlu0 0
      %239 = vperm.xlu0 %238, %v180
      %v240 = vpop.permute.xlu0 %239
      %243 = vset.pattern.permute.xlu0 0
      %244 = vperm.xlu0 %243, %v181
      %v245 = vpop.permute.xlu0 %244
      %248 = vset.pattern.permute.xlu0 0
      %249 = vperm.xlu0 %248, %v182
      %v250 = vpop.permute.xlu0 %249
      %253 = vset.pattern.permute.xlu0 0
      %254 = vperm.xlu0 %253, %v183
      %v255 = vpop.permute.xlu0 %254
      %258 = vset.pattern.permute.xlu0 0
      %259 = vperm.xlu0 %258, %v184
      %v260 = vpop.permute.xlu0 %259
      %263 = vset.pattern.permute.xlu0 0
      %264 = vperm.xlu0 %263, %v185
      %v265 = vpop.permute.xlu0 %264
      %268 = vset.pattern.permute.xlu0 0
      %269 = vperm.xlu0 %268, %v186
      %v270 = vpop.permute.xlu0 %269
      %273 = vset.pattern.permute.xlu0 0
      %274 = vperm.xlu0 %273, %v187
      %v275 = vpop.permute.xlu0 %274
      %278 = vset.pattern.permute.xlu0 0
      %279 = vperm.xlu0 %278, %v188
      %v280 = vpop.permute.xlu0 %279
      %283 = vset.pattern.permute.xlu0 0
      %284 = vperm.xlu0 %283, %v189
      %v285 = vpop.permute.xlu0 %284
      %288 = vset.pattern.permute.xlu0 0
      %289 = vperm.xlu0 %288, %v190
      %v290 = vpop.permute.xlu0 %289
      %293 = vset.pattern.permute.xlu0 0
      %294 = vperm.xlu0 %293, %v191
      %v295 = vpop.permute.xlu0 %294
      %298 = vset.pattern.permute.xlu0 0
      %299 = vperm.xlu0 %298, %v192
      %v300 = vpop.permute.xlu0 %299
      %303 = vset.pattern.permute.xlu0 0
      %304 = vperm.xlu0 %303, %v193
      %v305 = vpop.permute.xlu0 %304
      %308 = vset.pattern.permute.xlu0 0
      %309 = vperm.xlu0 %308, %v194
      %v310 = vpop.permute.xlu0 %309
      %313 = vset.pattern.permute.xlu0 0
      %314 = vperm.xlu0 %313, %v195
      %v315 = vpop.permute.xlu0 %314
      %318 = vset.pattern.permute.xlu0 0
      %319 = vperm.xlu0 %318, %v196
      %v320 = vpop.permute.xlu0 %319
      %323 = vset.pattern.permute.xlu0 0
      %324 = vperm.xlu0 %323, %v197
      %v325 = vpop.permute.xlu0 %324
      %328 = vset.pattern.permute.xlu0 0
      %329 = vperm.xlu0 %328, %v198
      %v330 = vpop.permute.xlu0 %329
      %333 = vset.pattern.permute.xlu0 0
      %334 = vperm.xlu0 %333, %v199
      %v335 = vpop.permute.xlu0 %334
      %338 = vset.pattern.permute.xlu0 0
      %339 = vperm.xlu0 %338, %v200
      %v340 = vpop.permute.xlu0 %339
      %343 = vset.pattern.permute.xlu0 0
      %344 = vperm.xlu0 %343, %v201
      %v345 = vpop.permute.xlu0 %344
      %348 = vset.pattern.permute.xlu0 0
      %349 = vperm.xlu0 %348, %v202
      %v350 = vpop.permute.xlu0 %349
      %353 = vset.pattern.permute.xlu0 0
      %354 = vperm.xlu0 %353, %v203
      %v355 = vpop.permute.xlu0 %354
      %358 = vset.pattern.permute.xlu0 0
      %359 = vperm.xlu0 %358, %v204
      %v360 = vpop.permute.xlu0 %359
      %363 = vset.pattern.permute.xlu0 0
      %364 = vperm.xlu0 %363, %v205
      %v365 = vpop.permute.xlu0 %364
      %v367 = vlaneseq
      %v368 = vshrl.u32 %v367, 7
      %v369 = vsub.s32 0, %v368
      %v370 = vrot.slane %v206, %v369
      %v371 = vmul.f32 %v210, %v370
      %v372 = vmul.f32 %v215, %v370
      %v373 = vmul.f32 %v220, %v370
      %v374 = vmul.f32 %v225, %v370
      %v375 = vmul.f32 %v230, %v370
      %v376 = vmul.f32 %v235, %v370
      %v377 = vmul.f32 %v240, %v370
      %v378 = vmul.f32 %v245, %v370
      %v379 = vmul.f32 %v250, %v370
      %v380 = vmul.f32 %v255, %v370
      %v381 = vmul.f32 %v260, %v370
      %v382 = vmul.f32 %v265, %v370
      %v383 = vmul.f32 %v270, %v370
      %v384 = vmul.f32 %v275, %v370
      %v385 = vmul.f32 %v280, %v370
      %v386 = vmul.f32 %v285, %v370
      %v387 = vmul.f32 %v290, %v370
      %v388 = vmul.f32 %v295, %v370
      %v389 = vmul.f32 %v300, %v370
      %v390 = vmul.f32 %v305, %v370
      %v391 = vmul.f32 %v310, %v370
      %v392 = vmul.f32 %v315, %v370
      %v393 = vmul.f32 %v320, %v370
      %v394 = vmul.f32 %v325, %v370
      %v395 = vmul.f32 %v330, %v370
      %v396 = vmul.f32 %v335, %v370
      %v397 = vmul.f32 %v340, %v370
      %v398 = vmul.f32 %v345, %v370
      %v399 = vmul.f32 %v350, %v370
      %v400 = vmul.f32 %v355, %v370
      %v401 = vmul.f32 %v360, %v370
      %v402 = vmul.f32 %v365, %v370
      %403 = vset.pattern.permute.xlu0 1
      %404 = vperm.xlu0 %403, %v174
      %v405 = vpop.permute.xlu0 %404
      %407 = vset.pattern.permute.xlu0 1
      %408 = vperm.xlu0 %407, %v175
      %v409 = vpop.permute.xlu0 %408
      %411 = vset.pattern.permute.xlu0 1
      %412 = vperm.xlu0 %411, %v176
      %v413 = vpop.permute.xlu0 %412
      %415 = vset.pattern.permute.xlu0 1
      %416 = vperm.xlu0 %415, %v177
      %v417 = vpop.permute.xlu0 %416
      %419 = vset.pattern.permute.xlu0 1
      %420 = vperm.xlu0 %419, %v178
      %v421 = vpop.permute.xlu0 %420
      %423 = vset.pattern.permute.xlu0 1
      %424 = vperm.xlu0 %423, %v179
      %v425 = vpop.permute.xlu0 %424
      %427 = vset.pattern.permute.xlu0 1
      %428 = vperm.xlu0 %427, %v180
      %v429 = vpop.permute.xlu0 %428
      %431 = vset.pattern.permute.xlu0 1
      %432 = vperm.xlu0 %431, %v181
      %v433 = vpop.permute.xlu0 %432
      %435 = vset.pattern.permute.xlu0 1
      %436 = vperm.xlu0 %435, %v182
      %v437 = vpop.permute.xlu0 %436
      %439 = vset.pattern.permute.xlu0 1
      %440 = vperm.xlu0 %439, %v183
      %v441 = vpop.permute.xlu0 %440
      %443 = vset.pattern.permute.xlu0 1
      %444 = vperm.xlu0 %443, %v184
      %v445 = vpop.permute.xlu0 %444
      %447 = vset.pattern.permute.xlu0 1
      %448 = vperm.xlu0 %447, %v185
      %v449 = vpop.permute.xlu0 %448
      %451 = vset.pattern.permute.xlu0 1
      %452 = vperm.xlu0 %451, %v186
      %v453 = vpop.permute.xlu0 %452
      %455 = vset.pattern.permute.xlu0 1
      %456 = vperm.xlu0 %455, %v187
      %v457 = vpop.permute.xlu0 %456
      %459 = vset.pattern.permute.xlu0 1
      %460 = vperm.xlu0 %459, %v188
      %v461 = vpop.permute.xlu0 %460
      %463 = vset.pattern.permute.xlu0 1
      %464 = vperm.xlu0 %463, %v189
      %v465 = vpop.permute.xlu0 %464
      %467 = vset.pattern.permute.xlu0 1
      %468 = vperm.xlu0 %467, %v190
      %v469 = vpop.permute.xlu0 %468
      %471 = vset.pattern.permute.xlu0 1
      %472 = vperm.xlu0 %471, %v191
      %v473 = vpop.permute.xlu0 %472
      %475 = vset.pattern.permute.xlu0 1
      %476 = vperm.xlu0 %475, %v192
      %v477 = vpop.permute.xlu0 %476
      %479 = vset.pattern.permute.xlu0 1
      %480 = vperm.xlu0 %479, %v193
      %v481 = vpop.permute.xlu0 %480
      %483 = vset.pattern.permute.xlu0 1
      %484 = vperm.xlu0 %483, %v194
      %v485 = vpop.permute.xlu0 %484
      %487 = vset.pattern.permute.xlu0 1
      %488 = vperm.xlu0 %487, %v195
      %v489 = vpop.permute.xlu0 %488
      %491 = vset.pattern.permute.xlu0 1
      %492 = vperm.xlu0 %491, %v196
      %v493 = vpop.permute.xlu0 %492
      %495 = vset.pattern.permute.xlu0 1
      %496 = vperm.xlu0 %495, %v197
      %v497 = vpop.permute.xlu0 %496
      %499 = vset.pattern.permute.xlu0 1
      %500 = vperm.xlu0 %499, %v198
      %v501 = vpop.permute.xlu0 %500
      %503 = vset.pattern.permute.xlu0 1
      %504 = vperm.xlu0 %503, %v199
      %v505 = vpop.permute.xlu0 %504
      %507 = vset.pattern.permute.xlu0 1
      %508 = vperm.xlu0 %507, %v200
      %v509 = vpop.permute.xlu0 %508
      %511 = vset.pattern.permute.xlu0 1
      %512 = vperm.xlu0 %511, %v201
      %v513 = vpop.permute.xlu0 %512
      %515 = vset.pattern.permute.xlu0 1
      %516 = vperm.xlu0 %515, %v202
      %v517 = vpop.permute.xlu0 %516
      %519 = vset.pattern.permute.xlu0 1
      %520 = vperm.xlu0 %519, %v203
      %v521 = vpop.permute.xlu0 %520
      %523 = vset.pattern.permute.xlu0 1
      %524 = vperm.xlu0 %523, %v204
      %v525 = vpop.permute.xlu0 %524
      %527 = vset.pattern.permute.xlu0 1
      %528 = vperm.xlu0 %527, %v205
      %v529 = vpop.permute.xlu0 %528
      %v531 = vlaneseq
      %v532 = vshrl.u32 %v531, 7
      %v533 = vsub.s32 1, %v532
      %v534 = vrot.slane %v206, %v533
      %v535 = vmul.f32 %v405, %v534
      %v536 = vmul.f32 %v409, %v534
      %v537 = vmul.f32 %v413, %v534
      %v538 = vmul.f32 %v417, %v534
      %v539 = vmul.f32 %v421, %v534
      %v540 = vmul.f32 %v425, %v534
      %v541 = vmul.f32 %v429, %v534
      %v542 = vmul.f32 %v433, %v534
      %v543 = vmul.f32 %v437, %v534
      %v544 = vmul.f32 %v441, %v534
      %v545 = vmul.f32 %v445, %v534
      %v546 = vmul.f32 %v449, %v534
      %v547 = vmul.f32 %v453, %v534
      %v548 = vmul.f32 %v457, %v534
      %v549 = vmul.f32 %v461, %v534
      %v550 = vmul.f32 %v465, %v534
      %v551 = vmul.f32 %v469, %v534
      %v552 = vmul.f32 %v473, %v534
      %v553 = vmul.f32 %v477, %v534
      %v554 = vmul.f32 %v481, %v534
      %v555 = vmul.f32 %v485, %v534
      %v556 = vmul.f32 %v489, %v534
      %v557 = vmul.f32 %v493, %v534
      %v558 = vmul.f32 %v497, %v534
      %v559 = vmul.f32 %v501, %v534
      %v560 = vmul.f32 %v505, %v534
      %v561 = vmul.f32 %v509, %v534
      %v562 = vmul.f32 %v513, %v534
      %v563 = vmul.f32 %v517, %v534
      %v564 = vmul.f32 %v521, %v534
      %v565 = vmul.f32 %v525, %v534
      %v566 = vmul.f32 %v529, %v534
      %v567 = vadd.f32 %v371, %v535
      %v568 = vadd.f32 %v372, %v536
      %v569 = vadd.f32 %v373, %v537
      %v570 = vadd.f32 %v374, %v538
      %v571 = vadd.f32 %v375, %v539
      %v572 = vadd.f32 %v376, %v540
      %v573 = vadd.f32 %v377, %v541
      %v574 = vadd.f32 %v378, %v542
      %v575 = vadd.f32 %v379, %v543
      %v576 = vadd.f32 %v380, %v544
      %v577 = vadd.f32 %v381, %v545
      %v578 = vadd.f32 %v382, %v546
      %v579 = vadd.f32 %v383, %v547
      %v580 = vadd.f32 %v384, %v548
      %v581 = vadd.f32 %v385, %v549
      %v582 = vadd.f32 %v386, %v550
      %v583 = vadd.f32 %v387, %v551
      %v584 = vadd.f32 %v388, %v552
      %v585 = vadd.f32 %v389, %v553
      %v586 = vadd.f32 %v390, %v554
      %v587 = vadd.f32 %v391, %v555
      %v588 = vadd.f32 %v392, %v556
      %v589 = vadd.f32 %v393, %v557
      %v590 = vadd.f32 %v394, %v558
      %v591 = vadd.f32 %v395, %v559
      %v592 = vadd.f32 %v396, %v560
      %v593 = vadd.f32 %v397, %v561
      %v594 = vadd.f32 %v398, %v562
      %v595 = vadd.f32 %v399, %v563
      %v596 = vadd.f32 %v400, %v564
      %v597 = vadd.f32 %v401, %v565
      %v598 = vadd.f32 %v402, %v566
      %599 = vset.pattern.permute.xlu0 2
      %600 = vperm.xlu0 %599, %v174
      %v601 = vpop.permute.xlu0 %600
      %603 = vset.pattern.permute.xlu0 2
      %604 = vperm.xlu0 %603, %v175
      %v605 = vpop.permute.xlu0 %604
      %607 = vset.pattern.permute.xlu0 2
      %608 = vperm.xlu0 %607, %v176
      %v609 = vpop.permute.xlu0 %608
      %611 = vset.pattern.permute.xlu0 2
      %612 = vperm.xlu0 %611, %v177
      %v613 = vpop.permute.xlu0 %612
      %615 = vset.pattern.permute.xlu0 2
      %616 = vperm.xlu0 %615, %v178
      %v617 = vpop.permute.xlu0 %616
      %619 = vset.pattern.permute.xlu0 2
      %620 = vperm.xlu0 %619, %v179
      %v621 = vpop.permute.xlu0 %620
      %623 = vset.pattern.permute.xlu0 2
      %624 = vperm.xlu0 %623, %v180
      %v625 = vpop.permute.xlu0 %624
      %627 = vset.pattern.permute.xlu0 2
      %628 = vperm.xlu0 %627, %v181
      %v629 = vpop.permute.xlu0 %628
      %631 = vset.pattern.permute.xlu0 2
      %632 = vperm.xlu0 %631, %v182
      %v633 = vpop.permute.xlu0 %632
      %635 = vset.pattern.permute.xlu0 2
      %636 = vperm.xlu0 %635, %v183
      %v637 = vpop.permute.xlu0 %636
      %639 = vset.pattern.permute.xlu0 2
      %640 = vperm.xlu0 %639, %v184
      %v641 = vpop.permute.xlu0 %640
      %643 = vset.pattern.permute.xlu0 2
      %644 = vperm.xlu0 %643, %v185
      %v645 = vpop.permute.xlu0 %644
      %647 = vset.pattern.permute.xlu0 2
      %648 = vperm.xlu0 %647, %v186
      %v649 = vpop.permute.xlu0 %648
      %651 = vset.pattern.permute.xlu0 2
      %652 = vperm.xlu0 %651, %v187
      %v653 = vpop.permute.xlu0 %652
      %655 = vset.pattern.permute.xlu0 2
      %656 = vperm.xlu0 %655, %v188
      %v657 = vpop.permute.xlu0 %656
      %659 = vset.pattern.permute.xlu0 2
      %660 = vperm.xlu0 %659, %v189
      %v661 = vpop.permute.xlu0 %660
      %663 = vset.pattern.permute.xlu0 2
      %664 = vperm.xlu0 %663, %v190
      %v665 = vpop.permute.xlu0 %664
      %667 = vset.pattern.permute.xlu0 2
      %668 = vperm.xlu0 %667, %v191
      %v669 = vpop.permute.xlu0 %668
      %671 = vset.pattern.permute.xlu0 2
      %672 = vperm.xlu0 %671, %v192
      %v673 = vpop.permute.xlu0 %672
      %675 = vset.pattern.permute.xlu0 2
      %676 = vperm.xlu0 %675, %v193
      %v677 = vpop.permute.xlu0 %676
      %679 = vset.pattern.permute.xlu0 2
      %680 = vperm.xlu0 %679, %v194
      %v681 = vpop.permute.xlu0 %680
      %683 = vset.pattern.permute.xlu0 2
      %684 = vperm.xlu0 %683, %v195
      %v685 = vpop.permute.xlu0 %684
      %687 = vset.pattern.permute.xlu0 2
      %688 = vperm.xlu0 %687, %v196
      %v689 = vpop.permute.xlu0 %688
      %691 = vset.pattern.permute.xlu0 2
      %692 = vperm.xlu0 %691, %v197
      %v693 = vpop.permute.xlu0 %692
      %695 = vset.pattern.permute.xlu0 2
      %696 = vperm.xlu0 %695, %v198
      %v697 = vpop.permute.xlu0 %696
      %699 = vset.pattern.permute.xlu0 2
      %700 = vperm.xlu0 %699, %v199
      %v701 = vpop.permute.xlu0 %700
      %703 = vset.pattern.permute.xlu0 2
      %704 = vperm.xlu0 %703, %v200
      %v705 = vpop.permute.xlu0 %704
      %707 = vset.pattern.permute.xlu0 2
      %708 = vperm.xlu0 %707, %v201
      %v709 = vpop.permute.xlu0 %708
      %711 = vset.pattern.permute.xlu0 2
      %712 = vperm.xlu0 %711, %v202
      %v713 = vpop.permute.xlu0 %712
      %715 = vset.pattern.permute.xlu0 2
      %716 = vperm.xlu0 %715, %v203
      %v717 = vpop.permute.xlu0 %716
      %719 = vset.pattern.permute.xlu0 2
      %720 = vperm.xlu0 %719, %v204
      %v721 = vpop.permute.xlu0 %720
      %723 = vset.pattern.permute.xlu0 2
      %724 = vperm.xlu0 %723, %v205
      %v725 = vpop.permute.xlu0 %724
      %v727 = vlaneseq
      %v728 = vshrl.u32 %v727, 7
      %v729 = vsub.s32 2, %v728
      %v730 = vrot.slane %v206, %v729
      %v731 = vmul.f32 %v601, %v730
      %v732 = vmul.f32 %v605, %v730
      %v733 = vmul.f32 %v609, %v730
      %v734 = vmul.f32 %v613, %v730
      %v735 = vmul.f32 %v617, %v730
      %v736 = vmul.f32 %v621, %v730
      %v737 = vmul.f32 %v625, %v730
      %v738 = vmul.f32 %v629, %v730
      %v739 = vmul.f32 %v633, %v730
      %v740 = vmul.f32 %v637, %v730
      %v741 = vmul.f32 %v641, %v730
      %v742 = vmul.f32 %v645, %v730
      %v743 = vmul.f32 %v649, %v730
      %v744 = vmul.f32 %v653, %v730
      %v745 = vmul.f32 %v657, %v730
      %v746 = vmul.f32 %v661, %v730
      %v747 = vmul.f32 %v665, %v730
      %v748 = vmul.f32 %v669, %v730
      %v749 = vmul.f32 %v673, %v730
      %v750 = vmul.f32 %v677, %v730
      %v751 = vmul.f32 %v681, %v730
      %v752 = vmul.f32 %v685, %v730
      %v753 = vmul.f32 %v689, %v730
      %v754 = vmul.f32 %v693, %v730
      %v755 = vmul.f32 %v697, %v730
      %v756 = vmul.f32 %v701, %v730
      %v757 = vmul.f32 %v705, %v730
      %v758 = vmul.f32 %v709, %v730
      %v759 = vmul.f32 %v713, %v730
      %v760 = vmul.f32 %v717, %v730
      %v761 = vmul.f32 %v721, %v730
      %v762 = vmul.f32 %v725, %v730
      %v763 = vadd.f32 %v567, %v731
      %v764 = vadd.f32 %v568, %v732
      %v765 = vadd.f32 %v569, %v733
      %v766 = vadd.f32 %v570, %v734
      %v767 = vadd.f32 %v571, %v735
      %v768 = vadd.f32 %v572, %v736
      %v769 = vadd.f32 %v573, %v737
      %v770 = vadd.f32 %v574, %v738
      %v771 = vadd.f32 %v575, %v739
      %v772 = vadd.f32 %v576, %v740
      %v773 = vadd.f32 %v577, %v741
      %v774 = vadd.f32 %v578, %v742
      %v775 = vadd.f32 %v579, %v743
      %v776 = vadd.f32 %v580, %v744
      %v777 = vadd.f32 %v581, %v745
      %v778 = vadd.f32 %v582, %v746
      %v779 = vadd.f32 %v583, %v747
      %v780 = vadd.f32 %v584, %v748
      %v781 = vadd.f32 %v585, %v749
      %v782 = vadd.f32 %v586, %v750
      %v783 = vadd.f32 %v587, %v751
      %v784 = vadd.f32 %v588, %v752
      %v785 = vadd.f32 %v589, %v753
      %v786 = vadd.f32 %v590, %v754
      %v787 = vadd.f32 %v591, %v755
      %v788 = vadd.f32 %v592, %v756
      %v789 = vadd.f32 %v593, %v757
      %v790 = vadd.f32 %v594, %v758
      %v791 = vadd.f32 %v595, %v759
      %v792 = vadd.f32 %v596, %v760
      %v793 = vadd.f32 %v597, %v761
      %v794 = vadd.f32 %v598, %v762
      %v795 = vld [vmem:[%s2] sm:$0x1]
      %v796 = vlaneseq
      %v797 = vshrl.u32 %v796, 7
      %v798 = vsub.s32 0, %v797
      %v799 = vrot.slane %v795, %v798
      %v800 = vmul.f32 %v799, %v763
      %v801 = vmul.f32 %v799, %v764
      %v802 = vmul.f32 %v799, %v765
      %v803 = vmul.f32 %v799, %v766
      %v804 = vmul.f32 %v799, %v767
      %v805 = vmul.f32 %v799, %v768
      %v806 = vmul.f32 %v799, %v769
      %v807 = vmul.f32 %v799, %v770
      %v808 = vmul.f32 %v799, %v771
      %v809 = vmul.f32 %v799, %v772
      %v810 = vmul.f32 %v799, %v773
      %v811 = vmul.f32 %v799, %v774
      %v812 = vmul.f32 %v799, %v775
      %v813 = vmul.f32 %v799, %v776
      %v814 = vmul.f32 %v799, %v777
      %v815 = vmul.f32 %v799, %v778
      %v816 = vmul.f32 %v799, %v779
      %v817 = vmul.f32 %v799, %v780
      %v818 = vmul.f32 %v799, %v781
      %v819 = vmul.f32 %v799, %v782
      %v820 = vmul.f32 %v799, %v783
      %v821 = vmul.f32 %v799, %v784
      %v822 = vmul.f32 %v799, %v785
      %v823 = vmul.f32 %v799, %v786
      %v824 = vmul.f32 %v799, %v787
      %v825 = vmul.f32 %v799, %v788
      %v826 = vmul.f32 %v799, %v789
      %v827 = vmul.f32 %v799, %v790
      %v828 = vmul.f32 %v799, %v791
      %v829 = vmul.f32 %v799, %v792
      %v830 = vmul.f32 %v799, %v793
      %v831 = vmul.f32 %v799, %v794
      %v832 = vld [vmem:[%s2 + $0x1] sm:$0x1]
      %v833 = vand.u32 2147483647, %v763
      %vm834 = vcmp.le.f32.partialorder %v833, 0.7853982
      %vm835 = vcmp.lt.s32.totalorder %v763, 0
      %v836 = vand.u32 %v763, 2139095040
      %v837 = vshrl.u32 %v836, 23
      %v838 = vsub.s32 %v837, 127
      %v839 = vand.u32 2147483647, %v763
      %v840 = vand.u32 %v839, 8388607
      %v841 = vor.u32 %v840, 8388608
      %v842 = vsub.s32 0, %v841
      %v843 = vadd.s32 %v838, 1
      %vm844 = vcmp.gt.s32.totalorder %v843, 0
      %v845 = vsel %vm844, %v843, 0
      %v846 = vshrl.u32 %v845, 5
      %v847 = vand.u32 %v845, 31
      %v848 = vsub.s32 32, %v847
      %v849 = vshrl.u32 683565275, %v848
      %v850 = vshll.u32 683565275, %v847
      %v851 = vshrl.u32 2475754826, %v848
      %v852 = vor.u32 %v850, %v851
      %v853 = vshll.u32 2475754826, %v847
      %v854 = vshrl.u32 2131351028, %v848
      %v855 = vor.u32 %v853, %v854
      %v856 = vshll.u32 2131351028, %v847
      %v857 = vshrl.u32 2102212464, %v848
      %v858 = vor.u32 %v856, %v857
      %v859 = vshll.u32 2102212464, %v847
      %v860 = vshrl.u32 920167782, %v848
      %v861 = vor.u32 %v859, %v860
      %v862 = vshll.u32 920167782, %v847
      %v863 = vshrl.u32 1326507024, %v848
      %v864 = vor.u32 %v862, %v863
      %vm865 = vcmp.lt.s32.totalorder %v846, 1
      %vm866 = vcmp.lt.s32.totalorder %v846, 2
      %vm867 = vcmp.lt.s32.totalorder %v846, 3
      %vm868 = vcmp.lt.s32.totalorder %v846, 4
      %v869 = vsel %vm865, %v849, %v852
      %v870 = vsel %vm868, %v858, 2102212464
      %v871 = vsel %vm867, %v855, %v870
      %v872 = vsel %vm866, %v869, %v871
      %v873 = vsel %vm865, %v852, %v855
      %v874 = vsel %vm868, %v861, 920167782
      %v875 = vsel %vm867, %v858, %v874
      %v876 = vsel %vm866, %v873, %v875
      %v877 = vsel %vm865, %v855, %v858
      %v878 = vsel %vm868, %v864, 1326507024
      %v879 = vsel %vm867, %v861, %v878
      %v880 = vsel %vm866, %v877, %v879
      %v881 = vshll.u32 %v841, 8
      %v882 = vmul.u32.u64.compose %v881, %v880
      %v883 = vextract.low.u32 %v882
      %v884 = vextract.high.u32 %v882
      %v885 = vmul.u32.u64.compose %v881, %v876
      %v886 = vextract.low.u32 %v885
      %v887 = vextract.high.u32 %v885
      %v888 = vmul.u32 %v881, %v872
      %v889 = vadd.s32 %v884, %v886
      %vm890 = vc.u32 %v884, %v886
      %v891 = vadd.s32 %v887, 1
      %v892 = vsel %vm890, %v891, %v887
      %v893 = vadd.s32 %v888, %v892
      %v894 = vadd.s32 %v893, 536870912
      %v895 = vshrl.u32 %v894, 30
      %v896 = vshll.u32 %v895, 30
      %v897 = vsub.s32 %v893, %v896
      %vm898 = vcmp.lt.s32.totalorder %v897, 0
      %v899 = vsub.s32 0, %v897
      %v900 = vsel %vm898, %v899, %v897
      %v901 = vclz %v900
      %v902 = vsub.s32 %v901, 2
      %vm903 = vcmp.gt.s32.totalorder 0, %v902
      %v904 = vsel %vm903, 0, %v902
      %v905 = vsub.s32 32, %v904
      %v906 = vshll.u32 %v897, %v904
      %v907 = vshrl.u32 %v889, %v905
      %v908 = vor.u32 %v906, %v907
      %v909 = vsub.s32 4294967266, %v904
      %v910 = vadd.s32 %v909, 127
      %v911 = vshll.u32 %v910, 23
      %v912 = vor.u32 4788187, %v911
      %v913 = vand.u32 2147483647, %v912
      %v915 = vcvt.s32.f32 %v908
      %v916 = vmul.f32 %v915, %v913
      %v917 = vxor.u32 %v916, 2147483648
      %v918 = vsel %vm835, %v917, %v916
      %v919 = vsub.s32 4, %v895
      %v920 = vsel %vm835, %v919, %v895
      %v921 = vsel %vm834, %v763, %v918
      %v922 = vsel %vm834, 0, %v920
      %v923 = vcosq.f32.pop %v921
      %v924 = vsinq.f32.pop %v921
      %vm925 = vweird.f32 %v763
      %v926 = vadd.s32 %v922, 3
      %v927 = vand.u32 %v926, 3
      %vm928 = vcmp.lt.s32.totalorder %v927, 2
      %vm929 = vcmp.eq.s32.totalorder %v927, 0
      %v930 = vxor.u32 %v924, 2147483648
      %v931 = vsel %vm929, %v923, %v930
      %vm932 = vcmp.eq.s32.totalorder %v927, 2
      %v933 = vxor.u32 %v923, 2147483648
      %v934 = vsel %vm932, %v933, %v924
      %v935 = vsel %vm928, %v931, %v934
      %v936 = vsel %vm925, nan, %v935
      %v937 = vand.u32 2147483647, %v764
      %vm938 = vcmp.le.f32.partialorder %v937, 0.7853982
      %vm939 = vcmp.lt.s32.totalorder %v764, 0
      %v940 = vand.u32 %v764, 2139095040
      %v941 = vshrl.u32 %v940, 23
      %v942 = vsub.s32 %v941, 127
      %v943 = vand.u32 2147483647, %v764
      %v944 = vand.u32 %v943, 8388607
      %v945 = vor.u32 %v944, 8388608
      %v946 = vsub.s32 0, %v945
      %v947 = vadd.s32 %v942, 1
      %vm948 = vcmp.gt.s32.totalorder %v947, 0
      %v949 = vsel %vm948, %v947, 0
      %v950 = vshrl.u32 %v949, 5
      %v951 = vand.u32 %v949, 31
      %v952 = vsub.s32 32, %v951
      %v953 = vshrl.u32 683565275, %v952
      %v954 = vshll.u32 683565275, %v951
      %v955 = vshrl.u32 2475754826, %v952
      %v956 = vor.u32 %v954, %v955
      %v957 = vshll.u32 2475754826, %v951
      %v958 = vshrl.u32 2131351028, %v952
      %v959 = vor.u32 %v957, %v958
      %v960 = vshll.u32 2131351028, %v951
      %v961 = vshrl.u32 2102212464, %v952
      %v962 = vor.u32 %v960, %v961
      %v963 = vshll.u32 2102212464, %v951
      %v964 = vshrl.u32 920167782, %v952
      %v965 = vor.u32 %v963, %v964
      %v966 = vshll.u32 920167782, %v951
      %v967 = vshrl.u32 1326507024, %v952
      %v968 = vor.u32 %v966, %v967
      %vm969 = vcmp.lt.s32.totalorder %v950, 1
      %vm970 = vcmp.lt.s32.totalorder %v950, 2
      %vm971 = vcmp.lt.s32.totalorder %v950, 3
      %vm972 = vcmp.lt.s32.totalorder %v950, 4
      %v973 = vsel %vm969, %v953, %v956
      %v974 = vsel %vm972, %v962, 2102212464
      %v975 = vsel %vm971, %v959, %v974
      %v976 = vsel %vm970, %v973, %v975
      %v977 = vsel %vm969, %v956, %v959
      %v978 = vsel %vm972, %v965, 920167782
      %v979 = vsel %vm971, %v962, %v978
      %v980 = vsel %vm970, %v977, %v979
      %v981 = vsel %vm969, %v959, %v962
      %v982 = vsel %vm972, %v968, 1326507024
      %v983 = vsel %vm971, %v965, %v982
      %v984 = vsel %vm970, %v981, %v983
      %v985 = vshll.u32 %v945, 8
      %v986 = vmul.u32.u64.compose %v985, %v984
      %v987 = vextract.low.u32 %v986
      %v988 = vextract.high.u32 %v986
      %v989 = vmul.u32.u64.compose %v985, %v980
      %v990 = vextract.low.u32 %v989
      %v991 = vextract.high.u32 %v989
      %v992 = vmul.u32 %v985, %v976
      %v993 = vadd.s32 %v988, %v990
      %vm994 = vc.u32 %v988, %v990
      %v995 = vadd.s32 %v991, 1
      %v996 = vsel %vm994, %v995, %v991
      %v997 = vadd.s32 %v992, %v996
      %v998 = vadd.s32 %v997, 536870912
      %v999 = vshrl.u32 %v998, 30
      %v1000 = vshll.u32 %v999, 30
      %v1001 = vsub.s32 %v997, %v1000
      %vm1002 = vcmp.lt.s32.totalorder %v1001, 0
      %v1003 = vsub.s32 0, %v1001
      %v1004 = vsel %vm1002, %v1003, %v1001
      %v1005 = vclz %v1004
      %v1006 = vsub.s32 %v1005, 2
      %vm1007 = vcmp.gt.s32.totalorder 0, %v1006
      %v1008 = vsel %vm1007, 0, %v1006
      %v1009 = vsub.s32 32, %v1008
      %v1010 = vshll.u32 %v1001, %v1008
      %v1011 = vshrl.u32 %v993, %v1009
      %v1012 = vor.u32 %v1010, %v1011
      %v1013 = vsub.s32 4294967266, %v1008
      %v1014 = vadd.s32 %v1013, 127
      %v1015 = vshll.u32 %v1014, 23
      %v1016 = vor.u32 4788187, %v1015
      %v1017 = vand.u32 2147483647, %v1016
      %v1019 = vcvt.s32.f32 %v1012
      %v1020 = vmul.f32 %v1019, %v1017
      %v1021 = vxor.u32 %v1020, 2147483648
      %v1022 = vsel %vm939, %v1021, %v1020
      %v1023 = vsub.s32 4, %v999
      %v1024 = vsel %vm939, %v1023, %v999
      %v1025 = vsel %vm938, %v764, %v1022
      %v1026 = vsel %vm938, 0, %v1024
      %v1027 = vcosq.f32.pop %v1025
      %v1028 = vsinq.f32.pop %v1025
      %vm1029 = vweird.f32 %v764
      %v1030 = vadd.s32 %v1026, 3
      %v1031 = vand.u32 %v1030, 3
      %vm1032 = vcmp.lt.s32.totalorder %v1031, 2
      %vm1033 = vcmp.eq.s32.totalorder %v1031, 0
      %v1034 = vxor.u32 %v1028, 2147483648
      %v1035 = vsel %vm1033, %v1027, %v1034
      %vm1036 = vcmp.eq.s32.totalorder %v1031, 2
      %v1037 = vxor.u32 %v1027, 2147483648
      %v1038 = vsel %vm1036, %v1037, %v1028
      %v1039 = vsel %vm1032, %v1035, %v1038
      %v1040 = vsel %vm1029, nan, %v1039
      %v1041 = vand.u32 2147483647, %v765
      %vm1042 = vcmp.le.f32.partialorder %v1041, 0.7853982
      %vm1043 = vcmp.lt.s32.totalorder %v765, 0
      %v1044 = vand.u32 %v765, 2139095040
      %v1045 = vshrl.u32 %v1044, 23
      %v1046 = vsub.s32 %v1045, 127
      %v1047 = vand.u32 2147483647, %v765
      %v1048 = vand.u32 %v1047, 8388607
      %v1049 = vor.u32 %v1048, 8388608
      %v1050 = vsub.s32 0, %v1049
      %v1051 = vadd.s32 %v1046, 1
      %vm1052 = vcmp.gt.s32.totalorder %v1051, 0
      %v1053 = vsel %vm1052, %v1051, 0
      %v1054 = vshrl.u32 %v1053, 5
      %v1055 = vand.u32 %v1053, 31
      %v1056 = vsub.s32 32, %v1055
      %v1057 = vshrl.u32 683565275, %v1056
      %v1058 = vshll.u32 683565275, %v1055
      %v1059 = vshrl.u32 2475754826, %v1056
      %v1060 = vor.u32 %v1058, %v1059
      %v1061 = vshll.u32 2475754826, %v1055
      %v1062 = vshrl.u32 2131351028, %v1056
      %v1063 = vor.u32 %v1061, %v1062
      %v1064 = vshll.u32 2131351028, %v1055
      %v1065 = vshrl.u32 2102212464, %v1056
      %v1066 = vor.u32 %v1064, %v1065
      %v1067 = vshll.u32 2102212464, %v1055
      %v1068 = vshrl.u32 920167782, %v1056
      %v1069 = vor.u32 %v1067, %v1068
      %v1070 = vshll.u32 920167782, %v1055
      %v1071 = vshrl.u32 1326507024, %v1056
      %v1072 = vor.u32 %v1070, %v1071
      %vm1073 = vcmp.lt.s32.totalorder %v1054, 1
      %vm1074 = vcmp.lt.s32.totalorder %v1054, 2
      %vm1075 = vcmp.lt.s32.totalorder %v1054, 3
      %vm1076 = vcmp.lt.s32.totalorder %v1054, 4
      %v1077 = vsel %vm1073, %v1057, %v1060
      %v1078 = vsel %vm1076, %v1066, 2102212464
      %v1079 = vsel %vm1075, %v1063, %v1078
      %v1080 = vsel %vm1074, %v1077, %v1079
      %v1081 = vsel %vm1073, %v1060, %v1063
      %v1082 = vsel %vm1076, %v1069, 920167782
      %v1083 = vsel %vm1075, %v1066, %v1082
      %v1084 = vsel %vm1074, %v1081, %v1083
      %v1085 = vsel %vm1073, %v1063, %v1066
      %v1086 = vsel %vm1076, %v1072, 1326507024
      %v1087 = vsel %vm1075, %v1069, %v1086
      %v1088 = vsel %vm1074, %v1085, %v1087
      %v1089 = vshll.u32 %v1049, 8
      %v1090 = vmul.u32.u64.compose %v1089, %v1088
      %v1091 = vextract.low.u32 %v1090
      %v1092 = vextract.high.u32 %v1090
      %v1093 = vmul.u32.u64.compose %v1089, %v1084
      %v1094 = vextract.low.u32 %v1093
      %v1095 = vextract.high.u32 %v1093
      %v1096 = vmul.u32 %v1089, %v1080
      %v1097 = vadd.s32 %v1092, %v1094
      %vm1098 = vc.u32 %v1092, %v1094
      %v1099 = vadd.s32 %v1095, 1
      %v1100 = vsel %vm1098, %v1099, %v1095
      %v1101 = vadd.s32 %v1096, %v1100
      %v1102 = vadd.s32 %v1101, 536870912
      %v1103 = vshrl.u32 %v1102, 30
      %v1104 = vshll.u32 %v1103, 30
      %v1105 = vsub.s32 %v1101, %v1104
      %vm1106 = vcmp.lt.s32.totalorder %v1105, 0
      %v1107 = vsub.s32 0, %v1105
      %v1108 = vsel %vm1106, %v1107, %v1105
      %v1109 = vclz %v1108
      %v1110 = vsub.s32 %v1109, 2
      %vm1111 = vcmp.gt.s32.totalorder 0, %v1110
      %v1112 = vsel %vm1111, 0, %v1110
      %v1113 = vsub.s32 32, %v1112
      %v1114 = vshll.u32 %v1105, %v1112
      %v1115 = vshrl.u32 %v1097, %v1113
      %v1116 = vor.u32 %v1114, %v1115
      %v1117 = vsub.s32 4294967266, %v1112
      %v1118 = vadd.s32 %v1117, 127
      %v1119 = vshll.u32 %v1118, 23
      %v1120 = vor.u32 4788187, %v1119
      %v1121 = vand.u32 2147483647, %v1120
      %v1123 = vcvt.s32.f32 %v1116
      %v1124 = vmul.f32 %v1123, %v1121
      %v1125 = vxor.u32 %v1124, 2147483648
      %v1126 = vsel %vm1043, %v1125, %v1124
      %v1127 = vsub.s32 4, %v1103
      %v1128 = vsel %vm1043, %v1127, %v1103
      %v1129 = vsel %vm1042, %v765, %v1126
      %v1130 = vsel %vm1042, 0, %v1128
      %v1131 = vcosq.f32.pop %v1129
      %v1132 = vsinq.f32.pop %v1129
      %vm1133 = vweird.f32 %v765
      %v1134 = vadd.s32 %v1130, 3
      %v1135 = vand.u32 %v1134, 3
      %vm1136 = vcmp.lt.s32.totalorder %v1135, 2
      %vm1137 = vcmp.eq.s32.totalorder %v1135, 0
      %v1138 = vxor.u32 %v1132, 2147483648
      %v1139 = vsel %vm1137, %v1131, %v1138
      %vm1140 = vcmp.eq.s32.totalorder %v1135, 2
      %v1141 = vxor.u32 %v1131, 2147483648
      %v1142 = vsel %vm1140, %v1141, %v1132
      %v1143 = vsel %vm1136, %v1139, %v1142
      %v1144 = vsel %vm1133, nan, %v1143
      %v1145 = vand.u32 2147483647, %v766
      %vm1146 = vcmp.le.f32.partialorder %v1145, 0.7853982
      %vm1147 = vcmp.lt.s32.totalorder %v766, 0
      %v1148 = vand.u32 %v766, 2139095040
      %v1149 = vshrl.u32 %v1148, 23
      %v1150 = vsub.s32 %v1149, 127
      %v1151 = vand.u32 2147483647, %v766
      %v1152 = vand.u32 %v1151, 8388607
      %v1153 = vor.u32 %v1152, 8388608
      %v1154 = vsub.s32 0, %v1153
      %v1155 = vadd.s32 %v1150, 1
      %vm1156 = vcmp.gt.s32.totalorder %v1155, 0
      %v1157 = vsel %vm1156, %v1155, 0
      %v1158 = vshrl.u32 %v1157, 5
      %v1159 = vand.u32 %v1157, 31
      %v1160 = vsub.s32 32, %v1159
      %v1161 = vshrl.u32 683565275, %v1160
      %v1162 = vshll.u32 683565275, %v1159
      %v1163 = vshrl.u32 2475754826, %v1160
      %v1164 = vor.u32 %v1162, %v1163
      %v1165 = vshll.u32 2475754826, %v1159
      %v1166 = vshrl.u32 2131351028, %v1160
      %v1167 = vor.u32 %v1165, %v1166
      %v1168 = vshll.u32 2131351028, %v1159
      %v1169 = vshrl.u32 2102212464, %v1160
      %v1170 = vor.u32 %v1168, %v1169
      %v1171 = vshll.u32 2102212464, %v1159
      %v1172 = vshrl.u32 920167782, %v1160
      %v1173 = vor.u32 %v1171, %v1172
      %v1174 = vshll.u32 920167782, %v1159
      %v1175 = vshrl.u32 1326507024, %v1160
      %v1176 = vor.u32 %v1174, %v1175
      %vm1177 = vcmp.lt.s32.totalorder %v1158, 1
      %vm1178 = vcmp.lt.s32.totalorder %v1158, 2
      %vm1179 = vcmp.lt.s32.totalorder %v1158, 3
      %vm1180 = vcmp.lt.s32.totalorder %v1158, 4
      %v1181 = vsel %vm1177, %v1161, %v1164
      %v1182 = vsel %vm1180, %v1170, 2102212464
      %v1183 = vsel %vm1179, %v1167, %v1182
      %v1184 = vsel %vm1178, %v1181, %v1183
      %v1185 = vsel %vm1177, %v1164, %v1167
      %v1186 = vsel %vm1180, %v1173, 920167782
      %v1187 = vsel %vm1179, %v1170, %v1186
      %v1188 = vsel %vm1178, %v1185, %v1187
      %v1189 = vsel %vm1177, %v1167, %v1170
      %v1190 = vsel %vm1180, %v1176, 1326507024
      %v1191 = vsel %vm1179, %v1173, %v1190
      %v1192 = vsel %vm1178, %v1189, %v1191
      %v1193 = vshll.u32 %v1153, 8
      %v1194 = vmul.u32.u64.compose %v1193, %v1192
      %v1195 = vextract.low.u32 %v1194
      %v1196 = vextract.high.u32 %v1194
      %v1197 = vmul.u32.u64.compose %v1193, %v1188
      %v1198 = vextract.low.u32 %v1197
      %v1199 = vextract.high.u32 %v1197
      %v1200 = vmul.u32 %v1193, %v1184
      %v1201 = vadd.s32 %v1196, %v1198
      %vm1202 = vc.u32 %v1196, %v1198
      %v1203 = vadd.s32 %v1199, 1
      %v1204 = vsel %vm1202, %v1203, %v1199
      %v1205 = vadd.s32 %v1200, %v1204
      %v1206 = vadd.s32 %v1205, 536870912
      %v1207 = vshrl.u32 %v1206, 30
      %v1208 = vshll.u32 %v1207, 30
      %v1209 = vsub.s32 %v1205, %v1208
      %vm1210 = vcmp.lt.s32.totalorder %v1209, 0
      %v1211 = vsub.s32 0, %v1209
      %v1212 = vsel %vm1210, %v1211, %v1209
      %v1213 = vclz %v1212
      %v1214 = vsub.s32 %v1213, 2
      %vm1215 = vcmp.gt.s32.totalorder 0, %v1214
      %v1216 = vsel %vm1215, 0, %v1214
      %v1217 = vsub.s32 32, %v1216
      %v1218 = vshll.u32 %v1209, %v1216
      %v1219 = vshrl.u32 %v1201, %v1217
      %v1220 = vor.u32 %v1218, %v1219
      %v1221 = vsub.s32 4294967266, %v1216
      %v1222 = vadd.s32 %v1221, 127
      %v1223 = vshll.u32 %v1222, 23
      %v1224 = vor.u32 4788187, %v1223
      %v1225 = vand.u32 2147483647, %v1224
      %v1227 = vcvt.s32.f32 %v1220
      %v1228 = vmul.f32 %v1227, %v1225
      %v1229 = vxor.u32 %v1228, 2147483648
      %v1230 = vsel %vm1147, %v1229, %v1228
      %v1231 = vsub.s32 4, %v1207
      %v1232 = vsel %vm1147, %v1231, %v1207
      %v1233 = vsel %vm1146, %v766, %v1230
      %v1234 = vsel %vm1146, 0, %v1232
      %v1235 = vcosq.f32.pop %v1233
      %v1236 = vsinq.f32.pop %v1233
      %vm1237 = vweird.f32 %v766
      %v1238 = vadd.s32 %v1234, 3
      %v1239 = vand.u32 %v1238, 3
      %vm1240 = vcmp.lt.s32.totalorder %v1239, 2
      %vm1241 = vcmp.eq.s32.totalorder %v1239, 0
      %v1242 = vxor.u32 %v1236, 2147483648
      %v1243 = vsel %vm1241, %v1235, %v1242
      %vm1244 = vcmp.eq.s32.totalorder %v1239, 2
      %v1245 = vxor.u32 %v1235, 2147483648
      %v1246 = vsel %vm1244, %v1245, %v1236
      %v1247 = vsel %vm1240, %v1243, %v1246
      %v1248 = vsel %vm1237, nan, %v1247
      %v1249 = vand.u32 2147483647, %v767
      %vm1250 = vcmp.le.f32.partialorder %v1249, 0.7853982
      %vm1251 = vcmp.lt.s32.totalorder %v767, 0
      %v1252 = vand.u32 %v767, 2139095040
      %v1253 = vshrl.u32 %v1252, 23
      %v1254 = vsub.s32 %v1253, 127
      %v1255 = vand.u32 2147483647, %v767
      %v1256 = vand.u32 %v1255, 8388607
      %v1257 = vor.u32 %v1256, 8388608
      %v1258 = vsub.s32 0, %v1257
      %v1259 = vadd.s32 %v1254, 1
      %vm1260 = vcmp.gt.s32.totalorder %v1259, 0
      %v1261 = vsel %vm1260, %v1259, 0
      %v1262 = vshrl.u32 %v1261, 5
      %v1263 = vand.u32 %v1261, 31
      %v1264 = vsub.s32 32, %v1263
      %v1265 = vshrl.u32 683565275, %v1264
      %v1266 = vshll.u32 683565275, %v1263
      %v1267 = vshrl.u32 2475754826, %v1264
      %v1268 = vor.u32 %v1266, %v1267
      %v1269 = vshll.u32 2475754826, %v1263
      %v1270 = vshrl.u32 2131351028, %v1264
      %v1271 = vor.u32 %v1269, %v1270
      %v1272 = vshll.u32 2131351028, %v1263
      %v1273 = vshrl.u32 2102212464, %v1264
      %v1274 = vor.u32 %v1272, %v1273
      %v1275 = vshll.u32 2102212464, %v1263
      %v1276 = vshrl.u32 920167782, %v1264
      %v1277 = vor.u32 %v1275, %v1276
      %v1278 = vshll.u32 920167782, %v1263
      %v1279 = vshrl.u32 1326507024, %v1264
      %v1280 = vor.u32 %v1278, %v1279
      %vm1281 = vcmp.lt.s32.totalorder %v1262, 1
      %vm1282 = vcmp.lt.s32.totalorder %v1262, 2
      %vm1283 = vcmp.lt.s32.totalorder %v1262, 3
      %vm1284 = vcmp.lt.s32.totalorder %v1262, 4
      %v1285 = vsel %vm1281, %v1265, %v1268
      %v1286 = vsel %vm1284, %v1274, 2102212464
      %v1287 = vsel %vm1283, %v1271, %v1286
      %v1288 = vsel %vm1282, %v1285, %v1287
      %v1289 = vsel %vm1281, %v1268, %v1271
      %v1290 = vsel %vm1284, %v1277, 920167782
      %v1291 = vsel %vm1283, %v1274, %v1290
      %v1292 = vsel %vm1282, %v1289, %v1291
      %v1293 = vsel %vm1281, %v1271, %v1274
      %v1294 = vsel %vm1284, %v1280, 1326507024
      %v1295 = vsel %vm1283, %v1277, %v1294
      %v1296 = vsel %vm1282, %v1293, %v1295
      %v1297 = vshll.u32 %v1257, 8
      %v1298 = vmul.u32.u64.compose %v1297, %v1296
      %v1299 = vextract.low.u32 %v1298
      %v1300 = vextract.high.u32 %v1298
      %v1301 = vmul.u32.u64.compose %v1297, %v1292
      %v1302 = vextract.low.u32 %v1301
      %v1303 = vextract.high.u32 %v1301
      %v1304 = vmul.u32 %v1297, %v1288
      %v1305 = vadd.s32 %v1300, %v1302
      %vm1306 = vc.u32 %v1300, %v1302
      %v1307 = vadd.s32 %v1303, 1
      %v1308 = vsel %vm1306, %v1307, %v1303
      %v1309 = vadd.s32 %v1304, %v1308
      %v1310 = vadd.s32 %v1309, 536870912
      %v1311 = vshrl.u32 %v1310, 30
      %v1312 = vshll.u32 %v1311, 30
      %v1313 = vsub.s32 %v1309, %v1312
      %vm1314 = vcmp.lt.s32.totalorder %v1313, 0
      %v1315 = vsub.s32 0, %v1313
      %v1316 = vsel %vm1314, %v1315, %v1313
      %v1317 = vclz %v1316
      %v1318 = vsub.s32 %v1317, 2
      %vm1319 = vcmp.gt.s32.totalorder 0, %v1318
      %v1320 = vsel %vm1319, 0, %v1318
      %v1321 = vsub.s32 32, %v1320
      %v1322 = vshll.u32 %v1313, %v1320
      %v1323 = vshrl.u32 %v1305, %v1321
      %v1324 = vor.u32 %v1322, %v1323
      %v1325 = vsub.s32 4294967266, %v1320
      %v1326 = vadd.s32 %v1325, 127
      %v1327 = vshll.u32 %v1326, 23
      %v1328 = vor.u32 4788187, %v1327
      %v1329 = vand.u32 2147483647, %v1328
      %v1331 = vcvt.s32.f32 %v1324
      %v1332 = vmul.f32 %v1331, %v1329
      %v1333 = vxor.u32 %v1332, 2147483648
      %v1334 = vsel %vm1251, %v1333, %v1332
      %v1335 = vsub.s32 4, %v1311
      %v1336 = vsel %vm1251, %v1335, %v1311
      %v1337 = vsel %vm1250, %v767, %v1334
      %v1338 = vsel %vm1250, 0, %v1336
      %v1339 = vcosq.f32.pop %v1337
      %v1340 = vsinq.f32.pop %v1337
      %vm1341 = vweird.f32 %v767
      %v1342 = vadd.s32 %v1338, 3
      %v1343 = vand.u32 %v1342, 3
      %vm1344 = vcmp.lt.s32.totalorder %v1343, 2
      %vm1345 = vcmp.eq.s32.totalorder %v1343, 0
      %v1346 = vxor.u32 %v1340, 2147483648
      %v1347 = vsel %vm1345, %v1339, %v1346
      %vm1348 = vcmp.eq.s32.totalorder %v1343, 2
      %v1349 = vxor.u32 %v1339, 2147483648
      %v1350 = vsel %vm1348, %v1349, %v1340
      %v1351 = vsel %vm1344, %v1347, %v1350
      %v1352 = vsel %vm1341, nan, %v1351
      %v1353 = vand.u32 2147483647, %v768
      %vm1354 = vcmp.le.f32.partialorder %v1353, 0.7853982
      %vm1355 = vcmp.lt.s32.totalorder %v768, 0
      %v1356 = vand.u32 %v768, 2139095040
      %v1357 = vshrl.u32 %v1356, 23
      %v1358 = vsub.s32 %v1357, 127
      %v1359 = vand.u32 2147483647, %v768
      %v1360 = vand.u32 %v1359, 8388607
      %v1361 = vor.u32 %v1360, 8388608
      %v1362 = vsub.s32 0, %v1361
      %v1363 = vadd.s32 %v1358, 1
      %vm1364 = vcmp.gt.s32.totalorder %v1363, 0
      %v1365 = vsel %vm1364, %v1363, 0
      %v1366 = vshrl.u32 %v1365, 5
      %v1367 = vand.u32 %v1365, 31
      %v1368 = vsub.s32 32, %v1367
      %v1369 = vshrl.u32 683565275, %v1368
      %v1370 = vshll.u32 683565275, %v1367
      %v1371 = vshrl.u32 2475754826, %v1368
      %v1372 = vor.u32 %v1370, %v1371
      %v1373 = vshll.u32 2475754826, %v1367
      %v1374 = vshrl.u32 2131351028, %v1368
      %v1375 = vor.u32 %v1373, %v1374
      %v1376 = vshll.u32 2131351028, %v1367
      %v1377 = vshrl.u32 2102212464, %v1368
      %v1378 = vor.u32 %v1376, %v1377
      %v1379 = vshll.u32 2102212464, %v1367
      %v1380 = vshrl.u32 920167782, %v1368
      %v1381 = vor.u32 %v1379, %v1380
      %v1382 = vshll.u32 920167782, %v1367
      %v1383 = vshrl.u32 1326507024, %v1368
      %v1384 = vor.u32 %v1382, %v1383
      %vm1385 = vcmp.lt.s32.totalorder %v1366, 1
      %vm1386 = vcmp.lt.s32.totalorder %v1366, 2
      %vm1387 = vcmp.lt.s32.totalorder %v1366, 3
      %vm1388 = vcmp.lt.s32.totalorder %v1366, 4
      %v1389 = vsel %vm1385, %v1369, %v1372
      %v1390 = vsel %vm1388, %v1378, 2102212464
      %v1391 = vsel %vm1387, %v1375, %v1390
      %v1392 = vsel %vm1386, %v1389, %v1391
      %v1393 = vsel %vm1385, %v1372, %v1375
      %v1394 = vsel %vm1388, %v1381, 920167782
      %v1395 = vsel %vm1387, %v1378, %v1394
      %v1396 = vsel %vm1386, %v1393, %v1395
      %v1397 = vsel %vm1385, %v1375, %v1378
      %v1398 = vsel %vm1388, %v1384, 1326507024
      %v1399 = vsel %vm1387, %v1381, %v1398
      %v1400 = vsel %vm1386, %v1397, %v1399
      %v1401 = vshll.u32 %v1361, 8
      %v1402 = vmul.u32.u64.compose %v1401, %v1400
      %v1403 = vextract.low.u32 %v1402
      %v1404 = vextract.high.u32 %v1402
      %v1405 = vmul.u32.u64.compose %v1401, %v1396
      %v1406 = vextract.low.u32 %v1405
      %v1407 = vextract.high.u32 %v1405
      %v1408 = vmul.u32 %v1401, %v1392
      %v1409 = vadd.s32 %v1404, %v1406
      %vm1410 = vc.u32 %v1404, %v1406
      %v1411 = vadd.s32 %v1407, 1
      %v1412 = vsel %vm1410, %v1411, %v1407
      %v1413 = vadd.s32 %v1408, %v1412
      %v1414 = vadd.s32 %v1413, 536870912
      %v1415 = vshrl.u32 %v1414, 30
      %v1416 = vshll.u32 %v1415, 30
      %v1417 = vsub.s32 %v1413, %v1416
      %vm1418 = vcmp.lt.s32.totalorder %v1417, 0
      %v1419 = vsub.s32 0, %v1417
      %v1420 = vsel %vm1418, %v1419, %v1417
      %v1421 = vclz %v1420
      %v1422 = vsub.s32 %v1421, 2
      %vm1423 = vcmp.gt.s32.totalorder 0, %v1422
      %v1424 = vsel %vm1423, 0, %v1422
      %v1425 = vsub.s32 32, %v1424
      %v1426 = vshll.u32 %v1417, %v1424
      %v1427 = vshrl.u32 %v1409, %v1425
      %v1428 = vor.u32 %v1426, %v1427
      %v1429 = vsub.s32 4294967266, %v1424
      %v1430 = vadd.s32 %v1429, 127
      %v1431 = vshll.u32 %v1430, 23
      %v1432 = vor.u32 4788187, %v1431
      %v1433 = vand.u32 2147483647, %v1432
      %v1435 = vcvt.s32.f32 %v1428
      %v1436 = vmul.f32 %v1435, %v1433
      %v1437 = vxor.u32 %v1436, 2147483648
      %v1438 = vsel %vm1355, %v1437, %v1436
      %v1439 = vsub.s32 4, %v1415
      %v1440 = vsel %vm1355, %v1439, %v1415
      %v1441 = vsel %vm1354, %v768, %v1438
      %v1442 = vsel %vm1354, 0, %v1440
      %v1443 = vcosq.f32.pop %v1441
      %v1444 = vsinq.f32.pop %v1441
      %vm1445 = vweird.f32 %v768
      %v1446 = vadd.s32 %v1442, 3
      %v1447 = vand.u32 %v1446, 3
      %vm1448 = vcmp.lt.s32.totalorder %v1447, 2
      %vm1449 = vcmp.eq.s32.totalorder %v1447, 0
      %v1450 = vxor.u32 %v1444, 2147483648
      %v1451 = vsel %vm1449, %v1443, %v1450
      %vm1452 = vcmp.eq.s32.totalorder %v1447, 2
      %v1453 = vxor.u32 %v1443, 2147483648
      %v1454 = vsel %vm1452, %v1453, %v1444
      %v1455 = vsel %vm1448, %v1451, %v1454
      %v1456 = vsel %vm1445, nan, %v1455
      %v1457 = vand.u32 2147483647, %v769
      %vm1458 = vcmp.le.f32.partialorder %v1457, 0.7853982
      %vm1459 = vcmp.lt.s32.totalorder %v769, 0
      %v1460 = vand.u32 %v769, 2139095040
      %v1461 = vshrl.u32 %v1460, 23
      %v1462 = vsub.s32 %v1461, 127
      %v1463 = vand.u32 2147483647, %v769
      %v1464 = vand.u32 %v1463, 8388607
      %v1465 = vor.u32 %v1464, 8388608
      %v1466 = vsub.s32 0, %v1465
      %v1467 = vadd.s32 %v1462, 1
      %vm1468 = vcmp.gt.s32.totalorder %v1467, 0
      %v1469 = vsel %vm1468, %v1467, 0
      %v1470 = vshrl.u32 %v1469, 5
      %v1471 = vand.u32 %v1469, 31
      %v1472 = vsub.s32 32, %v1471
      %v1473 = vshrl.u32 683565275, %v1472
      %v1474 = vshll.u32 683565275, %v1471
      %v1475 = vshrl.u32 2475754826, %v1472
      %v1476 = vor.u32 %v1474, %v1475
      %v1477 = vshll.u32 2475754826, %v1471
      %v1478 = vshrl.u32 2131351028, %v1472
      %v1479 = vor.u32 %v1477, %v1478
      %v1480 = vshll.u32 2131351028, %v1471
      %v1481 = vshrl.u32 2102212464, %v1472
      %v1482 = vor.u32 %v1480, %v1481
      %v1483 = vshll.u32 2102212464, %v1471
      %v1484 = vshrl.u32 920167782, %v1472
      %v1485 = vor.u32 %v1483, %v1484
      %v1486 = vshll.u32 920167782, %v1471
      %v1487 = vshrl.u32 1326507024, %v1472
      %v1488 = vor.u32 %v1486, %v1487
      %vm1489 = vcmp.lt.s32.totalorder %v1470, 1
      %vm1490 = vcmp.lt.s32.totalorder %v1470, 2
      %vm1491 = vcmp.lt.s32.totalorder %v1470, 3
      %vm1492 = vcmp.lt.s32.totalorder %v1470, 4
      %v1493 = vsel %vm1489, %v1473, %v1476
      %v1494 = vsel %vm1492, %v1482, 2102212464
      %v1495 = vsel %vm1491, %v1479, %v1494
      %v1496 = vsel %vm1490, %v1493, %v1495
      %v1497 = vsel %vm1489, %v1476, %v1479
      %v1498 = vsel %vm1492, %v1485, 920167782
      %v1499 = vsel %vm1491, %v1482, %v1498
      %v1500 = vsel %vm1490, %v1497, %v1499
      %v1501 = vsel %vm1489, %v1479, %v1482
      %v1502 = vsel %vm1492, %v1488, 1326507024
      %v1503 = vsel %vm1491, %v1485, %v1502
      %v1504 = vsel %vm1490, %v1501, %v1503
      %v1505 = vshll.u32 %v1465, 8
      %v1506 = vmul.u32.u64.compose %v1505, %v1504
      %v1507 = vextract.low.u32 %v1506
      %v1508 = vextract.high.u32 %v1506
      %v1509 = vmul.u32.u64.compose %v1505, %v1500
      %v1510 = vextract.low.u32 %v1509
      %v1511 = vextract.high.u32 %v1509
      %v1512 = vmul.u32 %v1505, %v1496
      %v1513 = vadd.s32 %v1508, %v1510
      %vm1514 = vc.u32 %v1508, %v1510
      %v1515 = vadd.s32 %v1511, 1
      %v1516 = vsel %vm1514, %v1515, %v1511
      %v1517 = vadd.s32 %v1512, %v1516
      %v1518 = vadd.s32 %v1517, 536870912
      %v1519 = vshrl.u32 %v1518, 30
      %v1520 = vshll.u32 %v1519, 30
      %v1521 = vsub.s32 %v1517, %v1520
      %vm1522 = vcmp.lt.s32.totalorder %v1521, 0
      %v1523 = vsub.s32 0, %v1521
      %v1524 = vsel %vm1522, %v1523, %v1521
      %v1525 = vclz %v1524
      %v1526 = vsub.s32 %v1525, 2
      %vm1527 = vcmp.gt.s32.totalorder 0, %v1526
      %v1528 = vsel %vm1527, 0, %v1526
      %v1529 = vsub.s32 32, %v1528
      %v1530 = vshll.u32 %v1521, %v1528
      %v1531 = vshrl.u32 %v1513, %v1529
      %v1532 = vor.u32 %v1530, %v1531
      %v1533 = vsub.s32 4294967266, %v1528
      %v1534 = vadd.s32 %v1533, 127
      %v1535 = vshll.u32 %v1534, 23
      %v1536 = vor.u32 4788187, %v1535
      %v1537 = vand.u32 2147483647, %v1536
      %v1539 = vcvt.s32.f32 %v1532
      %v1540 = vmul.f32 %v1539, %v1537
      %v1541 = vxor.u32 %v1540, 2147483648
      %v1542 = vsel %vm1459, %v1541, %v1540
      %v1543 = vsub.s32 4, %v1519
      %v1544 = vsel %vm1459, %v1543, %v1519
      %v1545 = vsel %vm1458, %v769, %v1542
      %v1546 = vsel %vm1458, 0, %v1544
      %v1547 = vcosq.f32.pop %v1545
      %v1548 = vsinq.f32.pop %v1545
      %vm1549 = vweird.f32 %v769
      %v1550 = vadd.s32 %v1546, 3
      %v1551 = vand.u32 %v1550, 3
      %vm1552 = vcmp.lt.s32.totalorder %v1551, 2
      %vm1553 = vcmp.eq.s32.totalorder %v1551, 0
      %v1554 = vxor.u32 %v1548, 2147483648
      %v1555 = vsel %vm1553, %v1547, %v1554
      %vm1556 = vcmp.eq.s32.totalorder %v1551, 2
      %v1557 = vxor.u32 %v1547, 2147483648
      %v1558 = vsel %vm1556, %v1557, %v1548
      %v1559 = vsel %vm1552, %v1555, %v1558
      %v1560 = vsel %vm1549, nan, %v1559
      %v1561 = vand.u32 2147483647, %v770
      %vm1562 = vcmp.le.f32.partialorder %v1561, 0.7853982
      %vm1563 = vcmp.lt.s32.totalorder %v770, 0
      %v1564 = vand.u32 %v770, 2139095040
      %v1565 = vshrl.u32 %v1564, 23
      %v1566 = vsub.s32 %v1565, 127
      %v1567 = vand.u32 2147483647, %v770
      %v1568 = vand.u32 %v1567, 8388607
      %v1569 = vor.u32 %v1568, 8388608
      %v1570 = vsub.s32 0, %v1569
      %v1571 = vadd.s32 %v1566, 1
      %vm1572 = vcmp.gt.s32.totalorder %v1571, 0
      %v1573 = vsel %vm1572, %v1571, 0
      %v1574 = vshrl.u32 %v1573, 5
      %v1575 = vand.u32 %v1573, 31
      %v1576 = vsub.s32 32, %v1575
      %v1577 = vshrl.u32 683565275, %v1576
      %v1578 = vshll.u32 683565275, %v1575
      %v1579 = vshrl.u32 2475754826, %v1576
      %v1580 = vor.u32 %v1578, %v1579
      %v1581 = vshll.u32 2475754826, %v1575
      %v1582 = vshrl.u32 2131351028, %v1576
      %v1583 = vor.u32 %v1581, %v1582
      %v1584 = vshll.u32 2131351028, %v1575
      %v1585 = vshrl.u32 2102212464, %v1576
      %v1586 = vor.u32 %v1584, %v1585
      %v1587 = vshll.u32 2102212464, %v1575
      %v1588 = vshrl.u32 920167782, %v1576
      %v1589 = vor.u32 %v1587, %v1588
      %v1590 = vshll.u32 920167782, %v1575
      %v1591 = vshrl.u32 1326507024, %v1576
      %v1592 = vor.u32 %v1590, %v1591
      %vm1593 = vcmp.lt.s32.totalorder %v1574, 1
      %vm1594 = vcmp.lt.s32.totalorder %v1574, 2
      %vm1595 = vcmp.lt.s32.totalorder %v1574, 3
      %vm1596 = vcmp.lt.s32.totalorder %v1574, 4
      %v1597 = vsel %vm1593, %v1577, %v1580
      %v1598 = vsel %vm1596, %v1586, 2102212464
      %v1599 = vsel %vm1595, %v1583, %v1598
      %v1600 = vsel %vm1594, %v1597, %v1599
      %v1601 = vsel %vm1593, %v1580, %v1583
      %v1602 = vsel %vm1596, %v1589, 920167782
      %v1603 = vsel %vm1595, %v1586, %v1602
      %v1604 = vsel %vm1594, %v1601, %v1603
      %v1605 = vsel %vm1593, %v1583, %v1586
      %v1606 = vsel %vm1596, %v1592, 1326507024
      %v1607 = vsel %vm1595, %v1589, %v1606
      %v1608 = vsel %vm1594, %v1605, %v1607
      %v1609 = vshll.u32 %v1569, 8
      %v1610 = vmul.u32.u64.compose %v1609, %v1608
      %v1611 = vextract.low.u32 %v1610
      %v1612 = vextract.high.u32 %v1610
      %v1613 = vmul.u32.u64.compose %v1609, %v1604
      %v1614 = vextract.low.u32 %v1613
      %v1615 = vextract.high.u32 %v1613
      %v1616 = vmul.u32 %v1609, %v1600
      %v1617 = vadd.s32 %v1612, %v1614
      %vm1618 = vc.u32 %v1612, %v1614
      %v1619 = vadd.s32 %v1615, 1
      %v1620 = vsel %vm1618, %v1619, %v1615
      %v1621 = vadd.s32 %v1616, %v1620
      %v1622 = vadd.s32 %v1621, 536870912
      %v1623 = vshrl.u32 %v1622, 30
      %v1624 = vshll.u32 %v1623, 30
      %v1625 = vsub.s32 %v1621, %v1624
      %vm1626 = vcmp.lt.s32.totalorder %v1625, 0
      %v1627 = vsub.s32 0, %v1625
      %v1628 = vsel %vm1626, %v1627, %v1625
      %v1629 = vclz %v1628
      %v1630 = vsub.s32 %v1629, 2
      %vm1631 = vcmp.gt.s32.totalorder 0, %v1630
      %v1632 = vsel %vm1631, 0, %v1630
      %v1633 = vsub.s32 32, %v1632
      %v1634 = vshll.u32 %v1625, %v1632
      %v1635 = vshrl.u32 %v1617, %v1633
      %v1636 = vor.u32 %v1634, %v1635
      %v1637 = vsub.s32 4294967266, %v1632
      %v1638 = vadd.s32 %v1637, 127
      %v1639 = vshll.u32 %v1638, 23
      %v1640 = vor.u32 4788187, %v1639
      %v1641 = vand.u32 2147483647, %v1640
      %v1643 = vcvt.s32.f32 %v1636
      %v1644 = vmul.f32 %v1643, %v1641
      %v1645 = vxor.u32 %v1644, 2147483648
      %v1646 = vsel %vm1563, %v1645, %v1644
      %v1647 = vsub.s32 4, %v1623
      %v1648 = vsel %vm1563, %v1647, %v1623
      %v1649 = vsel %vm1562, %v770, %v1646
      %v1650 = vsel %vm1562, 0, %v1648
      %v1651 = vcosq.f32.pop %v1649
      %v1652 = vsinq.f32.pop %v1649
      %vm1653 = vweird.f32 %v770
      %v1654 = vadd.s32 %v1650, 3
      %v1655 = vand.u32 %v1654, 3
      %vm1656 = vcmp.lt.s32.totalorder %v1655, 2
      %vm1657 = vcmp.eq.s32.totalorder %v1655, 0
      %v1658 = vxor.u32 %v1652, 2147483648
      %v1659 = vsel %vm1657, %v1651, %v1658
      %vm1660 = vcmp.eq.s32.totalorder %v1655, 2
      %v1661 = vxor.u32 %v1651, 2147483648
      %v1662 = vsel %vm1660, %v1661, %v1652
      %v1663 = vsel %vm1656, %v1659, %v1662
      %v1664 = vsel %vm1653, nan, %v1663
      %v1665 = vand.u32 2147483647, %v771
      %vm1666 = vcmp.le.f32.partialorder %v1665, 0.7853982
      %vm1667 = vcmp.lt.s32.totalorder %v771, 0
      %v1668 = vand.u32 %v771, 2139095040
      %v1669 = vshrl.u32 %v1668, 23
      %v1670 = vsub.s32 %v1669, 127
      %v1671 = vand.u32 2147483647, %v771
      %v1672 = vand.u32 %v1671, 8388607
      %v1673 = vor.u32 %v1672, 8388608
      %v1674 = vsub.s32 0, %v1673
      %v1675 = vadd.s32 %v1670, 1
      %vm1676 = vcmp.gt.s32.totalorder %v1675, 0
      %v1677 = vsel %vm1676, %v1675, 0
      %v1678 = vshrl.u32 %v1677, 5
      %v1679 = vand.u32 %v1677, 31
      %v1680 = vsub.s32 32, %v1679
      %v1681 = vshrl.u32 683565275, %v1680
      %v1682 = vshll.u32 683565275, %v1679
      %v1683 = vshrl.u32 2475754826, %v1680
      %v1684 = vor.u32 %v1682, %v1683
      %v1685 = vshll.u32 2475754826, %v1679
      %v1686 = vshrl.u32 2131351028, %v1680
      %v1687 = vor.u32 %v1685, %v1686
      %v1688 = vshll.u32 2131351028, %v1679
      %v1689 = vshrl.u32 2102212464, %v1680
      %v1690 = vor.u32 %v1688, %v1689
      %v1691 = vshll.u32 2102212464, %v1679
      %v1692 = vshrl.u32 920167782, %v1680
      %v1693 = vor.u32 %v1691, %v1692
      %v1694 = vshll.u32 920167782, %v1679
      %v1695 = vshrl.u32 1326507024, %v1680
      %v1696 = vor.u32 %v1694, %v1695
      %vm1697 = vcmp.lt.s32.totalorder %v1678, 1
      %vm1698 = vcmp.lt.s32.totalorder %v1678, 2
      %vm1699 = vcmp.lt.s32.totalorder %v1678, 3
      %vm1700 = vcmp.lt.s32.totalorder %v1678, 4
      %v1701 = vsel %vm1697, %v1681, %v1684
      %v1702 = vsel %vm1700, %v1690, 2102212464
      %v1703 = vsel %vm1699, %v1687, %v1702
      %v1704 = vsel %vm1698, %v1701, %v1703
      %v1705 = vsel %vm1697, %v1684, %v1687
      %v1706 = vsel %vm1700, %v1693, 920167782
      %v1707 = vsel %vm1699, %v1690, %v1706
      %v1708 = vsel %vm1698, %v1705, %v1707
      %v1709 = vsel %vm1697, %v1687, %v1690
      %v1710 = vsel %vm1700, %v1696, 1326507024
      %v1711 = vsel %vm1699, %v1693, %v1710
      %v1712 = vsel %vm1698, %v1709, %v1711
      %v1713 = vshll.u32 %v1673, 8
      %v1714 = vmul.u32.u64.compose %v1713, %v1712
      %v1715 = vextract.low.u32 %v1714
      %v1716 = vextract.high.u32 %v1714
      %v1717 = vmul.u32.u64.compose %v1713, %v1708
      %v1718 = vextract.low.u32 %v1717
      %v1719 = vextract.high.u32 %v1717
      %v1720 = vmul.u32 %v1713, %v1704
      %v1721 = vadd.s32 %v1716, %v1718
      %vm1722 = vc.u32 %v1716, %v1718
      %v1723 = vadd.s32 %v1719, 1
      %v1724 = vsel %vm1722, %v1723, %v1719
      %v1725 = vadd.s32 %v1720, %v1724
      %v1726 = vadd.s32 %v1725, 536870912
      %v1727 = vshrl.u32 %v1726, 30
      %v1728 = vshll.u32 %v1727, 30
      %v1729 = vsub.s32 %v1725, %v1728
      %vm1730 = vcmp.lt.s32.totalorder %v1729, 0
      %v1731 = vsub.s32 0, %v1729
      %v1732 = vsel %vm1730, %v1731, %v1729
      %v1733 = vclz %v1732
      %v1734 = vsub.s32 %v1733, 2
      %vm1735 = vcmp.gt.s32.totalorder 0, %v1734
      %v1736 = vsel %vm1735, 0, %v1734
      %v1737 = vsub.s32 32, %v1736
      %v1738 = vshll.u32 %v1729, %v1736
      %v1739 = vshrl.u32 %v1721, %v1737
      %v1740 = vor.u32 %v1738, %v1739
      %v1741 = vsub.s32 4294967266, %v1736
      %v1742 = vadd.s32 %v1741, 127
      %v1743 = vshll.u32 %v1742, 23
      %v1744 = vor.u32 4788187, %v1743
      %v1745 = vand.u32 2147483647, %v1744
      %v1747 = vcvt.s32.f32 %v1740
      %v1748 = vmul.f32 %v1747, %v1745
      %v1749 = vxor.u32 %v1748, 2147483648
      %v1750 = vsel %vm1667, %v1749, %v1748
      %v1751 = vsub.s32 4, %v1727
      %v1752 = vsel %vm1667, %v1751, %v1727
      %v1753 = vsel %vm1666, %v771, %v1750
      %v1754 = vsel %vm1666, 0, %v1752
      %v1755 = vcosq.f32.pop %v1753
      %v1756 = vsinq.f32.pop %v1753
      %vm1757 = vweird.f32 %v771
      %v1758 = vadd.s32 %v1754, 3
      %v1759 = vand.u32 %v1758, 3
      %vm1760 = vcmp.lt.s32.totalorder %v1759, 2
      %vm1761 = vcmp.eq.s32.totalorder %v1759, 0
      %v1762 = vxor.u32 %v1756, 2147483648
      %v1763 = vsel %vm1761, %v1755, %v1762
      %vm1764 = vcmp.eq.s32.totalorder %v1759, 2
      %v1765 = vxor.u32 %v1755, 2147483648
      %v1766 = vsel %vm1764, %v1765, %v1756
      %v1767 = vsel %vm1760, %v1763, %v1766
      %v1768 = vsel %vm1757, nan, %v1767
      %v1769 = vand.u32 2147483647, %v772
      %vm1770 = vcmp.le.f32.partialorder %v1769, 0.7853982
      %vm1771 = vcmp.lt.s32.totalorder %v772, 0
      %v1772 = vand.u32 %v772, 2139095040
      %v1773 = vshrl.u32 %v1772, 23
      %v1774 = vsub.s32 %v1773, 127
      %v1775 = vand.u32 2147483647, %v772
      %v1776 = vand.u32 %v1775, 8388607
      %v1777 = vor.u32 %v1776, 8388608
      %v1778 = vsub.s32 0, %v1777
      %v1779 = vadd.s32 %v1774, 1
      %vm1780 = vcmp.gt.s32.totalorder %v1779, 0
      %v1781 = vsel %vm1780, %v1779, 0
      %v1782 = vshrl.u32 %v1781, 5
      %v1783 = vand.u32 %v1781, 31
      %v1784 = vsub.s32 32, %v1783
      %v1785 = vshrl.u32 683565275, %v1784
      %v1786 = vshll.u32 683565275, %v1783
      %v1787 = vshrl.u32 2475754826, %v1784
      %v1788 = vor.u32 %v1786, %v1787
      %v1789 = vshll.u32 2475754826, %v1783
      %v1790 = vshrl.u32 2131351028, %v1784
      %v1791 = vor.u32 %v1789, %v1790
      %v1792 = vshll.u32 2131351028, %v1783
      %v1793 = vshrl.u32 2102212464, %v1784
      %v1794 = vor.u32 %v1792, %v1793
      %v1795 = vshll.u32 2102212464, %v1783
      %v1796 = vshrl.u32 920167782, %v1784
      %v1797 = vor.u32 %v1795, %v1796
      %v1798 = vshll.u32 920167782, %v1783
      %v1799 = vshrl.u32 1326507024, %v1784
      %v1800 = vor.u32 %v1798, %v1799
      %vm1801 = vcmp.lt.s32.totalorder %v1782, 1
      %vm1802 = vcmp.lt.s32.totalorder %v1782, 2
      %vm1803 = vcmp.lt.s32.totalorder %v1782, 3
      %vm1804 = vcmp.lt.s32.totalorder %v1782, 4
      %v1805 = vsel %vm1801, %v1785, %v1788
      %v1806 = vsel %vm1804, %v1794, 2102212464
      %v1807 = vsel %vm1803, %v1791, %v1806
      %v1808 = vsel %vm1802, %v1805, %v1807
      %v1809 = vsel %vm1801, %v1788, %v1791
      %v1810 = vsel %vm1804, %v1797, 920167782
      %v1811 = vsel %vm1803, %v1794, %v1810
      %v1812 = vsel %vm1802, %v1809, %v1811
      %v1813 = vsel %vm1801, %v1791, %v1794
      %v1814 = vsel %vm1804, %v1800, 1326507024
      %v1815 = vsel %vm1803, %v1797, %v1814
      %v1816 = vsel %vm1802, %v1813, %v1815
      %v1817 = vshll.u32 %v1777, 8
      %v1818 = vmul.u32.u64.compose %v1817, %v1816
      %v1819 = vextract.low.u32 %v1818
      %v1820 = vextract.high.u32 %v1818
      %v1821 = vmul.u32.u64.compose %v1817, %v1812
      %v1822 = vextract.low.u32 %v1821
      %v1823 = vextract.high.u32 %v1821
      %v1824 = vmul.u32 %v1817, %v1808
      %v1825 = vadd.s32 %v1820, %v1822
      %vm1826 = vc.u32 %v1820, %v1822
      %v1827 = vadd.s32 %v1823, 1
      %v1828 = vsel %vm1826, %v1827, %v1823
      %v1829 = vadd.s32 %v1824, %v1828
      %v1830 = vadd.s32 %v1829, 536870912
      %v1831 = vshrl.u32 %v1830, 30
      %v1832 = vshll.u32 %v1831, 30
      %v1833 = vsub.s32 %v1829, %v1832
      %vm1834 = vcmp.lt.s32.totalorder %v1833, 0
      %v1835 = vsub.s32 0, %v1833
      %v1836 = vsel %vm1834, %v1835, %v1833
      %v1837 = vclz %v1836
      %v1838 = vsub.s32 %v1837, 2
      %vm1839 = vcmp.gt.s32.totalorder 0, %v1838
      %v1840 = vsel %vm1839, 0, %v1838
      %v1841 = vsub.s32 32, %v1840
      %v1842 = vshll.u32 %v1833, %v1840
      %v1843 = vshrl.u32 %v1825, %v1841
      %v1844 = vor.u32 %v1842, %v1843
      %v1845 = vsub.s32 4294967266, %v1840
      %v1846 = vadd.s32 %v1845, 127
      %v1847 = vshll.u32 %v1846, 23
      %v1848 = vor.u32 4788187, %v1847
      %v1849 = vand.u32 2147483647, %v1848
      %v1851 = vcvt.s32.f32 %v1844
      %v1852 = vmul.f32 %v1851, %v1849
      %v1853 = vxor.u32 %v1852, 2147483648
      %v1854 = vsel %vm1771, %v1853, %v1852
      %v1855 = vsub.s32 4, %v1831
      %v1856 = vsel %vm1771, %v1855, %v1831
      %v1857 = vsel %vm1770, %v772, %v1854
      %v1858 = vsel %vm1770, 0, %v1856
      %v1859 = vcosq.f32.pop %v1857
      %v1860 = vsinq.f32.pop %v1857
      %vm1861 = vweird.f32 %v772
      %v1862 = vadd.s32 %v1858, 3
      %v1863 = vand.u32 %v1862, 3
      %vm1864 = vcmp.lt.s32.totalorder %v1863, 2
      %vm1865 = vcmp.eq.s32.totalorder %v1863, 0
      %v1866 = vxor.u32 %v1860, 2147483648
      %v1867 = vsel %vm1865, %v1859, %v1866
      %vm1868 = vcmp.eq.s32.totalorder %v1863, 2
      %v1869 = vxor.u32 %v1859, 2147483648
      %v1870 = vsel %vm1868, %v1869, %v1860
      %v1871 = vsel %vm1864, %v1867, %v1870
      %v1872 = vsel %vm1861, nan, %v1871
      %v1873 = vand.u32 2147483647, %v773
      %vm1874 = vcmp.le.f32.partialorder %v1873, 0.7853982
      %vm1875 = vcmp.lt.s32.totalorder %v773, 0
      %v1876 = vand.u32 %v773, 2139095040
      %v1877 = vshrl.u32 %v1876, 23
      %v1878 = vsub.s32 %v1877, 127
      %v1879 = vand.u32 2147483647, %v773
      %v1880 = vand.u32 %v1879, 8388607
      %v1881 = vor.u32 %v1880, 8388608
      %v1882 = vsub.s32 0, %v1881
      %v1883 = vadd.s32 %v1878, 1
      %vm1884 = vcmp.gt.s32.totalorder %v1883, 0
      %v1885 = vsel %vm1884, %v1883, 0
      %v1886 = vshrl.u32 %v1885, 5
      %v1887 = vand.u32 %v1885, 31
      %v1888 = vsub.s32 32, %v1887
      %v1889 = vshrl.u32 683565275, %v1888
      %v1890 = vshll.u32 683565275, %v1887
      %v1891 = vshrl.u32 2475754826, %v1888
      %v1892 = vor.u32 %v1890, %v1891
      %v1893 = vshll.u32 2475754826, %v1887
      %v1894 = vshrl.u32 2131351028, %v1888
      %v1895 = vor.u32 %v1893, %v1894
      %v1896 = vshll.u32 2131351028, %v1887
      %v1897 = vshrl.u32 2102212464, %v1888
      %v1898 = vor.u32 %v1896, %v1897
      %v1899 = vshll.u32 2102212464, %v1887
      %v1900 = vshrl.u32 920167782, %v1888
      %v1901 = vor.u32 %v1899, %v1900
      %v1902 = vshll.u32 920167782, %v1887
      %v1903 = vshrl.u32 1326507024, %v1888
      %v1904 = vor.u32 %v1902, %v1903
      %vm1905 = vcmp.lt.s32.totalorder %v1886, 1
      %vm1906 = vcmp.lt.s32.totalorder %v1886, 2
      %vm1907 = vcmp.lt.s32.totalorder %v1886, 3
      %vm1908 = vcmp.lt.s32.totalorder %v1886, 4
      %v1909 = vsel %vm1905, %v1889, %v1892
      %v1910 = vsel %vm1908, %v1898, 2102212464
      %v1911 = vsel %vm1907, %v1895, %v1910
      %v1912 = vsel %vm1906, %v1909, %v1911
      %v1913 = vsel %vm1905, %v1892, %v1895
      %v1914 = vsel %vm1908, %v1901, 920167782
      %v1915 = vsel %vm1907, %v1898, %v1914
      %v1916 = vsel %vm1906, %v1913, %v1915
      %v1917 = vsel %vm1905, %v1895, %v1898
      %v1918 = vsel %vm1908, %v1904, 1326507024
      %v1919 = vsel %vm1907, %v1901, %v1918
      %v1920 = vsel %vm1906, %v1917, %v1919
      %v1921 = vshll.u32 %v1881, 8
      %v1922 = vmul.u32.u64.compose %v1921, %v1920
      %v1923 = vextract.low.u32 %v1922
      %v1924 = vextract.high.u32 %v1922
      %v1925 = vmul.u32.u64.compose %v1921, %v1916
      %v1926 = vextract.low.u32 %v1925
      %v1927 = vextract.high.u32 %v1925
      %v1928 = vmul.u32 %v1921, %v1912
      %v1929 = vadd.s32 %v1924, %v1926
      %vm1930 = vc.u32 %v1924, %v1926
      %v1931 = vadd.s32 %v1927, 1
      %v1932 = vsel %vm1930, %v1931, %v1927
      %v1933 = vadd.s32 %v1928, %v1932
      %v1934 = vadd.s32 %v1933, 536870912
      %v1935 = vshrl.u32 %v1934, 30
      %v1936 = vshll.u32 %v1935, 30
      %v1937 = vsub.s32 %v1933, %v1936
      %vm1938 = vcmp.lt.s32.totalorder %v1937, 0
      %v1939 = vsub.s32 0, %v1937
      %v1940 = vsel %vm1938, %v1939, %v1937
      %v1941 = vclz %v1940
      %v1942 = vsub.s32 %v1941, 2
      %vm1943 = vcmp.gt.s32.totalorder 0, %v1942
      %v1944 = vsel %vm1943, 0, %v1942
      %v1945 = vsub.s32 32, %v1944
      %v1946 = vshll.u32 %v1937, %v1944
      %v1947 = vshrl.u32 %v1929, %v1945
      %v1948 = vor.u32 %v1946, %v1947
      %v1949 = vsub.s32 4294967266, %v1944
      %v1950 = vadd.s32 %v1949, 127
      %v1951 = vshll.u32 %v1950, 23
      %v1952 = vor.u32 4788187, %v1951
      %v1953 = vand.u32 2147483647, %v1952
      %v1955 = vcvt.s32.f32 %v1948
      %v1956 = vmul.f32 %v1955, %v1953
      %v1957 = vxor.u32 %v1956, 2147483648
      %v1958 = vsel %vm1875, %v1957, %v1956
      %v1959 = vsub.s32 4, %v1935
      %v1960 = vsel %vm1875, %v1959, %v1935
      %v1961 = vsel %vm1874, %v773, %v1958
      %v1962 = vsel %vm1874, 0, %v1960
      %v1963 = vcosq.f32.pop %v1961
      %v1964 = vsinq.f32.pop %v1961
      %vm1965 = vweird.f32 %v773
      %v1966 = vadd.s32 %v1962, 3
      %v1967 = vand.u32 %v1966, 3
      %vm1968 = vcmp.lt.s32.totalorder %v1967, 2
      %vm1969 = vcmp.eq.s32.totalorder %v1967, 0
      %v1970 = vxor.u32 %v1964, 2147483648
      %v1971 = vsel %vm1969, %v1963, %v1970
      %vm1972 = vcmp.eq.s32.totalorder %v1967, 2
      %v1973 = vxor.u32 %v1963, 2147483648
      %v1974 = vsel %vm1972, %v1973, %v1964
      %v1975 = vsel %vm1968, %v1971, %v1974
      %v1976 = vsel %vm1965, nan, %v1975
      %v1977 = vand.u32 2147483647, %v774
      %vm1978 = vcmp.le.f32.partialorder %v1977, 0.7853982
      %vm1979 = vcmp.lt.s32.totalorder %v774, 0
      %v1980 = vand.u32 %v774, 2139095040
      %v1981 = vshrl.u32 %v1980, 23
      %v1982 = vsub.s32 %v1981, 127
      %v1983 = vand.u32 2147483647, %v774
      %v1984 = vand.u32 %v1983, 8388607
      %v1985 = vor.u32 %v1984, 8388608
      %v1986 = vsub.s32 0, %v1985
      %v1987 = vadd.s32 %v1982, 1
      %vm1988 = vcmp.gt.s32.totalorder %v1987, 0
      %v1989 = vsel %vm1988, %v1987, 0
      %v1990 = vshrl.u32 %v1989, 5
      %v1991 = vand.u32 %v1989, 31
      %v1992 = vsub.s32 32, %v1991
      %v1993 = vshrl.u32 683565275, %v1992
      %v1994 = vshll.u32 683565275, %v1991
      %v1995 = vshrl.u32 2475754826, %v1992
      %v1996 = vor.u32 %v1994, %v1995
      %v1997 = vshll.u32 2475754826, %v1991
      %v1998 = vshrl.u32 2131351028, %v1992
      %v1999 = vor.u32 %v1997, %v1998
      %v2000 = vshll.u32 2131351028, %v1991
      %v2001 = vshrl.u32 2102212464, %v1992
      %v2002 = vor.u32 %v2000, %v2001
      %v2003 = vshll.u32 2102212464, %v1991
      %v2004 = vshrl.u32 920167782, %v1992
      %v2005 = vor.u32 %v2003, %v2004
      %v2006 = vshll.u32 920167782, %v1991
      %v2007 = vshrl.u32 1326507024, %v1992
      %v2008 = vor.u32 %v2006, %v2007
      %vm2009 = vcmp.lt.s32.totalorder %v1990, 1
      %vm2010 = vcmp.lt.s32.totalorder %v1990, 2
      %vm2011 = vcmp.lt.s32.totalorder %v1990, 3
      %vm2012 = vcmp.lt.s32.totalorder %v1990, 4
      %v2013 = vsel %vm2009, %v1993, %v1996
      %v2014 = vsel %vm2012, %v2002, 2102212464
      %v2015 = vsel %vm2011, %v1999, %v2014
      %v2016 = vsel %vm2010, %v2013, %v2015
      %v2017 = vsel %vm2009, %v1996, %v1999
      %v2018 = vsel %vm2012, %v2005, 920167782
      %v2019 = vsel %vm2011, %v2002, %v2018
      %v2020 = vsel %vm2010, %v2017, %v2019
      %v2021 = vsel %vm2009, %v1999, %v2002
      %v2022 = vsel %vm2012, %v2008, 1326507024
      %v2023 = vsel %vm2011, %v2005, %v2022
      %v2024 = vsel %vm2010, %v2021, %v2023
      %v2025 = vshll.u32 %v1985, 8
      %v2026 = vmul.u32.u64.compose %v2025, %v2024
      %v2027 = vextract.low.u32 %v2026
      %v2028 = vextract.high.u32 %v2026
      %v2029 = vmul.u32.u64.compose %v2025, %v2020
      %v2030 = vextract.low.u32 %v2029
      %v2031 = vextract.high.u32 %v2029
      %v2032 = vmul.u32 %v2025, %v2016
      %v2033 = vadd.s32 %v2028, %v2030
      %vm2034 = vc.u32 %v2028, %v2030
      %v2035 = vadd.s32 %v2031, 1
      %v2036 = vsel %vm2034, %v2035, %v2031
      %v2037 = vadd.s32 %v2032, %v2036
      %v2038 = vadd.s32 %v2037, 536870912
      %v2039 = vshrl.u32 %v2038, 30
      %v2040 = vshll.u32 %v2039, 30
      %v2041 = vsub.s32 %v2037, %v2040
      %vm2042 = vcmp.lt.s32.totalorder %v2041, 0
      %v2043 = vsub.s32 0, %v2041
      %v2044 = vsel %vm2042, %v2043, %v2041
      %v2045 = vclz %v2044
      %v2046 = vsub.s32 %v2045, 2
      %vm2047 = vcmp.gt.s32.totalorder 0, %v2046
      %v2048 = vsel %vm2047, 0, %v2046
      %v2049 = vsub.s32 32, %v2048
      %v2050 = vshll.u32 %v2041, %v2048
      %v2051 = vshrl.u32 %v2033, %v2049
      %v2052 = vor.u32 %v2050, %v2051
      %v2053 = vsub.s32 4294967266, %v2048
      %v2054 = vadd.s32 %v2053, 127
      %v2055 = vshll.u32 %v2054, 23
      %v2056 = vor.u32 4788187, %v2055
      %v2057 = vand.u32 2147483647, %v2056
      %v2059 = vcvt.s32.f32 %v2052
      %v2060 = vmul.f32 %v2059, %v2057
      %v2061 = vxor.u32 %v2060, 2147483648
      %v2062 = vsel %vm1979, %v2061, %v2060
      %v2063 = vsub.s32 4, %v2039
      %v2064 = vsel %vm1979, %v2063, %v2039
      %v2065 = vsel %vm1978, %v774, %v2062
      %v2066 = vsel %vm1978, 0, %v2064
      %v2067 = vcosq.f32.pop %v2065
      %v2068 = vsinq.f32.pop %v2065
      %vm2069 = vweird.f32 %v774
      %v2070 = vadd.s32 %v2066, 3
      %v2071 = vand.u32 %v2070, 3
      %vm2072 = vcmp.lt.s32.totalorder %v2071, 2
      %vm2073 = vcmp.eq.s32.totalorder %v2071, 0
      %v2074 = vxor.u32 %v2068, 2147483648
      %v2075 = vsel %vm2073, %v2067, %v2074
      %vm2076 = vcmp.eq.s32.totalorder %v2071, 2
      %v2077 = vxor.u32 %v2067, 2147483648
      %v2078 = vsel %vm2076, %v2077, %v2068
      %v2079 = vsel %vm2072, %v2075, %v2078
      %v2080 = vsel %vm2069, nan, %v2079
      %v2081 = vand.u32 2147483647, %v775
      %vm2082 = vcmp.le.f32.partialorder %v2081, 0.7853982
      %vm2083 = vcmp.lt.s32.totalorder %v775, 0
      %v2084 = vand.u32 %v775, 2139095040
      %v2085 = vshrl.u32 %v2084, 23
      %v2086 = vsub.s32 %v2085, 127
      %v2087 = vand.u32 2147483647, %v775
      %v2088 = vand.u32 %v2087, 8388607
      %v2089 = vor.u32 %v2088, 8388608
      %v2090 = vsub.s32 0, %v2089
      %v2091 = vadd.s32 %v2086, 1
      %vm2092 = vcmp.gt.s32.totalorder %v2091, 0
      %v2093 = vsel %vm2092, %v2091, 0
      %v2094 = vshrl.u32 %v2093, 5
      %v2095 = vand.u32 %v2093, 31
      %v2096 = vsub.s32 32, %v2095
      %v2097 = vshrl.u32 683565275, %v2096
      %v2098 = vshll.u32 683565275, %v2095
      %v2099 = vshrl.u32 2475754826, %v2096
      %v2100 = vor.u32 %v2098, %v2099
      %v2101 = vshll.u32 2475754826, %v2095
      %v2102 = vshrl.u32 2131351028, %v2096
      %v2103 = vor.u32 %v2101, %v2102
      %v2104 = vshll.u32 2131351028, %v2095
      %v2105 = vshrl.u32 2102212464, %v2096
      %v2106 = vor.u32 %v2104, %v2105
      %v2107 = vshll.u32 2102212464, %v2095
      %v2108 = vshrl.u32 920167782, %v2096
      %v2109 = vor.u32 %v2107, %v2108
      %v2110 = vshll.u32 920167782, %v2095
      %v2111 = vshrl.u32 1326507024, %v2096
      %v2112 = vor.u32 %v2110, %v2111
      %vm2113 = vcmp.lt.s32.totalorder %v2094, 1
      %vm2114 = vcmp.lt.s32.totalorder %v2094, 2
      %vm2115 = vcmp.lt.s32.totalorder %v2094, 3
      %vm2116 = vcmp.lt.s32.totalorder %v2094, 4
      %v2117 = vsel %vm2113, %v2097, %v2100
      %v2118 = vsel %vm2116, %v2106, 2102212464
      %v2119 = vsel %vm2115, %v2103, %v2118
      %v2120 = vsel %vm2114, %v2117, %v2119
      %v2121 = vsel %vm2113, %v2100, %v2103
      %v2122 = vsel %vm2116, %v2109, 920167782
      %v2123 = vsel %vm2115, %v2106, %v2122
      %v2124 = vsel %vm2114, %v2121, %v2123
      %v2125 = vsel %vm2113, %v2103, %v2106
      %v2126 = vsel %vm2116, %v2112, 1326507024
      %v2127 = vsel %vm2115, %v2109, %v2126
      %v2128 = vsel %vm2114, %v2125, %v2127
      %v2129 = vshll.u32 %v2089, 8
      %v2130 = vmul.u32.u64.compose %v2129, %v2128
      %v2131 = vextract.low.u32 %v2130
      %v2132 = vextract.high.u32 %v2130
      %v2133 = vmul.u32.u64.compose %v2129, %v2124
      %v2134 = vextract.low.u32 %v2133
      %v2135 = vextract.high.u32 %v2133
      %v2136 = vmul.u32 %v2129, %v2120
      %v2137 = vadd.s32 %v2132, %v2134
      %vm2138 = vc.u32 %v2132, %v2134
      %v2139 = vadd.s32 %v2135, 1
      %v2140 = vsel %vm2138, %v2139, %v2135
      %v2141 = vadd.s32 %v2136, %v2140
      %v2142 = vadd.s32 %v2141, 536870912
      %v2143 = vshrl.u32 %v2142, 30
      %v2144 = vshll.u32 %v2143, 30
      %v2145 = vsub.s32 %v2141, %v2144
      %vm2146 = vcmp.lt.s32.totalorder %v2145, 0
      %v2147 = vsub.s32 0, %v2145
      %v2148 = vsel %vm2146, %v2147, %v2145
      %v2149 = vclz %v2148
      %v2150 = vsub.s32 %v2149, 2
      %vm2151 = vcmp.gt.s32.totalorder 0, %v2150
      %v2152 = vsel %vm2151, 0, %v2150
      %v2153 = vsub.s32 32, %v2152
      %v2154 = vshll.u32 %v2145, %v2152
      %v2155 = vshrl.u32 %v2137, %v2153
      %v2156 = vor.u32 %v2154, %v2155
      %v2157 = vsub.s32 4294967266, %v2152
      %v2158 = vadd.s32 %v2157, 127
      %v2159 = vshll.u32 %v2158, 23
      %v2160 = vor.u32 4788187, %v2159
      %v2161 = vand.u32 2147483647, %v2160
      %v2163 = vcvt.s32.f32 %v2156
      %v2164 = vmul.f32 %v2163, %v2161
      %v2165 = vxor.u32 %v2164, 2147483648
      %v2166 = vsel %vm2083, %v2165, %v2164
      %v2167 = vsub.s32 4, %v2143
      %v2168 = vsel %vm2083, %v2167, %v2143
      %v2169 = vsel %vm2082, %v775, %v2166
      %v2170 = vsel %vm2082, 0, %v2168
      %v2171 = vcosq.f32.pop %v2169
      %v2172 = vsinq.f32.pop %v2169
      %vm2173 = vweird.f32 %v775
      %v2174 = vadd.s32 %v2170, 3
      %v2175 = vand.u32 %v2174, 3
      %vm2176 = vcmp.lt.s32.totalorder %v2175, 2
      %vm2177 = vcmp.eq.s32.totalorder %v2175, 0
      %v2178 = vxor.u32 %v2172, 2147483648
      %v2179 = vsel %vm2177, %v2171, %v2178
      %vm2180 = vcmp.eq.s32.totalorder %v2175, 2
      %v2181 = vxor.u32 %v2171, 2147483648
      %v2182 = vsel %vm2180, %v2181, %v2172
      %v2183 = vsel %vm2176, %v2179, %v2182
      %v2184 = vsel %vm2173, nan, %v2183
      %v2185 = vand.u32 2147483647, %v776
      %vm2186 = vcmp.le.f32.partialorder %v2185, 0.7853982
      %vm2187 = vcmp.lt.s32.totalorder %v776, 0
      %v2188 = vand.u32 %v776, 2139095040
      %v2189 = vshrl.u32 %v2188, 23
      %v2190 = vsub.s32 %v2189, 127
      %v2191 = vand.u32 2147483647, %v776
      %v2192 = vand.u32 %v2191, 8388607
      %v2193 = vor.u32 %v2192, 8388608
      %v2194 = vsub.s32 0, %v2193
      %v2195 = vadd.s32 %v2190, 1
      %vm2196 = vcmp.gt.s32.totalorder %v2195, 0
      %v2197 = vsel %vm2196, %v2195, 0
      %v2198 = vshrl.u32 %v2197, 5
      %v2199 = vand.u32 %v2197, 31
      %v2200 = vsub.s32 32, %v2199
      %v2201 = vshrl.u32 683565275, %v2200
      %v2202 = vshll.u32 683565275, %v2199
      %v2203 = vshrl.u32 2475754826, %v2200
      %v2204 = vor.u32 %v2202, %v2203
      %v2205 = vshll.u32 2475754826, %v2199
      %v2206 = vshrl.u32 2131351028, %v2200
      %v2207 = vor.u32 %v2205, %v2206
      %v2208 = vshll.u32 2131351028, %v2199
      %v2209 = vshrl.u32 2102212464, %v2200
      %v2210 = vor.u32 %v2208, %v2209
      %v2211 = vshll.u32 2102212464, %v2199
      %v2212 = vshrl.u32 920167782, %v2200
      %v2213 = vor.u32 %v2211, %v2212
      %v2214 = vshll.u32 920167782, %v2199
      %v2215 = vshrl.u32 1326507024, %v2200
      %v2216 = vor.u32 %v2214, %v2215
      %vm2217 = vcmp.lt.s32.totalorder %v2198, 1
      %vm2218 = vcmp.lt.s32.totalorder %v2198, 2
      %vm2219 = vcmp.lt.s32.totalorder %v2198, 3
      %vm2220 = vcmp.lt.s32.totalorder %v2198, 4
      %v2221 = vsel %vm2217, %v2201, %v2204
      %v2222 = vsel %vm2220, %v2210, 2102212464
      %v2223 = vsel %vm2219, %v2207, %v2222
      %v2224 = vsel %vm2218, %v2221, %v2223
      %v2225 = vsel %vm2217, %v2204, %v2207
      %v2226 = vsel %vm2220, %v2213, 920167782
      %v2227 = vsel %vm2219, %v2210, %v2226
      %v2228 = vsel %vm2218, %v2225, %v2227
      %v2229 = vsel %vm2217, %v2207, %v2210
      %v2230 = vsel %vm2220, %v2216, 1326507024
      %v2231 = vsel %vm2219, %v2213, %v2230
      %v2232 = vsel %vm2218, %v2229, %v2231
      %v2233 = vshll.u32 %v2193, 8
      %v2234 = vmul.u32.u64.compose %v2233, %v2232
      %v2235 = vextract.low.u32 %v2234
      %v2236 = vextract.high.u32 %v2234
      %v2237 = vmul.u32.u64.compose %v2233, %v2228
      %v2238 = vextract.low.u32 %v2237
      %v2239 = vextract.high.u32 %v2237
      %v2240 = vmul.u32 %v2233, %v2224
      %v2241 = vadd.s32 %v2236, %v2238
      %vm2242 = vc.u32 %v2236, %v2238
      %v2243 = vadd.s32 %v2239, 1
      %v2244 = vsel %vm2242, %v2243, %v2239
      %v2245 = vadd.s32 %v2240, %v2244
      %v2246 = vadd.s32 %v2245, 536870912
      %v2247 = vshrl.u32 %v2246, 30
      %v2248 = vshll.u32 %v2247, 30
      %v2249 = vsub.s32 %v2245, %v2248
      %vm2250 = vcmp.lt.s32.totalorder %v2249, 0
      %v2251 = vsub.s32 0, %v2249
      %v2252 = vsel %vm2250, %v2251, %v2249
      %v2253 = vclz %v2252
      %v2254 = vsub.s32 %v2253, 2
      %vm2255 = vcmp.gt.s32.totalorder 0, %v2254
      %v2256 = vsel %vm2255, 0, %v2254
      %v2257 = vsub.s32 32, %v2256
      %v2258 = vshll.u32 %v2249, %v2256
      %v2259 = vshrl.u32 %v2241, %v2257
      %v2260 = vor.u32 %v2258, %v2259
      %v2261 = vsub.s32 4294967266, %v2256
      %v2262 = vadd.s32 %v2261, 127
      %v2263 = vshll.u32 %v2262, 23
      %v2264 = vor.u32 4788187, %v2263
      %v2265 = vand.u32 2147483647, %v2264
      %v2267 = vcvt.s32.f32 %v2260
      %v2268 = vmul.f32 %v2267, %v2265
      %v2269 = vxor.u32 %v2268, 2147483648
      %v2270 = vsel %vm2187, %v2269, %v2268
      %v2271 = vsub.s32 4, %v2247
      %v2272 = vsel %vm2187, %v2271, %v2247
      %v2273 = vsel %vm2186, %v776, %v2270
      %v2274 = vsel %vm2186, 0, %v2272
      %v2275 = vcosq.f32.pop %v2273
      %v2276 = vsinq.f32.pop %v2273
      %vm2277 = vweird.f32 %v776
      %v2278 = vadd.s32 %v2274, 3
      %v2279 = vand.u32 %v2278, 3
      %vm2280 = vcmp.lt.s32.totalorder %v2279, 2
      %vm2281 = vcmp.eq.s32.totalorder %v2279, 0
      %v2282 = vxor.u32 %v2276, 2147483648
      %v2283 = vsel %vm2281, %v2275, %v2282
      %vm2284 = vcmp.eq.s32.totalorder %v2279, 2
      %v2285 = vxor.u32 %v2275, 2147483648
      %v2286 = vsel %vm2284, %v2285, %v2276
      %v2287 = vsel %vm2280, %v2283, %v2286
      %v2288 = vsel %vm2277, nan, %v2287
      %v2289 = vand.u32 2147483647, %v777
      %vm2290 = vcmp.le.f32.partialorder %v2289, 0.7853982
      %vm2291 = vcmp.lt.s32.totalorder %v777, 0
      %v2292 = vand.u32 %v777, 2139095040
      %v2293 = vshrl.u32 %v2292, 23
      %v2294 = vsub.s32 %v2293, 127
      %v2295 = vand.u32 2147483647, %v777
      %v2296 = vand.u32 %v2295, 8388607
      %v2297 = vor.u32 %v2296, 8388608
      %v2298 = vsub.s32 0, %v2297
      %v2299 = vadd.s32 %v2294, 1
      %vm2300 = vcmp.gt.s32.totalorder %v2299, 0
      %v2301 = vsel %vm2300, %v2299, 0
      %v2302 = vshrl.u32 %v2301, 5
      %v2303 = vand.u32 %v2301, 31
      %v2304 = vsub.s32 32, %v2303
      %v2305 = vshrl.u32 683565275, %v2304
      %v2306 = vshll.u32 683565275, %v2303
      %v2307 = vshrl.u32 2475754826, %v2304
      %v2308 = vor.u32 %v2306, %v2307
      %v2309 = vshll.u32 2475754826, %v2303
      %v2310 = vshrl.u32 2131351028, %v2304
      %v2311 = vor.u32 %v2309, %v2310
      %v2312 = vshll.u32 2131351028, %v2303
      %v2313 = vshrl.u32 2102212464, %v2304
      %v2314 = vor.u32 %v2312, %v2313
      %v2315 = vshll.u32 2102212464, %v2303
      %v2316 = vshrl.u32 920167782, %v2304
      %v2317 = vor.u32 %v2315, %v2316
      %v2318 = vshll.u32 920167782, %v2303
      %v2319 = vshrl.u32 1326507024, %v2304
      %v2320 = vor.u32 %v2318, %v2319
      %vm2321 = vcmp.lt.s32.totalorder %v2302, 1
      %vm2322 = vcmp.lt.s32.totalorder %v2302, 2
      %vm2323 = vcmp.lt.s32.totalorder %v2302, 3
      %vm2324 = vcmp.lt.s32.totalorder %v2302, 4
      %v2325 = vsel %vm2321, %v2305, %v2308
      %v2326 = vsel %vm2324, %v2314, 2102212464
      %v2327 = vsel %vm2323, %v2311, %v2326
      %v2328 = vsel %vm2322, %v2325, %v2327
      %v2329 = vsel %vm2321, %v2308, %v2311
      %v2330 = vsel %vm2324, %v2317, 920167782
      %v2331 = vsel %vm2323, %v2314, %v2330
      %v2332 = vsel %vm2322, %v2329, %v2331
      %v2333 = vsel %vm2321, %v2311, %v2314
      %v2334 = vsel %vm2324, %v2320, 1326507024
      %v2335 = vsel %vm2323, %v2317, %v2334
      %v2336 = vsel %vm2322, %v2333, %v2335
      %v2337 = vshll.u32 %v2297, 8
      %v2338 = vmul.u32.u64.compose %v2337, %v2336
      %v2339 = vextract.low.u32 %v2338
      %v2340 = vextract.high.u32 %v2338
      %v2341 = vmul.u32.u64.compose %v2337, %v2332
      %v2342 = vextract.low.u32 %v2341
      %v2343 = vextract.high.u32 %v2341
      %v2344 = vmul.u32 %v2337, %v2328
      %v2345 = vadd.s32 %v2340, %v2342
      %vm2346 = vc.u32 %v2340, %v2342
      %v2347 = vadd.s32 %v2343, 1
      %v2348 = vsel %vm2346, %v2347, %v2343
      %v2349 = vadd.s32 %v2344, %v2348
      %v2350 = vadd.s32 %v2349, 536870912
      %v2351 = vshrl.u32 %v2350, 30
      %v2352 = vshll.u32 %v2351, 30
      %v2353 = vsub.s32 %v2349, %v2352
      %vm2354 = vcmp.lt.s32.totalorder %v2353, 0
      %v2355 = vsub.s32 0, %v2353
      %v2356 = vsel %vm2354, %v2355, %v2353
      %v2357 = vclz %v2356
      %v2358 = vsub.s32 %v2357, 2
      %vm2359 = vcmp.gt.s32.totalorder 0, %v2358
      %v2360 = vsel %vm2359, 0, %v2358
      %v2361 = vsub.s32 32, %v2360
      %v2362 = vshll.u32 %v2353, %v2360
      %v2363 = vshrl.u32 %v2345, %v2361
      %v2364 = vor.u32 %v2362, %v2363
      %v2365 = vsub.s32 4294967266, %v2360
      %v2366 = vadd.s32 %v2365, 127
      %v2367 = vshll.u32 %v2366, 23
      %v2368 = vor.u32 4788187, %v2367
      %v2369 = vand.u32 2147483647, %v2368
      %v2371 = vcvt.s32.f32 %v2364
      %v2372 = vmul.f32 %v2371, %v2369
      %v2373 = vxor.u32 %v2372, 2147483648
      %v2374 = vsel %vm2291, %v2373, %v2372
      %v2375 = vsub.s32 4, %v2351
      %v2376 = vsel %vm2291, %v2375, %v2351
      %v2377 = vsel %vm2290, %v777, %v2374
      %v2378 = vsel %vm2290, 0, %v2376
      %v2379 = vcosq.f32.pop %v2377
      %v2380 = vsinq.f32.pop %v2377
      %vm2381 = vweird.f32 %v777
      %v2382 = vadd.s32 %v2378, 3
      %v2383 = vand.u32 %v2382, 3
      %vm2384 = vcmp.lt.s32.totalorder %v2383, 2
      %vm2385 = vcmp.eq.s32.totalorder %v2383, 0
      %v2386 = vxor.u32 %v2380, 2147483648
      %v2387 = vsel %vm2385, %v2379, %v2386
      %vm2388 = vcmp.eq.s32.totalorder %v2383, 2
      %v2389 = vxor.u32 %v2379, 2147483648
      %v2390 = vsel %vm2388, %v2389, %v2380
      %v2391 = vsel %vm2384, %v2387, %v2390
      %v2392 = vsel %vm2381, nan, %v2391
      %v2393 = vand.u32 2147483647, %v778
      %vm2394 = vcmp.le.f32.partialorder %v2393, 0.7853982
      %vm2395 = vcmp.lt.s32.totalorder %v778, 0
      %v2396 = vand.u32 %v778, 2139095040
      %v2397 = vshrl.u32 %v2396, 23
      %v2398 = vsub.s32 %v2397, 127
      %v2399 = vand.u32 2147483647, %v778
      %v2400 = vand.u32 %v2399, 8388607
      %v2401 = vor.u32 %v2400, 8388608
      %v2402 = vsub.s32 0, %v2401
      %v2403 = vadd.s32 %v2398, 1
      %vm2404 = vcmp.gt.s32.totalorder %v2403, 0
      %v2405 = vsel %vm2404, %v2403, 0
      %v2406 = vshrl.u32 %v2405, 5
      %v2407 = vand.u32 %v2405, 31
      %v2408 = vsub.s32 32, %v2407
      %v2409 = vshrl.u32 683565275, %v2408
      %v2410 = vshll.u32 683565275, %v2407
      %v2411 = vshrl.u32 2475754826, %v2408
      %v2412 = vor.u32 %v2410, %v2411
      %v2413 = vshll.u32 2475754826, %v2407
      %v2414 = vshrl.u32 2131351028, %v2408
      %v2415 = vor.u32 %v2413, %v2414
      %v2416 = vshll.u32 2131351028, %v2407
      %v2417 = vshrl.u32 2102212464, %v2408
      %v2418 = vor.u32 %v2416, %v2417
      %v2419 = vshll.u32 2102212464, %v2407
      %v2420 = vshrl.u32 920167782, %v2408
      %v2421 = vor.u32 %v2419, %v2420
      %v2422 = vshll.u32 920167782, %v2407
      %v2423 = vshrl.u32 1326507024, %v2408
      %v2424 = vor.u32 %v2422, %v2423
      %vm2425 = vcmp.lt.s32.totalorder %v2406, 1
      %vm2426 = vcmp.lt.s32.totalorder %v2406, 2
      %vm2427 = vcmp.lt.s32.totalorder %v2406, 3
      %vm2428 = vcmp.lt.s32.totalorder %v2406, 4
      %v2429 = vsel %vm2425, %v2409, %v2412
      %v2430 = vsel %vm2428, %v2418, 2102212464
      %v2431 = vsel %vm2427, %v2415, %v2430
      %v2432 = vsel %vm2426, %v2429, %v2431
      %v2433 = vsel %vm2425, %v2412, %v2415
      %v2434 = vsel %vm2428, %v2421, 920167782
      %v2435 = vsel %vm2427, %v2418, %v2434
      %v2436 = vsel %vm2426, %v2433, %v2435
      %v2437 = vsel %vm2425, %v2415, %v2418
      %v2438 = vsel %vm2428, %v2424, 1326507024
      %v2439 = vsel %vm2427, %v2421, %v2438
      %v2440 = vsel %vm2426, %v2437, %v2439
      %v2441 = vshll.u32 %v2401, 8
      %v2442 = vmul.u32.u64.compose %v2441, %v2440
      %v2443 = vextract.low.u32 %v2442
      %v2444 = vextract.high.u32 %v2442
      %v2445 = vmul.u32.u64.compose %v2441, %v2436
      %v2446 = vextract.low.u32 %v2445
      %v2447 = vextract.high.u32 %v2445
      %v2448 = vmul.u32 %v2441, %v2432
      %v2449 = vadd.s32 %v2444, %v2446
      %vm2450 = vc.u32 %v2444, %v2446
      %v2451 = vadd.s32 %v2447, 1
      %v2452 = vsel %vm2450, %v2451, %v2447
      %v2453 = vadd.s32 %v2448, %v2452
      %v2454 = vadd.s32 %v2453, 536870912
      %v2455 = vshrl.u32 %v2454, 30
      %v2456 = vshll.u32 %v2455, 30
      %v2457 = vsub.s32 %v2453, %v2456
      %vm2458 = vcmp.lt.s32.totalorder %v2457, 0
      %v2459 = vsub.s32 0, %v2457
      %v2460 = vsel %vm2458, %v2459, %v2457
      %v2461 = vclz %v2460
      %v2462 = vsub.s32 %v2461, 2
      %vm2463 = vcmp.gt.s32.totalorder 0, %v2462
      %v2464 = vsel %vm2463, 0, %v2462
      %v2465 = vsub.s32 32, %v2464
      %v2466 = vshll.u32 %v2457, %v2464
      %v2467 = vshrl.u32 %v2449, %v2465
      %v2468 = vor.u32 %v2466, %v2467
      %v2469 = vsub.s32 4294967266, %v2464
      %v2470 = vadd.s32 %v2469, 127
      %v2471 = vshll.u32 %v2470, 23
      %v2472 = vor.u32 4788187, %v2471
      %v2473 = vand.u32 2147483647, %v2472
      %v2475 = vcvt.s32.f32 %v2468
      %v2476 = vmul.f32 %v2475, %v2473
      %v2477 = vxor.u32 %v2476, 2147483648
      %v2478 = vsel %vm2395, %v2477, %v2476
      %v2479 = vsub.s32 4, %v2455
      %v2480 = vsel %vm2395, %v2479, %v2455
      %v2481 = vsel %vm2394, %v778, %v2478
      %v2482 = vsel %vm2394, 0, %v2480
      %v2483 = vcosq.f32.pop %v2481
      %v2484 = vsinq.f32.pop %v2481
      %vm2485 = vweird.f32 %v778
      %v2486 = vadd.s32 %v2482, 3
      %v2487 = vand.u32 %v2486, 3
      %vm2488 = vcmp.lt.s32.totalorder %v2487, 2
      %vm2489 = vcmp.eq.s32.totalorder %v2487, 0
      %v2490 = vxor.u32 %v2484, 2147483648
      %v2491 = vsel %vm2489, %v2483, %v2490
      %vm2492 = vcmp.eq.s32.totalorder %v2487, 2
      %v2493 = vxor.u32 %v2483, 2147483648
      %v2494 = vsel %vm2492, %v2493, %v2484
      %v2495 = vsel %vm2488, %v2491, %v2494
      %v2496 = vsel %vm2485, nan, %v2495
      %v2497 = vand.u32 2147483647, %v779
      %vm2498 = vcmp.le.f32.partialorder %v2497, 0.7853982
      %vm2499 = vcmp.lt.s32.totalorder %v779, 0
      %v2500 = vand.u32 %v779, 2139095040
      %v2501 = vshrl.u32 %v2500, 23
      %v2502 = vsub.s32 %v2501, 127
      %v2503 = vand.u32 2147483647, %v779
      %v2504 = vand.u32 %v2503, 8388607
      %v2505 = vor.u32 %v2504, 8388608
      %v2506 = vsub.s32 0, %v2505
      %v2507 = vadd.s32 %v2502, 1
      %vm2508 = vcmp.gt.s32.totalorder %v2507, 0
      %v2509 = vsel %vm2508, %v2507, 0
      %v2510 = vshrl.u32 %v2509, 5
      %v2511 = vand.u32 %v2509, 31
      %v2512 = vsub.s32 32, %v2511
      %v2513 = vshrl.u32 683565275, %v2512
      %v2514 = vshll.u32 683565275, %v2511
      %v2515 = vshrl.u32 2475754826, %v2512
      %v2516 = vor.u32 %v2514, %v2515
      %v2517 = vshll.u32 2475754826, %v2511
      %v2518 = vshrl.u32 2131351028, %v2512
      %v2519 = vor.u32 %v2517, %v2518
      %v2520 = vshll.u32 2131351028, %v2511
      %v2521 = vshrl.u32 2102212464, %v2512
      %v2522 = vor.u32 %v2520, %v2521
      %v2523 = vshll.u32 2102212464, %v2511
      %v2524 = vshrl.u32 920167782, %v2512
      %v2525 = vor.u32 %v2523, %v2524
      %v2526 = vshll.u32 920167782, %v2511
      %v2527 = vshrl.u32 1326507024, %v2512
      %v2528 = vor.u32 %v2526, %v2527
      %vm2529 = vcmp.lt.s32.totalorder %v2510, 1
      %vm2530 = vcmp.lt.s32.totalorder %v2510, 2
      %vm2531 = vcmp.lt.s32.totalorder %v2510, 3
      %vm2532 = vcmp.lt.s32.totalorder %v2510, 4
      %v2533 = vsel %vm2529, %v2513, %v2516
      %v2534 = vsel %vm2532, %v2522, 2102212464
      %v2535 = vsel %vm2531, %v2519, %v2534
      %v2536 = vsel %vm2530, %v2533, %v2535
      %v2537 = vsel %vm2529, %v2516, %v2519
      %v2538 = vsel %vm2532, %v2525, 920167782
      %v2539 = vsel %vm2531, %v2522, %v2538
      %v2540 = vsel %vm2530, %v2537, %v2539
      %v2541 = vsel %vm2529, %v2519, %v2522
      %v2542 = vsel %vm2532, %v2528, 1326507024
      %v2543 = vsel %vm2531, %v2525, %v2542
      %v2544 = vsel %vm2530, %v2541, %v2543
      %v2545 = vshll.u32 %v2505, 8
      %v2546 = vmul.u32.u64.compose %v2545, %v2544
      %v2547 = vextract.low.u32 %v2546
      %v2548 = vextract.high.u32 %v2546
      %v2549 = vmul.u32.u64.compose %v2545, %v2540
      %v2550 = vextract.low.u32 %v2549
      %v2551 = vextract.high.u32 %v2549
      %v2552 = vmul.u32 %v2545, %v2536
      %v2553 = vadd.s32 %v2548, %v2550
      %vm2554 = vc.u32 %v2548, %v2550
      %v2555 = vadd.s32 %v2551, 1
      %v2556 = vsel %vm2554, %v2555, %v2551
      %v2557 = vadd.s32 %v2552, %v2556
      %v2558 = vadd.s32 %v2557, 536870912
      %v2559 = vshrl.u32 %v2558, 30
      %v2560 = vshll.u32 %v2559, 30
      %v2561 = vsub.s32 %v2557, %v2560
      %vm2562 = vcmp.lt.s32.totalorder %v2561, 0
      %v2563 = vsub.s32 0, %v2561
      %v2564 = vsel %vm2562, %v2563, %v2561
      %v2565 = vclz %v2564
      %v2566 = vsub.s32 %v2565, 2
      %vm2567 = vcmp.gt.s32.totalorder 0, %v2566
      %v2568 = vsel %vm2567, 0, %v2566
      %v2569 = vsub.s32 32, %v2568
      %v2570 = vshll.u32 %v2561, %v2568
      %v2571 = vshrl.u32 %v2553, %v2569
      %v2572 = vor.u32 %v2570, %v2571
      %v2573 = vsub.s32 4294967266, %v2568
      %v2574 = vadd.s32 %v2573, 127
      %v2575 = vshll.u32 %v2574, 23
      %v2576 = vor.u32 4788187, %v2575
      %v2577 = vand.u32 2147483647, %v2576
      %v2579 = vcvt.s32.f32 %v2572
      %v2580 = vmul.f32 %v2579, %v2577
      %v2581 = vxor.u32 %v2580, 2147483648
      %v2582 = vsel %vm2499, %v2581, %v2580
      %v2583 = vsub.s32 4, %v2559
      %v2584 = vsel %vm2499, %v2583, %v2559
      %v2585 = vsel %vm2498, %v779, %v2582
      %v2586 = vsel %vm2498, 0, %v2584
      %v2587 = vcosq.f32.pop %v2585
      %v2588 = vsinq.f32.pop %v2585
      %vm2589 = vweird.f32 %v779
      %v2590 = vadd.s32 %v2586, 3
      %v2591 = vand.u32 %v2590, 3
      %vm2592 = vcmp.lt.s32.totalorder %v2591, 2
      %vm2593 = vcmp.eq.s32.totalorder %v2591, 0
      %v2594 = vxor.u32 %v2588, 2147483648
      %v2595 = vsel %vm2593, %v2587, %v2594
      %vm2596 = vcmp.eq.s32.totalorder %v2591, 2
      %v2597 = vxor.u32 %v2587, 2147483648
      %v2598 = vsel %vm2596, %v2597, %v2588
      %v2599 = vsel %vm2592, %v2595, %v2598
      %v2600 = vsel %vm2589, nan, %v2599
      %v2601 = vand.u32 2147483647, %v780
      %vm2602 = vcmp.le.f32.partialorder %v2601, 0.7853982
      %vm2603 = vcmp.lt.s32.totalorder %v780, 0
      %v2604 = vand.u32 %v780, 2139095040
      %v2605 = vshrl.u32 %v2604, 23
      %v2606 = vsub.s32 %v2605, 127
      %v2607 = vand.u32 2147483647, %v780
      %v2608 = vand.u32 %v2607, 8388607
      %v2609 = vor.u32 %v2608, 8388608
      %v2610 = vsub.s32 0, %v2609
      %v2611 = vadd.s32 %v2606, 1
      %vm2612 = vcmp.gt.s32.totalorder %v2611, 0
      %v2613 = vsel %vm2612, %v2611, 0
      %v2614 = vshrl.u32 %v2613, 5
      %v2615 = vand.u32 %v2613, 31
      %v2616 = vsub.s32 32, %v2615
      %v2617 = vshrl.u32 683565275, %v2616
      %v2618 = vshll.u32 683565275, %v2615
      %v2619 = vshrl.u32 2475754826, %v2616
      %v2620 = vor.u32 %v2618, %v2619
      %v2621 = vshll.u32 2475754826, %v2615
      %v2622 = vshrl.u32 2131351028, %v2616
      %v2623 = vor.u32 %v2621, %v2622
      %v2624 = vshll.u32 2131351028, %v2615
      %v2625 = vshrl.u32 2102212464, %v2616
      %v2626 = vor.u32 %v2624, %v2625
      %v2627 = vshll.u32 2102212464, %v2615
      %v2628 = vshrl.u32 920167782, %v2616
      %v2629 = vor.u32 %v2627, %v2628
      %v2630 = vshll.u32 920167782, %v2615
      %v2631 = vshrl.u32 1326507024, %v2616
      %v2632 = vor.u32 %v2630, %v2631
      %vm2633 = vcmp.lt.s32.totalorder %v2614, 1
      %vm2634 = vcmp.lt.s32.totalorder %v2614, 2
      %vm2635 = vcmp.lt.s32.totalorder %v2614, 3
      %vm2636 = vcmp.lt.s32.totalorder %v2614, 4
      %v2637 = vsel %vm2633, %v2617, %v2620
      %v2638 = vsel %vm2636, %v2626, 2102212464
      %v2639 = vsel %vm2635, %v2623, %v2638
      %v2640 = vsel %vm2634, %v2637, %v2639
      %v2641 = vsel %vm2633, %v2620, %v2623
      %v2642 = vsel %vm2636, %v2629, 920167782
      %v2643 = vsel %vm2635, %v2626, %v2642
      %v2644 = vsel %vm2634, %v2641, %v2643
      %v2645 = vsel %vm2633, %v2623, %v2626
      %v2646 = vsel %vm2636, %v2632, 1326507024
      %v2647 = vsel %vm2635, %v2629, %v2646
      %v2648 = vsel %vm2634, %v2645, %v2647
      %v2649 = vshll.u32 %v2609, 8
      %v2650 = vmul.u32.u64.compose %v2649, %v2648
      %v2651 = vextract.low.u32 %v2650
      %v2652 = vextract.high.u32 %v2650
      %v2653 = vmul.u32.u64.compose %v2649, %v2644
      %v2654 = vextract.low.u32 %v2653
      %v2655 = vextract.high.u32 %v2653
      %v2656 = vmul.u32 %v2649, %v2640
      %v2657 = vadd.s32 %v2652, %v2654
      %vm2658 = vc.u32 %v2652, %v2654
      %v2659 = vadd.s32 %v2655, 1
      %v2660 = vsel %vm2658, %v2659, %v2655
      %v2661 = vadd.s32 %v2656, %v2660
      %v2662 = vadd.s32 %v2661, 536870912
      %v2663 = vshrl.u32 %v2662, 30
      %v2664 = vshll.u32 %v2663, 30
      %v2665 = vsub.s32 %v2661, %v2664
      %vm2666 = vcmp.lt.s32.totalorder %v2665, 0
      %v2667 = vsub.s32 0, %v2665
      %v2668 = vsel %vm2666, %v2667, %v2665
      %v2669 = vclz %v2668
      %v2670 = vsub.s32 %v2669, 2
      %vm2671 = vcmp.gt.s32.totalorder 0, %v2670
      %v2672 = vsel %vm2671, 0, %v2670
      %v2673 = vsub.s32 32, %v2672
      %v2674 = vshll.u32 %v2665, %v2672
      %v2675 = vshrl.u32 %v2657, %v2673
      %v2676 = vor.u32 %v2674, %v2675
      %v2677 = vsub.s32 4294967266, %v2672
      %v2678 = vadd.s32 %v2677, 127
      %v2679 = vshll.u32 %v2678, 23
      %v2680 = vor.u32 4788187, %v2679
      %v2681 = vand.u32 2147483647, %v2680
      %v2683 = vcvt.s32.f32 %v2676
      %v2684 = vmul.f32 %v2683, %v2681
      %v2685 = vxor.u32 %v2684, 2147483648
      %v2686 = vsel %vm2603, %v2685, %v2684
      %v2687 = vsub.s32 4, %v2663
      %v2688 = vsel %vm2603, %v2687, %v2663
      %v2689 = vsel %vm2602, %v780, %v2686
      %v2690 = vsel %vm2602, 0, %v2688
      %v2691 = vcosq.f32.pop %v2689
      %v2692 = vsinq.f32.pop %v2689
      %vm2693 = vweird.f32 %v780
      %v2694 = vadd.s32 %v2690, 3
      %v2695 = vand.u32 %v2694, 3
      %vm2696 = vcmp.lt.s32.totalorder %v2695, 2
      %vm2697 = vcmp.eq.s32.totalorder %v2695, 0
      %v2698 = vxor.u32 %v2692, 2147483648
      %v2699 = vsel %vm2697, %v2691, %v2698
      %vm2700 = vcmp.eq.s32.totalorder %v2695, 2
      %v2701 = vxor.u32 %v2691, 2147483648
      %v2702 = vsel %vm2700, %v2701, %v2692
      %v2703 = vsel %vm2696, %v2699, %v2702
      %v2704 = vsel %vm2693, nan, %v2703
      %v2705 = vand.u32 2147483647, %v781
      %vm2706 = vcmp.le.f32.partialorder %v2705, 0.7853982
      %vm2707 = vcmp.lt.s32.totalorder %v781, 0
      %v2708 = vand.u32 %v781, 2139095040
      %v2709 = vshrl.u32 %v2708, 23
      %v2710 = vsub.s32 %v2709, 127
      %v2711 = vand.u32 2147483647, %v781
      %v2712 = vand.u32 %v2711, 8388607
      %v2713 = vor.u32 %v2712, 8388608
      %v2714 = vsub.s32 0, %v2713
      %v2715 = vadd.s32 %v2710, 1
      %vm2716 = vcmp.gt.s32.totalorder %v2715, 0
      %v2717 = vsel %vm2716, %v2715, 0
      %v2718 = vshrl.u32 %v2717, 5
      %v2719 = vand.u32 %v2717, 31
      %v2720 = vsub.s32 32, %v2719
      %v2721 = vshrl.u32 683565275, %v2720
      %v2722 = vshll.u32 683565275, %v2719
      %v2723 = vshrl.u32 2475754826, %v2720
      %v2724 = vor.u32 %v2722, %v2723
      %v2725 = vshll.u32 2475754826, %v2719
      %v2726 = vshrl.u32 2131351028, %v2720
      %v2727 = vor.u32 %v2725, %v2726
      %v2728 = vshll.u32 2131351028, %v2719
      %v2729 = vshrl.u32 2102212464, %v2720
      %v2730 = vor.u32 %v2728, %v2729
      %v2731 = vshll.u32 2102212464, %v2719
      %v2732 = vshrl.u32 920167782, %v2720
      %v2733 = vor.u32 %v2731, %v2732
      %v2734 = vshll.u32 920167782, %v2719
      %v2735 = vshrl.u32 1326507024, %v2720
      %v2736 = vor.u32 %v2734, %v2735
      %vm2737 = vcmp.lt.s32.totalorder %v2718, 1
      %vm2738 = vcmp.lt.s32.totalorder %v2718, 2
      %vm2739 = vcmp.lt.s32.totalorder %v2718, 3
      %vm2740 = vcmp.lt.s32.totalorder %v2718, 4
      %v2741 = vsel %vm2737, %v2721, %v2724
      %v2742 = vsel %vm2740, %v2730, 2102212464
      %v2743 = vsel %vm2739, %v2727, %v2742
      %v2744 = vsel %vm2738, %v2741, %v2743
      %v2745 = vsel %vm2737, %v2724, %v2727
      %v2746 = vsel %vm2740, %v2733, 920167782
      %v2747 = vsel %vm2739, %v2730, %v2746
      %v2748 = vsel %vm2738, %v2745, %v2747
      %v2749 = vsel %vm2737, %v2727, %v2730
      %v2750 = vsel %vm2740, %v2736, 1326507024
      %v2751 = vsel %vm2739, %v2733, %v2750
      %v2752 = vsel %vm2738, %v2749, %v2751
      %v2753 = vshll.u32 %v2713, 8
      %v2754 = vmul.u32.u64.compose %v2753, %v2752
      %v2755 = vextract.low.u32 %v2754
      %v2756 = vextract.high.u32 %v2754
      %v2757 = vmul.u32.u64.compose %v2753, %v2748
      %v2758 = vextract.low.u32 %v2757
      %v2759 = vextract.high.u32 %v2757
      %v2760 = vmul.u32 %v2753, %v2744
      %v2761 = vadd.s32 %v2756, %v2758
      %vm2762 = vc.u32 %v2756, %v2758
      %v2763 = vadd.s32 %v2759, 1
      %v2764 = vsel %vm2762, %v2763, %v2759
      %v2765 = vadd.s32 %v2760, %v2764
      %v2766 = vadd.s32 %v2765, 536870912
      %v2767 = vshrl.u32 %v2766, 30
      %v2768 = vshll.u32 %v2767, 30
      %v2769 = vsub.s32 %v2765, %v2768
      %vm2770 = vcmp.lt.s32.totalorder %v2769, 0
      %v2771 = vsub.s32 0, %v2769
      %v2772 = vsel %vm2770, %v2771, %v2769
      %v2773 = vclz %v2772
      %v2774 = vsub.s32 %v2773, 2
      %vm2775 = vcmp.gt.s32.totalorder 0, %v2774
      %v2776 = vsel %vm2775, 0, %v2774
      %v2777 = vsub.s32 32, %v2776
      %v2778 = vshll.u32 %v2769, %v2776
      %v2779 = vshrl.u32 %v2761, %v2777
      %v2780 = vor.u32 %v2778, %v2779
      %v2781 = vsub.s32 4294967266, %v2776
      %v2782 = vadd.s32 %v2781, 127
      %v2783 = vshll.u32 %v2782, 23
      %v2784 = vor.u32 4788187, %v2783
      %v2785 = vand.u32 2147483647, %v2784
      %v2787 = vcvt.s32.f32 %v2780
      %v2788 = vmul.f32 %v2787, %v2785
      %v2789 = vxor.u32 %v2788, 2147483648
      %v2790 = vsel %vm2707, %v2789, %v2788
      %v2791 = vsub.s32 4, %v2767
      %v2792 = vsel %vm2707, %v2791, %v2767
      %v2793 = vsel %vm2706, %v781, %v2790
      %v2794 = vsel %vm2706, 0, %v2792
      %v2795 = vcosq.f32.pop %v2793
      %v2796 = vsinq.f32.pop %v2793
      %vm2797 = vweird.f32 %v781
      %v2798 = vadd.s32 %v2794, 3
      %v2799 = vand.u32 %v2798, 3
      %vm2800 = vcmp.lt.s32.totalorder %v2799, 2
      %vm2801 = vcmp.eq.s32.totalorder %v2799, 0
      %v2802 = vxor.u32 %v2796, 2147483648
      %v2803 = vsel %vm2801, %v2795, %v2802
      %vm2804 = vcmp.eq.s32.totalorder %v2799, 2
      %v2805 = vxor.u32 %v2795, 2147483648
      %v2806 = vsel %vm2804, %v2805, %v2796
      %v2807 = vsel %vm2800, %v2803, %v2806
      %v2808 = vsel %vm2797, nan, %v2807
      %v2809 = vand.u32 2147483647, %v782
      %vm2810 = vcmp.le.f32.partialorder %v2809, 0.7853982
      %vm2811 = vcmp.lt.s32.totalorder %v782, 0
      %v2812 = vand.u32 %v782, 2139095040
      %v2813 = vshrl.u32 %v2812, 23
      %v2814 = vsub.s32 %v2813, 127
      %v2815 = vand.u32 2147483647, %v782
      %v2816 = vand.u32 %v2815, 8388607
      %v2817 = vor.u32 %v2816, 8388608
      %v2818 = vsub.s32 0, %v2817
      %v2819 = vadd.s32 %v2814, 1
      %vm2820 = vcmp.gt.s32.totalorder %v2819, 0
      %v2821 = vsel %vm2820, %v2819, 0
      %v2822 = vshrl.u32 %v2821, 5
      %v2823 = vand.u32 %v2821, 31
      %v2824 = vsub.s32 32, %v2823
      %v2825 = vshrl.u32 683565275, %v2824
      %v2826 = vshll.u32 683565275, %v2823
      %v2827 = vshrl.u32 2475754826, %v2824
      %v2828 = vor.u32 %v2826, %v2827
      %v2829 = vshll.u32 2475754826, %v2823
      %v2830 = vshrl.u32 2131351028, %v2824
      %v2831 = vor.u32 %v2829, %v2830
      %v2832 = vshll.u32 2131351028, %v2823
      %v2833 = vshrl.u32 2102212464, %v2824
      %v2834 = vor.u32 %v2832, %v2833
      %v2835 = vshll.u32 2102212464, %v2823
      %v2836 = vshrl.u32 920167782, %v2824
      %v2837 = vor.u32 %v2835, %v2836
      %v2838 = vshll.u32 920167782, %v2823
      %v2839 = vshrl.u32 1326507024, %v2824
      %v2840 = vor.u32 %v2838, %v2839
      %vm2841 = vcmp.lt.s32.totalorder %v2822, 1
      %vm2842 = vcmp.lt.s32.totalorder %v2822, 2
      %vm2843 = vcmp.lt.s32.totalorder %v2822, 3
      %vm2844 = vcmp.lt.s32.totalorder %v2822, 4
      %v2845 = vsel %vm2841, %v2825, %v2828
      %v2846 = vsel %vm2844, %v2834, 2102212464
      %v2847 = vsel %vm2843, %v2831, %v2846
      %v2848 = vsel %vm2842, %v2845, %v2847
      %v2849 = vsel %vm2841, %v2828, %v2831
      %v2850 = vsel %vm2844, %v2837, 920167782
      %v2851 = vsel %vm2843, %v2834, %v2850
      %v2852 = vsel %vm2842, %v2849, %v2851
      %v2853 = vsel %vm2841, %v2831, %v2834
      %v2854 = vsel %vm2844, %v2840, 1326507024
      %v2855 = vsel %vm2843, %v2837, %v2854
      %v2856 = vsel %vm2842, %v2853, %v2855
      %v2857 = vshll.u32 %v2817, 8
      %v2858 = vmul.u32.u64.compose %v2857, %v2856
      %v2859 = vextract.low.u32 %v2858
      %v2860 = vextract.high.u32 %v2858
      %v2861 = vmul.u32.u64.compose %v2857, %v2852
      %v2862 = vextract.low.u32 %v2861
      %v2863 = vextract.high.u32 %v2861
      %v2864 = vmul.u32 %v2857, %v2848
      %v2865 = vadd.s32 %v2860, %v2862
      %vm2866 = vc.u32 %v2860, %v2862
      %v2867 = vadd.s32 %v2863, 1
      %v2868 = vsel %vm2866, %v2867, %v2863
      %v2869 = vadd.s32 %v2864, %v2868
      %v2870 = vadd.s32 %v2869, 536870912
      %v2871 = vshrl.u32 %v2870, 30
      %v2872 = vshll.u32 %v2871, 30
      %v2873 = vsub.s32 %v2869, %v2872
      %vm2874 = vcmp.lt.s32.totalorder %v2873, 0
      %v2875 = vsub.s32 0, %v2873
      %v2876 = vsel %vm2874, %v2875, %v2873
      %v2877 = vclz %v2876
      %v2878 = vsub.s32 %v2877, 2
      %vm2879 = vcmp.gt.s32.totalorder 0, %v2878
      %v2880 = vsel %vm2879, 0, %v2878
      %v2881 = vsub.s32 32, %v2880
      %v2882 = vshll.u32 %v2873, %v2880
      %v2883 = vshrl.u32 %v2865, %v2881
      %v2884 = vor.u32 %v2882, %v2883
      %v2885 = vsub.s32 4294967266, %v2880
      %v2886 = vadd.s32 %v2885, 127
      %v2887 = vshll.u32 %v2886, 23
      %v2888 = vor.u32 4788187, %v2887
      %v2889 = vand.u32 2147483647, %v2888
      %v2891 = vcvt.s32.f32 %v2884
      %v2892 = vmul.f32 %v2891, %v2889
      %v2893 = vxor.u32 %v2892, 2147483648
      %v2894 = vsel %vm2811, %v2893, %v2892
      %v2895 = vsub.s32 4, %v2871
      %v2896 = vsel %vm2811, %v2895, %v2871
      %v2897 = vsel %vm2810, %v782, %v2894
      %v2898 = vsel %vm2810, 0, %v2896
      %v2899 = vcosq.f32.pop %v2897
      %v2900 = vsinq.f32.pop %v2897
      %vm2901 = vweird.f32 %v782
      %v2902 = vadd.s32 %v2898, 3
      %v2903 = vand.u32 %v2902, 3
      %vm2904 = vcmp.lt.s32.totalorder %v2903, 2
      %vm2905 = vcmp.eq.s32.totalorder %v2903, 0
      %v2906 = vxor.u32 %v2900, 2147483648
      %v2907 = vsel %vm2905, %v2899, %v2906
      %vm2908 = vcmp.eq.s32.totalorder %v2903, 2
      %v2909 = vxor.u32 %v2899, 2147483648
      %v2910 = vsel %vm2908, %v2909, %v2900
      %v2911 = vsel %vm2904, %v2907, %v2910
      %v2912 = vsel %vm2901, nan, %v2911
      %v2913 = vand.u32 2147483647, %v783
      %vm2914 = vcmp.le.f32.partialorder %v2913, 0.7853982
      %vm2915 = vcmp.lt.s32.totalorder %v783, 0
      %v2916 = vand.u32 %v783, 2139095040
      %v2917 = vshrl.u32 %v2916, 23
      %v2918 = vsub.s32 %v2917, 127
      %v2919 = vand.u32 2147483647, %v783
      %v2920 = vand.u32 %v2919, 8388607
      %v2921 = vor.u32 %v2920, 8388608
      %v2922 = vsub.s32 0, %v2921
      %v2923 = vadd.s32 %v2918, 1
      %vm2924 = vcmp.gt.s32.totalorder %v2923, 0
      %v2925 = vsel %vm2924, %v2923, 0
      %v2926 = vshrl.u32 %v2925, 5
      %v2927 = vand.u32 %v2925, 31
      %v2928 = vsub.s32 32, %v2927
      %v2929 = vshrl.u32 683565275, %v2928
      %v2930 = vshll.u32 683565275, %v2927
      %v2931 = vshrl.u32 2475754826, %v2928
      %v2932 = vor.u32 %v2930, %v2931
      %v2933 = vshll.u32 2475754826, %v2927
      %v2934 = vshrl.u32 2131351028, %v2928
      %v2935 = vor.u32 %v2933, %v2934
      %v2936 = vshll.u32 2131351028, %v2927
      %v2937 = vshrl.u32 2102212464, %v2928
      %v2938 = vor.u32 %v2936, %v2937
      %v2939 = vshll.u32 2102212464, %v2927
      %v2940 = vshrl.u32 920167782, %v2928
      %v2941 = vor.u32 %v2939, %v2940
      %v2942 = vshll.u32 920167782, %v2927
      %v2943 = vshrl.u32 1326507024, %v2928
      %v2944 = vor.u32 %v2942, %v2943
      %vm2945 = vcmp.lt.s32.totalorder %v2926, 1
      %vm2946 = vcmp.lt.s32.totalorder %v2926, 2
      %vm2947 = vcmp.lt.s32.totalorder %v2926, 3
      %vm2948 = vcmp.lt.s32.totalorder %v2926, 4
      %v2949 = vsel %vm2945, %v2929, %v2932
      %v2950 = vsel %vm2948, %v2938, 2102212464
      %v2951 = vsel %vm2947, %v2935, %v2950
      %v2952 = vsel %vm2946, %v2949, %v2951
      %v2953 = vsel %vm2945, %v2932, %v2935
      %v2954 = vsel %vm2948, %v2941, 920167782
      %v2955 = vsel %vm2947, %v2938, %v2954
      %v2956 = vsel %vm2946, %v2953, %v2955
      %v2957 = vsel %vm2945, %v2935, %v2938
      %v2958 = vsel %vm2948, %v2944, 1326507024
      %v2959 = vsel %vm2947, %v2941, %v2958
      %v2960 = vsel %vm2946, %v2957, %v2959
      %v2961 = vshll.u32 %v2921, 8
      %v2962 = vmul.u32.u64.compose %v2961, %v2960
      %v2963 = vextract.low.u32 %v2962
      %v2964 = vextract.high.u32 %v2962
      %v2965 = vmul.u32.u64.compose %v2961, %v2956
      %v2966 = vextract.low.u32 %v2965
      %v2967 = vextract.high.u32 %v2965
      %v2968 = vmul.u32 %v2961, %v2952
      %v2969 = vadd.s32 %v2964, %v2966
      %vm2970 = vc.u32 %v2964, %v2966
      %v2971 = vadd.s32 %v2967, 1
      %v2972 = vsel %vm2970, %v2971, %v2967
      %v2973 = vadd.s32 %v2968, %v2972
      %v2974 = vadd.s32 %v2973, 536870912
      %v2975 = vshrl.u32 %v2974, 30
      %v2976 = vshll.u32 %v2975, 30
      %v2977 = vsub.s32 %v2973, %v2976
      %vm2978 = vcmp.lt.s32.totalorder %v2977, 0
      %v2979 = vsub.s32 0, %v2977
      %v2980 = vsel %vm2978, %v2979, %v2977
      %v2981 = vclz %v2980
      %v2982 = vsub.s32 %v2981, 2
      %vm2983 = vcmp.gt.s32.totalorder 0, %v2982
      %v2984 = vsel %vm2983, 0, %v2982
      %v2985 = vsub.s32 32, %v2984
      %v2986 = vshll.u32 %v2977, %v2984
      %v2987 = vshrl.u32 %v2969, %v2985
      %v2988 = vor.u32 %v2986, %v2987
      %v2989 = vsub.s32 4294967266, %v2984
      %v2990 = vadd.s32 %v2989, 127
      %v2991 = vshll.u32 %v2990, 23
      %v2992 = vor.u32 4788187, %v2991
      %v2993 = vand.u32 2147483647, %v2992
      %v2995 = vcvt.s32.f32 %v2988
      %v2996 = vmul.f32 %v2995, %v2993
      %v2997 = vxor.u32 %v2996, 2147483648
      %v2998 = vsel %vm2915, %v2997, %v2996
      %v2999 = vsub.s32 4, %v2975
      %v3000 = vsel %vm2915, %v2999, %v2975
      %v3001 = vsel %vm2914, %v783, %v2998
      %v3002 = vsel %vm2914, 0, %v3000
      %v3003 = vcosq.f32.pop %v3001
      %v3004 = vsinq.f32.pop %v3001
      %vm3005 = vweird.f32 %v783
      %v3006 = vadd.s32 %v3002, 3
      %v3007 = vand.u32 %v3006, 3
      %vm3008 = vcmp.lt.s32.totalorder %v3007, 2
      %vm3009 = vcmp.eq.s32.totalorder %v3007, 0
      %v3010 = vxor.u32 %v3004, 2147483648
      %v3011 = vsel %vm3009, %v3003, %v3010
      %vm3012 = vcmp.eq.s32.totalorder %v3007, 2
      %v3013 = vxor.u32 %v3003, 2147483648
      %v3014 = vsel %vm3012, %v3013, %v3004
      %v3015 = vsel %vm3008, %v3011, %v3014
      %v3016 = vsel %vm3005, nan, %v3015
      %v3017 = vand.u32 2147483647, %v784
      %vm3018 = vcmp.le.f32.partialorder %v3017, 0.7853982
      %vm3019 = vcmp.lt.s32.totalorder %v784, 0
      %v3020 = vand.u32 %v784, 2139095040
      %v3021 = vshrl.u32 %v3020, 23
      %v3022 = vsub.s32 %v3021, 127
      %v3023 = vand.u32 2147483647, %v784
      %v3024 = vand.u32 %v3023, 8388607
      %v3025 = vor.u32 %v3024, 8388608
      %v3026 = vsub.s32 0, %v3025
      %v3027 = vadd.s32 %v3022, 1
      %vm3028 = vcmp.gt.s32.totalorder %v3027, 0
      %v3029 = vsel %vm3028, %v3027, 0
      %v3030 = vshrl.u32 %v3029, 5
      %v3031 = vand.u32 %v3029, 31
      %v3032 = vsub.s32 32, %v3031
      %v3033 = vshrl.u32 683565275, %v3032
      %v3034 = vshll.u32 683565275, %v3031
      %v3035 = vshrl.u32 2475754826, %v3032
      %v3036 = vor.u32 %v3034, %v3035
      %v3037 = vshll.u32 2475754826, %v3031
      %v3038 = vshrl.u32 2131351028, %v3032
      %v3039 = vor.u32 %v3037, %v3038
      %v3040 = vshll.u32 2131351028, %v3031
      %v3041 = vshrl.u32 2102212464, %v3032
      %v3042 = vor.u32 %v3040, %v3041
      %v3043 = vshll.u32 2102212464, %v3031
      %v3044 = vshrl.u32 920167782, %v3032
      %v3045 = vor.u32 %v3043, %v3044
      %v3046 = vshll.u32 920167782, %v3031
      %v3047 = vshrl.u32 1326507024, %v3032
      %v3048 = vor.u32 %v3046, %v3047
      %vm3049 = vcmp.lt.s32.totalorder %v3030, 1
      %vm3050 = vcmp.lt.s32.totalorder %v3030, 2
      %vm3051 = vcmp.lt.s32.totalorder %v3030, 3
      %vm3052 = vcmp.lt.s32.totalorder %v3030, 4
      %v3053 = vsel %vm3049, %v3033, %v3036
      %v3054 = vsel %vm3052, %v3042, 2102212464
      %v3055 = vsel %vm3051, %v3039, %v3054
      %v3056 = vsel %vm3050, %v3053, %v3055
      %v3057 = vsel %vm3049, %v3036, %v3039
      %v3058 = vsel %vm3052, %v3045, 920167782
      %v3059 = vsel %vm3051, %v3042, %v3058
      %v3060 = vsel %vm3050, %v3057, %v3059
      %v3061 = vsel %vm3049, %v3039, %v3042
      %v3062 = vsel %vm3052, %v3048, 1326507024
      %v3063 = vsel %vm3051, %v3045, %v3062
      %v3064 = vsel %vm3050, %v3061, %v3063
      %v3065 = vshll.u32 %v3025, 8
      %v3066 = vmul.u32.u64.compose %v3065, %v3064
      %v3067 = vextract.low.u32 %v3066
      %v3068 = vextract.high.u32 %v3066
      %v3069 = vmul.u32.u64.compose %v3065, %v3060
      %v3070 = vextract.low.u32 %v3069
      %v3071 = vextract.high.u32 %v3069
      %v3072 = vmul.u32 %v3065, %v3056
      %v3073 = vadd.s32 %v3068, %v3070
      %vm3074 = vc.u32 %v3068, %v3070
      %v3075 = vadd.s32 %v3071, 1
      %v3076 = vsel %vm3074, %v3075, %v3071
      %v3077 = vadd.s32 %v3072, %v3076
      %v3078 = vadd.s32 %v3077, 536870912
      %v3079 = vshrl.u32 %v3078, 30
      %v3080 = vshll.u32 %v3079, 30
      %v3081 = vsub.s32 %v3077, %v3080
      %vm3082 = vcmp.lt.s32.totalorder %v3081, 0
      %v3083 = vsub.s32 0, %v3081
      %v3084 = vsel %vm3082, %v3083, %v3081
      %v3085 = vclz %v3084
      %v3086 = vsub.s32 %v3085, 2
      %vm3087 = vcmp.gt.s32.totalorder 0, %v3086
      %v3088 = vsel %vm3087, 0, %v3086
      %v3089 = vsub.s32 32, %v3088
      %v3090 = vshll.u32 %v3081, %v3088
      %v3091 = vshrl.u32 %v3073, %v3089
      %v3092 = vor.u32 %v3090, %v3091
      %v3093 = vsub.s32 4294967266, %v3088
      %v3094 = vadd.s32 %v3093, 127
      %v3095 = vshll.u32 %v3094, 23
      %v3096 = vor.u32 4788187, %v3095
      %v3097 = vand.u32 2147483647, %v3096
      %v3099 = vcvt.s32.f32 %v3092
      %v3100 = vmul.f32 %v3099, %v3097
      %v3101 = vxor.u32 %v3100, 2147483648
      %v3102 = vsel %vm3019, %v3101, %v3100
      %v3103 = vsub.s32 4, %v3079
      %v3104 = vsel %vm3019, %v3103, %v3079
      %v3105 = vsel %vm3018, %v784, %v3102
      %v3106 = vsel %vm3018, 0, %v3104
      %v3107 = vcosq.f32.pop %v3105
      %v3108 = vsinq.f32.pop %v3105
      %vm3109 = vweird.f32 %v784
      %v3110 = vadd.s32 %v3106, 3
      %v3111 = vand.u32 %v3110, 3
      %vm3112 = vcmp.lt.s32.totalorder %v3111, 2
      %vm3113 = vcmp.eq.s32.totalorder %v3111, 0
      %v3114 = vxor.u32 %v3108, 2147483648
      %v3115 = vsel %vm3113, %v3107, %v3114
      %vm3116 = vcmp.eq.s32.totalorder %v3111, 2
      %v3117 = vxor.u32 %v3107, 2147483648
      %v3118 = vsel %vm3116, %v3117, %v3108
      %v3119 = vsel %vm3112, %v3115, %v3118
      %v3120 = vsel %vm3109, nan, %v3119
      %v3121 = vand.u32 2147483647, %v785
      %vm3122 = vcmp.le.f32.partialorder %v3121, 0.7853982
      %vm3123 = vcmp.lt.s32.totalorder %v785, 0
      %v3124 = vand.u32 %v785, 2139095040
      %v3125 = vshrl.u32 %v3124, 23
      %v3126 = vsub.s32 %v3125, 127
      %v3127 = vand.u32 2147483647, %v785
      %v3128 = vand.u32 %v3127, 8388607
      %v3129 = vor.u32 %v3128, 8388608
      %v3130 = vsub.s32 0, %v3129
      %v3131 = vadd.s32 %v3126, 1
      %vm3132 = vcmp.gt.s32.totalorder %v3131, 0
      %v3133 = vsel %vm3132, %v3131, 0
      %v3134 = vshrl.u32 %v3133, 5
      %v3135 = vand.u32 %v3133, 31
      %v3136 = vsub.s32 32, %v3135
      %v3137 = vshrl.u32 683565275, %v3136
      %v3138 = vshll.u32 683565275, %v3135
      %v3139 = vshrl.u32 2475754826, %v3136
      %v3140 = vor.u32 %v3138, %v3139
      %v3141 = vshll.u32 2475754826, %v3135
      %v3142 = vshrl.u32 2131351028, %v3136
      %v3143 = vor.u32 %v3141, %v3142
      %v3144 = vshll.u32 2131351028, %v3135
      %v3145 = vshrl.u32 2102212464, %v3136
      %v3146 = vor.u32 %v3144, %v3145
      %v3147 = vshll.u32 2102212464, %v3135
      %v3148 = vshrl.u32 920167782, %v3136
      %v3149 = vor.u32 %v3147, %v3148
      %v3150 = vshll.u32 920167782, %v3135
      %v3151 = vshrl.u32 1326507024, %v3136
      %v3152 = vor.u32 %v3150, %v3151
      %vm3153 = vcmp.lt.s32.totalorder %v3134, 1
      %vm3154 = vcmp.lt.s32.totalorder %v3134, 2
      %vm3155 = vcmp.lt.s32.totalorder %v3134, 3
      %vm3156 = vcmp.lt.s32.totalorder %v3134, 4
      %v3157 = vsel %vm3153, %v3137, %v3140
      %v3158 = vsel %vm3156, %v3146, 2102212464
      %v3159 = vsel %vm3155, %v3143, %v3158
      %v3160 = vsel %vm3154, %v3157, %v3159
      %v3161 = vsel %vm3153, %v3140, %v3143
      %v3162 = vsel %vm3156, %v3149, 920167782
      %v3163 = vsel %vm3155, %v3146, %v3162
      %v3164 = vsel %vm3154, %v3161, %v3163
      %v3165 = vsel %vm3153, %v3143, %v3146
      %v3166 = vsel %vm3156, %v3152, 1326507024
      %v3167 = vsel %vm3155, %v3149, %v3166
      %v3168 = vsel %vm3154, %v3165, %v3167
      %v3169 = vshll.u32 %v3129, 8
      %v3170 = vmul.u32.u64.compose %v3169, %v3168
      %v3171 = vextract.low.u32 %v3170
      %v3172 = vextract.high.u32 %v3170
      %v3173 = vmul.u32.u64.compose %v3169, %v3164
      %v3174 = vextract.low.u32 %v3173
      %v3175 = vextract.high.u32 %v3173
      %v3176 = vmul.u32 %v3169, %v3160
      %v3177 = vadd.s32 %v3172, %v3174
      %vm3178 = vc.u32 %v3172, %v3174
      %v3179 = vadd.s32 %v3175, 1
      %v3180 = vsel %vm3178, %v3179, %v3175
      %v3181 = vadd.s32 %v3176, %v3180
      %v3182 = vadd.s32 %v3181, 536870912
      %v3183 = vshrl.u32 %v3182, 30
      %v3184 = vshll.u32 %v3183, 30
      %v3185 = vsub.s32 %v3181, %v3184
      %vm3186 = vcmp.lt.s32.totalorder %v3185, 0
      %v3187 = vsub.s32 0, %v3185
      %v3188 = vsel %vm3186, %v3187, %v3185
      %v3189 = vclz %v3188
      %v3190 = vsub.s32 %v3189, 2
      %vm3191 = vcmp.gt.s32.totalorder 0, %v3190
      %v3192 = vsel %vm3191, 0, %v3190
      %v3193 = vsub.s32 32, %v3192
      %v3194 = vshll.u32 %v3185, %v3192
      %v3195 = vshrl.u32 %v3177, %v3193
      %v3196 = vor.u32 %v3194, %v3195
      %v3197 = vsub.s32 4294967266, %v3192
      %v3198 = vadd.s32 %v3197, 127
      %v3199 = vshll.u32 %v3198, 23
      %v3200 = vor.u32 4788187, %v3199
      %v3201 = vand.u32 2147483647, %v3200
      %v3203 = vcvt.s32.f32 %v3196
      %v3204 = vmul.f32 %v3203, %v3201
      %v3205 = vxor.u32 %v3204, 2147483648
      %v3206 = vsel %vm3123, %v3205, %v3204
      %v3207 = vsub.s32 4, %v3183
      %v3208 = vsel %vm3123, %v3207, %v3183
      %v3209 = vsel %vm3122, %v785, %v3206
      %v3210 = vsel %vm3122, 0, %v3208
      %v3211 = vcosq.f32.pop %v3209
      %v3212 = vsinq.f32.pop %v3209
      %vm3213 = vweird.f32 %v785
      %v3214 = vadd.s32 %v3210, 3
      %v3215 = vand.u32 %v3214, 3
      %vm3216 = vcmp.lt.s32.totalorder %v3215, 2
      %vm3217 = vcmp.eq.s32.totalorder %v3215, 0
      %v3218 = vxor.u32 %v3212, 2147483648
      %v3219 = vsel %vm3217, %v3211, %v3218
      %vm3220 = vcmp.eq.s32.totalorder %v3215, 2
      %v3221 = vxor.u32 %v3211, 2147483648
      %v3222 = vsel %vm3220, %v3221, %v3212
      %v3223 = vsel %vm3216, %v3219, %v3222
      %v3224 = vsel %vm3213, nan, %v3223
      %v3225 = vand.u32 2147483647, %v786
      %vm3226 = vcmp.le.f32.partialorder %v3225, 0.7853982
      %vm3227 = vcmp.lt.s32.totalorder %v786, 0
      %v3228 = vand.u32 %v786, 2139095040
      %v3229 = vshrl.u32 %v3228, 23
      %v3230 = vsub.s32 %v3229, 127
      %v3231 = vand.u32 2147483647, %v786
      %v3232 = vand.u32 %v3231, 8388607
      %v3233 = vor.u32 %v3232, 8388608
      %v3234 = vsub.s32 0, %v3233
      %v3235 = vadd.s32 %v3230, 1
      %vm3236 = vcmp.gt.s32.totalorder %v3235, 0
      %v3237 = vsel %vm3236, %v3235, 0
      %v3238 = vshrl.u32 %v3237, 5
      %v3239 = vand.u32 %v3237, 31
      %v3240 = vsub.s32 32, %v3239
      %v3241 = vshrl.u32 683565275, %v3240
      %v3242 = vshll.u32 683565275, %v3239
      %v3243 = vshrl.u32 2475754826, %v3240
      %v3244 = vor.u32 %v3242, %v3243
      %v3245 = vshll.u32 2475754826, %v3239
      %v3246 = vshrl.u32 2131351028, %v3240
      %v3247 = vor.u32 %v3245, %v3246
      %v3248 = vshll.u32 2131351028, %v3239
      %v3249 = vshrl.u32 2102212464, %v3240
      %v3250 = vor.u32 %v3248, %v3249
      %v3251 = vshll.u32 2102212464, %v3239
      %v3252 = vshrl.u32 920167782, %v3240
      %v3253 = vor.u32 %v3251, %v3252
      %v3254 = vshll.u32 920167782, %v3239
      %v3255 = vshrl.u32 1326507024, %v3240
      %v3256 = vor.u32 %v3254, %v3255
      %vm3257 = vcmp.lt.s32.totalorder %v3238, 1
      %vm3258 = vcmp.lt.s32.totalorder %v3238, 2
      %vm3259 = vcmp.lt.s32.totalorder %v3238, 3
      %vm3260 = vcmp.lt.s32.totalorder %v3238, 4
      %v3261 = vsel %vm3257, %v3241, %v3244
      %v3262 = vsel %vm3260, %v3250, 2102212464
      %v3263 = vsel %vm3259, %v3247, %v3262
      %v3264 = vsel %vm3258, %v3261, %v3263
      %v3265 = vsel %vm3257, %v3244, %v3247
      %v3266 = vsel %vm3260, %v3253, 920167782
      %v3267 = vsel %vm3259, %v3250, %v3266
      %v3268 = vsel %vm3258, %v3265, %v3267
      %v3269 = vsel %vm3257, %v3247, %v3250
      %v3270 = vsel %vm3260, %v3256, 1326507024
      %v3271 = vsel %vm3259, %v3253, %v3270
      %v3272 = vsel %vm3258, %v3269, %v3271
      %v3273 = vshll.u32 %v3233, 8
      %v3274 = vmul.u32.u64.compose %v3273, %v3272
      %v3275 = vextract.low.u32 %v3274
      %v3276 = vextract.high.u32 %v3274
      %v3277 = vmul.u32.u64.compose %v3273, %v3268
      %v3278 = vextract.low.u32 %v3277
      %v3279 = vextract.high.u32 %v3277
      %v3280 = vmul.u32 %v3273, %v3264
      %v3281 = vadd.s32 %v3276, %v3278
      %vm3282 = vc.u32 %v3276, %v3278
      %v3283 = vadd.s32 %v3279, 1
      %v3284 = vsel %vm3282, %v3283, %v3279
      %v3285 = vadd.s32 %v3280, %v3284
      %v3286 = vadd.s32 %v3285, 536870912
      %v3287 = vshrl.u32 %v3286, 30
      %v3288 = vshll.u32 %v3287, 30
      %v3289 = vsub.s32 %v3285, %v3288
      %vm3290 = vcmp.lt.s32.totalorder %v3289, 0
      %v3291 = vsub.s32 0, %v3289
      %v3292 = vsel %vm3290, %v3291, %v3289
      %v3293 = vclz %v3292
      %v3294 = vsub.s32 %v3293, 2
      %vm3295 = vcmp.gt.s32.totalorder 0, %v3294
      %v3296 = vsel %vm3295, 0, %v3294
      %v3297 = vsub.s32 32, %v3296
      %v3298 = vshll.u32 %v3289, %v3296
      %v3299 = vshrl.u32 %v3281, %v3297
      %v3300 = vor.u32 %v3298, %v3299
      %v3301 = vsub.s32 4294967266, %v3296
      %v3302 = vadd.s32 %v3301, 127
      %v3303 = vshll.u32 %v3302, 23
      %v3304 = vor.u32 4788187, %v3303
      %v3305 = vand.u32 2147483647, %v3304
      %v3307 = vcvt.s32.f32 %v3300
      %v3308 = vmul.f32 %v3307, %v3305
      %v3309 = vxor.u32 %v3308, 2147483648
      %v3310 = vsel %vm3227, %v3309, %v3308
      %v3311 = vsub.s32 4, %v3287
      %v3312 = vsel %vm3227, %v3311, %v3287
      %v3313 = vsel %vm3226, %v786, %v3310
      %v3314 = vsel %vm3226, 0, %v3312
      %v3315 = vcosq.f32.pop %v3313
      %v3316 = vsinq.f32.pop %v3313
      %vm3317 = vweird.f32 %v786
      %v3318 = vadd.s32 %v3314, 3
      %v3319 = vand.u32 %v3318, 3
      %vm3320 = vcmp.lt.s32.totalorder %v3319, 2
      %vm3321 = vcmp.eq.s32.totalorder %v3319, 0
      %v3322 = vxor.u32 %v3316, 2147483648
      %v3323 = vsel %vm3321, %v3315, %v3322
      %vm3324 = vcmp.eq.s32.totalorder %v3319, 2
      %v3325 = vxor.u32 %v3315, 2147483648
      %v3326 = vsel %vm3324, %v3325, %v3316
      %v3327 = vsel %vm3320, %v3323, %v3326
      %v3328 = vsel %vm3317, nan, %v3327
      %v3329 = vand.u32 2147483647, %v787
      %vm3330 = vcmp.le.f32.partialorder %v3329, 0.7853982
      %vm3331 = vcmp.lt.s32.totalorder %v787, 0
      %v3332 = vand.u32 %v787, 2139095040
      %v3333 = vshrl.u32 %v3332, 23
      %v3334 = vsub.s32 %v3333, 127
      %v3335 = vand.u32 2147483647, %v787
      %v3336 = vand.u32 %v3335, 8388607
      %v3337 = vor.u32 %v3336, 8388608
      %v3338 = vsub.s32 0, %v3337
      %v3339 = vadd.s32 %v3334, 1
      %vm3340 = vcmp.gt.s32.totalorder %v3339, 0
      %v3341 = vsel %vm3340, %v3339, 0
      %v3342 = vshrl.u32 %v3341, 5
      %v3343 = vand.u32 %v3341, 31
      %v3344 = vsub.s32 32, %v3343
      %v3345 = vshrl.u32 683565275, %v3344
      %v3346 = vshll.u32 683565275, %v3343
      %v3347 = vshrl.u32 2475754826, %v3344
      %v3348 = vor.u32 %v3346, %v3347
      %v3349 = vshll.u32 2475754826, %v3343
      %v3350 = vshrl.u32 2131351028, %v3344
      %v3351 = vor.u32 %v3349, %v3350
      %v3352 = vshll.u32 2131351028, %v3343
      %v3353 = vshrl.u32 2102212464, %v3344
      %v3354 = vor.u32 %v3352, %v3353
      %v3355 = vshll.u32 2102212464, %v3343
      %v3356 = vshrl.u32 920167782, %v3344
      %v3357 = vor.u32 %v3355, %v3356
      %v3358 = vshll.u32 920167782, %v3343
      %v3359 = vshrl.u32 1326507024, %v3344
      %v3360 = vor.u32 %v3358, %v3359
      %vm3361 = vcmp.lt.s32.totalorder %v3342, 1
      %vm3362 = vcmp.lt.s32.totalorder %v3342, 2
      %vm3363 = vcmp.lt.s32.totalorder %v3342, 3
      %vm3364 = vcmp.lt.s32.totalorder %v3342, 4
      %v3365 = vsel %vm3361, %v3345, %v3348
      %v3366 = vsel %vm3364, %v3354, 2102212464
      %v3367 = vsel %vm3363, %v3351, %v3366
      %v3368 = vsel %vm3362, %v3365, %v3367
      %v3369 = vsel %vm3361, %v3348, %v3351
      %v3370 = vsel %vm3364, %v3357, 920167782
      %v3371 = vsel %vm3363, %v3354, %v3370
      %v3372 = vsel %vm3362, %v3369, %v3371
      %v3373 = vsel %vm3361, %v3351, %v3354
      %v3374 = vsel %vm3364, %v3360, 1326507024
      %v3375 = vsel %vm3363, %v3357, %v3374
      %v3376 = vsel %vm3362, %v3373, %v3375
      %v3377 = vshll.u32 %v3337, 8
      %v3378 = vmul.u32.u64.compose %v3377, %v3376
      %v3379 = vextract.low.u32 %v3378
      %v3380 = vextract.high.u32 %v3378
      %v3381 = vmul.u32.u64.compose %v3377, %v3372
      %v3382 = vextract.low.u32 %v3381
      %v3383 = vextract.high.u32 %v3381
      %v3384 = vmul.u32 %v3377, %v3368
      %v3385 = vadd.s32 %v3380, %v3382
      %vm3386 = vc.u32 %v3380, %v3382
      %v3387 = vadd.s32 %v3383, 1
      %v3388 = vsel %vm3386, %v3387, %v3383
      %v3389 = vadd.s32 %v3384, %v3388
      %v3390 = vadd.s32 %v3389, 536870912
      %v3391 = vshrl.u32 %v3390, 30
      %v3392 = vshll.u32 %v3391, 30
      %v3393 = vsub.s32 %v3389, %v3392
      %vm3394 = vcmp.lt.s32.totalorder %v3393, 0
      %v3395 = vsub.s32 0, %v3393
      %v3396 = vsel %vm3394, %v3395, %v3393
      %v3397 = vclz %v3396
      %v3398 = vsub.s32 %v3397, 2
      %vm3399 = vcmp.gt.s32.totalorder 0, %v3398
      %v3400 = vsel %vm3399, 0, %v3398
      %v3401 = vsub.s32 32, %v3400
      %v3402 = vshll.u32 %v3393, %v3400
      %v3403 = vshrl.u32 %v3385, %v3401
      %v3404 = vor.u32 %v3402, %v3403
      %v3405 = vsub.s32 4294967266, %v3400
      %v3406 = vadd.s32 %v3405, 127
      %v3407 = vshll.u32 %v3406, 23
      %v3408 = vor.u32 4788187, %v3407
      %v3409 = vand.u32 2147483647, %v3408
      %v3411 = vcvt.s32.f32 %v3404
      %v3412 = vmul.f32 %v3411, %v3409
      %v3413 = vxor.u32 %v3412, 2147483648
      %v3414 = vsel %vm3331, %v3413, %v3412
      %v3415 = vsub.s32 4, %v3391
      %v3416 = vsel %vm3331, %v3415, %v3391
      %v3417 = vsel %vm3330, %v787, %v3414
      %v3418 = vsel %vm3330, 0, %v3416
      %v3419 = vcosq.f32.pop %v3417
      %v3420 = vsinq.f32.pop %v3417
      %vm3421 = vweird.f32 %v787
      %v3422 = vadd.s32 %v3418, 3
      %v3423 = vand.u32 %v3422, 3
      %vm3424 = vcmp.lt.s32.totalorder %v3423, 2
      %vm3425 = vcmp.eq.s32.totalorder %v3423, 0
      %v3426 = vxor.u32 %v3420, 2147483648
      %v3427 = vsel %vm3425, %v3419, %v3426
      %vm3428 = vcmp.eq.s32.totalorder %v3423, 2
      %v3429 = vxor.u32 %v3419, 2147483648
      %v3430 = vsel %vm3428, %v3429, %v3420
      %v3431 = vsel %vm3424, %v3427, %v3430
      %v3432 = vsel %vm3421, nan, %v3431
      %v3433 = vand.u32 2147483647, %v788
      %vm3434 = vcmp.le.f32.partialorder %v3433, 0.7853982
      %vm3435 = vcmp.lt.s32.totalorder %v788, 0
      %v3436 = vand.u32 %v788, 2139095040
      %v3437 = vshrl.u32 %v3436, 23
      %v3438 = vsub.s32 %v3437, 127
      %v3439 = vand.u32 2147483647, %v788
      %v3440 = vand.u32 %v3439, 8388607
      %v3441 = vor.u32 %v3440, 8388608
      %v3442 = vsub.s32 0, %v3441
      %v3443 = vadd.s32 %v3438, 1
      %vm3444 = vcmp.gt.s32.totalorder %v3443, 0
      %v3445 = vsel %vm3444, %v3443, 0
      %v3446 = vshrl.u32 %v3445, 5
      %v3447 = vand.u32 %v3445, 31
      %v3448 = vsub.s32 32, %v3447
      %v3449 = vshrl.u32 683565275, %v3448
      %v3450 = vshll.u32 683565275, %v3447
      %v3451 = vshrl.u32 2475754826, %v3448
      %v3452 = vor.u32 %v3450, %v3451
      %v3453 = vshll.u32 2475754826, %v3447
      %v3454 = vshrl.u32 2131351028, %v3448
      %v3455 = vor.u32 %v3453, %v3454
      %v3456 = vshll.u32 2131351028, %v3447
      %v3457 = vshrl.u32 2102212464, %v3448
      %v3458 = vor.u32 %v3456, %v3457
      %v3459 = vshll.u32 2102212464, %v3447
      %v3460 = vshrl.u32 920167782, %v3448
      %v3461 = vor.u32 %v3459, %v3460
      %v3462 = vshll.u32 920167782, %v3447
      %v3463 = vshrl.u32 1326507024, %v3448
      %v3464 = vor.u32 %v3462, %v3463
      %vm3465 = vcmp.lt.s32.totalorder %v3446, 1
      %vm3466 = vcmp.lt.s32.totalorder %v3446, 2
      %vm3467 = vcmp.lt.s32.totalorder %v3446, 3
      %vm3468 = vcmp.lt.s32.totalorder %v3446, 4
      %v3469 = vsel %vm3465, %v3449, %v3452
      %v3470 = vsel %vm3468, %v3458, 2102212464
      %v3471 = vsel %vm3467, %v3455, %v3470
      %v3472 = vsel %vm3466, %v3469, %v3471
      %v3473 = vsel %vm3465, %v3452, %v3455
      %v3474 = vsel %vm3468, %v3461, 920167782
      %v3475 = vsel %vm3467, %v3458, %v3474
      %v3476 = vsel %vm3466, %v3473, %v3475
      %v3477 = vsel %vm3465, %v3455, %v3458
      %v3478 = vsel %vm3468, %v3464, 1326507024
      %v3479 = vsel %vm3467, %v3461, %v3478
      %v3480 = vsel %vm3466, %v3477, %v3479
      %v3481 = vshll.u32 %v3441, 8
      %v3482 = vmul.u32.u64.compose %v3481, %v3480
      %v3483 = vextract.low.u32 %v3482
      %v3484 = vextract.high.u32 %v3482
      %v3485 = vmul.u32.u64.compose %v3481, %v3476
      %v3486 = vextract.low.u32 %v3485
      %v3487 = vextract.high.u32 %v3485
      %v3488 = vmul.u32 %v3481, %v3472
      %v3489 = vadd.s32 %v3484, %v3486
      %vm3490 = vc.u32 %v3484, %v3486
      %v3491 = vadd.s32 %v3487, 1
      %v3492 = vsel %vm3490, %v3491, %v3487
      %v3493 = vadd.s32 %v3488, %v3492
      %v3494 = vadd.s32 %v3493, 536870912
      %v3495 = vshrl.u32 %v3494, 30
      %v3496 = vshll.u32 %v3495, 30
      %v3497 = vsub.s32 %v3493, %v3496
      %vm3498 = vcmp.lt.s32.totalorder %v3497, 0
      %v3499 = vsub.s32 0, %v3497
      %v3500 = vsel %vm3498, %v3499, %v3497
      %v3501 = vclz %v3500
      %v3502 = vsub.s32 %v3501, 2
      %vm3503 = vcmp.gt.s32.totalorder 0, %v3502
      %v3504 = vsel %vm3503, 0, %v3502
      %v3505 = vsub.s32 32, %v3504
      %v3506 = vshll.u32 %v3497, %v3504
      %v3507 = vshrl.u32 %v3489, %v3505
      %v3508 = vor.u32 %v3506, %v3507
      %v3509 = vsub.s32 4294967266, %v3504
      %v3510 = vadd.s32 %v3509, 127
      %v3511 = vshll.u32 %v3510, 23
      %v3512 = vor.u32 4788187, %v3511
      %v3513 = vand.u32 2147483647, %v3512
      %v3515 = vcvt.s32.f32 %v3508
      %v3516 = vmul.f32 %v3515, %v3513
      %v3517 = vxor.u32 %v3516, 2147483648
      %v3518 = vsel %vm3435, %v3517, %v3516
      %v3519 = vsub.s32 4, %v3495
      %v3520 = vsel %vm3435, %v3519, %v3495
      %v3521 = vsel %vm3434, %v788, %v3518
      %v3522 = vsel %vm3434, 0, %v3520
      %v3523 = vcosq.f32.pop %v3521
      %v3524 = vsinq.f32.pop %v3521
      %vm3525 = vweird.f32 %v788
      %v3526 = vadd.s32 %v3522, 3
      %v3527 = vand.u32 %v3526, 3
      %vm3528 = vcmp.lt.s32.totalorder %v3527, 2
      %vm3529 = vcmp.eq.s32.totalorder %v3527, 0
      %v3530 = vxor.u32 %v3524, 2147483648
      %v3531 = vsel %vm3529, %v3523, %v3530
      %vm3532 = vcmp.eq.s32.totalorder %v3527, 2
      %v3533 = vxor.u32 %v3523, 2147483648
      %v3534 = vsel %vm3532, %v3533, %v3524
      %v3535 = vsel %vm3528, %v3531, %v3534
      %v3536 = vsel %vm3525, nan, %v3535
      %v3537 = vand.u32 2147483647, %v789
      %vm3538 = vcmp.le.f32.partialorder %v3537, 0.7853982
      %vm3539 = vcmp.lt.s32.totalorder %v789, 0
      %v3540 = vand.u32 %v789, 2139095040
      %v3541 = vshrl.u32 %v3540, 23
      %v3542 = vsub.s32 %v3541, 127
      %v3543 = vand.u32 2147483647, %v789
      %v3544 = vand.u32 %v3543, 8388607
      %v3545 = vor.u32 %v3544, 8388608
      %v3546 = vsub.s32 0, %v3545
      %v3547 = vadd.s32 %v3542, 1
      %vm3548 = vcmp.gt.s32.totalorder %v3547, 0
      %v3549 = vsel %vm3548, %v3547, 0
      %v3550 = vshrl.u32 %v3549, 5
      %v3551 = vand.u32 %v3549, 31
      %v3552 = vsub.s32 32, %v3551
      %v3553 = vshrl.u32 683565275, %v3552
      %v3554 = vshll.u32 683565275, %v3551
      %v3555 = vshrl.u32 2475754826, %v3552
      %v3556 = vor.u32 %v3554, %v3555
      %v3557 = vshll.u32 2475754826, %v3551
      %v3558 = vshrl.u32 2131351028, %v3552
      %v3559 = vor.u32 %v3557, %v3558
      %v3560 = vshll.u32 2131351028, %v3551
      %v3561 = vshrl.u32 2102212464, %v3552
      %v3562 = vor.u32 %v3560, %v3561
      %v3563 = vshll.u32 2102212464, %v3551
      %v3564 = vshrl.u32 920167782, %v3552
      %v3565 = vor.u32 %v3563, %v3564
      %v3566 = vshll.u32 920167782, %v3551
      %v3567 = vshrl.u32 1326507024, %v3552
      %v3568 = vor.u32 %v3566, %v3567
      %vm3569 = vcmp.lt.s32.totalorder %v3550, 1
      %vm3570 = vcmp.lt.s32.totalorder %v3550, 2
      %vm3571 = vcmp.lt.s32.totalorder %v3550, 3
      %vm3572 = vcmp.lt.s32.totalorder %v3550, 4
      %v3573 = vsel %vm3569, %v3553, %v3556
      %v3574 = vsel %vm3572, %v3562, 2102212464
      %v3575 = vsel %vm3571, %v3559, %v3574
      %v3576 = vsel %vm3570, %v3573, %v3575
      %v3577 = vsel %vm3569, %v3556, %v3559
      %v3578 = vsel %vm3572, %v3565, 920167782
      %v3579 = vsel %vm3571, %v3562, %v3578
      %v3580 = vsel %vm3570, %v3577, %v3579
      %v3581 = vsel %vm3569, %v3559, %v3562
      %v3582 = vsel %vm3572, %v3568, 1326507024
      %v3583 = vsel %vm3571, %v3565, %v3582
      %v3584 = vsel %vm3570, %v3581, %v3583
      %v3585 = vshll.u32 %v3545, 8
      %v3586 = vmul.u32.u64.compose %v3585, %v3584
      %v3587 = vextract.low.u32 %v3586
      %v3588 = vextract.high.u32 %v3586
      %v3589 = vmul.u32.u64.compose %v3585, %v3580
      %v3590 = vextract.low.u32 %v3589
      %v3591 = vextract.high.u32 %v3589
      %v3592 = vmul.u32 %v3585, %v3576
      %v3593 = vadd.s32 %v3588, %v3590
      %vm3594 = vc.u32 %v3588, %v3590
      %v3595 = vadd.s32 %v3591, 1
      %v3596 = vsel %vm3594, %v3595, %v3591
      %v3597 = vadd.s32 %v3592, %v3596
      %v3598 = vadd.s32 %v3597, 536870912
      %v3599 = vshrl.u32 %v3598, 30
      %v3600 = vshll.u32 %v3599, 30
      %v3601 = vsub.s32 %v3597, %v3600
      %vm3602 = vcmp.lt.s32.totalorder %v3601, 0
      %v3603 = vsub.s32 0, %v3601
      %v3604 = vsel %vm3602, %v3603, %v3601
      %v3605 = vclz %v3604
      %v3606 = vsub.s32 %v3605, 2
      %vm3607 = vcmp.gt.s32.totalorder 0, %v3606
      %v3608 = vsel %vm3607, 0, %v3606
      %v3609 = vsub.s32 32, %v3608
      %v3610 = vshll.u32 %v3601, %v3608
      %v3611 = vshrl.u32 %v3593, %v3609
      %v3612 = vor.u32 %v3610, %v3611
      %v3613 = vsub.s32 4294967266, %v3608
      %v3614 = vadd.s32 %v3613, 127
      %v3615 = vshll.u32 %v3614, 23
      %v3616 = vor.u32 4788187, %v3615
      %v3617 = vand.u32 2147483647, %v3616
      %v3619 = vcvt.s32.f32 %v3612
      %v3620 = vmul.f32 %v3619, %v3617
      %v3621 = vxor.u32 %v3620, 2147483648
      %v3622 = vsel %vm3539, %v3621, %v3620
      %v3623 = vsub.s32 4, %v3599
      %v3624 = vsel %vm3539, %v3623, %v3599
      %v3625 = vsel %vm3538, %v789, %v3622
      %v3626 = vsel %vm3538, 0, %v3624
      %v3627 = vcosq.f32.pop %v3625
      %v3628 = vsinq.f32.pop %v3625
      %vm3629 = vweird.f32 %v789
      %v3630 = vadd.s32 %v3626, 3
      %v3631 = vand.u32 %v3630, 3
      %vm3632 = vcmp.lt.s32.totalorder %v3631, 2
      %vm3633 = vcmp.eq.s32.totalorder %v3631, 0
      %v3634 = vxor.u32 %v3628, 2147483648
      %v3635 = vsel %vm3633, %v3627, %v3634
      %vm3636 = vcmp.eq.s32.totalorder %v3631, 2
      %v3637 = vxor.u32 %v3627, 2147483648
      %v3638 = vsel %vm3636, %v3637, %v3628
      %v3639 = vsel %vm3632, %v3635, %v3638
      %v3640 = vsel %vm3629, nan, %v3639
      %v3641 = vand.u32 2147483647, %v790
      %vm3642 = vcmp.le.f32.partialorder %v3641, 0.7853982
      %vm3643 = vcmp.lt.s32.totalorder %v790, 0
      %v3644 = vand.u32 %v790, 2139095040
      %v3645 = vshrl.u32 %v3644, 23
      %v3646 = vsub.s32 %v3645, 127
      %v3647 = vand.u32 2147483647, %v790
      %v3648 = vand.u32 %v3647, 8388607
      %v3649 = vor.u32 %v3648, 8388608
      %v3650 = vsub.s32 0, %v3649
      %v3651 = vadd.s32 %v3646, 1
      %vm3652 = vcmp.gt.s32.totalorder %v3651, 0
      %v3653 = vsel %vm3652, %v3651, 0
      %v3654 = vshrl.u32 %v3653, 5
      %v3655 = vand.u32 %v3653, 31
      %v3656 = vsub.s32 32, %v3655
      %v3657 = vshrl.u32 683565275, %v3656
      %v3658 = vshll.u32 683565275, %v3655
      %v3659 = vshrl.u32 2475754826, %v3656
      %v3660 = vor.u32 %v3658, %v3659
      %v3661 = vshll.u32 2475754826, %v3655
      %v3662 = vshrl.u32 2131351028, %v3656
      %v3663 = vor.u32 %v3661, %v3662
      %v3664 = vshll.u32 2131351028, %v3655
      %v3665 = vshrl.u32 2102212464, %v3656
      %v3666 = vor.u32 %v3664, %v3665
      %v3667 = vshll.u32 2102212464, %v3655
      %v3668 = vshrl.u32 920167782, %v3656
      %v3669 = vor.u32 %v3667, %v3668
      %v3670 = vshll.u32 920167782, %v3655
      %v3671 = vshrl.u32 1326507024, %v3656
      %v3672 = vor.u32 %v3670, %v3671
      %vm3673 = vcmp.lt.s32.totalorder %v3654, 1
      %vm3674 = vcmp.lt.s32.totalorder %v3654, 2
      %vm3675 = vcmp.lt.s32.totalorder %v3654, 3
      %vm3676 = vcmp.lt.s32.totalorder %v3654, 4
      %v3677 = vsel %vm3673, %v3657, %v3660
      %v3678 = vsel %vm3676, %v3666, 2102212464
      %v3679 = vsel %vm3675, %v3663, %v3678
      %v3680 = vsel %vm3674, %v3677, %v3679
      %v3681 = vsel %vm3673, %v3660, %v3663
      %v3682 = vsel %vm3676, %v3669, 920167782
      %v3683 = vsel %vm3675, %v3666, %v3682
      %v3684 = vsel %vm3674, %v3681, %v3683
      %v3685 = vsel %vm3673, %v3663, %v3666
      %v3686 = vsel %vm3676, %v3672, 1326507024
      %v3687 = vsel %vm3675, %v3669, %v3686
      %v3688 = vsel %vm3674, %v3685, %v3687
      %v3689 = vshll.u32 %v3649, 8
      %v3690 = vmul.u32.u64.compose %v3689, %v3688
      %v3691 = vextract.low.u32 %v3690
      %v3692 = vextract.high.u32 %v3690
      %v3693 = vmul.u32.u64.compose %v3689, %v3684
      %v3694 = vextract.low.u32 %v3693
      %v3695 = vextract.high.u32 %v3693
      %v3696 = vmul.u32 %v3689, %v3680
      %v3697 = vadd.s32 %v3692, %v3694
      %vm3698 = vc.u32 %v3692, %v3694
      %v3699 = vadd.s32 %v3695, 1
      %v3700 = vsel %vm3698, %v3699, %v3695
      %v3701 = vadd.s32 %v3696, %v3700
      %v3702 = vadd.s32 %v3701, 536870912
      %v3703 = vshrl.u32 %v3702, 30
      %v3704 = vshll.u32 %v3703, 30
      %v3705 = vsub.s32 %v3701, %v3704
      %vm3706 = vcmp.lt.s32.totalorder %v3705, 0
      %v3707 = vsub.s32 0, %v3705
      %v3708 = vsel %vm3706, %v3707, %v3705
      %v3709 = vclz %v3708
      %v3710 = vsub.s32 %v3709, 2
      %vm3711 = vcmp.gt.s32.totalorder 0, %v3710
      %v3712 = vsel %vm3711, 0, %v3710
      %v3713 = vsub.s32 32, %v3712
      %v3714 = vshll.u32 %v3705, %v3712
      %v3715 = vshrl.u32 %v3697, %v3713
      %v3716 = vor.u32 %v3714, %v3715
      %v3717 = vsub.s32 4294967266, %v3712
      %v3718 = vadd.s32 %v3717, 127
      %v3719 = vshll.u32 %v3718, 23
      %v3720 = vor.u32 4788187, %v3719
      %v3721 = vand.u32 2147483647, %v3720
      %v3723 = vcvt.s32.f32 %v3716
      %v3724 = vmul.f32 %v3723, %v3721
      %v3725 = vxor.u32 %v3724, 2147483648
      %v3726 = vsel %vm3643, %v3725, %v3724
      %v3727 = vsub.s32 4, %v3703
      %v3728 = vsel %vm3643, %v3727, %v3703
      %v3729 = vsel %vm3642, %v790, %v3726
      %v3730 = vsel %vm3642, 0, %v3728
      %v3731 = vcosq.f32.pop %v3729
      %v3732 = vsinq.f32.pop %v3729
      %vm3733 = vweird.f32 %v790
      %v3734 = vadd.s32 %v3730, 3
      %v3735 = vand.u32 %v3734, 3
      %vm3736 = vcmp.lt.s32.totalorder %v3735, 2
      %vm3737 = vcmp.eq.s32.totalorder %v3735, 0
      %v3738 = vxor.u32 %v3732, 2147483648
      %v3739 = vsel %vm3737, %v3731, %v3738
      %vm3740 = vcmp.eq.s32.totalorder %v3735, 2
      %v3741 = vxor.u32 %v3731, 2147483648
      %v3742 = vsel %vm3740, %v3741, %v3732
      %v3743 = vsel %vm3736, %v3739, %v3742
      %v3744 = vsel %vm3733, nan, %v3743
      %v3745 = vand.u32 2147483647, %v791
      %vm3746 = vcmp.le.f32.partialorder %v3745, 0.7853982
      %vm3747 = vcmp.lt.s32.totalorder %v791, 0
      %v3748 = vand.u32 %v791, 2139095040
      %v3749 = vshrl.u32 %v3748, 23
      %v3750 = vsub.s32 %v3749, 127
      %v3751 = vand.u32 2147483647, %v791
      %v3752 = vand.u32 %v3751, 8388607
      %v3753 = vor.u32 %v3752, 8388608
      %v3754 = vsub.s32 0, %v3753
      %v3755 = vadd.s32 %v3750, 1
      %vm3756 = vcmp.gt.s32.totalorder %v3755, 0
      %v3757 = vsel %vm3756, %v3755, 0
      %v3758 = vshrl.u32 %v3757, 5
      %v3759 = vand.u32 %v3757, 31
      %v3760 = vsub.s32 32, %v3759
      %v3761 = vshrl.u32 683565275, %v3760
      %v3762 = vshll.u32 683565275, %v3759
      %v3763 = vshrl.u32 2475754826, %v3760
      %v3764 = vor.u32 %v3762, %v3763
      %v3765 = vshll.u32 2475754826, %v3759
      %v3766 = vshrl.u32 2131351028, %v3760
      %v3767 = vor.u32 %v3765, %v3766
      %v3768 = vshll.u32 2131351028, %v3759
      %v3769 = vshrl.u32 2102212464, %v3760
      %v3770 = vor.u32 %v3768, %v3769
      %v3771 = vshll.u32 2102212464, %v3759
      %v3772 = vshrl.u32 920167782, %v3760
      %v3773 = vor.u32 %v3771, %v3772
      %v3774 = vshll.u32 920167782, %v3759
      %v3775 = vshrl.u32 1326507024, %v3760
      %v3776 = vor.u32 %v3774, %v3775
      %vm3777 = vcmp.lt.s32.totalorder %v3758, 1
      %vm3778 = vcmp.lt.s32.totalorder %v3758, 2
      %vm3779 = vcmp.lt.s32.totalorder %v3758, 3
      %vm3780 = vcmp.lt.s32.totalorder %v3758, 4
      %v3781 = vsel %vm3777, %v3761, %v3764
      %v3782 = vsel %vm3780, %v3770, 2102212464
      %v3783 = vsel %vm3779, %v3767, %v3782
      %v3784 = vsel %vm3778, %v3781, %v3783
      %v3785 = vsel %vm3777, %v3764, %v3767
      %v3786 = vsel %vm3780, %v3773, 920167782
      %v3787 = vsel %vm3779, %v3770, %v3786
      %v3788 = vsel %vm3778, %v3785, %v3787
      %v3789 = vsel %vm3777, %v3767, %v3770
      %v3790 = vsel %vm3780, %v3776, 1326507024
      %v3791 = vsel %vm3779, %v3773, %v3790
      %v3792 = vsel %vm3778, %v3789, %v3791
      %v3793 = vshll.u32 %v3753, 8
      %v3794 = vmul.u32.u64.compose %v3793, %v3792
      %v3795 = vextract.low.u32 %v3794
      %v3796 = vextract.high.u32 %v3794
      %v3797 = vmul.u32.u64.compose %v3793, %v3788
      %v3798 = vextract.low.u32 %v3797
      %v3799 = vextract.high.u32 %v3797
      %v3800 = vmul.u32 %v3793, %v3784
      %v3801 = vadd.s32 %v3796, %v3798
      %vm3802 = vc.u32 %v3796, %v3798
      %v3803 = vadd.s32 %v3799, 1
      %v3804 = vsel %vm3802, %v3803, %v3799
      %v3805 = vadd.s32 %v3800, %v3804
      %v3806 = vadd.s32 %v3805, 536870912
      %v3807 = vshrl.u32 %v3806, 30
      %v3808 = vshll.u32 %v3807, 30
      %v3809 = vsub.s32 %v3805, %v3808
      %vm3810 = vcmp.lt.s32.totalorder %v3809, 0
      %v3811 = vsub.s32 0, %v3809
      %v3812 = vsel %vm3810, %v3811, %v3809
      %v3813 = vclz %v3812
      %v3814 = vsub.s32 %v3813, 2
      %vm3815 = vcmp.gt.s32.totalorder 0, %v3814
      %v3816 = vsel %vm3815, 0, %v3814
      %v3817 = vsub.s32 32, %v3816
      %v3818 = vshll.u32 %v3809, %v3816
      %v3819 = vshrl.u32 %v3801, %v3817
      %v3820 = vor.u32 %v3818, %v3819
      %v3821 = vsub.s32 4294967266, %v3816
      %v3822 = vadd.s32 %v3821, 127
      %v3823 = vshll.u32 %v3822, 23
      %v3824 = vor.u32 4788187, %v3823
      %v3825 = vand.u32 2147483647, %v3824
      %v3827 = vcvt.s32.f32 %v3820
      %v3828 = vmul.f32 %v3827, %v3825
      %v3829 = vxor.u32 %v3828, 2147483648
      %v3830 = vsel %vm3747, %v3829, %v3828
      %v3831 = vsub.s32 4, %v3807
      %v3832 = vsel %vm3747, %v3831, %v3807
      %v3833 = vsel %vm3746, %v791, %v3830
      %v3834 = vsel %vm3746, 0, %v3832
      %v3835 = vcosq.f32.pop %v3833
      %v3836 = vsinq.f32.pop %v3833
      %vm3837 = vweird.f32 %v791
      %v3838 = vadd.s32 %v3834, 3
      %v3839 = vand.u32 %v3838, 3
      %vm3840 = vcmp.lt.s32.totalorder %v3839, 2
      %vm3841 = vcmp.eq.s32.totalorder %v3839, 0
      %v3842 = vxor.u32 %v3836, 2147483648
      %v3843 = vsel %vm3841, %v3835, %v3842
      %vm3844 = vcmp.eq.s32.totalorder %v3839, 2
      %v3845 = vxor.u32 %v3835, 2147483648
      %v3846 = vsel %vm3844, %v3845, %v3836
      %v3847 = vsel %vm3840, %v3843, %v3846
      %v3848 = vsel %vm3837, nan, %v3847
      %v3849 = vand.u32 2147483647, %v792
      %vm3850 = vcmp.le.f32.partialorder %v3849, 0.7853982
      %vm3851 = vcmp.lt.s32.totalorder %v792, 0
      %v3852 = vand.u32 %v792, 2139095040
      %v3853 = vshrl.u32 %v3852, 23
      %v3854 = vsub.s32 %v3853, 127
      %v3855 = vand.u32 2147483647, %v792
      %v3856 = vand.u32 %v3855, 8388607
      %v3857 = vor.u32 %v3856, 8388608
      %v3858 = vsub.s32 0, %v3857
      %v3859 = vadd.s32 %v3854, 1
      %vm3860 = vcmp.gt.s32.totalorder %v3859, 0
      %v3861 = vsel %vm3860, %v3859, 0
      %v3862 = vshrl.u32 %v3861, 5
      %v3863 = vand.u32 %v3861, 31
      %v3864 = vsub.s32 32, %v3863
      %v3865 = vshrl.u32 683565275, %v3864
      %v3866 = vshll.u32 683565275, %v3863
      %v3867 = vshrl.u32 2475754826, %v3864
      %v3868 = vor.u32 %v3866, %v3867
      %v3869 = vshll.u32 2475754826, %v3863
      %v3870 = vshrl.u32 2131351028, %v3864
      %v3871 = vor.u32 %v3869, %v3870
      %v3872 = vshll.u32 2131351028, %v3863
      %v3873 = vshrl.u32 2102212464, %v3864
      %v3874 = vor.u32 %v3872, %v3873
      %v3875 = vshll.u32 2102212464, %v3863
      %v3876 = vshrl.u32 920167782, %v3864
      %v3877 = vor.u32 %v3875, %v3876
      %v3878 = vshll.u32 920167782, %v3863
      %v3879 = vshrl.u32 1326507024, %v3864
      %v3880 = vor.u32 %v3878, %v3879
      %vm3881 = vcmp.lt.s32.totalorder %v3862, 1
      %vm3882 = vcmp.lt.s32.totalorder %v3862, 2
      %vm3883 = vcmp.lt.s32.totalorder %v3862, 3
      %vm3884 = vcmp.lt.s32.totalorder %v3862, 4
      %v3885 = vsel %vm3881, %v3865, %v3868
      %v3886 = vsel %vm3884, %v3874, 2102212464
      %v3887 = vsel %vm3883, %v3871, %v3886
      %v3888 = vsel %vm3882, %v3885, %v3887
      %v3889 = vsel %vm3881, %v3868, %v3871
      %v3890 = vsel %vm3884, %v3877, 920167782
      %v3891 = vsel %vm3883, %v3874, %v3890
      %v3892 = vsel %vm3882, %v3889, %v3891
      %v3893 = vsel %vm3881, %v3871, %v3874
      %v3894 = vsel %vm3884, %v3880, 1326507024
      %v3895 = vsel %vm3883, %v3877, %v3894
      %v3896 = vsel %vm3882, %v3893, %v3895
      %v3897 = vshll.u32 %v3857, 8
      %v3898 = vmul.u32.u64.compose %v3897, %v3896
      %v3899 = vextract.low.u32 %v3898
      %v3900 = vextract.high.u32 %v3898
      %v3901 = vmul.u32.u64.compose %v3897, %v3892
      %v3902 = vextract.low.u32 %v3901
      %v3903 = vextract.high.u32 %v3901
      %v3904 = vmul.u32 %v3897, %v3888
      %v3905 = vadd.s32 %v3900, %v3902
      %vm3906 = vc.u32 %v3900, %v3902
      %v3907 = vadd.s32 %v3903, 1
      %v3908 = vsel %vm3906, %v3907, %v3903
      %v3909 = vadd.s32 %v3904, %v3908
      %v3910 = vadd.s32 %v3909, 536870912
      %v3911 = vshrl.u32 %v3910, 30
      %v3912 = vshll.u32 %v3911, 30
      %v3913 = vsub.s32 %v3909, %v3912
      %vm3914 = vcmp.lt.s32.totalorder %v3913, 0
      %v3915 = vsub.s32 0, %v3913
      %v3916 = vsel %vm3914, %v3915, %v3913
      %v3917 = vclz %v3916
      %v3918 = vsub.s32 %v3917, 2
      %vm3919 = vcmp.gt.s32.totalorder 0, %v3918
      %v3920 = vsel %vm3919, 0, %v3918
      %v3921 = vsub.s32 32, %v3920
      %v3922 = vshll.u32 %v3913, %v3920
      %v3923 = vshrl.u32 %v3905, %v3921
      %v3924 = vor.u32 %v3922, %v3923
      %v3925 = vsub.s32 4294967266, %v3920
      %v3926 = vadd.s32 %v3925, 127
      %v3927 = vshll.u32 %v3926, 23
      %v3928 = vor.u32 4788187, %v3927
      %v3929 = vand.u32 2147483647, %v3928
      %v3931 = vcvt.s32.f32 %v3924
      %v3932 = vmul.f32 %v3931, %v3929
      %v3933 = vxor.u32 %v3932, 2147483648
      %v3934 = vsel %vm3851, %v3933, %v3932
      %v3935 = vsub.s32 4, %v3911
      %v3936 = vsel %vm3851, %v3935, %v3911
      %v3937 = vsel %vm3850, %v792, %v3934
      %v3938 = vsel %vm3850, 0, %v3936
      %v3939 = vcosq.f32.pop %v3937
      %v3940 = vsinq.f32.pop %v3937
      %vm3941 = vweird.f32 %v792
      %v3942 = vadd.s32 %v3938, 3
      %v3943 = vand.u32 %v3942, 3
      %vm3944 = vcmp.lt.s32.totalorder %v3943, 2
      %vm3945 = vcmp.eq.s32.totalorder %v3943, 0
      %v3946 = vxor.u32 %v3940, 2147483648
      %v3947 = vsel %vm3945, %v3939, %v3946
      %vm3948 = vcmp.eq.s32.totalorder %v3943, 2
      %v3949 = vxor.u32 %v3939, 2147483648
      %v3950 = vsel %vm3948, %v3949, %v3940
      %v3951 = vsel %vm3944, %v3947, %v3950
      %v3952 = vsel %vm3941, nan, %v3951
      %v3953 = vand.u32 2147483647, %v793
      %vm3954 = vcmp.le.f32.partialorder %v3953, 0.7853982
      %vm3955 = vcmp.lt.s32.totalorder %v793, 0
      %v3956 = vand.u32 %v793, 2139095040
      %v3957 = vshrl.u32 %v3956, 23
      %v3958 = vsub.s32 %v3957, 127
      %v3959 = vand.u32 2147483647, %v793
      %v3960 = vand.u32 %v3959, 8388607
      %v3961 = vor.u32 %v3960, 8388608
      %v3962 = vsub.s32 0, %v3961
      %v3963 = vadd.s32 %v3958, 1
      %vm3964 = vcmp.gt.s32.totalorder %v3963, 0
      %v3965 = vsel %vm3964, %v3963, 0
      %v3966 = vshrl.u32 %v3965, 5
      %v3967 = vand.u32 %v3965, 31
      %v3968 = vsub.s32 32, %v3967
      %v3969 = vshrl.u32 683565275, %v3968
      %v3970 = vshll.u32 683565275, %v3967
      %v3971 = vshrl.u32 2475754826, %v3968
      %v3972 = vor.u32 %v3970, %v3971
      %v3973 = vshll.u32 2475754826, %v3967
      %v3974 = vshrl.u32 2131351028, %v3968
      %v3975 = vor.u32 %v3973, %v3974
      %v3976 = vshll.u32 2131351028, %v3967
      %v3977 = vshrl.u32 2102212464, %v3968
      %v3978 = vor.u32 %v3976, %v3977
      %v3979 = vshll.u32 2102212464, %v3967
      %v3980 = vshrl.u32 920167782, %v3968
      %v3981 = vor.u32 %v3979, %v3980
      %v3982 = vshll.u32 920167782, %v3967
      %v3983 = vshrl.u32 1326507024, %v3968
      %v3984 = vor.u32 %v3982, %v3983
      %vm3985 = vcmp.lt.s32.totalorder %v3966, 1
      %vm3986 = vcmp.lt.s32.totalorder %v3966, 2
      %vm3987 = vcmp.lt.s32.totalorder %v3966, 3
      %vm3988 = vcmp.lt.s32.totalorder %v3966, 4
      %v3989 = vsel %vm3985, %v3969, %v3972
      %v3990 = vsel %vm3988, %v3978, 2102212464
      %v3991 = vsel %vm3987, %v3975, %v3990
      %v3992 = vsel %vm3986, %v3989, %v3991
      %v3993 = vsel %vm3985, %v3972, %v3975
      %v3994 = vsel %vm3988, %v3981, 920167782
      %v3995 = vsel %vm3987, %v3978, %v3994
      %v3996 = vsel %vm3986, %v3993, %v3995
      %v3997 = vsel %vm3985, %v3975, %v3978
      %v3998 = vsel %vm3988, %v3984, 1326507024
      %v3999 = vsel %vm3987, %v3981, %v3998
      %v4000 = vsel %vm3986, %v3997, %v3999
      %v4001 = vshll.u32 %v3961, 8
      %v4002 = vmul.u32.u64.compose %v4001, %v4000
      %v4003 = vextract.low.u32 %v4002
      %v4004 = vextract.high.u32 %v4002
      %v4005 = vmul.u32.u64.compose %v4001, %v3996
      %v4006 = vextract.low.u32 %v4005
      %v4007 = vextract.high.u32 %v4005
      %v4008 = vmul.u32 %v4001, %v3992
      %v4009 = vadd.s32 %v4004, %v4006
      %vm4010 = vc.u32 %v4004, %v4006
      %v4011 = vadd.s32 %v4007, 1
      %v4012 = vsel %vm4010, %v4011, %v4007
      %v4013 = vadd.s32 %v4008, %v4012
      %v4014 = vadd.s32 %v4013, 536870912
      %v4015 = vshrl.u32 %v4014, 30
      %v4016 = vshll.u32 %v4015, 30
      %v4017 = vsub.s32 %v4013, %v4016
      %vm4018 = vcmp.lt.s32.totalorder %v4017, 0
      %v4019 = vsub.s32 0, %v4017
      %v4020 = vsel %vm4018, %v4019, %v4017
      %v4021 = vclz %v4020
      %v4022 = vsub.s32 %v4021, 2
      %vm4023 = vcmp.gt.s32.totalorder 0, %v4022
      %v4024 = vsel %vm4023, 0, %v4022
      %v4025 = vsub.s32 32, %v4024
      %v4026 = vshll.u32 %v4017, %v4024
      %v4027 = vshrl.u32 %v4009, %v4025
      %v4028 = vor.u32 %v4026, %v4027
      %v4029 = vsub.s32 4294967266, %v4024
      %v4030 = vadd.s32 %v4029, 127
      %v4031 = vshll.u32 %v4030, 23
      %v4032 = vor.u32 4788187, %v4031
      %v4033 = vand.u32 2147483647, %v4032
      %v4035 = vcvt.s32.f32 %v4028
      %v4036 = vmul.f32 %v4035, %v4033
      %v4037 = vxor.u32 %v4036, 2147483648
      %v4038 = vsel %vm3955, %v4037, %v4036
      %v4039 = vsub.s32 4, %v4015
      %v4040 = vsel %vm3955, %v4039, %v4015
      %v4041 = vsel %vm3954, %v793, %v4038
      %v4042 = vsel %vm3954, 0, %v4040
      %v4043 = vcosq.f32.pop %v4041
      %v4044 = vsinq.f32.pop %v4041
      %vm4045 = vweird.f32 %v793
      %v4046 = vadd.s32 %v4042, 3
      %v4047 = vand.u32 %v4046, 3
      %vm4048 = vcmp.lt.s32.totalorder %v4047, 2
      %vm4049 = vcmp.eq.s32.totalorder %v4047, 0
      %v4050 = vxor.u32 %v4044, 2147483648
      %v4051 = vsel %vm4049, %v4043, %v4050
      %vm4052 = vcmp.eq.s32.totalorder %v4047, 2
      %v4053 = vxor.u32 %v4043, 2147483648
      %v4054 = vsel %vm4052, %v4053, %v4044
      %v4055 = vsel %vm4048, %v4051, %v4054
      %v4056 = vsel %vm4045, nan, %v4055
      %v4057 = vand.u32 2147483647, %v794
      %vm4058 = vcmp.le.f32.partialorder %v4057, 0.7853982
      %vm4059 = vcmp.lt.s32.totalorder %v794, 0
      %v4060 = vand.u32 %v794, 2139095040
      %v4061 = vshrl.u32 %v4060, 23
      %v4062 = vsub.s32 %v4061, 127
      %v4063 = vand.u32 2147483647, %v794
      %v4064 = vand.u32 %v4063, 8388607
      %v4065 = vor.u32 %v4064, 8388608
      %v4066 = vsub.s32 0, %v4065
      %v4067 = vadd.s32 %v4062, 1
      %vm4068 = vcmp.gt.s32.totalorder %v4067, 0
      %v4069 = vsel %vm4068, %v4067, 0
      %v4070 = vshrl.u32 %v4069, 5
      %v4071 = vand.u32 %v4069, 31
      %v4072 = vsub.s32 32, %v4071
      %v4073 = vshrl.u32 683565275, %v4072
      %v4074 = vshll.u32 683565275, %v4071
      %v4075 = vshrl.u32 2475754826, %v4072
      %v4076 = vor.u32 %v4074, %v4075
      %v4077 = vshll.u32 2475754826, %v4071
      %v4078 = vshrl.u32 2131351028, %v4072
      %v4079 = vor.u32 %v4077, %v4078
      %v4080 = vshll.u32 2131351028, %v4071
      %v4081 = vshrl.u32 2102212464, %v4072
      %v4082 = vor.u32 %v4080, %v4081
      %v4083 = vshll.u32 2102212464, %v4071
      %v4084 = vshrl.u32 920167782, %v4072
      %v4085 = vor.u32 %v4083, %v4084
      %v4086 = vshll.u32 920167782, %v4071
      %v4087 = vshrl.u32 1326507024, %v4072
      %v4088 = vor.u32 %v4086, %v4087
      %vm4089 = vcmp.lt.s32.totalorder %v4070, 1
      %vm4090 = vcmp.lt.s32.totalorder %v4070, 2
      %vm4091 = vcmp.lt.s32.totalorder %v4070, 3
      %vm4092 = vcmp.lt.s32.totalorder %v4070, 4
      %v4093 = vsel %vm4089, %v4073, %v4076
      %v4094 = vsel %vm4092, %v4082, 2102212464
      %v4095 = vsel %vm4091, %v4079, %v4094
      %v4096 = vsel %vm4090, %v4093, %v4095
      %v4097 = vsel %vm4089, %v4076, %v4079
      %v4098 = vsel %vm4092, %v4085, 920167782
      %v4099 = vsel %vm4091, %v4082, %v4098
      %v4100 = vsel %vm4090, %v4097, %v4099
      %v4101 = vsel %vm4089, %v4079, %v4082
      %v4102 = vsel %vm4092, %v4088, 1326507024
      %v4103 = vsel %vm4091, %v4085, %v4102
      %v4104 = vsel %vm4090, %v4101, %v4103
      %v4105 = vshll.u32 %v4065, 8
      %v4106 = vmul.u32.u64.compose %v4105, %v4104
      %v4107 = vextract.low.u32 %v4106
      %v4108 = vextract.high.u32 %v4106
      %v4109 = vmul.u32.u64.compose %v4105, %v4100
      %v4110 = vextract.low.u32 %v4109
      %v4111 = vextract.high.u32 %v4109
      %v4112 = vmul.u32 %v4105, %v4096
      %v4113 = vadd.s32 %v4108, %v4110
      %vm4114 = vc.u32 %v4108, %v4110
      %v4115 = vadd.s32 %v4111, 1
      %v4116 = vsel %vm4114, %v4115, %v4111
      %v4117 = vadd.s32 %v4112, %v4116
      %v4118 = vadd.s32 %v4117, 536870912
      %v4119 = vshrl.u32 %v4118, 30
      %v4120 = vshll.u32 %v4119, 30
      %v4121 = vsub.s32 %v4117, %v4120
      %vm4122 = vcmp.lt.s32.totalorder %v4121, 0
      %v4123 = vsub.s32 0, %v4121
      %v4124 = vsel %vm4122, %v4123, %v4121
      %v4125 = vclz %v4124
      %v4126 = vsub.s32 %v4125, 2
      %vm4127 = vcmp.gt.s32.totalorder 0, %v4126
      %v4128 = vsel %vm4127, 0, %v4126
      %v4129 = vsub.s32 32, %v4128
      %v4130 = vshll.u32 %v4121, %v4128
      %v4131 = vshrl.u32 %v4113, %v4129
      %v4132 = vor.u32 %v4130, %v4131
      %v4133 = vsub.s32 4294967266, %v4128
      %v4134 = vadd.s32 %v4133, 127
      %v4135 = vshll.u32 %v4134, 23
      %v4136 = vor.u32 4788187, %v4135
      %v4137 = vand.u32 2147483647, %v4136
      %v4139 = vcvt.s32.f32 %v4132
      %v4140 = vmul.f32 %v4139, %v4137
      %v4141 = vxor.u32 %v4140, 2147483648
      %v4142 = vsel %vm4059, %v4141, %v4140
      %v4143 = vsub.s32 4, %v4119
      %v4144 = vsel %vm4059, %v4143, %v4119
      %v4145 = vsel %vm4058, %v794, %v4142
      %v4146 = vsel %vm4058, 0, %v4144
      %v4147 = vcosq.f32.pop %v4145
      %v4148 = vsinq.f32.pop %v4145
      %vm4149 = vweird.f32 %v794
      %v4150 = vadd.s32 %v4146, 3
      %v4151 = vand.u32 %v4150, 3
      %vm4152 = vcmp.lt.s32.totalorder %v4151, 2
      %vm4153 = vcmp.eq.s32.totalorder %v4151, 0
      %v4154 = vxor.u32 %v4148, 2147483648
      %v4155 = vsel %vm4153, %v4147, %v4154
      %vm4156 = vcmp.eq.s32.totalorder %v4151, 2
      %v4157 = vxor.u32 %v4147, 2147483648
      %v4158 = vsel %vm4156, %v4157, %v4148
      %v4159 = vsel %vm4152, %v4155, %v4158
      %v4160 = vsel %vm4149, nan, %v4159
      %v4161 = vlaneseq
      %v4162 = vshrl.u32 %v4161, 7
      %v4163 = vsub.s32 0, %v4162
      %v4164 = vrot.slane %v832, %v4163
      %v4165 = vmul.f32 %v4164, %v936
      %v4166 = vmul.f32 %v4164, %v1040
      %v4167 = vmul.f32 %v4164, %v1144
      %v4168 = vmul.f32 %v4164, %v1248
      %v4169 = vmul.f32 %v4164, %v1352
      %v4170 = vmul.f32 %v4164, %v1456
      %v4171 = vmul.f32 %v4164, %v1560
      %v4172 = vmul.f32 %v4164, %v1664
      %v4173 = vmul.f32 %v4164, %v1768
      %v4174 = vmul.f32 %v4164, %v1872
      %v4175 = vmul.f32 %v4164, %v1976
      %v4176 = vmul.f32 %v4164, %v2080
      %v4177 = vmul.f32 %v4164, %v2184
      %v4178 = vmul.f32 %v4164, %v2288
      %v4179 = vmul.f32 %v4164, %v2392
      %v4180 = vmul.f32 %v4164, %v2496
      %v4181 = vmul.f32 %v4164, %v2600
      %v4182 = vmul.f32 %v4164, %v2704
      %v4183 = vmul.f32 %v4164, %v2808
      %v4184 = vmul.f32 %v4164, %v2912
      %v4185 = vmul.f32 %v4164, %v3016
      %v4186 = vmul.f32 %v4164, %v3120
      %v4187 = vmul.f32 %v4164, %v3224
      %v4188 = vmul.f32 %v4164, %v3328
      %v4189 = vmul.f32 %v4164, %v3432
      %v4190 = vmul.f32 %v4164, %v3536
      %v4191 = vmul.f32 %v4164, %v3640
      %v4192 = vmul.f32 %v4164, %v3744
      %v4193 = vmul.f32 %v4164, %v3848
      %v4194 = vmul.f32 %v4164, %v3952
      %v4195 = vmul.f32 %v4164, %v4056
      %v4196 = vmul.f32 %v4164, %v4160
      %v4197 = vadd.f32 %v800, %v4165
      %v4198 = vadd.f32 %v801, %v4166
      %v4199 = vadd.f32 %v802, %v4167
      %v4200 = vadd.f32 %v803, %v4168
      %v4201 = vadd.f32 %v804, %v4169
      %v4202 = vadd.f32 %v805, %v4170
      %v4203 = vadd.f32 %v806, %v4171
      %v4204 = vadd.f32 %v807, %v4172
      %v4205 = vadd.f32 %v808, %v4173
      %v4206 = vadd.f32 %v809, %v4174
      %v4207 = vadd.f32 %v810, %v4175
      %v4208 = vadd.f32 %v811, %v4176
      %v4209 = vadd.f32 %v812, %v4177
      %v4210 = vadd.f32 %v813, %v4178
      %v4211 = vadd.f32 %v814, %v4179
      %v4212 = vadd.f32 %v815, %v4180
      %v4213 = vadd.f32 %v816, %v4181
      %v4214 = vadd.f32 %v817, %v4182
      %v4215 = vadd.f32 %v818, %v4183
      %v4216 = vadd.f32 %v819, %v4184
      %v4217 = vadd.f32 %v820, %v4185
      %v4218 = vadd.f32 %v821, %v4186
      %v4219 = vadd.f32 %v822, %v4187
      %v4220 = vadd.f32 %v823, %v4188
      %v4221 = vadd.f32 %v824, %v4189
      %v4222 = vadd.f32 %v825, %v4190
      %v4223 = vadd.f32 %v826, %v4191
      %v4224 = vadd.f32 %v827, %v4192
      %v4225 = vadd.f32 %v828, %v4193
      %v4226 = vadd.f32 %v829, %v4194
      %v4227 = vadd.f32 %v830, %v4195
      %v4228 = vadd.f32 %v831, %v4196
      %v4229 = vld [vmem:[%s2 + $0x2] sm:$0x1]
      %v4230 = vand.u32 2147483647, %v763
      %vm4231 = vcmp.le.f32.partialorder %v4230, 0.7853982
      %vm4232 = vcmp.lt.s32.totalorder %v763, 0
      %v4233 = vand.u32 %v763, 2139095040
      %v4234 = vshrl.u32 %v4233, 23
      %v4235 = vsub.s32 %v4234, 127
      %v4236 = vand.u32 2147483647, %v763
      %v4237 = vand.u32 %v4236, 8388607
      %v4238 = vor.u32 %v4237, 8388608
      %v4239 = vsub.s32 0, %v4238
      %v4240 = vadd.s32 %v4235, 1
      %vm4241 = vcmp.gt.s32.totalorder %v4240, 0
      %v4242 = vsel %vm4241, %v4240, 0
      %v4243 = vshrl.u32 %v4242, 5
      %v4244 = vand.u32 %v4242, 31
      %v4245 = vsub.s32 32, %v4244
      %v4246 = vshrl.u32 683565275, %v4245
      %v4247 = vshll.u32 683565275, %v4244
      %v4248 = vshrl.u32 2475754826, %v4245
      %v4249 = vor.u32 %v4247, %v4248
      %v4250 = vshll.u32 2475754826, %v4244
      %v4251 = vshrl.u32 2131351028, %v4245
      %v4252 = vor.u32 %v4250, %v4251
      %v4253 = vshll.u32 2131351028, %v4244
      %v4254 = vshrl.u32 2102212464, %v4245
      %v4255 = vor.u32 %v4253, %v4254
      %v4256 = vshll.u32 2102212464, %v4244
      %v4257 = vshrl.u32 920167782, %v4245
      %v4258 = vor.u32 %v4256, %v4257
      %v4259 = vshll.u32 920167782, %v4244
      %v4260 = vshrl.u32 1326507024, %v4245
      %v4261 = vor.u32 %v4259, %v4260
      %vm4262 = vcmp.lt.s32.totalorder %v4243, 1
      %vm4263 = vcmp.lt.s32.totalorder %v4243, 2
      %vm4264 = vcmp.lt.s32.totalorder %v4243, 3
      %vm4265 = vcmp.lt.s32.totalorder %v4243, 4
      %v4266 = vsel %vm4262, %v4246, %v4249
      %v4267 = vsel %vm4265, %v4255, 2102212464
      %v4268 = vsel %vm4264, %v4252, %v4267
      %v4269 = vsel %vm4263, %v4266, %v4268
      %v4270 = vsel %vm4262, %v4249, %v4252
      %v4271 = vsel %vm4265, %v4258, 920167782
      %v4272 = vsel %vm4264, %v4255, %v4271
      %v4273 = vsel %vm4263, %v4270, %v4272
      %v4274 = vsel %vm4262, %v4252, %v4255
      %v4275 = vsel %vm4265, %v4261, 1326507024
      %v4276 = vsel %vm4264, %v4258, %v4275
      %v4277 = vsel %vm4263, %v4274, %v4276
      %v4278 = vshll.u32 %v4238, 8
      %v4279 = vmul.u32.u64.compose %v4278, %v4277
      %v4280 = vextract.low.u32 %v4279
      %v4281 = vextract.high.u32 %v4279
      %v4282 = vmul.u32.u64.compose %v4278, %v4273
      %v4283 = vextract.low.u32 %v4282
      %v4284 = vextract.high.u32 %v4282
      %v4285 = vmul.u32 %v4278, %v4269
      %v4286 = vadd.s32 %v4281, %v4283
      %vm4287 = vc.u32 %v4281, %v4283
      %v4288 = vadd.s32 %v4284, 1
      %v4289 = vsel %vm4287, %v4288, %v4284
      %v4290 = vadd.s32 %v4285, %v4289
      %v4291 = vadd.s32 %v4290, 536870912
      %v4292 = vshrl.u32 %v4291, 30
      %v4293 = vshll.u32 %v4292, 30
      %v4294 = vsub.s32 %v4290, %v4293
      %vm4295 = vcmp.lt.s32.totalorder %v4294, 0
      %v4296 = vsub.s32 0, %v4294
      %v4297 = vsel %vm4295, %v4296, %v4294
      %v4298 = vclz %v4297
      %v4299 = vsub.s32 %v4298, 2
      %vm4300 = vcmp.gt.s32.totalorder 0, %v4299
      %v4301 = vsel %vm4300, 0, %v4299
      %v4302 = vsub.s32 32, %v4301
      %v4303 = vshll.u32 %v4294, %v4301
      %v4304 = vshrl.u32 %v4286, %v4302
      %v4305 = vor.u32 %v4303, %v4304
      %v4306 = vsub.s32 4294967266, %v4301
      %v4307 = vadd.s32 %v4306, 127
      %v4308 = vshll.u32 %v4307, 23
      %v4309 = vor.u32 4788187, %v4308
      %v4310 = vand.u32 2147483647, %v4309
      %v4312 = vcvt.s32.f32 %v4305
      %v4313 = vmul.f32 %v4312, %v4310
      %v4314 = vxor.u32 %v4313, 2147483648
      %v4315 = vsel %vm4232, %v4314, %v4313
      %v4316 = vsub.s32 4, %v4292
      %v4317 = vsel %vm4232, %v4316, %v4292
      %v4318 = vsel %vm4231, %v763, %v4315
      %v4319 = vsel %vm4231, 0, %v4317
      %v4320 = vcosq.f32.pop %v4318
      %v4321 = vsinq.f32.pop %v4318
      %vm4322 = vweird.f32 %v763
      %v4323 = vand.u32 %v4319, 3
      %vm4324 = vcmp.lt.s32.totalorder %v4323, 2
      %vm4325 = vcmp.eq.s32.totalorder %v4323, 0
      %v4326 = vxor.u32 %v4321, 2147483648
      %v4327 = vsel %vm4325, %v4320, %v4326
      %vm4328 = vcmp.eq.s32.totalorder %v4323, 2
      %v4329 = vxor.u32 %v4320, 2147483648
      %v4330 = vsel %vm4328, %v4329, %v4321
      %v4331 = vsel %vm4324, %v4327, %v4330
      %v4332 = vsel %vm4322, nan, %v4331
      %v4333 = vand.u32 2147483647, %v764
      %vm4334 = vcmp.le.f32.partialorder %v4333, 0.7853982
      %vm4335 = vcmp.lt.s32.totalorder %v764, 0
      %v4336 = vand.u32 %v764, 2139095040
      %v4337 = vshrl.u32 %v4336, 23
      %v4338 = vsub.s32 %v4337, 127
      %v4339 = vand.u32 2147483647, %v764
      %v4340 = vand.u32 %v4339, 8388607
      %v4341 = vor.u32 %v4340, 8388608
      %v4342 = vsub.s32 0, %v4341
      %v4343 = vadd.s32 %v4338, 1
      %vm4344 = vcmp.gt.s32.totalorder %v4343, 0
      %v4345 = vsel %vm4344, %v4343, 0
      %v4346 = vshrl.u32 %v4345, 5
      %v4347 = vand.u32 %v4345, 31
      %v4348 = vsub.s32 32, %v4347
      %v4349 = vshrl.u32 683565275, %v4348
      %v4350 = vshll.u32 683565275, %v4347
      %v4351 = vshrl.u32 2475754826, %v4348
      %v4352 = vor.u32 %v4350, %v4351
      %v4353 = vshll.u32 2475754826, %v4347
      %v4354 = vshrl.u32 2131351028, %v4348
      %v4355 = vor.u32 %v4353, %v4354
      %v4356 = vshll.u32 2131351028, %v4347
      %v4357 = vshrl.u32 2102212464, %v4348
      %v4358 = vor.u32 %v4356, %v4357
      %v4359 = vshll.u32 2102212464, %v4347
      %v4360 = vshrl.u32 920167782, %v4348
      %v4361 = vor.u32 %v4359, %v4360
      %v4362 = vshll.u32 920167782, %v4347
      %v4363 = vshrl.u32 1326507024, %v4348
      %v4364 = vor.u32 %v4362, %v4363
      %vm4365 = vcmp.lt.s32.totalorder %v4346, 1
      %vm4366 = vcmp.lt.s32.totalorder %v4346, 2
      %vm4367 = vcmp.lt.s32.totalorder %v4346, 3
      %vm4368 = vcmp.lt.s32.totalorder %v4346, 4
      %v4369 = vsel %vm4365, %v4349, %v4352
      %v4370 = vsel %vm4368, %v4358, 2102212464
      %v4371 = vsel %vm4367, %v4355, %v4370
      %v4372 = vsel %vm4366, %v4369, %v4371
      %v4373 = vsel %vm4365, %v4352, %v4355
      %v4374 = vsel %vm4368, %v4361, 920167782
      %v4375 = vsel %vm4367, %v4358, %v4374
      %v4376 = vsel %vm4366, %v4373, %v4375
      %v4377 = vsel %vm4365, %v4355, %v4358
      %v4378 = vsel %vm4368, %v4364, 1326507024
      %v4379 = vsel %vm4367, %v4361, %v4378
      %v4380 = vsel %vm4366, %v4377, %v4379
      %v4381 = vshll.u32 %v4341, 8
      %v4382 = vmul.u32.u64.compose %v4381, %v4380
      %v4383 = vextract.low.u32 %v4382
      %v4384 = vextract.high.u32 %v4382
      %v4385 = vmul.u32.u64.compose %v4381, %v4376
      %v4386 = vextract.low.u32 %v4385
      %v4387 = vextract.high.u32 %v4385
      %v4388 = vmul.u32 %v4381, %v4372
      %v4389 = vadd.s32 %v4384, %v4386
      %vm4390 = vc.u32 %v4384, %v4386
      %v4391 = vadd.s32 %v4387, 1
      %v4392 = vsel %vm4390, %v4391, %v4387
      %v4393 = vadd.s32 %v4388, %v4392
      %v4394 = vadd.s32 %v4393, 536870912
      %v4395 = vshrl.u32 %v4394, 30
      %v4396 = vshll.u32 %v4395, 30
      %v4397 = vsub.s32 %v4393, %v4396
      %vm4398 = vcmp.lt.s32.totalorder %v4397, 0
      %v4399 = vsub.s32 0, %v4397
      %v4400 = vsel %vm4398, %v4399, %v4397
      %v4401 = vclz %v4400
      %v4402 = vsub.s32 %v4401, 2
      %vm4403 = vcmp.gt.s32.totalorder 0, %v4402
      %v4404 = vsel %vm4403, 0, %v4402
      %v4405 = vsub.s32 32, %v4404
      %v4406 = vshll.u32 %v4397, %v4404
      %v4407 = vshrl.u32 %v4389, %v4405
      %v4408 = vor.u32 %v4406, %v4407
      %v4409 = vsub.s32 4294967266, %v4404
      %v4410 = vadd.s32 %v4409, 127
      %v4411 = vshll.u32 %v4410, 23
      %v4412 = vor.u32 4788187, %v4411
      %v4413 = vand.u32 2147483647, %v4412
      %v4415 = vcvt.s32.f32 %v4408
      %v4416 = vmul.f32 %v4415, %v4413
      %v4417 = vxor.u32 %v4416, 2147483648
      %v4418 = vsel %vm4335, %v4417, %v4416
      %v4419 = vsub.s32 4, %v4395
      %v4420 = vsel %vm4335, %v4419, %v4395
      %v4421 = vsel %vm4334, %v764, %v4418
      %v4422 = vsel %vm4334, 0, %v4420
      %v4423 = vcosq.f32.pop %v4421
      %v4424 = vsinq.f32.pop %v4421
      %vm4425 = vweird.f32 %v764
      %v4426 = vand.u32 %v4422, 3
      %vm4427 = vcmp.lt.s32.totalorder %v4426, 2
      %vm4428 = vcmp.eq.s32.totalorder %v4426, 0
      %v4429 = vxor.u32 %v4424, 2147483648
      %v4430 = vsel %vm4428, %v4423, %v4429
      %vm4431 = vcmp.eq.s32.totalorder %v4426, 2
      %v4432 = vxor.u32 %v4423, 2147483648
      %v4433 = vsel %vm4431, %v4432, %v4424
      %v4434 = vsel %vm4427, %v4430, %v4433
      %v4435 = vsel %vm4425, nan, %v4434
      %v4436 = vand.u32 2147483647, %v765
      %vm4437 = vcmp.le.f32.partialorder %v4436, 0.7853982
      %vm4438 = vcmp.lt.s32.totalorder %v765, 0
      %v4439 = vand.u32 %v765, 2139095040
      %v4440 = vshrl.u32 %v4439, 23
      %v4441 = vsub.s32 %v4440, 127
      %v4442 = vand.u32 2147483647, %v765
      %v4443 = vand.u32 %v4442, 8388607
      %v4444 = vor.u32 %v4443, 8388608
      %v4445 = vsub.s32 0, %v4444
      %v4446 = vadd.s32 %v4441, 1
      %vm4447 = vcmp.gt.s32.totalorder %v4446, 0
      %v4448 = vsel %vm4447, %v4446, 0
      %v4449 = vshrl.u32 %v4448, 5
      %v4450 = vand.u32 %v4448, 31
      %v4451 = vsub.s32 32, %v4450
      %v4452 = vshrl.u32 683565275, %v4451
      %v4453 = vshll.u32 683565275, %v4450
      %v4454 = vshrl.u32 2475754826, %v4451
      %v4455 = vor.u32 %v4453, %v4454
      %v4456 = vshll.u32 2475754826, %v4450
      %v4457 = vshrl.u32 2131351028, %v4451
      %v4458 = vor.u32 %v4456, %v4457
      %v4459 = vshll.u32 2131351028, %v4450
      %v4460 = vshrl.u32 2102212464, %v4451
      %v4461 = vor.u32 %v4459, %v4460
      %v4462 = vshll.u32 2102212464, %v4450
      %v4463 = vshrl.u32 920167782, %v4451
      %v4464 = vor.u32 %v4462, %v4463
      %v4465 = vshll.u32 920167782, %v4450
      %v4466 = vshrl.u32 1326507024, %v4451
      %v4467 = vor.u32 %v4465, %v4466
      %vm4468 = vcmp.lt.s32.totalorder %v4449, 1
      %vm4469 = vcmp.lt.s32.totalorder %v4449, 2
      %vm4470 = vcmp.lt.s32.totalorder %v4449, 3
      %vm4471 = vcmp.lt.s32.totalorder %v4449, 4
      %v4472 = vsel %vm4468, %v4452, %v4455
      %v4473 = vsel %vm4471, %v4461, 2102212464
      %v4474 = vsel %vm4470, %v4458, %v4473
      %v4475 = vsel %vm4469, %v4472, %v4474
      %v4476 = vsel %vm4468, %v4455, %v4458
      %v4477 = vsel %vm4471, %v4464, 920167782
      %v4478 = vsel %vm4470, %v4461, %v4477
      %v4479 = vsel %vm4469, %v4476, %v4478
      %v4480 = vsel %vm4468, %v4458, %v4461
      %v4481 = vsel %vm4471, %v4467, 1326507024
      %v4482 = vsel %vm4470, %v4464, %v4481
      %v4483 = vsel %vm4469, %v4480, %v4482
      %v4484 = vshll.u32 %v4444, 8
      %v4485 = vmul.u32.u64.compose %v4484, %v4483
      %v4486 = vextract.low.u32 %v4485
      %v4487 = vextract.high.u32 %v4485
      %v4488 = vmul.u32.u64.compose %v4484, %v4479
      %v4489 = vextract.low.u32 %v4488
      %v4490 = vextract.high.u32 %v4488
      %v4491 = vmul.u32 %v4484, %v4475
      %v4492 = vadd.s32 %v4487, %v4489
      %vm4493 = vc.u32 %v4487, %v4489
      %v4494 = vadd.s32 %v4490, 1
      %v4495 = vsel %vm4493, %v4494, %v4490
      %v4496 = vadd.s32 %v4491, %v4495
      %v4497 = vadd.s32 %v4496, 536870912
      %v4498 = vshrl.u32 %v4497, 30
      %v4499 = vshll.u32 %v4498, 30
      %v4500 = vsub.s32 %v4496, %v4499
      %vm4501 = vcmp.lt.s32.totalorder %v4500, 0
      %v4502 = vsub.s32 0, %v4500
      %v4503 = vsel %vm4501, %v4502, %v4500
      %v4504 = vclz %v4503
      %v4505 = vsub.s32 %v4504, 2
      %vm4506 = vcmp.gt.s32.totalorder 0, %v4505
      %v4507 = vsel %vm4506, 0, %v4505
      %v4508 = vsub.s32 32, %v4507
      %v4509 = vshll.u32 %v4500, %v4507
      %v4510 = vshrl.u32 %v4492, %v4508
      %v4511 = vor.u32 %v4509, %v4510
      %v4512 = vsub.s32 4294967266, %v4507
      %v4513 = vadd.s32 %v4512, 127
      %v4514 = vshll.u32 %v4513, 23
      %v4515 = vor.u32 4788187, %v4514
      %v4516 = vand.u32 2147483647, %v4515
      %v4518 = vcvt.s32.f32 %v4511
      %v4519 = vmul.f32 %v4518, %v4516
      %v4520 = vxor.u32 %v4519, 2147483648
      %v4521 = vsel %vm4438, %v4520, %v4519
      %v4522 = vsub.s32 4, %v4498
      %v4523 = vsel %vm4438, %v4522, %v4498
      %v4524 = vsel %vm4437, %v765, %v4521
      %v4525 = vsel %vm4437, 0, %v4523
      %v4526 = vcosq.f32.pop %v4524
      %v4527 = vsinq.f32.pop %v4524
      %vm4528 = vweird.f32 %v765
      %v4529 = vand.u32 %v4525, 3
      %vm4530 = vcmp.lt.s32.totalorder %v4529, 2
      %vm4531 = vcmp.eq.s32.totalorder %v4529, 0
      %v4532 = vxor.u32 %v4527, 2147483648
      %v4533 = vsel %vm4531, %v4526, %v4532
      %vm4534 = vcmp.eq.s32.totalorder %v4529, 2
      %v4535 = vxor.u32 %v4526, 2147483648
      %v4536 = vsel %vm4534, %v4535, %v4527
      %v4537 = vsel %vm4530, %v4533, %v4536
      %v4538 = vsel %vm4528, nan, %v4537
      %v4539 = vand.u32 2147483647, %v766
      %vm4540 = vcmp.le.f32.partialorder %v4539, 0.7853982
      %vm4541 = vcmp.lt.s32.totalorder %v766, 0
      %v4542 = vand.u32 %v766, 2139095040
      %v4543 = vshrl.u32 %v4542, 23
      %v4544 = vsub.s32 %v4543, 127
      %v4545 = vand.u32 2147483647, %v766
      %v4546 = vand.u32 %v4545, 8388607
      %v4547 = vor.u32 %v4546, 8388608
      %v4548 = vsub.s32 0, %v4547
      %v4549 = vadd.s32 %v4544, 1
      %vm4550 = vcmp.gt.s32.totalorder %v4549, 0
      %v4551 = vsel %vm4550, %v4549, 0
      %v4552 = vshrl.u32 %v4551, 5
      %v4553 = vand.u32 %v4551, 31
      %v4554 = vsub.s32 32, %v4553
      %v4555 = vshrl.u32 683565275, %v4554
      %v4556 = vshll.u32 683565275, %v4553
      %v4557 = vshrl.u32 2475754826, %v4554
      %v4558 = vor.u32 %v4556, %v4557
      %v4559 = vshll.u32 2475754826, %v4553
      %v4560 = vshrl.u32 2131351028, %v4554
      %v4561 = vor.u32 %v4559, %v4560
      %v4562 = vshll.u32 2131351028, %v4553
      %v4563 = vshrl.u32 2102212464, %v4554
      %v4564 = vor.u32 %v4562, %v4563
      %v4565 = vshll.u32 2102212464, %v4553
      %v4566 = vshrl.u32 920167782, %v4554
      %v4567 = vor.u32 %v4565, %v4566
      %v4568 = vshll.u32 920167782, %v4553
      %v4569 = vshrl.u32 1326507024, %v4554
      %v4570 = vor.u32 %v4568, %v4569
      %vm4571 = vcmp.lt.s32.totalorder %v4552, 1
      %vm4572 = vcmp.lt.s32.totalorder %v4552, 2
      %vm4573 = vcmp.lt.s32.totalorder %v4552, 3
      %vm4574 = vcmp.lt.s32.totalorder %v4552, 4
      %v4575 = vsel %vm4571, %v4555, %v4558
      %v4576 = vsel %vm4574, %v4564, 2102212464
      %v4577 = vsel %vm4573, %v4561, %v4576
      %v4578 = vsel %vm4572, %v4575, %v4577
      %v4579 = vsel %vm4571, %v4558, %v4561
      %v4580 = vsel %vm4574, %v4567, 920167782
      %v4581 = vsel %vm4573, %v4564, %v4580
      %v4582 = vsel %vm4572, %v4579, %v4581
      %v4583 = vsel %vm4571, %v4561, %v4564
      %v4584 = vsel %vm4574, %v4570, 1326507024
      %v4585 = vsel %vm4573, %v4567, %v4584
      %v4586 = vsel %vm4572, %v4583, %v4585
      %v4587 = vshll.u32 %v4547, 8
      %v4588 = vmul.u32.u64.compose %v4587, %v4586
      %v4589 = vextract.low.u32 %v4588
      %v4590 = vextract.high.u32 %v4588
      %v4591 = vmul.u32.u64.compose %v4587, %v4582
      %v4592 = vextract.low.u32 %v4591
      %v4593 = vextract.high.u32 %v4591
      %v4594 = vmul.u32 %v4587, %v4578
      %v4595 = vadd.s32 %v4590, %v4592
      %vm4596 = vc.u32 %v4590, %v4592
      %v4597 = vadd.s32 %v4593, 1
      %v4598 = vsel %vm4596, %v4597, %v4593
      %v4599 = vadd.s32 %v4594, %v4598
      %v4600 = vadd.s32 %v4599, 536870912
      %v4601 = vshrl.u32 %v4600, 30
      %v4602 = vshll.u32 %v4601, 30
      %v4603 = vsub.s32 %v4599, %v4602
      %vm4604 = vcmp.lt.s32.totalorder %v4603, 0
      %v4605 = vsub.s32 0, %v4603
      %v4606 = vsel %vm4604, %v4605, %v4603
      %v4607 = vclz %v4606
      %v4608 = vsub.s32 %v4607, 2
      %vm4609 = vcmp.gt.s32.totalorder 0, %v4608
      %v4610 = vsel %vm4609, 0, %v4608
      %v4611 = vsub.s32 32, %v4610
      %v4612 = vshll.u32 %v4603, %v4610
      %v4613 = vshrl.u32 %v4595, %v4611
      %v4614 = vor.u32 %v4612, %v4613
      %v4615 = vsub.s32 4294967266, %v4610
      %v4616 = vadd.s32 %v4615, 127
      %v4617 = vshll.u32 %v4616, 23
      %v4618 = vor.u32 4788187, %v4617
      %v4619 = vand.u32 2147483647, %v4618
      %v4621 = vcvt.s32.f32 %v4614
      %v4622 = vmul.f32 %v4621, %v4619
      %v4623 = vxor.u32 %v4622, 2147483648
      %v4624 = vsel %vm4541, %v4623, %v4622
      %v4625 = vsub.s32 4, %v4601
      %v4626 = vsel %vm4541, %v4625, %v4601
      %v4627 = vsel %vm4540, %v766, %v4624
      %v4628 = vsel %vm4540, 0, %v4626
      %v4629 = vcosq.f32.pop %v4627
      %v4630 = vsinq.f32.pop %v4627
      %vm4631 = vweird.f32 %v766
      %v4632 = vand.u32 %v4628, 3
      %vm4633 = vcmp.lt.s32.totalorder %v4632, 2
      %vm4634 = vcmp.eq.s32.totalorder %v4632, 0
      %v4635 = vxor.u32 %v4630, 2147483648
      %v4636 = vsel %vm4634, %v4629, %v4635
      %vm4637 = vcmp.eq.s32.totalorder %v4632, 2
      %v4638 = vxor.u32 %v4629, 2147483648
      %v4639 = vsel %vm4637, %v4638, %v4630
      %v4640 = vsel %vm4633, %v4636, %v4639
      %v4641 = vsel %vm4631, nan, %v4640
      %v4642 = vand.u32 2147483647, %v767
      %vm4643 = vcmp.le.f32.partialorder %v4642, 0.7853982
      %vm4644 = vcmp.lt.s32.totalorder %v767, 0
      %v4645 = vand.u32 %v767, 2139095040
      %v4646 = vshrl.u32 %v4645, 23
      %v4647 = vsub.s32 %v4646, 127
      %v4648 = vand.u32 2147483647, %v767
      %v4649 = vand.u32 %v4648, 8388607
      %v4650 = vor.u32 %v4649, 8388608
      %v4651 = vsub.s32 0, %v4650
      %v4652 = vadd.s32 %v4647, 1
      %vm4653 = vcmp.gt.s32.totalorder %v4652, 0
      %v4654 = vsel %vm4653, %v4652, 0
      %v4655 = vshrl.u32 %v4654, 5
      %v4656 = vand.u32 %v4654, 31
      %v4657 = vsub.s32 32, %v4656
      %v4658 = vshrl.u32 683565275, %v4657
      %v4659 = vshll.u32 683565275, %v4656
      %v4660 = vshrl.u32 2475754826, %v4657
      %v4661 = vor.u32 %v4659, %v4660
      %v4662 = vshll.u32 2475754826, %v4656
      %v4663 = vshrl.u32 2131351028, %v4657
      %v4664 = vor.u32 %v4662, %v4663
      %v4665 = vshll.u32 2131351028, %v4656
      %v4666 = vshrl.u32 2102212464, %v4657
      %v4667 = vor.u32 %v4665, %v4666
      %v4668 = vshll.u32 2102212464, %v4656
      %v4669 = vshrl.u32 920167782, %v4657
      %v4670 = vor.u32 %v4668, %v4669
      %v4671 = vshll.u32 920167782, %v4656
      %v4672 = vshrl.u32 1326507024, %v4657
      %v4673 = vor.u32 %v4671, %v4672
      %vm4674 = vcmp.lt.s32.totalorder %v4655, 1
      %vm4675 = vcmp.lt.s32.totalorder %v4655, 2
      %vm4676 = vcmp.lt.s32.totalorder %v4655, 3
      %vm4677 = vcmp.lt.s32.totalorder %v4655, 4
      %v4678 = vsel %vm4674, %v4658, %v4661
      %v4679 = vsel %vm4677, %v4667, 2102212464
      %v4680 = vsel %vm4676, %v4664, %v4679
      %v4681 = vsel %vm4675, %v4678, %v4680
      %v4682 = vsel %vm4674, %v4661, %v4664
      %v4683 = vsel %vm4677, %v4670, 920167782
      %v4684 = vsel %vm4676, %v4667, %v4683
      %v4685 = vsel %vm4675, %v4682, %v4684
      %v4686 = vsel %vm4674, %v4664, %v4667
      %v4687 = vsel %vm4677, %v4673, 1326507024
      %v4688 = vsel %vm4676, %v4670, %v4687
      %v4689 = vsel %vm4675, %v4686, %v4688
      %v4690 = vshll.u32 %v4650, 8
      %v4691 = vmul.u32.u64.compose %v4690, %v4689
      %v4692 = vextract.low.u32 %v4691
      %v4693 = vextract.high.u32 %v4691
      %v4694 = vmul.u32.u64.compose %v4690, %v4685
      %v4695 = vextract.low.u32 %v4694
      %v4696 = vextract.high.u32 %v4694
      %v4697 = vmul.u32 %v4690, %v4681
      %v4698 = vadd.s32 %v4693, %v4695
      %vm4699 = vc.u32 %v4693, %v4695
      %v4700 = vadd.s32 %v4696, 1
      %v4701 = vsel %vm4699, %v4700, %v4696
      %v4702 = vadd.s32 %v4697, %v4701
      %v4703 = vadd.s32 %v4702, 536870912
      %v4704 = vshrl.u32 %v4703, 30
      %v4705 = vshll.u32 %v4704, 30
      %v4706 = vsub.s32 %v4702, %v4705
      %vm4707 = vcmp.lt.s32.totalorder %v4706, 0
      %v4708 = vsub.s32 0, %v4706
      %v4709 = vsel %vm4707, %v4708, %v4706
      %v4710 = vclz %v4709
      %v4711 = vsub.s32 %v4710, 2
      %vm4712 = vcmp.gt.s32.totalorder 0, %v4711
      %v4713 = vsel %vm4712, 0, %v4711
      %v4714 = vsub.s32 32, %v4713
      %v4715 = vshll.u32 %v4706, %v4713
      %v4716 = vshrl.u32 %v4698, %v4714
      %v4717 = vor.u32 %v4715, %v4716
      %v4718 = vsub.s32 4294967266, %v4713
      %v4719 = vadd.s32 %v4718, 127
      %v4720 = vshll.u32 %v4719, 23
      %v4721 = vor.u32 4788187, %v4720
      %v4722 = vand.u32 2147483647, %v4721
      %v4724 = vcvt.s32.f32 %v4717
      %v4725 = vmul.f32 %v4724, %v4722
      %v4726 = vxor.u32 %v4725, 2147483648
      %v4727 = vsel %vm4644, %v4726, %v4725
      %v4728 = vsub.s32 4, %v4704
      %v4729 = vsel %vm4644, %v4728, %v4704
      %v4730 = vsel %vm4643, %v767, %v4727
      %v4731 = vsel %vm4643, 0, %v4729
      %v4732 = vcosq.f32.pop %v4730
      %v4733 = vsinq.f32.pop %v4730
      %vm4734 = vweird.f32 %v767
      %v4735 = vand.u32 %v4731, 3
      %vm4736 = vcmp.lt.s32.totalorder %v4735, 2
      %vm4737 = vcmp.eq.s32.totalorder %v4735, 0
      %v4738 = vxor.u32 %v4733, 2147483648
      %v4739 = vsel %vm4737, %v4732, %v4738
      %vm4740 = vcmp.eq.s32.totalorder %v4735, 2
      %v4741 = vxor.u32 %v4732, 2147483648
      %v4742 = vsel %vm4740, %v4741, %v4733
      %v4743 = vsel %vm4736, %v4739, %v4742
      %v4744 = vsel %vm4734, nan, %v4743
      %v4745 = vand.u32 2147483647, %v768
      %vm4746 = vcmp.le.f32.partialorder %v4745, 0.7853982
      %vm4747 = vcmp.lt.s32.totalorder %v768, 0
      %v4748 = vand.u32 %v768, 2139095040
      %v4749 = vshrl.u32 %v4748, 23
      %v4750 = vsub.s32 %v4749, 127
      %v4751 = vand.u32 2147483647, %v768
      %v4752 = vand.u32 %v4751, 8388607
      %v4753 = vor.u32 %v4752, 8388608
      %v4754 = vsub.s32 0, %v4753
      %v4755 = vadd.s32 %v4750, 1
      %vm4756 = vcmp.gt.s32.totalorder %v4755, 0
      %v4757 = vsel %vm4756, %v4755, 0
      %v4758 = vshrl.u32 %v4757, 5
      %v4759 = vand.u32 %v4757, 31
      %v4760 = vsub.s32 32, %v4759
      %v4761 = vshrl.u32 683565275, %v4760
      %v4762 = vshll.u32 683565275, %v4759
      %v4763 = vshrl.u32 2475754826, %v4760
      %v4764 = vor.u32 %v4762, %v4763
      %v4765 = vshll.u32 2475754826, %v4759
      %v4766 = vshrl.u32 2131351028, %v4760
      %v4767 = vor.u32 %v4765, %v4766
      %v4768 = vshll.u32 2131351028, %v4759
      %v4769 = vshrl.u32 2102212464, %v4760
      %v4770 = vor.u32 %v4768, %v4769
      %v4771 = vshll.u32 2102212464, %v4759
      %v4772 = vshrl.u32 920167782, %v4760
      %v4773 = vor.u32 %v4771, %v4772
      %v4774 = vshll.u32 920167782, %v4759
      %v4775 = vshrl.u32 1326507024, %v4760
      %v4776 = vor.u32 %v4774, %v4775
      %vm4777 = vcmp.lt.s32.totalorder %v4758, 1
      %vm4778 = vcmp.lt.s32.totalorder %v4758, 2
      %vm4779 = vcmp.lt.s32.totalorder %v4758, 3
      %vm4780 = vcmp.lt.s32.totalorder %v4758, 4
      %v4781 = vsel %vm4777, %v4761, %v4764
      %v4782 = vsel %vm4780, %v4770, 2102212464
      %v4783 = vsel %vm4779, %v4767, %v4782
      %v4784 = vsel %vm4778, %v4781, %v4783
      %v4785 = vsel %vm4777, %v4764, %v4767
      %v4786 = vsel %vm4780, %v4773, 920167782
      %v4787 = vsel %vm4779, %v4770, %v4786
      %v4788 = vsel %vm4778, %v4785, %v4787
      %v4789 = vsel %vm4777, %v4767, %v4770
      %v4790 = vsel %vm4780, %v4776, 1326507024
      %v4791 = vsel %vm4779, %v4773, %v4790
      %v4792 = vsel %vm4778, %v4789, %v4791
      %v4793 = vshll.u32 %v4753, 8
      %v4794 = vmul.u32.u64.compose %v4793, %v4792
      %v4795 = vextract.low.u32 %v4794
      %v4796 = vextract.high.u32 %v4794
      %v4797 = vmul.u32.u64.compose %v4793, %v4788
      %v4798 = vextract.low.u32 %v4797
      %v4799 = vextract.high.u32 %v4797
      %v4800 = vmul.u32 %v4793, %v4784
      %v4801 = vadd.s32 %v4796, %v4798
      %vm4802 = vc.u32 %v4796, %v4798
      %v4803 = vadd.s32 %v4799, 1
      %v4804 = vsel %vm4802, %v4803, %v4799
      %v4805 = vadd.s32 %v4800, %v4804
      %v4806 = vadd.s32 %v4805, 536870912
      %v4807 = vshrl.u32 %v4806, 30
      %v4808 = vshll.u32 %v4807, 30
      %v4809 = vsub.s32 %v4805, %v4808
      %vm4810 = vcmp.lt.s32.totalorder %v4809, 0
      %v4811 = vsub.s32 0, %v4809
      %v4812 = vsel %vm4810, %v4811, %v4809
      %v4813 = vclz %v4812
      %v4814 = vsub.s32 %v4813, 2
      %vm4815 = vcmp.gt.s32.totalorder 0, %v4814
      %v4816 = vsel %vm4815, 0, %v4814
      %v4817 = vsub.s32 32, %v4816
      %v4818 = vshll.u32 %v4809, %v4816
      %v4819 = vshrl.u32 %v4801, %v4817
      %v4820 = vor.u32 %v4818, %v4819
      %v4821 = vsub.s32 4294967266, %v4816
      %v4822 = vadd.s32 %v4821, 127
      %v4823 = vshll.u32 %v4822, 23
      %v4824 = vor.u32 4788187, %v4823
      %v4825 = vand.u32 2147483647, %v4824
      %v4827 = vcvt.s32.f32 %v4820
      %v4828 = vmul.f32 %v4827, %v4825
      %v4829 = vxor.u32 %v4828, 2147483648
      %v4830 = vsel %vm4747, %v4829, %v4828
      %v4831 = vsub.s32 4, %v4807
      %v4832 = vsel %vm4747, %v4831, %v4807
      %v4833 = vsel %vm4746, %v768, %v4830
      %v4834 = vsel %vm4746, 0, %v4832
      %v4835 = vcosq.f32.pop %v4833
      %v4836 = vsinq.f32.pop %v4833
      %vm4837 = vweird.f32 %v768
      %v4838 = vand.u32 %v4834, 3
      %vm4839 = vcmp.lt.s32.totalorder %v4838, 2
      %vm4840 = vcmp.eq.s32.totalorder %v4838, 0
      %v4841 = vxor.u32 %v4836, 2147483648
      %v4842 = vsel %vm4840, %v4835, %v4841
      %vm4843 = vcmp.eq.s32.totalorder %v4838, 2
      %v4844 = vxor.u32 %v4835, 2147483648
      %v4845 = vsel %vm4843, %v4844, %v4836
      %v4846 = vsel %vm4839, %v4842, %v4845
      %v4847 = vsel %vm4837, nan, %v4846
      %v4848 = vand.u32 2147483647, %v769
      %vm4849 = vcmp.le.f32.partialorder %v4848, 0.7853982
      %vm4850 = vcmp.lt.s32.totalorder %v769, 0
      %v4851 = vand.u32 %v769, 2139095040
      %v4852 = vshrl.u32 %v4851, 23
      %v4853 = vsub.s32 %v4852, 127
      %v4854 = vand.u32 2147483647, %v769
      %v4855 = vand.u32 %v4854, 8388607
      %v4856 = vor.u32 %v4855, 8388608
      %v4857 = vsub.s32 0, %v4856
      %v4858 = vadd.s32 %v4853, 1
      %vm4859 = vcmp.gt.s32.totalorder %v4858, 0
      %v4860 = vsel %vm4859, %v4858, 0
      %v4861 = vshrl.u32 %v4860, 5
      %v4862 = vand.u32 %v4860, 31
      %v4863 = vsub.s32 32, %v4862
      %v4864 = vshrl.u32 683565275, %v4863
      %v4865 = vshll.u32 683565275, %v4862
      %v4866 = vshrl.u32 2475754826, %v4863
      %v4867 = vor.u32 %v4865, %v4866
      %v4868 = vshll.u32 2475754826, %v4862
      %v4869 = vshrl.u32 2131351028, %v4863
      %v4870 = vor.u32 %v4868, %v4869
      %v4871 = vshll.u32 2131351028, %v4862
      %v4872 = vshrl.u32 2102212464, %v4863
      %v4873 = vor.u32 %v4871, %v4872
      %v4874 = vshll.u32 2102212464, %v4862
      %v4875 = vshrl.u32 920167782, %v4863
      %v4876 = vor.u32 %v4874, %v4875
      %v4877 = vshll.u32 920167782, %v4862
      %v4878 = vshrl.u32 1326507024, %v4863
      %v4879 = vor.u32 %v4877, %v4878
      %vm4880 = vcmp.lt.s32.totalorder %v4861, 1
      %vm4881 = vcmp.lt.s32.totalorder %v4861, 2
      %vm4882 = vcmp.lt.s32.totalorder %v4861, 3
      %vm4883 = vcmp.lt.s32.totalorder %v4861, 4
      %v4884 = vsel %vm4880, %v4864, %v4867
      %v4885 = vsel %vm4883, %v4873, 2102212464
      %v4886 = vsel %vm4882, %v4870, %v4885
      %v4887 = vsel %vm4881, %v4884, %v4886
      %v4888 = vsel %vm4880, %v4867, %v4870
      %v4889 = vsel %vm4883, %v4876, 920167782
      %v4890 = vsel %vm4882, %v4873, %v4889
      %v4891 = vsel %vm4881, %v4888, %v4890
      %v4892 = vsel %vm4880, %v4870, %v4873
      %v4893 = vsel %vm4883, %v4879, 1326507024
      %v4894 = vsel %vm4882, %v4876, %v4893
      %v4895 = vsel %vm4881, %v4892, %v4894
      %v4896 = vshll.u32 %v4856, 8
      %v4897 = vmul.u32.u64.compose %v4896, %v4895
      %v4898 = vextract.low.u32 %v4897
      %v4899 = vextract.high.u32 %v4897
      %v4900 = vmul.u32.u64.compose %v4896, %v4891
      %v4901 = vextract.low.u32 %v4900
      %v4902 = vextract.high.u32 %v4900
      %v4903 = vmul.u32 %v4896, %v4887
      %v4904 = vadd.s32 %v4899, %v4901
      %vm4905 = vc.u32 %v4899, %v4901
      %v4906 = vadd.s32 %v4902, 1
      %v4907 = vsel %vm4905, %v4906, %v4902
      %v4908 = vadd.s32 %v4903, %v4907
      %v4909 = vadd.s32 %v4908, 536870912
      %v4910 = vshrl.u32 %v4909, 30
      %v4911 = vshll.u32 %v4910, 30
      %v4912 = vsub.s32 %v4908, %v4911
      %vm4913 = vcmp.lt.s32.totalorder %v4912, 0
      %v4914 = vsub.s32 0, %v4912
      %v4915 = vsel %vm4913, %v4914, %v4912
      %v4916 = vclz %v4915
      %v4917 = vsub.s32 %v4916, 2
      %vm4918 = vcmp.gt.s32.totalorder 0, %v4917
      %v4919 = vsel %vm4918, 0, %v4917
      %v4920 = vsub.s32 32, %v4919
      %v4921 = vshll.u32 %v4912, %v4919
      %v4922 = vshrl.u32 %v4904, %v4920
      %v4923 = vor.u32 %v4921, %v4922
      %v4924 = vsub.s32 4294967266, %v4919
      %v4925 = vadd.s32 %v4924, 127
      %v4926 = vshll.u32 %v4925, 23
      %v4927 = vor.u32 4788187, %v4926
      %v4928 = vand.u32 2147483647, %v4927
      %v4930 = vcvt.s32.f32 %v4923
      %v4931 = vmul.f32 %v4930, %v4928
      %v4932 = vxor.u32 %v4931, 2147483648
      %v4933 = vsel %vm4850, %v4932, %v4931
      %v4934 = vsub.s32 4, %v4910
      %v4935 = vsel %vm4850, %v4934, %v4910
      %v4936 = vsel %vm4849, %v769, %v4933
      %v4937 = vsel %vm4849, 0, %v4935
      %v4938 = vcosq.f32.pop %v4936
      %v4939 = vsinq.f32.pop %v4936
      %vm4940 = vweird.f32 %v769
      %v4941 = vand.u32 %v4937, 3
      %vm4942 = vcmp.lt.s32.totalorder %v4941, 2
      %vm4943 = vcmp.eq.s32.totalorder %v4941, 0
      %v4944 = vxor.u32 %v4939, 2147483648
      %v4945 = vsel %vm4943, %v4938, %v4944
      %vm4946 = vcmp.eq.s32.totalorder %v4941, 2
      %v4947 = vxor.u32 %v4938, 2147483648
      %v4948 = vsel %vm4946, %v4947, %v4939
      %v4949 = vsel %vm4942, %v4945, %v4948
      %v4950 = vsel %vm4940, nan, %v4949
      %v4951 = vand.u32 2147483647, %v770
      %vm4952 = vcmp.le.f32.partialorder %v4951, 0.7853982
      %vm4953 = vcmp.lt.s32.totalorder %v770, 0
      %v4954 = vand.u32 %v770, 2139095040
      %v4955 = vshrl.u32 %v4954, 23
      %v4956 = vsub.s32 %v4955, 127
      %v4957 = vand.u32 2147483647, %v770
      %v4958 = vand.u32 %v4957, 8388607
      %v4959 = vor.u32 %v4958, 8388608
      %v4960 = vsub.s32 0, %v4959
      %v4961 = vadd.s32 %v4956, 1
      %vm4962 = vcmp.gt.s32.totalorder %v4961, 0
      %v4963 = vsel %vm4962, %v4961, 0
      %v4964 = vshrl.u32 %v4963, 5
      %v4965 = vand.u32 %v4963, 31
      %v4966 = vsub.s32 32, %v4965
      %v4967 = vshrl.u32 683565275, %v4966
      %v4968 = vshll.u32 683565275, %v4965
      %v4969 = vshrl.u32 2475754826, %v4966
      %v4970 = vor.u32 %v4968, %v4969
      %v4971 = vshll.u32 2475754826, %v4965
      %v4972 = vshrl.u32 2131351028, %v4966
      %v4973 = vor.u32 %v4971, %v4972
      %v4974 = vshll.u32 2131351028, %v4965
      %v4975 = vshrl.u32 2102212464, %v4966
      %v4976 = vor.u32 %v4974, %v4975
      %v4977 = vshll.u32 2102212464, %v4965
      %v4978 = vshrl.u32 920167782, %v4966
      %v4979 = vor.u32 %v4977, %v4978
      %v4980 = vshll.u32 920167782, %v4965
      %v4981 = vshrl.u32 1326507024, %v4966
      %v4982 = vor.u32 %v4980, %v4981
      %vm4983 = vcmp.lt.s32.totalorder %v4964, 1
      %vm4984 = vcmp.lt.s32.totalorder %v4964, 2
      %vm4985 = vcmp.lt.s32.totalorder %v4964, 3
      %vm4986 = vcmp.lt.s32.totalorder %v4964, 4
      %v4987 = vsel %vm4983, %v4967, %v4970
      %v4988 = vsel %vm4986, %v4976, 2102212464
      %v4989 = vsel %vm4985, %v4973, %v4988
      %v4990 = vsel %vm4984, %v4987, %v4989
      %v4991 = vsel %vm4983, %v4970, %v4973
      %v4992 = vsel %vm4986, %v4979, 920167782
      %v4993 = vsel %vm4985, %v4976, %v4992
      %v4994 = vsel %vm4984, %v4991, %v4993
      %v4995 = vsel %vm4983, %v4973, %v4976
      %v4996 = vsel %vm4986, %v4982, 1326507024
      %v4997 = vsel %vm4985, %v4979, %v4996
      %v4998 = vsel %vm4984, %v4995, %v4997
      %v4999 = vshll.u32 %v4959, 8
      %v5000 = vmul.u32.u64.compose %v4999, %v4998
      %v5001 = vextract.low.u32 %v5000
      %v5002 = vextract.high.u32 %v5000
      %v5003 = vmul.u32.u64.compose %v4999, %v4994
      %v5004 = vextract.low.u32 %v5003
      %v5005 = vextract.high.u32 %v5003
      %v5006 = vmul.u32 %v4999, %v4990
      %v5007 = vadd.s32 %v5002, %v5004
      %vm5008 = vc.u32 %v5002, %v5004
      %v5009 = vadd.s32 %v5005, 1
      %v5010 = vsel %vm5008, %v5009, %v5005
      %v5011 = vadd.s32 %v5006, %v5010
      %v5012 = vadd.s32 %v5011, 536870912
      %v5013 = vshrl.u32 %v5012, 30
      %v5014 = vshll.u32 %v5013, 30
      %v5015 = vsub.s32 %v5011, %v5014
      %vm5016 = vcmp.lt.s32.totalorder %v5015, 0
      %v5017 = vsub.s32 0, %v5015
      %v5018 = vsel %vm5016, %v5017, %v5015
      %v5019 = vclz %v5018
      %v5020 = vsub.s32 %v5019, 2
      %vm5021 = vcmp.gt.s32.totalorder 0, %v5020
      %v5022 = vsel %vm5021, 0, %v5020
      %v5023 = vsub.s32 32, %v5022
      %v5024 = vshll.u32 %v5015, %v5022
      %v5025 = vshrl.u32 %v5007, %v5023
      %v5026 = vor.u32 %v5024, %v5025
      %v5027 = vsub.s32 4294967266, %v5022
      %v5028 = vadd.s32 %v5027, 127
      %v5029 = vshll.u32 %v5028, 23
      %v5030 = vor.u32 4788187, %v5029
      %v5031 = vand.u32 2147483647, %v5030
      %v5033 = vcvt.s32.f32 %v5026
      %v5034 = vmul.f32 %v5033, %v5031
      %v5035 = vxor.u32 %v5034, 2147483648
      %v5036 = vsel %vm4953, %v5035, %v5034
      %v5037 = vsub.s32 4, %v5013
      %v5038 = vsel %vm4953, %v5037, %v5013
      %v5039 = vsel %vm4952, %v770, %v5036
      %v5040 = vsel %vm4952, 0, %v5038
      %v5041 = vcosq.f32.pop %v5039
      %v5042 = vsinq.f32.pop %v5039
      %vm5043 = vweird.f32 %v770
      %v5044 = vand.u32 %v5040, 3
      %vm5045 = vcmp.lt.s32.totalorder %v5044, 2
      %vm5046 = vcmp.eq.s32.totalorder %v5044, 0
      %v5047 = vxor.u32 %v5042, 2147483648
      %v5048 = vsel %vm5046, %v5041, %v5047
      %vm5049 = vcmp.eq.s32.totalorder %v5044, 2
      %v5050 = vxor.u32 %v5041, 2147483648
      %v5051 = vsel %vm5049, %v5050, %v5042
      %v5052 = vsel %vm5045, %v5048, %v5051
      %v5053 = vsel %vm5043, nan, %v5052
      %v5054 = vand.u32 2147483647, %v771
      %vm5055 = vcmp.le.f32.partialorder %v5054, 0.7853982
      %vm5056 = vcmp.lt.s32.totalorder %v771, 0
      %v5057 = vand.u32 %v771, 2139095040
      %v5058 = vshrl.u32 %v5057, 23
      %v5059 = vsub.s32 %v5058, 127
      %v5060 = vand.u32 2147483647, %v771
      %v5061 = vand.u32 %v5060, 8388607
      %v5062 = vor.u32 %v5061, 8388608
      %v5063 = vsub.s32 0, %v5062
      %v5064 = vadd.s32 %v5059, 1
      %vm5065 = vcmp.gt.s32.totalorder %v5064, 0
      %v5066 = vsel %vm5065, %v5064, 0
      %v5067 = vshrl.u32 %v5066, 5
      %v5068 = vand.u32 %v5066, 31
      %v5069 = vsub.s32 32, %v5068
      %v5070 = vshrl.u32 683565275, %v5069
      %v5071 = vshll.u32 683565275, %v5068
      %v5072 = vshrl.u32 2475754826, %v5069
      %v5073 = vor.u32 %v5071, %v5072
      %v5074 = vshll.u32 2475754826, %v5068
      %v5075 = vshrl.u32 2131351028, %v5069
      %v5076 = vor.u32 %v5074, %v5075
      %v5077 = vshll.u32 2131351028, %v5068
      %v5078 = vshrl.u32 2102212464, %v5069
      %v5079 = vor.u32 %v5077, %v5078
      %v5080 = vshll.u32 2102212464, %v5068
      %v5081 = vshrl.u32 920167782, %v5069
      %v5082 = vor.u32 %v5080, %v5081
      %v5083 = vshll.u32 920167782, %v5068
      %v5084 = vshrl.u32 1326507024, %v5069
      %v5085 = vor.u32 %v5083, %v5084
      %vm5086 = vcmp.lt.s32.totalorder %v5067, 1
      %vm5087 = vcmp.lt.s32.totalorder %v5067, 2
      %vm5088 = vcmp.lt.s32.totalorder %v5067, 3
      %vm5089 = vcmp.lt.s32.totalorder %v5067, 4
      %v5090 = vsel %vm5086, %v5070, %v5073
      %v5091 = vsel %vm5089, %v5079, 2102212464
      %v5092 = vsel %vm5088, %v5076, %v5091
      %v5093 = vsel %vm5087, %v5090, %v5092
      %v5094 = vsel %vm5086, %v5073, %v5076
      %v5095 = vsel %vm5089, %v5082, 920167782
      %v5096 = vsel %vm5088, %v5079, %v5095
      %v5097 = vsel %vm5087, %v5094, %v5096
      %v5098 = vsel %vm5086, %v5076, %v5079
      %v5099 = vsel %vm5089, %v5085, 1326507024
      %v5100 = vsel %vm5088, %v5082, %v5099
      %v5101 = vsel %vm5087, %v5098, %v5100
      %v5102 = vshll.u32 %v5062, 8
      %v5103 = vmul.u32.u64.compose %v5102, %v5101
      %v5104 = vextract.low.u32 %v5103
      %v5105 = vextract.high.u32 %v5103
      %v5106 = vmul.u32.u64.compose %v5102, %v5097
      %v5107 = vextract.low.u32 %v5106
      %v5108 = vextract.high.u32 %v5106
      %v5109 = vmul.u32 %v5102, %v5093
      %v5110 = vadd.s32 %v5105, %v5107
      %vm5111 = vc.u32 %v5105, %v5107
      %v5112 = vadd.s32 %v5108, 1
      %v5113 = vsel %vm5111, %v5112, %v5108
      %v5114 = vadd.s32 %v5109, %v5113
      %v5115 = vadd.s32 %v5114, 536870912
      %v5116 = vshrl.u32 %v5115, 30
      %v5117 = vshll.u32 %v5116, 30
      %v5118 = vsub.s32 %v5114, %v5117
      %vm5119 = vcmp.lt.s32.totalorder %v5118, 0
      %v5120 = vsub.s32 0, %v5118
      %v5121 = vsel %vm5119, %v5120, %v5118
      %v5122 = vclz %v5121
      %v5123 = vsub.s32 %v5122, 2
      %vm5124 = vcmp.gt.s32.totalorder 0, %v5123
      %v5125 = vsel %vm5124, 0, %v5123
      %v5126 = vsub.s32 32, %v5125
      %v5127 = vshll.u32 %v5118, %v5125
      %v5128 = vshrl.u32 %v5110, %v5126
      %v5129 = vor.u32 %v5127, %v5128
      %v5130 = vsub.s32 4294967266, %v5125
      %v5131 = vadd.s32 %v5130, 127
      %v5132 = vshll.u32 %v5131, 23
      %v5133 = vor.u32 4788187, %v5132
      %v5134 = vand.u32 2147483647, %v5133
      %v5136 = vcvt.s32.f32 %v5129
      %v5137 = vmul.f32 %v5136, %v5134
      %v5138 = vxor.u32 %v5137, 2147483648
      %v5139 = vsel %vm5056, %v5138, %v5137
      %v5140 = vsub.s32 4, %v5116
      %v5141 = vsel %vm5056, %v5140, %v5116
      %v5142 = vsel %vm5055, %v771, %v5139
      %v5143 = vsel %vm5055, 0, %v5141
      %v5144 = vcosq.f32.pop %v5142
      %v5145 = vsinq.f32.pop %v5142
      %vm5146 = vweird.f32 %v771
      %v5147 = vand.u32 %v5143, 3
      %vm5148 = vcmp.lt.s32.totalorder %v5147, 2
      %vm5149 = vcmp.eq.s32.totalorder %v5147, 0
      %v5150 = vxor.u32 %v5145, 2147483648
      %v5151 = vsel %vm5149, %v5144, %v5150
      %vm5152 = vcmp.eq.s32.totalorder %v5147, 2
      %v5153 = vxor.u32 %v5144, 2147483648
      %v5154 = vsel %vm5152, %v5153, %v5145
      %v5155 = vsel %vm5148, %v5151, %v5154
      %v5156 = vsel %vm5146, nan, %v5155
      %v5157 = vand.u32 2147483647, %v772
      %vm5158 = vcmp.le.f32.partialorder %v5157, 0.7853982
      %vm5159 = vcmp.lt.s32.totalorder %v772, 0
      %v5160 = vand.u32 %v772, 2139095040
      %v5161 = vshrl.u32 %v5160, 23
      %v5162 = vsub.s32 %v5161, 127
      %v5163 = vand.u32 2147483647, %v772
      %v5164 = vand.u32 %v5163, 8388607
      %v5165 = vor.u32 %v5164, 8388608
      %v5166 = vsub.s32 0, %v5165
      %v5167 = vadd.s32 %v5162, 1
      %vm5168 = vcmp.gt.s32.totalorder %v5167, 0
      %v5169 = vsel %vm5168, %v5167, 0
      %v5170 = vshrl.u32 %v5169, 5
      %v5171 = vand.u32 %v5169, 31
      %v5172 = vsub.s32 32, %v5171
      %v5173 = vshrl.u32 683565275, %v5172
      %v5174 = vshll.u32 683565275, %v5171
      %v5175 = vshrl.u32 2475754826, %v5172
      %v5176 = vor.u32 %v5174, %v5175
      %v5177 = vshll.u32 2475754826, %v5171
      %v5178 = vshrl.u32 2131351028, %v5172
      %v5179 = vor.u32 %v5177, %v5178
      %v5180 = vshll.u32 2131351028, %v5171
      %v5181 = vshrl.u32 2102212464, %v5172
      %v5182 = vor.u32 %v5180, %v5181
      %v5183 = vshll.u32 2102212464, %v5171
      %v5184 = vshrl.u32 920167782, %v5172
      %v5185 = vor.u32 %v5183, %v5184
      %v5186 = vshll.u32 920167782, %v5171
      %v5187 = vshrl.u32 1326507024, %v5172
      %v5188 = vor.u32 %v5186, %v5187
      %vm5189 = vcmp.lt.s32.totalorder %v5170, 1
      %vm5190 = vcmp.lt.s32.totalorder %v5170, 2
      %vm5191 = vcmp.lt.s32.totalorder %v5170, 3
      %vm5192 = vcmp.lt.s32.totalorder %v5170, 4
      %v5193 = vsel %vm5189, %v5173, %v5176
      %v5194 = vsel %vm5192, %v5182, 2102212464
      %v5195 = vsel %vm5191, %v5179, %v5194
      %v5196 = vsel %vm5190, %v5193, %v5195
      %v5197 = vsel %vm5189, %v5176, %v5179
      %v5198 = vsel %vm5192, %v5185, 920167782
      %v5199 = vsel %vm5191, %v5182, %v5198
      %v5200 = vsel %vm5190, %v5197, %v5199
      %v5201 = vsel %vm5189, %v5179, %v5182
      %v5202 = vsel %vm5192, %v5188, 1326507024
      %v5203 = vsel %vm5191, %v5185, %v5202
      %v5204 = vsel %vm5190, %v5201, %v5203
      %v5205 = vshll.u32 %v5165, 8
      %v5206 = vmul.u32.u64.compose %v5205, %v5204
      %v5207 = vextract.low.u32 %v5206
      %v5208 = vextract.high.u32 %v5206
      %v5209 = vmul.u32.u64.compose %v5205, %v5200
      %v5210 = vextract.low.u32 %v5209
      %v5211 = vextract.high.u32 %v5209
      %v5212 = vmul.u32 %v5205, %v5196
      %v5213 = vadd.s32 %v5208, %v5210
      %vm5214 = vc.u32 %v5208, %v5210
      %v5215 = vadd.s32 %v5211, 1
      %v5216 = vsel %vm5214, %v5215, %v5211
      %v5217 = vadd.s32 %v5212, %v5216
      %v5218 = vadd.s32 %v5217, 536870912
      %v5219 = vshrl.u32 %v5218, 30
      %v5220 = vshll.u32 %v5219, 30
      %v5221 = vsub.s32 %v5217, %v5220
      %vm5222 = vcmp.lt.s32.totalorder %v5221, 0
      %v5223 = vsub.s32 0, %v5221
      %v5224 = vsel %vm5222, %v5223, %v5221
      %v5225 = vclz %v5224
      %v5226 = vsub.s32 %v5225, 2
      %vm5227 = vcmp.gt.s32.totalorder 0, %v5226
      %v5228 = vsel %vm5227, 0, %v5226
      %v5229 = vsub.s32 32, %v5228
      %v5230 = vshll.u32 %v5221, %v5228
      %v5231 = vshrl.u32 %v5213, %v5229
      %v5232 = vor.u32 %v5230, %v5231
      %v5233 = vsub.s32 4294967266, %v5228
      %v5234 = vadd.s32 %v5233, 127
      %v5235 = vshll.u32 %v5234, 23
      %v5236 = vor.u32 4788187, %v5235
      %v5237 = vand.u32 2147483647, %v5236
      %v5239 = vcvt.s32.f32 %v5232
      %v5240 = vmul.f32 %v5239, %v5237
      %v5241 = vxor.u32 %v5240, 2147483648
      %v5242 = vsel %vm5159, %v5241, %v5240
      %v5243 = vsub.s32 4, %v5219
      %v5244 = vsel %vm5159, %v5243, %v5219
      %v5245 = vsel %vm5158, %v772, %v5242
      %v5246 = vsel %vm5158, 0, %v5244
      %v5247 = vcosq.f32.pop %v5245
      %v5248 = vsinq.f32.pop %v5245
      %vm5249 = vweird.f32 %v772
      %v5250 = vand.u32 %v5246, 3
      %vm5251 = vcmp.lt.s32.totalorder %v5250, 2
      %vm5252 = vcmp.eq.s32.totalorder %v5250, 0
      %v5253 = vxor.u32 %v5248, 2147483648
      %v5254 = vsel %vm5252, %v5247, %v5253
      %vm5255 = vcmp.eq.s32.totalorder %v5250, 2
      %v5256 = vxor.u32 %v5247, 2147483648
      %v5257 = vsel %vm5255, %v5256, %v5248
      %v5258 = vsel %vm5251, %v5254, %v5257
      %v5259 = vsel %vm5249, nan, %v5258
      %v5260 = vand.u32 2147483647, %v773
      %vm5261 = vcmp.le.f32.partialorder %v5260, 0.7853982
      %vm5262 = vcmp.lt.s32.totalorder %v773, 0
      %v5263 = vand.u32 %v773, 2139095040
      %v5264 = vshrl.u32 %v5263, 23
      %v5265 = vsub.s32 %v5264, 127
      %v5266 = vand.u32 2147483647, %v773
      %v5267 = vand.u32 %v5266, 8388607
      %v5268 = vor.u32 %v5267, 8388608
      %v5269 = vsub.s32 0, %v5268
      %v5270 = vadd.s32 %v5265, 1
      %vm5271 = vcmp.gt.s32.totalorder %v5270, 0
      %v5272 = vsel %vm5271, %v5270, 0
      %v5273 = vshrl.u32 %v5272, 5
      %v5274 = vand.u32 %v5272, 31
      %v5275 = vsub.s32 32, %v5274
      %v5276 = vshrl.u32 683565275, %v5275
      %v5277 = vshll.u32 683565275, %v5274
      %v5278 = vshrl.u32 2475754826, %v5275
      %v5279 = vor.u32 %v5277, %v5278
      %v5280 = vshll.u32 2475754826, %v5274
      %v5281 = vshrl.u32 2131351028, %v5275
      %v5282 = vor.u32 %v5280, %v5281
      %v5283 = vshll.u32 2131351028, %v5274
      %v5284 = vshrl.u32 2102212464, %v5275
      %v5285 = vor.u32 %v5283, %v5284
      %v5286 = vshll.u32 2102212464, %v5274
      %v5287 = vshrl.u32 920167782, %v5275
      %v5288 = vor.u32 %v5286, %v5287
      %v5289 = vshll.u32 920167782, %v5274
      %v5290 = vshrl.u32 1326507024, %v5275
      %v5291 = vor.u32 %v5289, %v5290
      %vm5292 = vcmp.lt.s32.totalorder %v5273, 1
      %vm5293 = vcmp.lt.s32.totalorder %v5273, 2
      %vm5294 = vcmp.lt.s32.totalorder %v5273, 3
      %vm5295 = vcmp.lt.s32.totalorder %v5273, 4
      %v5296 = vsel %vm5292, %v5276, %v5279
      %v5297 = vsel %vm5295, %v5285, 2102212464
      %v5298 = vsel %vm5294, %v5282, %v5297
      %v5299 = vsel %vm5293, %v5296, %v5298
      %v5300 = vsel %vm5292, %v5279, %v5282
      %v5301 = vsel %vm5295, %v5288, 920167782
      %v5302 = vsel %vm5294, %v5285, %v5301
      %v5303 = vsel %vm5293, %v5300, %v5302
      %v5304 = vsel %vm5292, %v5282, %v5285
      %v5305 = vsel %vm5295, %v5291, 1326507024
      %v5306 = vsel %vm5294, %v5288, %v5305
      %v5307 = vsel %vm5293, %v5304, %v5306
      %v5308 = vshll.u32 %v5268, 8
      %v5309 = vmul.u32.u64.compose %v5308, %v5307
      %v5310 = vextract.low.u32 %v5309
      %v5311 = vextract.high.u32 %v5309
      %v5312 = vmul.u32.u64.compose %v5308, %v5303
      %v5313 = vextract.low.u32 %v5312
      %v5314 = vextract.high.u32 %v5312
      %v5315 = vmul.u32 %v5308, %v5299
      %v5316 = vadd.s32 %v5311, %v5313
      %vm5317 = vc.u32 %v5311, %v5313
      %v5318 = vadd.s32 %v5314, 1
      %v5319 = vsel %vm5317, %v5318, %v5314
      %v5320 = vadd.s32 %v5315, %v5319
      %v5321 = vadd.s32 %v5320, 536870912
      %v5322 = vshrl.u32 %v5321, 30
      %v5323 = vshll.u32 %v5322, 30
      %v5324 = vsub.s32 %v5320, %v5323
      %vm5325 = vcmp.lt.s32.totalorder %v5324, 0
      %v5326 = vsub.s32 0, %v5324
      %v5327 = vsel %vm5325, %v5326, %v5324
      %v5328 = vclz %v5327
      %v5329 = vsub.s32 %v5328, 2
      %vm5330 = vcmp.gt.s32.totalorder 0, %v5329
      %v5331 = vsel %vm5330, 0, %v5329
      %v5332 = vsub.s32 32, %v5331
      %v5333 = vshll.u32 %v5324, %v5331
      %v5334 = vshrl.u32 %v5316, %v5332
      %v5335 = vor.u32 %v5333, %v5334
      %v5336 = vsub.s32 4294967266, %v5331
      %v5337 = vadd.s32 %v5336, 127
      %v5338 = vshll.u32 %v5337, 23
      %v5339 = vor.u32 4788187, %v5338
      %v5340 = vand.u32 2147483647, %v5339
      %v5342 = vcvt.s32.f32 %v5335
      %v5343 = vmul.f32 %v5342, %v5340
      %v5344 = vxor.u32 %v5343, 2147483648
      %v5345 = vsel %vm5262, %v5344, %v5343
      %v5346 = vsub.s32 4, %v5322
      %v5347 = vsel %vm5262, %v5346, %v5322
      %v5348 = vsel %vm5261, %v773, %v5345
      %v5349 = vsel %vm5261, 0, %v5347
      %v5350 = vcosq.f32.pop %v5348
      %v5351 = vsinq.f32.pop %v5348
      %vm5352 = vweird.f32 %v773
      %v5353 = vand.u32 %v5349, 3
      %vm5354 = vcmp.lt.s32.totalorder %v5353, 2
      %vm5355 = vcmp.eq.s32.totalorder %v5353, 0
      %v5356 = vxor.u32 %v5351, 2147483648
      %v5357 = vsel %vm5355, %v5350, %v5356
      %vm5358 = vcmp.eq.s32.totalorder %v5353, 2
      %v5359 = vxor.u32 %v5350, 2147483648
      %v5360 = vsel %vm5358, %v5359, %v5351
      %v5361 = vsel %vm5354, %v5357, %v5360
      %v5362 = vsel %vm5352, nan, %v5361
      %v5363 = vand.u32 2147483647, %v774
      %vm5364 = vcmp.le.f32.partialorder %v5363, 0.7853982
      %vm5365 = vcmp.lt.s32.totalorder %v774, 0
      %v5366 = vand.u32 %v774, 2139095040
      %v5367 = vshrl.u32 %v5366, 23
      %v5368 = vsub.s32 %v5367, 127
      %v5369 = vand.u32 2147483647, %v774
      %v5370 = vand.u32 %v5369, 8388607
      %v5371 = vor.u32 %v5370, 8388608
      %v5372 = vsub.s32 0, %v5371
      %v5373 = vadd.s32 %v5368, 1
      %vm5374 = vcmp.gt.s32.totalorder %v5373, 0
      %v5375 = vsel %vm5374, %v5373, 0
      %v5376 = vshrl.u32 %v5375, 5
      %v5377 = vand.u32 %v5375, 31
      %v5378 = vsub.s32 32, %v5377
      %v5379 = vshrl.u32 683565275, %v5378
      %v5380 = vshll.u32 683565275, %v5377
      %v5381 = vshrl.u32 2475754826, %v5378
      %v5382 = vor.u32 %v5380, %v5381
      %v5383 = vshll.u32 2475754826, %v5377
      %v5384 = vshrl.u32 2131351028, %v5378
      %v5385 = vor.u32 %v5383, %v5384
      %v5386 = vshll.u32 2131351028, %v5377
      %v5387 = vshrl.u32 2102212464, %v5378
      %v5388 = vor.u32 %v5386, %v5387
      %v5389 = vshll.u32 2102212464, %v5377
      %v5390 = vshrl.u32 920167782, %v5378
      %v5391 = vor.u32 %v5389, %v5390
      %v5392 = vshll.u32 920167782, %v5377
      %v5393 = vshrl.u32 1326507024, %v5378
      %v5394 = vor.u32 %v5392, %v5393
      %vm5395 = vcmp.lt.s32.totalorder %v5376, 1
      %vm5396 = vcmp.lt.s32.totalorder %v5376, 2
      %vm5397 = vcmp.lt.s32.totalorder %v5376, 3
      %vm5398 = vcmp.lt.s32.totalorder %v5376, 4
      %v5399 = vsel %vm5395, %v5379, %v5382
      %v5400 = vsel %vm5398, %v5388, 2102212464
      %v5401 = vsel %vm5397, %v5385, %v5400
      %v5402 = vsel %vm5396, %v5399, %v5401
      %v5403 = vsel %vm5395, %v5382, %v5385
      %v5404 = vsel %vm5398, %v5391, 920167782
      %v5405 = vsel %vm5397, %v5388, %v5404
      %v5406 = vsel %vm5396, %v5403, %v5405
      %v5407 = vsel %vm5395, %v5385, %v5388
      %v5408 = vsel %vm5398, %v5394, 1326507024
      %v5409 = vsel %vm5397, %v5391, %v5408
      %v5410 = vsel %vm5396, %v5407, %v5409
      %v5411 = vshll.u32 %v5371, 8
      %v5412 = vmul.u32.u64.compose %v5411, %v5410
      %v5413 = vextract.low.u32 %v5412
      %v5414 = vextract.high.u32 %v5412
      %v5415 = vmul.u32.u64.compose %v5411, %v5406
      %v5416 = vextract.low.u32 %v5415
      %v5417 = vextract.high.u32 %v5415
      %v5418 = vmul.u32 %v5411, %v5402
      %v5419 = vadd.s32 %v5414, %v5416
      %vm5420 = vc.u32 %v5414, %v5416
      %v5421 = vadd.s32 %v5417, 1
      %v5422 = vsel %vm5420, %v5421, %v5417
      %v5423 = vadd.s32 %v5418, %v5422
      %v5424 = vadd.s32 %v5423, 536870912
      %v5425 = vshrl.u32 %v5424, 30
      %v5426 = vshll.u32 %v5425, 30
      %v5427 = vsub.s32 %v5423, %v5426
      %vm5428 = vcmp.lt.s32.totalorder %v5427, 0
      %v5429 = vsub.s32 0, %v5427
      %v5430 = vsel %vm5428, %v5429, %v5427
      %v5431 = vclz %v5430
      %v5432 = vsub.s32 %v5431, 2
      %vm5433 = vcmp.gt.s32.totalorder 0, %v5432
      %v5434 = vsel %vm5433, 0, %v5432
      %v5435 = vsub.s32 32, %v5434
      %v5436 = vshll.u32 %v5427, %v5434
      %v5437 = vshrl.u32 %v5419, %v5435
      %v5438 = vor.u32 %v5436, %v5437
      %v5439 = vsub.s32 4294967266, %v5434
      %v5440 = vadd.s32 %v5439, 127
      %v5441 = vshll.u32 %v5440, 23
      %v5442 = vor.u32 4788187, %v5441
      %v5443 = vand.u32 2147483647, %v5442
      %v5445 = vcvt.s32.f32 %v5438
      %v5446 = vmul.f32 %v5445, %v5443
      %v5447 = vxor.u32 %v5446, 2147483648
      %v5448 = vsel %vm5365, %v5447, %v5446
      %v5449 = vsub.s32 4, %v5425
      %v5450 = vsel %vm5365, %v5449, %v5425
      %v5451 = vsel %vm5364, %v774, %v5448
      %v5452 = vsel %vm5364, 0, %v5450
      %v5453 = vcosq.f32.pop %v5451
      %v5454 = vsinq.f32.pop %v5451
      %vm5455 = vweird.f32 %v774
      %v5456 = vand.u32 %v5452, 3
      %vm5457 = vcmp.lt.s32.totalorder %v5456, 2
      %vm5458 = vcmp.eq.s32.totalorder %v5456, 0
      %v5459 = vxor.u32 %v5454, 2147483648
      %v5460 = vsel %vm5458, %v5453, %v5459
      %vm5461 = vcmp.eq.s32.totalorder %v5456, 2
      %v5462 = vxor.u32 %v5453, 2147483648
      %v5463 = vsel %vm5461, %v5462, %v5454
      %v5464 = vsel %vm5457, %v5460, %v5463
      %v5465 = vsel %vm5455, nan, %v5464
      %v5466 = vand.u32 2147483647, %v775
      %vm5467 = vcmp.le.f32.partialorder %v5466, 0.7853982
      %vm5468 = vcmp.lt.s32.totalorder %v775, 0
      %v5469 = vand.u32 %v775, 2139095040
      %v5470 = vshrl.u32 %v5469, 23
      %v5471 = vsub.s32 %v5470, 127
      %v5472 = vand.u32 2147483647, %v775
      %v5473 = vand.u32 %v5472, 8388607
      %v5474 = vor.u32 %v5473, 8388608
      %v5475 = vsub.s32 0, %v5474
      %v5476 = vadd.s32 %v5471, 1
      %vm5477 = vcmp.gt.s32.totalorder %v5476, 0
      %v5478 = vsel %vm5477, %v5476, 0
      %v5479 = vshrl.u32 %v5478, 5
      %v5480 = vand.u32 %v5478, 31
      %v5481 = vsub.s32 32, %v5480
      %v5482 = vshrl.u32 683565275, %v5481
      %v5483 = vshll.u32 683565275, %v5480
      %v5484 = vshrl.u32 2475754826, %v5481
      %v5485 = vor.u32 %v5483, %v5484
      %v5486 = vshll.u32 2475754826, %v5480
      %v5487 = vshrl.u32 2131351028, %v5481
      %v5488 = vor.u32 %v5486, %v5487
      %v5489 = vshll.u32 2131351028, %v5480
      %v5490 = vshrl.u32 2102212464, %v5481
      %v5491 = vor.u32 %v5489, %v5490
      %v5492 = vshll.u32 2102212464, %v5480
      %v5493 = vshrl.u32 920167782, %v5481
      %v5494 = vor.u32 %v5492, %v5493
      %v5495 = vshll.u32 920167782, %v5480
      %v5496 = vshrl.u32 1326507024, %v5481
      %v5497 = vor.u32 %v5495, %v5496
      %vm5498 = vcmp.lt.s32.totalorder %v5479, 1
      %vm5499 = vcmp.lt.s32.totalorder %v5479, 2
      %vm5500 = vcmp.lt.s32.totalorder %v5479, 3
      %vm5501 = vcmp.lt.s32.totalorder %v5479, 4
      %v5502 = vsel %vm5498, %v5482, %v5485
      %v5503 = vsel %vm5501, %v5491, 2102212464
      %v5504 = vsel %vm5500, %v5488, %v5503
      %v5505 = vsel %vm5499, %v5502, %v5504
      %v5506 = vsel %vm5498, %v5485, %v5488
      %v5507 = vsel %vm5501, %v5494, 920167782
      %v5508 = vsel %vm5500, %v5491, %v5507
      %v5509 = vsel %vm5499, %v5506, %v5508
      %v5510 = vsel %vm5498, %v5488, %v5491
      %v5511 = vsel %vm5501, %v5497, 1326507024
      %v5512 = vsel %vm5500, %v5494, %v5511
      %v5513 = vsel %vm5499, %v5510, %v5512
      %v5514 = vshll.u32 %v5474, 8
      %v5515 = vmul.u32.u64.compose %v5514, %v5513
      %v5516 = vextract.low.u32 %v5515
      %v5517 = vextract.high.u32 %v5515
      %v5518 = vmul.u32.u64.compose %v5514, %v5509
      %v5519 = vextract.low.u32 %v5518
      %v5520 = vextract.high.u32 %v5518
      %v5521 = vmul.u32 %v5514, %v5505
      %v5522 = vadd.s32 %v5517, %v5519
      %vm5523 = vc.u32 %v5517, %v5519
      %v5524 = vadd.s32 %v5520, 1
      %v5525 = vsel %vm5523, %v5524, %v5520
      %v5526 = vadd.s32 %v5521, %v5525
      %v5527 = vadd.s32 %v5526, 536870912
      %v5528 = vshrl.u32 %v5527, 30
      %v5529 = vshll.u32 %v5528, 30
      %v5530 = vsub.s32 %v5526, %v5529
      %vm5531 = vcmp.lt.s32.totalorder %v5530, 0
      %v5532 = vsub.s32 0, %v5530
      %v5533 = vsel %vm5531, %v5532, %v5530
      %v5534 = vclz %v5533
      %v5535 = vsub.s32 %v5534, 2
      %vm5536 = vcmp.gt.s32.totalorder 0, %v5535
      %v5537 = vsel %vm5536, 0, %v5535
      %v5538 = vsub.s32 32, %v5537
      %v5539 = vshll.u32 %v5530, %v5537
      %v5540 = vshrl.u32 %v5522, %v5538
      %v5541 = vor.u32 %v5539, %v5540
      %v5542 = vsub.s32 4294967266, %v5537
      %v5543 = vadd.s32 %v5542, 127
      %v5544 = vshll.u32 %v5543, 23
      %v5545 = vor.u32 4788187, %v5544
      %v5546 = vand.u32 2147483647, %v5545
      %v5548 = vcvt.s32.f32 %v5541
      %v5549 = vmul.f32 %v5548, %v5546
      %v5550 = vxor.u32 %v5549, 2147483648
      %v5551 = vsel %vm5468, %v5550, %v5549
      %v5552 = vsub.s32 4, %v5528
      %v5553 = vsel %vm5468, %v5552, %v5528
      %v5554 = vsel %vm5467, %v775, %v5551
      %v5555 = vsel %vm5467, 0, %v5553
      %v5556 = vcosq.f32.pop %v5554
      %v5557 = vsinq.f32.pop %v5554
      %vm5558 = vweird.f32 %v775
      %v5559 = vand.u32 %v5555, 3
      %vm5560 = vcmp.lt.s32.totalorder %v5559, 2
      %vm5561 = vcmp.eq.s32.totalorder %v5559, 0
      %v5562 = vxor.u32 %v5557, 2147483648
      %v5563 = vsel %vm5561, %v5556, %v5562
      %vm5564 = vcmp.eq.s32.totalorder %v5559, 2
      %v5565 = vxor.u32 %v5556, 2147483648
      %v5566 = vsel %vm5564, %v5565, %v5557
      %v5567 = vsel %vm5560, %v5563, %v5566
      %v5568 = vsel %vm5558, nan, %v5567
      %v5569 = vand.u32 2147483647, %v776
      %vm5570 = vcmp.le.f32.partialorder %v5569, 0.7853982
      %vm5571 = vcmp.lt.s32.totalorder %v776, 0
      %v5572 = vand.u32 %v776, 2139095040
      %v5573 = vshrl.u32 %v5572, 23
      %v5574 = vsub.s32 %v5573, 127
      %v5575 = vand.u32 2147483647, %v776
      %v5576 = vand.u32 %v5575, 8388607
      %v5577 = vor.u32 %v5576, 8388608
      %v5578 = vsub.s32 0, %v5577
      %v5579 = vadd.s32 %v5574, 1
      %vm5580 = vcmp.gt.s32.totalorder %v5579, 0
      %v5581 = vsel %vm5580, %v5579, 0
      %v5582 = vshrl.u32 %v5581, 5
      %v5583 = vand.u32 %v5581, 31
      %v5584 = vsub.s32 32, %v5583
      %v5585 = vshrl.u32 683565275, %v5584
      %v5586 = vshll.u32 683565275, %v5583
      %v5587 = vshrl.u32 2475754826, %v5584
      %v5588 = vor.u32 %v5586, %v5587
      %v5589 = vshll.u32 2475754826, %v5583
      %v5590 = vshrl.u32 2131351028, %v5584
      %v5591 = vor.u32 %v5589, %v5590
      %v5592 = vshll.u32 2131351028, %v5583
      %v5593 = vshrl.u32 2102212464, %v5584
      %v5594 = vor.u32 %v5592, %v5593
      %v5595 = vshll.u32 2102212464, %v5583
      %v5596 = vshrl.u32 920167782, %v5584
      %v5597 = vor.u32 %v5595, %v5596
      %v5598 = vshll.u32 920167782, %v5583
      %v5599 = vshrl.u32 1326507024, %v5584
      %v5600 = vor.u32 %v5598, %v5599
      %vm5601 = vcmp.lt.s32.totalorder %v5582, 1
      %vm5602 = vcmp.lt.s32.totalorder %v5582, 2
      %vm5603 = vcmp.lt.s32.totalorder %v5582, 3
      %vm5604 = vcmp.lt.s32.totalorder %v5582, 4
      %v5605 = vsel %vm5601, %v5585, %v5588
      %v5606 = vsel %vm5604, %v5594, 2102212464
      %v5607 = vsel %vm5603, %v5591, %v5606
      %v5608 = vsel %vm5602, %v5605, %v5607
      %v5609 = vsel %vm5601, %v5588, %v5591
      %v5610 = vsel %vm5604, %v5597, 920167782
      %v5611 = vsel %vm5603, %v5594, %v5610
      %v5612 = vsel %vm5602, %v5609, %v5611
      %v5613 = vsel %vm5601, %v5591, %v5594
      %v5614 = vsel %vm5604, %v5600, 1326507024
      %v5615 = vsel %vm5603, %v5597, %v5614
      %v5616 = vsel %vm5602, %v5613, %v5615
      %v5617 = vshll.u32 %v5577, 8
      %v5618 = vmul.u32.u64.compose %v5617, %v5616
      %v5619 = vextract.low.u32 %v5618
      %v5620 = vextract.high.u32 %v5618
      %v5621 = vmul.u32.u64.compose %v5617, %v5612
      %v5622 = vextract.low.u32 %v5621
      %v5623 = vextract.high.u32 %v5621
      %v5624 = vmul.u32 %v5617, %v5608
      %v5625 = vadd.s32 %v5620, %v5622
      %vm5626 = vc.u32 %v5620, %v5622
      %v5627 = vadd.s32 %v5623, 1
      %v5628 = vsel %vm5626, %v5627, %v5623
      %v5629 = vadd.s32 %v5624, %v5628
      %v5630 = vadd.s32 %v5629, 536870912
      %v5631 = vshrl.u32 %v5630, 30
      %v5632 = vshll.u32 %v5631, 30
      %v5633 = vsub.s32 %v5629, %v5632
      %vm5634 = vcmp.lt.s32.totalorder %v5633, 0
      %v5635 = vsub.s32 0, %v5633
      %v5636 = vsel %vm5634, %v5635, %v5633
      %v5637 = vclz %v5636
      %v5638 = vsub.s32 %v5637, 2
      %vm5639 = vcmp.gt.s32.totalorder 0, %v5638
      %v5640 = vsel %vm5639, 0, %v5638
      %v5641 = vsub.s32 32, %v5640
      %v5642 = vshll.u32 %v5633, %v5640
      %v5643 = vshrl.u32 %v5625, %v5641
      %v5644 = vor.u32 %v5642, %v5643
      %v5645 = vsub.s32 4294967266, %v5640
      %v5646 = vadd.s32 %v5645, 127
      %v5647 = vshll.u32 %v5646, 23
      %v5648 = vor.u32 4788187, %v5647
      %v5649 = vand.u32 2147483647, %v5648
      %v5651 = vcvt.s32.f32 %v5644
      %v5652 = vmul.f32 %v5651, %v5649
      %v5653 = vxor.u32 %v5652, 2147483648
      %v5654 = vsel %vm5571, %v5653, %v5652
      %v5655 = vsub.s32 4, %v5631
      %v5656 = vsel %vm5571, %v5655, %v5631
      %v5657 = vsel %vm5570, %v776, %v5654
      %v5658 = vsel %vm5570, 0, %v5656
      %v5659 = vcosq.f32.pop %v5657
      %v5660 = vsinq.f32.pop %v5657
      %vm5661 = vweird.f32 %v776
      %v5662 = vand.u32 %v5658, 3
      %vm5663 = vcmp.lt.s32.totalorder %v5662, 2
      %vm5664 = vcmp.eq.s32.totalorder %v5662, 0
      %v5665 = vxor.u32 %v5660, 2147483648
      %v5666 = vsel %vm5664, %v5659, %v5665
      %vm5667 = vcmp.eq.s32.totalorder %v5662, 2
      %v5668 = vxor.u32 %v5659, 2147483648
      %v5669 = vsel %vm5667, %v5668, %v5660
      %v5670 = vsel %vm5663, %v5666, %v5669
      %v5671 = vsel %vm5661, nan, %v5670
      %v5672 = vand.u32 2147483647, %v777
      %vm5673 = vcmp.le.f32.partialorder %v5672, 0.7853982
      %vm5674 = vcmp.lt.s32.totalorder %v777, 0
      %v5675 = vand.u32 %v777, 2139095040
      %v5676 = vshrl.u32 %v5675, 23
      %v5677 = vsub.s32 %v5676, 127
      %v5678 = vand.u32 2147483647, %v777
      %v5679 = vand.u32 %v5678, 8388607
      %v5680 = vor.u32 %v5679, 8388608
      %v5681 = vsub.s32 0, %v5680
      %v5682 = vadd.s32 %v5677, 1
      %vm5683 = vcmp.gt.s32.totalorder %v5682, 0
      %v5684 = vsel %vm5683, %v5682, 0
      %v5685 = vshrl.u32 %v5684, 5
      %v5686 = vand.u32 %v5684, 31
      %v5687 = vsub.s32 32, %v5686
      %v5688 = vshrl.u32 683565275, %v5687
      %v5689 = vshll.u32 683565275, %v5686
      %v5690 = vshrl.u32 2475754826, %v5687
      %v5691 = vor.u32 %v5689, %v5690
      %v5692 = vshll.u32 2475754826, %v5686
      %v5693 = vshrl.u32 2131351028, %v5687
      %v5694 = vor.u32 %v5692, %v5693
      %v5695 = vshll.u32 2131351028, %v5686
      %v5696 = vshrl.u32 2102212464, %v5687
      %v5697 = vor.u32 %v5695, %v5696
      %v5698 = vshll.u32 2102212464, %v5686
      %v5699 = vshrl.u32 920167782, %v5687
      %v5700 = vor.u32 %v5698, %v5699
      %v5701 = vshll.u32 920167782, %v5686
      %v5702 = vshrl.u32 1326507024, %v5687
      %v5703 = vor.u32 %v5701, %v5702
      %vm5704 = vcmp.lt.s32.totalorder %v5685, 1
      %vm5705 = vcmp.lt.s32.totalorder %v5685, 2
      %vm5706 = vcmp.lt.s32.totalorder %v5685, 3
      %vm5707 = vcmp.lt.s32.totalorder %v5685, 4
      %v5708 = vsel %vm5704, %v5688, %v5691
      %v5709 = vsel %vm5707, %v5697, 2102212464
      %v5710 = vsel %vm5706, %v5694, %v5709
      %v5711 = vsel %vm5705, %v5708, %v5710
      %v5712 = vsel %vm5704, %v5691, %v5694
      %v5713 = vsel %vm5707, %v5700, 920167782
      %v5714 = vsel %vm5706, %v5697, %v5713
      %v5715 = vsel %vm5705, %v5712, %v5714
      %v5716 = vsel %vm5704, %v5694, %v5697
      %v5717 = vsel %vm5707, %v5703, 1326507024
      %v5718 = vsel %vm5706, %v5700, %v5717
      %v5719 = vsel %vm5705, %v5716, %v5718
      %v5720 = vshll.u32 %v5680, 8
      %v5721 = vmul.u32.u64.compose %v5720, %v5719
      %v5722 = vextract.low.u32 %v5721
      %v5723 = vextract.high.u32 %v5721
      %v5724 = vmul.u32.u64.compose %v5720, %v5715
      %v5725 = vextract.low.u32 %v5724
      %v5726 = vextract.high.u32 %v5724
      %v5727 = vmul.u32 %v5720, %v5711
      %v5728 = vadd.s32 %v5723, %v5725
      %vm5729 = vc.u32 %v5723, %v5725
      %v5730 = vadd.s32 %v5726, 1
      %v5731 = vsel %vm5729, %v5730, %v5726
      %v5732 = vadd.s32 %v5727, %v5731
      %v5733 = vadd.s32 %v5732, 536870912
      %v5734 = vshrl.u32 %v5733, 30
      %v5735 = vshll.u32 %v5734, 30
      %v5736 = vsub.s32 %v5732, %v5735
      %vm5737 = vcmp.lt.s32.totalorder %v5736, 0
      %v5738 = vsub.s32 0, %v5736
      %v5739 = vsel %vm5737, %v5738, %v5736
      %v5740 = vclz %v5739
      %v5741 = vsub.s32 %v5740, 2
      %vm5742 = vcmp.gt.s32.totalorder 0, %v5741
      %v5743 = vsel %vm5742, 0, %v5741
      %v5744 = vsub.s32 32, %v5743
      %v5745 = vshll.u32 %v5736, %v5743
      %v5746 = vshrl.u32 %v5728, %v5744
      %v5747 = vor.u32 %v5745, %v5746
      %v5748 = vsub.s32 4294967266, %v5743
      %v5749 = vadd.s32 %v5748, 127
      %v5750 = vshll.u32 %v5749, 23
      %v5751 = vor.u32 4788187, %v5750
      %v5752 = vand.u32 2147483647, %v5751
      %v5754 = vcvt.s32.f32 %v5747
      %v5755 = vmul.f32 %v5754, %v5752
      %v5756 = vxor.u32 %v5755, 2147483648
      %v5757 = vsel %vm5674, %v5756, %v5755
      %v5758 = vsub.s32 4, %v5734
      %v5759 = vsel %vm5674, %v5758, %v5734
      %v5760 = vsel %vm5673, %v777, %v5757
      %v5761 = vsel %vm5673, 0, %v5759
      %v5762 = vcosq.f32.pop %v5760
      %v5763 = vsinq.f32.pop %v5760
      %vm5764 = vweird.f32 %v777
      %v5765 = vand.u32 %v5761, 3
      %vm5766 = vcmp.lt.s32.totalorder %v5765, 2
      %vm5767 = vcmp.eq.s32.totalorder %v5765, 0
      %v5768 = vxor.u32 %v5763, 2147483648
      %v5769 = vsel %vm5767, %v5762, %v5768
      %vm5770 = vcmp.eq.s32.totalorder %v5765, 2
      %v5771 = vxor.u32 %v5762, 2147483648
      %v5772 = vsel %vm5770, %v5771, %v5763
      %v5773 = vsel %vm5766, %v5769, %v5772
      %v5774 = vsel %vm5764, nan, %v5773
      %v5775 = vand.u32 2147483647, %v778
      %vm5776 = vcmp.le.f32.partialorder %v5775, 0.7853982
      %vm5777 = vcmp.lt.s32.totalorder %v778, 0
      %v5778 = vand.u32 %v778, 2139095040
      %v5779 = vshrl.u32 %v5778, 23
      %v5780 = vsub.s32 %v5779, 127
      %v5781 = vand.u32 2147483647, %v778
      %v5782 = vand.u32 %v5781, 8388607
      %v5783 = vor.u32 %v5782, 8388608
      %v5784 = vsub.s32 0, %v5783
      %v5785 = vadd.s32 %v5780, 1
      %vm5786 = vcmp.gt.s32.totalorder %v5785, 0
      %v5787 = vsel %vm5786, %v5785, 0
      %v5788 = vshrl.u32 %v5787, 5
      %v5789 = vand.u32 %v5787, 31
      %v5790 = vsub.s32 32, %v5789
      %v5791 = vshrl.u32 683565275, %v5790
      %v5792 = vshll.u32 683565275, %v5789
      %v5793 = vshrl.u32 2475754826, %v5790
      %v5794 = vor.u32 %v5792, %v5793
      %v5795 = vshll.u32 2475754826, %v5789
      %v5796 = vshrl.u32 2131351028, %v5790
      %v5797 = vor.u32 %v5795, %v5796
      %v5798 = vshll.u32 2131351028, %v5789
      %v5799 = vshrl.u32 2102212464, %v5790
      %v5800 = vor.u32 %v5798, %v5799
      %v5801 = vshll.u32 2102212464, %v5789
      %v5802 = vshrl.u32 920167782, %v5790
      %v5803 = vor.u32 %v5801, %v5802
      %v5804 = vshll.u32 920167782, %v5789
      %v5805 = vshrl.u32 1326507024, %v5790
      %v5806 = vor.u32 %v5804, %v5805
      %vm5807 = vcmp.lt.s32.totalorder %v5788, 1
      %vm5808 = vcmp.lt.s32.totalorder %v5788, 2
      %vm5809 = vcmp.lt.s32.totalorder %v5788, 3
      %vm5810 = vcmp.lt.s32.totalorder %v5788, 4
      %v5811 = vsel %vm5807, %v5791, %v5794
      %v5812 = vsel %vm5810, %v5800, 2102212464
      %v5813 = vsel %vm5809, %v5797, %v5812
      %v5814 = vsel %vm5808, %v5811, %v5813
      %v5815 = vsel %vm5807, %v5794, %v5797
      %v5816 = vsel %vm5810, %v5803, 920167782
      %v5817 = vsel %vm5809, %v5800, %v5816
      %v5818 = vsel %vm5808, %v5815, %v5817
      %v5819 = vsel %vm5807, %v5797, %v5800
      %v5820 = vsel %vm5810, %v5806, 1326507024
      %v5821 = vsel %vm5809, %v5803, %v5820
      %v5822 = vsel %vm5808, %v5819, %v5821
      %v5823 = vshll.u32 %v5783, 8
      %v5824 = vmul.u32.u64.compose %v5823, %v5822
      %v5825 = vextract.low.u32 %v5824
      %v5826 = vextract.high.u32 %v5824
      %v5827 = vmul.u32.u64.compose %v5823, %v5818
      %v5828 = vextract.low.u32 %v5827
      %v5829 = vextract.high.u32 %v5827
      %v5830 = vmul.u32 %v5823, %v5814
      %v5831 = vadd.s32 %v5826, %v5828
      %vm5832 = vc.u32 %v5826, %v5828
      %v5833 = vadd.s32 %v5829, 1
      %v5834 = vsel %vm5832, %v5833, %v5829
      %v5835 = vadd.s32 %v5830, %v5834
      %v5836 = vadd.s32 %v5835, 536870912
      %v5837 = vshrl.u32 %v5836, 30
      %v5838 = vshll.u32 %v5837, 30
      %v5839 = vsub.s32 %v5835, %v5838
      %vm5840 = vcmp.lt.s32.totalorder %v5839, 0
      %v5841 = vsub.s32 0, %v5839
      %v5842 = vsel %vm5840, %v5841, %v5839
      %v5843 = vclz %v5842
      %v5844 = vsub.s32 %v5843, 2
      %vm5845 = vcmp.gt.s32.totalorder 0, %v5844
      %v5846 = vsel %vm5845, 0, %v5844
      %v5847 = vsub.s32 32, %v5846
      %v5848 = vshll.u32 %v5839, %v5846
      %v5849 = vshrl.u32 %v5831, %v5847
      %v5850 = vor.u32 %v5848, %v5849
      %v5851 = vsub.s32 4294967266, %v5846
      %v5852 = vadd.s32 %v5851, 127
      %v5853 = vshll.u32 %v5852, 23
      %v5854 = vor.u32 4788187, %v5853
      %v5855 = vand.u32 2147483647, %v5854
      %v5857 = vcvt.s32.f32 %v5850
      %v5858 = vmul.f32 %v5857, %v5855
      %v5859 = vxor.u32 %v5858, 2147483648
      %v5860 = vsel %vm5777, %v5859, %v5858
      %v5861 = vsub.s32 4, %v5837
      %v5862 = vsel %vm5777, %v5861, %v5837
      %v5863 = vsel %vm5776, %v778, %v5860
      %v5864 = vsel %vm5776, 0, %v5862
      %v5865 = vcosq.f32.pop %v5863
      %v5866 = vsinq.f32.pop %v5863
      %vm5867 = vweird.f32 %v778
      %v5868 = vand.u32 %v5864, 3
      %vm5869 = vcmp.lt.s32.totalorder %v5868, 2
      %vm5870 = vcmp.eq.s32.totalorder %v5868, 0
      %v5871 = vxor.u32 %v5866, 2147483648
      %v5872 = vsel %vm5870, %v5865, %v5871
      %vm5873 = vcmp.eq.s32.totalorder %v5868, 2
      %v5874 = vxor.u32 %v5865, 2147483648
      %v5875 = vsel %vm5873, %v5874, %v5866
      %v5876 = vsel %vm5869, %v5872, %v5875
      %v5877 = vsel %vm5867, nan, %v5876
      %v5878 = vand.u32 2147483647, %v779
      %vm5879 = vcmp.le.f32.partialorder %v5878, 0.7853982
      %vm5880 = vcmp.lt.s32.totalorder %v779, 0
      %v5881 = vand.u32 %v779, 2139095040
      %v5882 = vshrl.u32 %v5881, 23
      %v5883 = vsub.s32 %v5882, 127
      %v5884 = vand.u32 2147483647, %v779
      %v5885 = vand.u32 %v5884, 8388607
      %v5886 = vor.u32 %v5885, 8388608
      %v5887 = vsub.s32 0, %v5886
      %v5888 = vadd.s32 %v5883, 1
      %vm5889 = vcmp.gt.s32.totalorder %v5888, 0
      %v5890 = vsel %vm5889, %v5888, 0
      %v5891 = vshrl.u32 %v5890, 5
      %v5892 = vand.u32 %v5890, 31
      %v5893 = vsub.s32 32, %v5892
      %v5894 = vshrl.u32 683565275, %v5893
      %v5895 = vshll.u32 683565275, %v5892
      %v5896 = vshrl.u32 2475754826, %v5893
      %v5897 = vor.u32 %v5895, %v5896
      %v5898 = vshll.u32 2475754826, %v5892
      %v5899 = vshrl.u32 2131351028, %v5893
      %v5900 = vor.u32 %v5898, %v5899
      %v5901 = vshll.u32 2131351028, %v5892
      %v5902 = vshrl.u32 2102212464, %v5893
      %v5903 = vor.u32 %v5901, %v5902
      %v5904 = vshll.u32 2102212464, %v5892
      %v5905 = vshrl.u32 920167782, %v5893
      %v5906 = vor.u32 %v5904, %v5905
      %v5907 = vshll.u32 920167782, %v5892
      %v5908 = vshrl.u32 1326507024, %v5893
      %v5909 = vor.u32 %v5907, %v5908
      %vm5910 = vcmp.lt.s32.totalorder %v5891, 1
      %vm5911 = vcmp.lt.s32.totalorder %v5891, 2
      %vm5912 = vcmp.lt.s32.totalorder %v5891, 3
      %vm5913 = vcmp.lt.s32.totalorder %v5891, 4
      %v5914 = vsel %vm5910, %v5894, %v5897
      %v5915 = vsel %vm5913, %v5903, 2102212464
      %v5916 = vsel %vm5912, %v5900, %v5915
      %v5917 = vsel %vm5911, %v5914, %v5916
      %v5918 = vsel %vm5910, %v5897, %v5900
      %v5919 = vsel %vm5913, %v5906, 920167782
      %v5920 = vsel %vm5912, %v5903, %v5919
      %v5921 = vsel %vm5911, %v5918, %v5920
      %v5922 = vsel %vm5910, %v5900, %v5903
      %v5923 = vsel %vm5913, %v5909, 1326507024
      %v5924 = vsel %vm5912, %v5906, %v5923
      %v5925 = vsel %vm5911, %v5922, %v5924
      %v5926 = vshll.u32 %v5886, 8
      %v5927 = vmul.u32.u64.compose %v5926, %v5925
      %v5928 = vextract.low.u32 %v5927
      %v5929 = vextract.high.u32 %v5927
      %v5930 = vmul.u32.u64.compose %v5926, %v5921
      %v5931 = vextract.low.u32 %v5930
      %v5932 = vextract.high.u32 %v5930
      %v5933 = vmul.u32 %v5926, %v5917
      %v5934 = vadd.s32 %v5929, %v5931
      %vm5935 = vc.u32 %v5929, %v5931
      %v5936 = vadd.s32 %v5932, 1
      %v5937 = vsel %vm5935, %v5936, %v5932
      %v5938 = vadd.s32 %v5933, %v5937
      %v5939 = vadd.s32 %v5938, 536870912
      %v5940 = vshrl.u32 %v5939, 30
      %v5941 = vshll.u32 %v5940, 30
      %v5942 = vsub.s32 %v5938, %v5941
      %vm5943 = vcmp.lt.s32.totalorder %v5942, 0
      %v5944 = vsub.s32 0, %v5942
      %v5945 = vsel %vm5943, %v5944, %v5942
      %v5946 = vclz %v5945
      %v5947 = vsub.s32 %v5946, 2
      %vm5948 = vcmp.gt.s32.totalorder 0, %v5947
      %v5949 = vsel %vm5948, 0, %v5947
      %v5950 = vsub.s32 32, %v5949
      %v5951 = vshll.u32 %v5942, %v5949
      %v5952 = vshrl.u32 %v5934, %v5950
      %v5953 = vor.u32 %v5951, %v5952
      %v5954 = vsub.s32 4294967266, %v5949
      %v5955 = vadd.s32 %v5954, 127
      %v5956 = vshll.u32 %v5955, 23
      %v5957 = vor.u32 4788187, %v5956
      %v5958 = vand.u32 2147483647, %v5957
      %v5960 = vcvt.s32.f32 %v5953
      %v5961 = vmul.f32 %v5960, %v5958
      %v5962 = vxor.u32 %v5961, 2147483648
      %v5963 = vsel %vm5880, %v5962, %v5961
      %v5964 = vsub.s32 4, %v5940
      %v5965 = vsel %vm5880, %v5964, %v5940
      %v5966 = vsel %vm5879, %v779, %v5963
      %v5967 = vsel %vm5879, 0, %v5965
      %v5968 = vcosq.f32.pop %v5966
      %v5969 = vsinq.f32.pop %v5966
      %vm5970 = vweird.f32 %v779
      %v5971 = vand.u32 %v5967, 3
      %vm5972 = vcmp.lt.s32.totalorder %v5971, 2
      %vm5973 = vcmp.eq.s32.totalorder %v5971, 0
      %v5974 = vxor.u32 %v5969, 2147483648
      %v5975 = vsel %vm5973, %v5968, %v5974
      %vm5976 = vcmp.eq.s32.totalorder %v5971, 2
      %v5977 = vxor.u32 %v5968, 2147483648
      %v5978 = vsel %vm5976, %v5977, %v5969
      %v5979 = vsel %vm5972, %v5975, %v5978
      %v5980 = vsel %vm5970, nan, %v5979
      %v5981 = vand.u32 2147483647, %v780
      %vm5982 = vcmp.le.f32.partialorder %v5981, 0.7853982
      %vm5983 = vcmp.lt.s32.totalorder %v780, 0
      %v5984 = vand.u32 %v780, 2139095040
      %v5985 = vshrl.u32 %v5984, 23
      %v5986 = vsub.s32 %v5985, 127
      %v5987 = vand.u32 2147483647, %v780
      %v5988 = vand.u32 %v5987, 8388607
      %v5989 = vor.u32 %v5988, 8388608
      %v5990 = vsub.s32 0, %v5989
      %v5991 = vadd.s32 %v5986, 1
      %vm5992 = vcmp.gt.s32.totalorder %v5991, 0
      %v5993 = vsel %vm5992, %v5991, 0
      %v5994 = vshrl.u32 %v5993, 5
      %v5995 = vand.u32 %v5993, 31
      %v5996 = vsub.s32 32, %v5995
      %v5997 = vshrl.u32 683565275, %v5996
      %v5998 = vshll.u32 683565275, %v5995
      %v5999 = vshrl.u32 2475754826, %v5996
      %v6000 = vor.u32 %v5998, %v5999
      %v6001 = vshll.u32 2475754826, %v5995
      %v6002 = vshrl.u32 2131351028, %v5996
      %v6003 = vor.u32 %v6001, %v6002
      %v6004 = vshll.u32 2131351028, %v5995
      %v6005 = vshrl.u32 2102212464, %v5996
      %v6006 = vor.u32 %v6004, %v6005
      %v6007 = vshll.u32 2102212464, %v5995
      %v6008 = vshrl.u32 920167782, %v5996
      %v6009 = vor.u32 %v6007, %v6008
      %v6010 = vshll.u32 920167782, %v5995
      %v6011 = vshrl.u32 1326507024, %v5996
      %v6012 = vor.u32 %v6010, %v6011
      %vm6013 = vcmp.lt.s32.totalorder %v5994, 1
      %vm6014 = vcmp.lt.s32.totalorder %v5994, 2
      %vm6015 = vcmp.lt.s32.totalorder %v5994, 3
      %vm6016 = vcmp.lt.s32.totalorder %v5994, 4
      %v6017 = vsel %vm6013, %v5997, %v6000
      %v6018 = vsel %vm6016, %v6006, 2102212464
      %v6019 = vsel %vm6015, %v6003, %v6018
      %v6020 = vsel %vm6014, %v6017, %v6019
      %v6021 = vsel %vm6013, %v6000, %v6003
      %v6022 = vsel %vm6016, %v6009, 920167782
      %v6023 = vsel %vm6015, %v6006, %v6022
      %v6024 = vsel %vm6014, %v6021, %v6023
      %v6025 = vsel %vm6013, %v6003, %v6006
      %v6026 = vsel %vm6016, %v6012, 1326507024
      %v6027 = vsel %vm6015, %v6009, %v6026
      %v6028 = vsel %vm6014, %v6025, %v6027
      %v6029 = vshll.u32 %v5989, 8
      %v6030 = vmul.u32.u64.compose %v6029, %v6028
      %v6031 = vextract.low.u32 %v6030
      %v6032 = vextract.high.u32 %v6030
      %v6033 = vmul.u32.u64.compose %v6029, %v6024
      %v6034 = vextract.low.u32 %v6033
      %v6035 = vextract.high.u32 %v6033
      %v6036 = vmul.u32 %v6029, %v6020
      %v6037 = vadd.s32 %v6032, %v6034
      %vm6038 = vc.u32 %v6032, %v6034
      %v6039 = vadd.s32 %v6035, 1
      %v6040 = vsel %vm6038, %v6039, %v6035
      %v6041 = vadd.s32 %v6036, %v6040
      %v6042 = vadd.s32 %v6041, 536870912
      %v6043 = vshrl.u32 %v6042, 30
      %v6044 = vshll.u32 %v6043, 30
      %v6045 = vsub.s32 %v6041, %v6044
      %vm6046 = vcmp.lt.s32.totalorder %v6045, 0
      %v6047 = vsub.s32 0, %v6045
      %v6048 = vsel %vm6046, %v6047, %v6045
      %v6049 = vclz %v6048
      %v6050 = vsub.s32 %v6049, 2
      %vm6051 = vcmp.gt.s32.totalorder 0, %v6050
      %v6052 = vsel %vm6051, 0, %v6050
      %v6053 = vsub.s32 32, %v6052
      %v6054 = vshll.u32 %v6045, %v6052
      %v6055 = vshrl.u32 %v6037, %v6053
      %v6056 = vor.u32 %v6054, %v6055
      %v6057 = vsub.s32 4294967266, %v6052
      %v6058 = vadd.s32 %v6057, 127
      %v6059 = vshll.u32 %v6058, 23
      %v6060 = vor.u32 4788187, %v6059
      %v6061 = vand.u32 2147483647, %v6060
      %v6063 = vcvt.s32.f32 %v6056
      %v6064 = vmul.f32 %v6063, %v6061
      %v6065 = vxor.u32 %v6064, 2147483648
      %v6066 = vsel %vm5983, %v6065, %v6064
      %v6067 = vsub.s32 4, %v6043
      %v6068 = vsel %vm5983, %v6067, %v6043
      %v6069 = vsel %vm5982, %v780, %v6066
      %v6070 = vsel %vm5982, 0, %v6068
      %v6071 = vcosq.f32.pop %v6069
      %v6072 = vsinq.f32.pop %v6069
      %vm6073 = vweird.f32 %v780
      %v6074 = vand.u32 %v6070, 3
      %vm6075 = vcmp.lt.s32.totalorder %v6074, 2
      %vm6076 = vcmp.eq.s32.totalorder %v6074, 0
      %v6077 = vxor.u32 %v6072, 2147483648
      %v6078 = vsel %vm6076, %v6071, %v6077
      %vm6079 = vcmp.eq.s32.totalorder %v6074, 2
      %v6080 = vxor.u32 %v6071, 2147483648
      %v6081 = vsel %vm6079, %v6080, %v6072
      %v6082 = vsel %vm6075, %v6078, %v6081
      %v6083 = vsel %vm6073, nan, %v6082
      %v6084 = vand.u32 2147483647, %v781
      %vm6085 = vcmp.le.f32.partialorder %v6084, 0.7853982
      %vm6086 = vcmp.lt.s32.totalorder %v781, 0
      %v6087 = vand.u32 %v781, 2139095040
      %v6088 = vshrl.u32 %v6087, 23
      %v6089 = vsub.s32 %v6088, 127
      %v6090 = vand.u32 2147483647, %v781
      %v6091 = vand.u32 %v6090, 8388607
      %v6092 = vor.u32 %v6091, 8388608
      %v6093 = vsub.s32 0, %v6092
      %v6094 = vadd.s32 %v6089, 1
      %vm6095 = vcmp.gt.s32.totalorder %v6094, 0
      %v6096 = vsel %vm6095, %v6094, 0
      %v6097 = vshrl.u32 %v6096, 5
      %v6098 = vand.u32 %v6096, 31
      %v6099 = vsub.s32 32, %v6098
      %v6100 = vshrl.u32 683565275, %v6099
      %v6101 = vshll.u32 683565275, %v6098
      %v6102 = vshrl.u32 2475754826, %v6099
      %v6103 = vor.u32 %v6101, %v6102
      %v6104 = vshll.u32 2475754826, %v6098
      %v6105 = vshrl.u32 2131351028, %v6099
      %v6106 = vor.u32 %v6104, %v6105
      %v6107 = vshll.u32 2131351028, %v6098
      %v6108 = vshrl.u32 2102212464, %v6099
      %v6109 = vor.u32 %v6107, %v6108
      %v6110 = vshll.u32 2102212464, %v6098
      %v6111 = vshrl.u32 920167782, %v6099
      %v6112 = vor.u32 %v6110, %v6111
      %v6113 = vshll.u32 920167782, %v6098
      %v6114 = vshrl.u32 1326507024, %v6099
      %v6115 = vor.u32 %v6113, %v6114
      %vm6116 = vcmp.lt.s32.totalorder %v6097, 1
      %vm6117 = vcmp.lt.s32.totalorder %v6097, 2
      %vm6118 = vcmp.lt.s32.totalorder %v6097, 3
      %vm6119 = vcmp.lt.s32.totalorder %v6097, 4
      %v6120 = vsel %vm6116, %v6100, %v6103
      %v6121 = vsel %vm6119, %v6109, 2102212464
      %v6122 = vsel %vm6118, %v6106, %v6121
      %v6123 = vsel %vm6117, %v6120, %v6122
      %v6124 = vsel %vm6116, %v6103, %v6106
      %v6125 = vsel %vm6119, %v6112, 920167782
      %v6126 = vsel %vm6118, %v6109, %v6125
      %v6127 = vsel %vm6117, %v6124, %v6126
      %v6128 = vsel %vm6116, %v6106, %v6109
      %v6129 = vsel %vm6119, %v6115, 1326507024
      %v6130 = vsel %vm6118, %v6112, %v6129
      %v6131 = vsel %vm6117, %v6128, %v6130
      %v6132 = vshll.u32 %v6092, 8
      %v6133 = vmul.u32.u64.compose %v6132, %v6131
      %v6134 = vextract.low.u32 %v6133
      %v6135 = vextract.high.u32 %v6133
      %v6136 = vmul.u32.u64.compose %v6132, %v6127
      %v6137 = vextract.low.u32 %v6136
      %v6138 = vextract.high.u32 %v6136
      %v6139 = vmul.u32 %v6132, %v6123
      %v6140 = vadd.s32 %v6135, %v6137
      %vm6141 = vc.u32 %v6135, %v6137
      %v6142 = vadd.s32 %v6138, 1
      %v6143 = vsel %vm6141, %v6142, %v6138
      %v6144 = vadd.s32 %v6139, %v6143
      %v6145 = vadd.s32 %v6144, 536870912
      %v6146 = vshrl.u32 %v6145, 30
      %v6147 = vshll.u32 %v6146, 30
      %v6148 = vsub.s32 %v6144, %v6147
      %vm6149 = vcmp.lt.s32.totalorder %v6148, 0
      %v6150 = vsub.s32 0, %v6148
      %v6151 = vsel %vm6149, %v6150, %v6148
      %v6152 = vclz %v6151
      %v6153 = vsub.s32 %v6152, 2
      %vm6154 = vcmp.gt.s32.totalorder 0, %v6153
      %v6155 = vsel %vm6154, 0, %v6153
      %v6156 = vsub.s32 32, %v6155
      %v6157 = vshll.u32 %v6148, %v6155
      %v6158 = vshrl.u32 %v6140, %v6156
      %v6159 = vor.u32 %v6157, %v6158
      %v6160 = vsub.s32 4294967266, %v6155
      %v6161 = vadd.s32 %v6160, 127
      %v6162 = vshll.u32 %v6161, 23
      %v6163 = vor.u32 4788187, %v6162
      %v6164 = vand.u32 2147483647, %v6163
      %v6166 = vcvt.s32.f32 %v6159
      %v6167 = vmul.f32 %v6166, %v6164
      %v6168 = vxor.u32 %v6167, 2147483648
      %v6169 = vsel %vm6086, %v6168, %v6167
      %v6170 = vsub.s32 4, %v6146
      %v6171 = vsel %vm6086, %v6170, %v6146
      %v6172 = vsel %vm6085, %v781, %v6169
      %v6173 = vsel %vm6085, 0, %v6171
      %v6174 = vcosq.f32.pop %v6172
      %v6175 = vsinq.f32.pop %v6172
      %vm6176 = vweird.f32 %v781
      %v6177 = vand.u32 %v6173, 3
      %vm6178 = vcmp.lt.s32.totalorder %v6177, 2
      %vm6179 = vcmp.eq.s32.totalorder %v6177, 0
      %v6180 = vxor.u32 %v6175, 2147483648
      %v6181 = vsel %vm6179, %v6174, %v6180
      %vm6182 = vcmp.eq.s32.totalorder %v6177, 2
      %v6183 = vxor.u32 %v6174, 2147483648
      %v6184 = vsel %vm6182, %v6183, %v6175
      %v6185 = vsel %vm6178, %v6181, %v6184
      %v6186 = vsel %vm6176, nan, %v6185
      %v6187 = vand.u32 2147483647, %v782
      %vm6188 = vcmp.le.f32.partialorder %v6187, 0.7853982
      %vm6189 = vcmp.lt.s32.totalorder %v782, 0
      %v6190 = vand.u32 %v782, 2139095040
      %v6191 = vshrl.u32 %v6190, 23
      %v6192 = vsub.s32 %v6191, 127
      %v6193 = vand.u32 2147483647, %v782
      %v6194 = vand.u32 %v6193, 8388607
      %v6195 = vor.u32 %v6194, 8388608
      %v6196 = vsub.s32 0, %v6195
      %v6197 = vadd.s32 %v6192, 1
      %vm6198 = vcmp.gt.s32.totalorder %v6197, 0
      %v6199 = vsel %vm6198, %v6197, 0
      %v6200 = vshrl.u32 %v6199, 5
      %v6201 = vand.u32 %v6199, 31
      %v6202 = vsub.s32 32, %v6201
      %v6203 = vshrl.u32 683565275, %v6202
      %v6204 = vshll.u32 683565275, %v6201
      %v6205 = vshrl.u32 2475754826, %v6202
      %v6206 = vor.u32 %v6204, %v6205
      %v6207 = vshll.u32 2475754826, %v6201
      %v6208 = vshrl.u32 2131351028, %v6202
      %v6209 = vor.u32 %v6207, %v6208
      %v6210 = vshll.u32 2131351028, %v6201
      %v6211 = vshrl.u32 2102212464, %v6202
      %v6212 = vor.u32 %v6210, %v6211
      %v6213 = vshll.u32 2102212464, %v6201
      %v6214 = vshrl.u32 920167782, %v6202
      %v6215 = vor.u32 %v6213, %v6214
      %v6216 = vshll.u32 920167782, %v6201
      %v6217 = vshrl.u32 1326507024, %v6202
      %v6218 = vor.u32 %v6216, %v6217
      %vm6219 = vcmp.lt.s32.totalorder %v6200, 1
      %vm6220 = vcmp.lt.s32.totalorder %v6200, 2
      %vm6221 = vcmp.lt.s32.totalorder %v6200, 3
      %vm6222 = vcmp.lt.s32.totalorder %v6200, 4
      %v6223 = vsel %vm6219, %v6203, %v6206
      %v6224 = vsel %vm6222, %v6212, 2102212464
      %v6225 = vsel %vm6221, %v6209, %v6224
      %v6226 = vsel %vm6220, %v6223, %v6225
      %v6227 = vsel %vm6219, %v6206, %v6209
      %v6228 = vsel %vm6222, %v6215, 920167782
      %v6229 = vsel %vm6221, %v6212, %v6228
      %v6230 = vsel %vm6220, %v6227, %v6229
      %v6231 = vsel %vm6219, %v6209, %v6212
      %v6232 = vsel %vm6222, %v6218, 1326507024
      %v6233 = vsel %vm6221, %v6215, %v6232
      %v6234 = vsel %vm6220, %v6231, %v6233
      %v6235 = vshll.u32 %v6195, 8
      %v6236 = vmul.u32.u64.compose %v6235, %v6234
      %v6237 = vextract.low.u32 %v6236
      %v6238 = vextract.high.u32 %v6236
      %v6239 = vmul.u32.u64.compose %v6235, %v6230
      %v6240 = vextract.low.u32 %v6239
      %v6241 = vextract.high.u32 %v6239
      %v6242 = vmul.u32 %v6235, %v6226
      %v6243 = vadd.s32 %v6238, %v6240
      %vm6244 = vc.u32 %v6238, %v6240
      %v6245 = vadd.s32 %v6241, 1
      %v6246 = vsel %vm6244, %v6245, %v6241
      %v6247 = vadd.s32 %v6242, %v6246
      %v6248 = vadd.s32 %v6247, 536870912
      %v6249 = vshrl.u32 %v6248, 30
      %v6250 = vshll.u32 %v6249, 30
      %v6251 = vsub.s32 %v6247, %v6250
      %vm6252 = vcmp.lt.s32.totalorder %v6251, 0
      %v6253 = vsub.s32 0, %v6251
      %v6254 = vsel %vm6252, %v6253, %v6251
      %v6255 = vclz %v6254
      %v6256 = vsub.s32 %v6255, 2
      %vm6257 = vcmp.gt.s32.totalorder 0, %v6256
      %v6258 = vsel %vm6257, 0, %v6256
      %v6259 = vsub.s32 32, %v6258
      %v6260 = vshll.u32 %v6251, %v6258
      %v6261 = vshrl.u32 %v6243, %v6259
      %v6262 = vor.u32 %v6260, %v6261
      %v6263 = vsub.s32 4294967266, %v6258
      %v6264 = vadd.s32 %v6263, 127
      %v6265 = vshll.u32 %v6264, 23
      %v6266 = vor.u32 4788187, %v6265
      %v6267 = vand.u32 2147483647, %v6266
      %v6269 = vcvt.s32.f32 %v6262
      %v6270 = vmul.f32 %v6269, %v6267
      %v6271 = vxor.u32 %v6270, 2147483648
      %v6272 = vsel %vm6189, %v6271, %v6270
      %v6273 = vsub.s32 4, %v6249
      %v6274 = vsel %vm6189, %v6273, %v6249
      %v6275 = vsel %vm6188, %v782, %v6272
      %v6276 = vsel %vm6188, 0, %v6274
      %v6277 = vcosq.f32.pop %v6275
      %v6278 = vsinq.f32.pop %v6275
      %vm6279 = vweird.f32 %v782
      %v6280 = vand.u32 %v6276, 3
      %vm6281 = vcmp.lt.s32.totalorder %v6280, 2
      %vm6282 = vcmp.eq.s32.totalorder %v6280, 0
      %v6283 = vxor.u32 %v6278, 2147483648
      %v6284 = vsel %vm6282, %v6277, %v6283
      %vm6285 = vcmp.eq.s32.totalorder %v6280, 2
      %v6286 = vxor.u32 %v6277, 2147483648
      %v6287 = vsel %vm6285, %v6286, %v6278
      %v6288 = vsel %vm6281, %v6284, %v6287
      %v6289 = vsel %vm6279, nan, %v6288
      %v6290 = vand.u32 2147483647, %v783
      %vm6291 = vcmp.le.f32.partialorder %v6290, 0.7853982
      %vm6292 = vcmp.lt.s32.totalorder %v783, 0
      %v6293 = vand.u32 %v783, 2139095040
      %v6294 = vshrl.u32 %v6293, 23
      %v6295 = vsub.s32 %v6294, 127
      %v6296 = vand.u32 2147483647, %v783
      %v6297 = vand.u32 %v6296, 8388607
      %v6298 = vor.u32 %v6297, 8388608
      %v6299 = vsub.s32 0, %v6298
      %v6300 = vadd.s32 %v6295, 1
      %vm6301 = vcmp.gt.s32.totalorder %v6300, 0
      %v6302 = vsel %vm6301, %v6300, 0
      %v6303 = vshrl.u32 %v6302, 5
      %v6304 = vand.u32 %v6302, 31
      %v6305 = vsub.s32 32, %v6304
      %v6306 = vshrl.u32 683565275, %v6305
      %v6307 = vshll.u32 683565275, %v6304
      %v6308 = vshrl.u32 2475754826, %v6305
      %v6309 = vor.u32 %v6307, %v6308
      %v6310 = vshll.u32 2475754826, %v6304
      %v6311 = vshrl.u32 2131351028, %v6305
      %v6312 = vor.u32 %v6310, %v6311
      %v6313 = vshll.u32 2131351028, %v6304
      %v6314 = vshrl.u32 2102212464, %v6305
      %v6315 = vor.u32 %v6313, %v6314
      %v6316 = vshll.u32 2102212464, %v6304
      %v6317 = vshrl.u32 920167782, %v6305
      %v6318 = vor.u32 %v6316, %v6317
      %v6319 = vshll.u32 920167782, %v6304
      %v6320 = vshrl.u32 1326507024, %v6305
      %v6321 = vor.u32 %v6319, %v6320
      %vm6322 = vcmp.lt.s32.totalorder %v6303, 1
      %vm6323 = vcmp.lt.s32.totalorder %v6303, 2
      %vm6324 = vcmp.lt.s32.totalorder %v6303, 3
      %vm6325 = vcmp.lt.s32.totalorder %v6303, 4
      %v6326 = vsel %vm6322, %v6306, %v6309
      %v6327 = vsel %vm6325, %v6315, 2102212464
      %v6328 = vsel %vm6324, %v6312, %v6327
      %v6329 = vsel %vm6323, %v6326, %v6328
      %v6330 = vsel %vm6322, %v6309, %v6312
      %v6331 = vsel %vm6325, %v6318, 920167782
      %v6332 = vsel %vm6324, %v6315, %v6331
      %v6333 = vsel %vm6323, %v6330, %v6332
      %v6334 = vsel %vm6322, %v6312, %v6315
      %v6335 = vsel %vm6325, %v6321, 1326507024
      %v6336 = vsel %vm6324, %v6318, %v6335
      %v6337 = vsel %vm6323, %v6334, %v6336
      %v6338 = vshll.u32 %v6298, 8
      %v6339 = vmul.u32.u64.compose %v6338, %v6337
      %v6340 = vextract.low.u32 %v6339
      %v6341 = vextract.high.u32 %v6339
      %v6342 = vmul.u32.u64.compose %v6338, %v6333
      %v6343 = vextract.low.u32 %v6342
      %v6344 = vextract.high.u32 %v6342
      %v6345 = vmul.u32 %v6338, %v6329
      %v6346 = vadd.s32 %v6341, %v6343
      %vm6347 = vc.u32 %v6341, %v6343
      %v6348 = vadd.s32 %v6344, 1
      %v6349 = vsel %vm6347, %v6348, %v6344
      %v6350 = vadd.s32 %v6345, %v6349
      %v6351 = vadd.s32 %v6350, 536870912
      %v6352 = vshrl.u32 %v6351, 30
      %v6353 = vshll.u32 %v6352, 30
      %v6354 = vsub.s32 %v6350, %v6353
      %vm6355 = vcmp.lt.s32.totalorder %v6354, 0
      %v6356 = vsub.s32 0, %v6354
      %v6357 = vsel %vm6355, %v6356, %v6354
      %v6358 = vclz %v6357
      %v6359 = vsub.s32 %v6358, 2
      %vm6360 = vcmp.gt.s32.totalorder 0, %v6359
      %v6361 = vsel %vm6360, 0, %v6359
      %v6362 = vsub.s32 32, %v6361
      %v6363 = vshll.u32 %v6354, %v6361
      %v6364 = vshrl.u32 %v6346, %v6362
      %v6365 = vor.u32 %v6363, %v6364
      %v6366 = vsub.s32 4294967266, %v6361
      %v6367 = vadd.s32 %v6366, 127
      %v6368 = vshll.u32 %v6367, 23
      %v6369 = vor.u32 4788187, %v6368
      %v6370 = vand.u32 2147483647, %v6369
      %v6372 = vcvt.s32.f32 %v6365
      %v6373 = vmul.f32 %v6372, %v6370
      %v6374 = vxor.u32 %v6373, 2147483648
      %v6375 = vsel %vm6292, %v6374, %v6373
      %v6376 = vsub.s32 4, %v6352
      %v6377 = vsel %vm6292, %v6376, %v6352
      %v6378 = vsel %vm6291, %v783, %v6375
      %v6379 = vsel %vm6291, 0, %v6377
      %v6380 = vcosq.f32.pop %v6378
      %v6381 = vsinq.f32.pop %v6378
      %vm6382 = vweird.f32 %v783
      %v6383 = vand.u32 %v6379, 3
      %vm6384 = vcmp.lt.s32.totalorder %v6383, 2
      %vm6385 = vcmp.eq.s32.totalorder %v6383, 0
      %v6386 = vxor.u32 %v6381, 2147483648
      %v6387 = vsel %vm6385, %v6380, %v6386
      %vm6388 = vcmp.eq.s32.totalorder %v6383, 2
      %v6389 = vxor.u32 %v6380, 2147483648
      %v6390 = vsel %vm6388, %v6389, %v6381
      %v6391 = vsel %vm6384, %v6387, %v6390
      %v6392 = vsel %vm6382, nan, %v6391
      %v6393 = vand.u32 2147483647, %v784
      %vm6394 = vcmp.le.f32.partialorder %v6393, 0.7853982
      %vm6395 = vcmp.lt.s32.totalorder %v784, 0
      %v6396 = vand.u32 %v784, 2139095040
      %v6397 = vshrl.u32 %v6396, 23
      %v6398 = vsub.s32 %v6397, 127
      %v6399 = vand.u32 2147483647, %v784
      %v6400 = vand.u32 %v6399, 8388607
      %v6401 = vor.u32 %v6400, 8388608
      %v6402 = vsub.s32 0, %v6401
      %v6403 = vadd.s32 %v6398, 1
      %vm6404 = vcmp.gt.s32.totalorder %v6403, 0
      %v6405 = vsel %vm6404, %v6403, 0
      %v6406 = vshrl.u32 %v6405, 5
      %v6407 = vand.u32 %v6405, 31
      %v6408 = vsub.s32 32, %v6407
      %v6409 = vshrl.u32 683565275, %v6408
      %v6410 = vshll.u32 683565275, %v6407
      %v6411 = vshrl.u32 2475754826, %v6408
      %v6412 = vor.u32 %v6410, %v6411
      %v6413 = vshll.u32 2475754826, %v6407
      %v6414 = vshrl.u32 2131351028, %v6408
      %v6415 = vor.u32 %v6413, %v6414
      %v6416 = vshll.u32 2131351028, %v6407
      %v6417 = vshrl.u32 2102212464, %v6408
      %v6418 = vor.u32 %v6416, %v6417
      %v6419 = vshll.u32 2102212464, %v6407
      %v6420 = vshrl.u32 920167782, %v6408
      %v6421 = vor.u32 %v6419, %v6420
      %v6422 = vshll.u32 920167782, %v6407
      %v6423 = vshrl.u32 1326507024, %v6408
      %v6424 = vor.u32 %v6422, %v6423
      %vm6425 = vcmp.lt.s32.totalorder %v6406, 1
      %vm6426 = vcmp.lt.s32.totalorder %v6406, 2
      %vm6427 = vcmp.lt.s32.totalorder %v6406, 3
      %vm6428 = vcmp.lt.s32.totalorder %v6406, 4
      %v6429 = vsel %vm6425, %v6409, %v6412
      %v6430 = vsel %vm6428, %v6418, 2102212464
      %v6431 = vsel %vm6427, %v6415, %v6430
      %v6432 = vsel %vm6426, %v6429, %v6431
      %v6433 = vsel %vm6425, %v6412, %v6415
      %v6434 = vsel %vm6428, %v6421, 920167782
      %v6435 = vsel %vm6427, %v6418, %v6434
      %v6436 = vsel %vm6426, %v6433, %v6435
      %v6437 = vsel %vm6425, %v6415, %v6418
      %v6438 = vsel %vm6428, %v6424, 1326507024
      %v6439 = vsel %vm6427, %v6421, %v6438
      %v6440 = vsel %vm6426, %v6437, %v6439
      %v6441 = vshll.u32 %v6401, 8
      %v6442 = vmul.u32.u64.compose %v6441, %v6440
      %v6443 = vextract.low.u32 %v6442
      %v6444 = vextract.high.u32 %v6442
      %v6445 = vmul.u32.u64.compose %v6441, %v6436
      %v6446 = vextract.low.u32 %v6445
      %v6447 = vextract.high.u32 %v6445
      %v6448 = vmul.u32 %v6441, %v6432
      %v6449 = vadd.s32 %v6444, %v6446
      %vm6450 = vc.u32 %v6444, %v6446
      %v6451 = vadd.s32 %v6447, 1
      %v6452 = vsel %vm6450, %v6451, %v6447
      %v6453 = vadd.s32 %v6448, %v6452
      %v6454 = vadd.s32 %v6453, 536870912
      %v6455 = vshrl.u32 %v6454, 30
      %v6456 = vshll.u32 %v6455, 30
      %v6457 = vsub.s32 %v6453, %v6456
      %vm6458 = vcmp.lt.s32.totalorder %v6457, 0
      %v6459 = vsub.s32 0, %v6457
      %v6460 = vsel %vm6458, %v6459, %v6457
      %v6461 = vclz %v6460
      %v6462 = vsub.s32 %v6461, 2
      %vm6463 = vcmp.gt.s32.totalorder 0, %v6462
      %v6464 = vsel %vm6463, 0, %v6462
      %v6465 = vsub.s32 32, %v6464
      %v6466 = vshll.u32 %v6457, %v6464
      %v6467 = vshrl.u32 %v6449, %v6465
      %v6468 = vor.u32 %v6466, %v6467
      %v6469 = vsub.s32 4294967266, %v6464
      %v6470 = vadd.s32 %v6469, 127
      %v6471 = vshll.u32 %v6470, 23
      %v6472 = vor.u32 4788187, %v6471
      %v6473 = vand.u32 2147483647, %v6472
      %v6475 = vcvt.s32.f32 %v6468
      %v6476 = vmul.f32 %v6475, %v6473
      %v6477 = vxor.u32 %v6476, 2147483648
      %v6478 = vsel %vm6395, %v6477, %v6476
      %v6479 = vsub.s32 4, %v6455
      %v6480 = vsel %vm6395, %v6479, %v6455
      %v6481 = vsel %vm6394, %v784, %v6478
      %v6482 = vsel %vm6394, 0, %v6480
      %v6483 = vcosq.f32.pop %v6481
      %v6484 = vsinq.f32.pop %v6481
      %vm6485 = vweird.f32 %v784
      %v6486 = vand.u32 %v6482, 3
      %vm6487 = vcmp.lt.s32.totalorder %v6486, 2
      %vm6488 = vcmp.eq.s32.totalorder %v6486, 0
      %v6489 = vxor.u32 %v6484, 2147483648
      %v6490 = vsel %vm6488, %v6483, %v6489
      %vm6491 = vcmp.eq.s32.totalorder %v6486, 2
      %v6492 = vxor.u32 %v6483, 2147483648
      %v6493 = vsel %vm6491, %v6492, %v6484
      %v6494 = vsel %vm6487, %v6490, %v6493
      %v6495 = vsel %vm6485, nan, %v6494
      %v6496 = vand.u32 2147483647, %v785
      %vm6497 = vcmp.le.f32.partialorder %v6496, 0.7853982
      %vm6498 = vcmp.lt.s32.totalorder %v785, 0
      %v6499 = vand.u32 %v785, 2139095040
      %v6500 = vshrl.u32 %v6499, 23
      %v6501 = vsub.s32 %v6500, 127
      %v6502 = vand.u32 2147483647, %v785
      %v6503 = vand.u32 %v6502, 8388607
      %v6504 = vor.u32 %v6503, 8388608
      %v6505 = vsub.s32 0, %v6504
      %v6506 = vadd.s32 %v6501, 1
      %vm6507 = vcmp.gt.s32.totalorder %v6506, 0
      %v6508 = vsel %vm6507, %v6506, 0
      %v6509 = vshrl.u32 %v6508, 5
      %v6510 = vand.u32 %v6508, 31
      %v6511 = vsub.s32 32, %v6510
      %v6512 = vshrl.u32 683565275, %v6511
      %v6513 = vshll.u32 683565275, %v6510
      %v6514 = vshrl.u32 2475754826, %v6511
      %v6515 = vor.u32 %v6513, %v6514
      %v6516 = vshll.u32 2475754826, %v6510
      %v6517 = vshrl.u32 2131351028, %v6511
      %v6518 = vor.u32 %v6516, %v6517
      %v6519 = vshll.u32 2131351028, %v6510
      %v6520 = vshrl.u32 2102212464, %v6511
      %v6521 = vor.u32 %v6519, %v6520
      %v6522 = vshll.u32 2102212464, %v6510
      %v6523 = vshrl.u32 920167782, %v6511
      %v6524 = vor.u32 %v6522, %v6523
      %v6525 = vshll.u32 920167782, %v6510
      %v6526 = vshrl.u32 1326507024, %v6511
      %v6527 = vor.u32 %v6525, %v6526
      %vm6528 = vcmp.lt.s32.totalorder %v6509, 1
      %vm6529 = vcmp.lt.s32.totalorder %v6509, 2
      %vm6530 = vcmp.lt.s32.totalorder %v6509, 3
      %vm6531 = vcmp.lt.s32.totalorder %v6509, 4
      %v6532 = vsel %vm6528, %v6512, %v6515
      %v6533 = vsel %vm6531, %v6521, 2102212464
      %v6534 = vsel %vm6530, %v6518, %v6533
      %v6535 = vsel %vm6529, %v6532, %v6534
      %v6536 = vsel %vm6528, %v6515, %v6518
      %v6537 = vsel %vm6531, %v6524, 920167782
      %v6538 = vsel %vm6530, %v6521, %v6537
      %v6539 = vsel %vm6529, %v6536, %v6538
      %v6540 = vsel %vm6528, %v6518, %v6521
      %v6541 = vsel %vm6531, %v6527, 1326507024
      %v6542 = vsel %vm6530, %v6524, %v6541
      %v6543 = vsel %vm6529, %v6540, %v6542
      %v6544 = vshll.u32 %v6504, 8
      %v6545 = vmul.u32.u64.compose %v6544, %v6543
      %v6546 = vextract.low.u32 %v6545
      %v6547 = vextract.high.u32 %v6545
      %v6548 = vmul.u32.u64.compose %v6544, %v6539
      %v6549 = vextract.low.u32 %v6548
      %v6550 = vextract.high.u32 %v6548
      %v6551 = vmul.u32 %v6544, %v6535
      %v6552 = vadd.s32 %v6547, %v6549
      %vm6553 = vc.u32 %v6547, %v6549
      %v6554 = vadd.s32 %v6550, 1
      %v6555 = vsel %vm6553, %v6554, %v6550
      %v6556 = vadd.s32 %v6551, %v6555
      %v6557 = vadd.s32 %v6556, 536870912
      %v6558 = vshrl.u32 %v6557, 30
      %v6559 = vshll.u32 %v6558, 30
      %v6560 = vsub.s32 %v6556, %v6559
      %vm6561 = vcmp.lt.s32.totalorder %v6560, 0
      %v6562 = vsub.s32 0, %v6560
      %v6563 = vsel %vm6561, %v6562, %v6560
      %v6564 = vclz %v6563
      %v6565 = vsub.s32 %v6564, 2
      %vm6566 = vcmp.gt.s32.totalorder 0, %v6565
      %v6567 = vsel %vm6566, 0, %v6565
      %v6568 = vsub.s32 32, %v6567
      %v6569 = vshll.u32 %v6560, %v6567
      %v6570 = vshrl.u32 %v6552, %v6568
      %v6571 = vor.u32 %v6569, %v6570
      %v6572 = vsub.s32 4294967266, %v6567
      %v6573 = vadd.s32 %v6572, 127
      %v6574 = vshll.u32 %v6573, 23
      %v6575 = vor.u32 4788187, %v6574
      %v6576 = vand.u32 2147483647, %v6575
      %v6578 = vcvt.s32.f32 %v6571
      %v6579 = vmul.f32 %v6578, %v6576
      %v6580 = vxor.u32 %v6579, 2147483648
      %v6581 = vsel %vm6498, %v6580, %v6579
      %v6582 = vsub.s32 4, %v6558
      %v6583 = vsel %vm6498, %v6582, %v6558
      %v6584 = vsel %vm6497, %v785, %v6581
      %v6585 = vsel %vm6497, 0, %v6583
      %v6586 = vcosq.f32.pop %v6584
      %v6587 = vsinq.f32.pop %v6584
      %vm6588 = vweird.f32 %v785
      %v6589 = vand.u32 %v6585, 3
      %vm6590 = vcmp.lt.s32.totalorder %v6589, 2
      %vm6591 = vcmp.eq.s32.totalorder %v6589, 0
      %v6592 = vxor.u32 %v6587, 2147483648
      %v6593 = vsel %vm6591, %v6586, %v6592
      %vm6594 = vcmp.eq.s32.totalorder %v6589, 2
      %v6595 = vxor.u32 %v6586, 2147483648
      %v6596 = vsel %vm6594, %v6595, %v6587
      %v6597 = vsel %vm6590, %v6593, %v6596
      %v6598 = vsel %vm6588, nan, %v6597
      %v6599 = vand.u32 2147483647, %v786
      %vm6600 = vcmp.le.f32.partialorder %v6599, 0.7853982
      %vm6601 = vcmp.lt.s32.totalorder %v786, 0
      %v6602 = vand.u32 %v786, 2139095040
      %v6603 = vshrl.u32 %v6602, 23
      %v6604 = vsub.s32 %v6603, 127
      %v6605 = vand.u32 2147483647, %v786
      %v6606 = vand.u32 %v6605, 8388607
      %v6607 = vor.u32 %v6606, 8388608
      %v6608 = vsub.s32 0, %v6607
      %v6609 = vadd.s32 %v6604, 1
      %vm6610 = vcmp.gt.s32.totalorder %v6609, 0
      %v6611 = vsel %vm6610, %v6609, 0
      %v6612 = vshrl.u32 %v6611, 5
      %v6613 = vand.u32 %v6611, 31
      %v6614 = vsub.s32 32, %v6613
      %v6615 = vshrl.u32 683565275, %v6614
      %v6616 = vshll.u32 683565275, %v6613
      %v6617 = vshrl.u32 2475754826, %v6614
      %v6618 = vor.u32 %v6616, %v6617
      %v6619 = vshll.u32 2475754826, %v6613
      %v6620 = vshrl.u32 2131351028, %v6614
      %v6621 = vor.u32 %v6619, %v6620
      %v6622 = vshll.u32 2131351028, %v6613
      %v6623 = vshrl.u32 2102212464, %v6614
      %v6624 = vor.u32 %v6622, %v6623
      %v6625 = vshll.u32 2102212464, %v6613
      %v6626 = vshrl.u32 920167782, %v6614
      %v6627 = vor.u32 %v6625, %v6626
      %v6628 = vshll.u32 920167782, %v6613
      %v6629 = vshrl.u32 1326507024, %v6614
      %v6630 = vor.u32 %v6628, %v6629
      %vm6631 = vcmp.lt.s32.totalorder %v6612, 1
      %vm6632 = vcmp.lt.s32.totalorder %v6612, 2
      %vm6633 = vcmp.lt.s32.totalorder %v6612, 3
      %vm6634 = vcmp.lt.s32.totalorder %v6612, 4
      %v6635 = vsel %vm6631, %v6615, %v6618
      %v6636 = vsel %vm6634, %v6624, 2102212464
      %v6637 = vsel %vm6633, %v6621, %v6636
      %v6638 = vsel %vm6632, %v6635, %v6637
      %v6639 = vsel %vm6631, %v6618, %v6621
      %v6640 = vsel %vm6634, %v6627, 920167782
      %v6641 = vsel %vm6633, %v6624, %v6640
      %v6642 = vsel %vm6632, %v6639, %v6641
      %v6643 = vsel %vm6631, %v6621, %v6624
      %v6644 = vsel %vm6634, %v6630, 1326507024
      %v6645 = vsel %vm6633, %v6627, %v6644
      %v6646 = vsel %vm6632, %v6643, %v6645
      %v6647 = vshll.u32 %v6607, 8
      %v6648 = vmul.u32.u64.compose %v6647, %v6646
      %v6649 = vextract.low.u32 %v6648
      %v6650 = vextract.high.u32 %v6648
      %v6651 = vmul.u32.u64.compose %v6647, %v6642
      %v6652 = vextract.low.u32 %v6651
      %v6653 = vextract.high.u32 %v6651
      %v6654 = vmul.u32 %v6647, %v6638
      %v6655 = vadd.s32 %v6650, %v6652
      %vm6656 = vc.u32 %v6650, %v6652
      %v6657 = vadd.s32 %v6653, 1
      %v6658 = vsel %vm6656, %v6657, %v6653
      %v6659 = vadd.s32 %v6654, %v6658
      %v6660 = vadd.s32 %v6659, 536870912
      %v6661 = vshrl.u32 %v6660, 30
      %v6662 = vshll.u32 %v6661, 30
      %v6663 = vsub.s32 %v6659, %v6662
      %vm6664 = vcmp.lt.s32.totalorder %v6663, 0
      %v6665 = vsub.s32 0, %v6663
      %v6666 = vsel %vm6664, %v6665, %v6663
      %v6667 = vclz %v6666
      %v6668 = vsub.s32 %v6667, 2
      %vm6669 = vcmp.gt.s32.totalorder 0, %v6668
      %v6670 = vsel %vm6669, 0, %v6668
      %v6671 = vsub.s32 32, %v6670
      %v6672 = vshll.u32 %v6663, %v6670
      %v6673 = vshrl.u32 %v6655, %v6671
      %v6674 = vor.u32 %v6672, %v6673
      %v6675 = vsub.s32 4294967266, %v6670
      %v6676 = vadd.s32 %v6675, 127
      %v6677 = vshll.u32 %v6676, 23
      %v6678 = vor.u32 4788187, %v6677
      %v6679 = vand.u32 2147483647, %v6678
      %v6681 = vcvt.s32.f32 %v6674
      %v6682 = vmul.f32 %v6681, %v6679
      %v6683 = vxor.u32 %v6682, 2147483648
      %v6684 = vsel %vm6601, %v6683, %v6682
      %v6685 = vsub.s32 4, %v6661
      %v6686 = vsel %vm6601, %v6685, %v6661
      %v6687 = vsel %vm6600, %v786, %v6684
      %v6688 = vsel %vm6600, 0, %v6686
      %v6689 = vcosq.f32.pop %v6687
      %v6690 = vsinq.f32.pop %v6687
      %vm6691 = vweird.f32 %v786
      %v6692 = vand.u32 %v6688, 3
      %vm6693 = vcmp.lt.s32.totalorder %v6692, 2
      %vm6694 = vcmp.eq.s32.totalorder %v6692, 0
      %v6695 = vxor.u32 %v6690, 2147483648
      %v6696 = vsel %vm6694, %v6689, %v6695
      %vm6697 = vcmp.eq.s32.totalorder %v6692, 2
      %v6698 = vxor.u32 %v6689, 2147483648
      %v6699 = vsel %vm6697, %v6698, %v6690
      %v6700 = vsel %vm6693, %v6696, %v6699
      %v6701 = vsel %vm6691, nan, %v6700
      %v6702 = vand.u32 2147483647, %v787
      %vm6703 = vcmp.le.f32.partialorder %v6702, 0.7853982
      %vm6704 = vcmp.lt.s32.totalorder %v787, 0
      %v6705 = vand.u32 %v787, 2139095040
      %v6706 = vshrl.u32 %v6705, 23
      %v6707 = vsub.s32 %v6706, 127
      %v6708 = vand.u32 2147483647, %v787
      %v6709 = vand.u32 %v6708, 8388607
      %v6710 = vor.u32 %v6709, 8388608
      %v6711 = vsub.s32 0, %v6710
      %v6712 = vadd.s32 %v6707, 1
      %vm6713 = vcmp.gt.s32.totalorder %v6712, 0
      %v6714 = vsel %vm6713, %v6712, 0
      %v6715 = vshrl.u32 %v6714, 5
      %v6716 = vand.u32 %v6714, 31
      %v6717 = vsub.s32 32, %v6716
      %v6718 = vshrl.u32 683565275, %v6717
      %v6719 = vshll.u32 683565275, %v6716
      %v6720 = vshrl.u32 2475754826, %v6717
      %v6721 = vor.u32 %v6719, %v6720
      %v6722 = vshll.u32 2475754826, %v6716
      %v6723 = vshrl.u32 2131351028, %v6717
      %v6724 = vor.u32 %v6722, %v6723
      %v6725 = vshll.u32 2131351028, %v6716
      %v6726 = vshrl.u32 2102212464, %v6717
      %v6727 = vor.u32 %v6725, %v6726
      %v6728 = vshll.u32 2102212464, %v6716
      %v6729 = vshrl.u32 920167782, %v6717
      %v6730 = vor.u32 %v6728, %v6729
      %v6731 = vshll.u32 920167782, %v6716
      %v6732 = vshrl.u32 1326507024, %v6717
      %v6733 = vor.u32 %v6731, %v6732
      %vm6734 = vcmp.lt.s32.totalorder %v6715, 1
      %vm6735 = vcmp.lt.s32.totalorder %v6715, 2
      %vm6736 = vcmp.lt.s32.totalorder %v6715, 3
      %vm6737 = vcmp.lt.s32.totalorder %v6715, 4
      %v6738 = vsel %vm6734, %v6718, %v6721
      %v6739 = vsel %vm6737, %v6727, 2102212464
      %v6740 = vsel %vm6736, %v6724, %v6739
      %v6741 = vsel %vm6735, %v6738, %v6740
      %v6742 = vsel %vm6734, %v6721, %v6724
      %v6743 = vsel %vm6737, %v6730, 920167782
      %v6744 = vsel %vm6736, %v6727, %v6743
      %v6745 = vsel %vm6735, %v6742, %v6744
      %v6746 = vsel %vm6734, %v6724, %v6727
      %v6747 = vsel %vm6737, %v6733, 1326507024
      %v6748 = vsel %vm6736, %v6730, %v6747
      %v6749 = vsel %vm6735, %v6746, %v6748
      %v6750 = vshll.u32 %v6710, 8
      %v6751 = vmul.u32.u64.compose %v6750, %v6749
      %v6752 = vextract.low.u32 %v6751
      %v6753 = vextract.high.u32 %v6751
      %v6754 = vmul.u32.u64.compose %v6750, %v6745
      %v6755 = vextract.low.u32 %v6754
      %v6756 = vextract.high.u32 %v6754
      %v6757 = vmul.u32 %v6750, %v6741
      %v6758 = vadd.s32 %v6753, %v6755
      %vm6759 = vc.u32 %v6753, %v6755
      %v6760 = vadd.s32 %v6756, 1
      %v6761 = vsel %vm6759, %v6760, %v6756
      %v6762 = vadd.s32 %v6757, %v6761
      %v6763 = vadd.s32 %v6762, 536870912
      %v6764 = vshrl.u32 %v6763, 30
      %v6765 = vshll.u32 %v6764, 30
      %v6766 = vsub.s32 %v6762, %v6765
      %vm6767 = vcmp.lt.s32.totalorder %v6766, 0
      %v6768 = vsub.s32 0, %v6766
      %v6769 = vsel %vm6767, %v6768, %v6766
      %v6770 = vclz %v6769
      %v6771 = vsub.s32 %v6770, 2
      %vm6772 = vcmp.gt.s32.totalorder 0, %v6771
      %v6773 = vsel %vm6772, 0, %v6771
      %v6774 = vsub.s32 32, %v6773
      %v6775 = vshll.u32 %v6766, %v6773
      %v6776 = vshrl.u32 %v6758, %v6774
      %v6777 = vor.u32 %v6775, %v6776
      %v6778 = vsub.s32 4294967266, %v6773
      %v6779 = vadd.s32 %v6778, 127
      %v6780 = vshll.u32 %v6779, 23
      %v6781 = vor.u32 4788187, %v6780
      %v6782 = vand.u32 2147483647, %v6781
      %v6784 = vcvt.s32.f32 %v6777
      %v6785 = vmul.f32 %v6784, %v6782
      %v6786 = vxor.u32 %v6785, 2147483648
      %v6787 = vsel %vm6704, %v6786, %v6785
      %v6788 = vsub.s32 4, %v6764
      %v6789 = vsel %vm6704, %v6788, %v6764
      %v6790 = vsel %vm6703, %v787, %v6787
      %v6791 = vsel %vm6703, 0, %v6789
      %v6792 = vcosq.f32.pop %v6790
      %v6793 = vsinq.f32.pop %v6790
      %vm6794 = vweird.f32 %v787
      %v6795 = vand.u32 %v6791, 3
      %vm6796 = vcmp.lt.s32.totalorder %v6795, 2
      %vm6797 = vcmp.eq.s32.totalorder %v6795, 0
      %v6798 = vxor.u32 %v6793, 2147483648
      %v6799 = vsel %vm6797, %v6792, %v6798
      %vm6800 = vcmp.eq.s32.totalorder %v6795, 2
      %v6801 = vxor.u32 %v6792, 2147483648
      %v6802 = vsel %vm6800, %v6801, %v6793
      %v6803 = vsel %vm6796, %v6799, %v6802
      %v6804 = vsel %vm6794, nan, %v6803
      %v6805 = vand.u32 2147483647, %v788
      %vm6806 = vcmp.le.f32.partialorder %v6805, 0.7853982
      %vm6807 = vcmp.lt.s32.totalorder %v788, 0
      %v6808 = vand.u32 %v788, 2139095040
      %v6809 = vshrl.u32 %v6808, 23
      %v6810 = vsub.s32 %v6809, 127
      %v6811 = vand.u32 2147483647, %v788
      %v6812 = vand.u32 %v6811, 8388607
      %v6813 = vor.u32 %v6812, 8388608
      %v6814 = vsub.s32 0, %v6813
      %v6815 = vadd.s32 %v6810, 1
      %vm6816 = vcmp.gt.s32.totalorder %v6815, 0
      %v6817 = vsel %vm6816, %v6815, 0
      %v6818 = vshrl.u32 %v6817, 5
      %v6819 = vand.u32 %v6817, 31
      %v6820 = vsub.s32 32, %v6819
      %v6821 = vshrl.u32 683565275, %v6820
      %v6822 = vshll.u32 683565275, %v6819
      %v6823 = vshrl.u32 2475754826, %v6820
      %v6824 = vor.u32 %v6822, %v6823
      %v6825 = vshll.u32 2475754826, %v6819
      %v6826 = vshrl.u32 2131351028, %v6820
      %v6827 = vor.u32 %v6825, %v6826
      %v6828 = vshll.u32 2131351028, %v6819
      %v6829 = vshrl.u32 2102212464, %v6820
      %v6830 = vor.u32 %v6828, %v6829
      %v6831 = vshll.u32 2102212464, %v6819
      %v6832 = vshrl.u32 920167782, %v6820
      %v6833 = vor.u32 %v6831, %v6832
      %v6834 = vshll.u32 920167782, %v6819
      %v6835 = vshrl.u32 1326507024, %v6820
      %v6836 = vor.u32 %v6834, %v6835
      %vm6837 = vcmp.lt.s32.totalorder %v6818, 1
      %vm6838 = vcmp.lt.s32.totalorder %v6818, 2
      %vm6839 = vcmp.lt.s32.totalorder %v6818, 3
      %vm6840 = vcmp.lt.s32.totalorder %v6818, 4
      %v6841 = vsel %vm6837, %v6821, %v6824
      %v6842 = vsel %vm6840, %v6830, 2102212464
      %v6843 = vsel %vm6839, %v6827, %v6842
      %v6844 = vsel %vm6838, %v6841, %v6843
      %v6845 = vsel %vm6837, %v6824, %v6827
      %v6846 = vsel %vm6840, %v6833, 920167782
      %v6847 = vsel %vm6839, %v6830, %v6846
      %v6848 = vsel %vm6838, %v6845, %v6847
      %v6849 = vsel %vm6837, %v6827, %v6830
      %v6850 = vsel %vm6840, %v6836, 1326507024
      %v6851 = vsel %vm6839, %v6833, %v6850
      %v6852 = vsel %vm6838, %v6849, %v6851
      %v6853 = vshll.u32 %v6813, 8
      %v6854 = vmul.u32.u64.compose %v6853, %v6852
      %v6855 = vextract.low.u32 %v6854
      %v6856 = vextract.high.u32 %v6854
      %v6857 = vmul.u32.u64.compose %v6853, %v6848
      %v6858 = vextract.low.u32 %v6857
      %v6859 = vextract.high.u32 %v6857
      %v6860 = vmul.u32 %v6853, %v6844
      %v6861 = vadd.s32 %v6856, %v6858
      %vm6862 = vc.u32 %v6856, %v6858
      %v6863 = vadd.s32 %v6859, 1
      %v6864 = vsel %vm6862, %v6863, %v6859
      %v6865 = vadd.s32 %v6860, %v6864
      %v6866 = vadd.s32 %v6865, 536870912
      %v6867 = vshrl.u32 %v6866, 30
      %v6868 = vshll.u32 %v6867, 30
      %v6869 = vsub.s32 %v6865, %v6868
      %vm6870 = vcmp.lt.s32.totalorder %v6869, 0
      %v6871 = vsub.s32 0, %v6869
      %v6872 = vsel %vm6870, %v6871, %v6869
      %v6873 = vclz %v6872
      %v6874 = vsub.s32 %v6873, 2
      %vm6875 = vcmp.gt.s32.totalorder 0, %v6874
      %v6876 = vsel %vm6875, 0, %v6874
      %v6877 = vsub.s32 32, %v6876
      %v6878 = vshll.u32 %v6869, %v6876
      %v6879 = vshrl.u32 %v6861, %v6877
      %v6880 = vor.u32 %v6878, %v6879
      %v6881 = vsub.s32 4294967266, %v6876
      %v6882 = vadd.s32 %v6881, 127
      %v6883 = vshll.u32 %v6882, 23
      %v6884 = vor.u32 4788187, %v6883
      %v6885 = vand.u32 2147483647, %v6884
      %v6887 = vcvt.s32.f32 %v6880
      %v6888 = vmul.f32 %v6887, %v6885
      %v6889 = vxor.u32 %v6888, 2147483648
      %v6890 = vsel %vm6807, %v6889, %v6888
      %v6891 = vsub.s32 4, %v6867
      %v6892 = vsel %vm6807, %v6891, %v6867
      %v6893 = vsel %vm6806, %v788, %v6890
      %v6894 = vsel %vm6806, 0, %v6892
      %v6895 = vcosq.f32.pop %v6893
      %v6896 = vsinq.f32.pop %v6893
      %vm6897 = vweird.f32 %v788
      %v6898 = vand.u32 %v6894, 3
      %vm6899 = vcmp.lt.s32.totalorder %v6898, 2
      %vm6900 = vcmp.eq.s32.totalorder %v6898, 0
      %v6901 = vxor.u32 %v6896, 2147483648
      %v6902 = vsel %vm6900, %v6895, %v6901
      %vm6903 = vcmp.eq.s32.totalorder %v6898, 2
      %v6904 = vxor.u32 %v6895, 2147483648
      %v6905 = vsel %vm6903, %v6904, %v6896
      %v6906 = vsel %vm6899, %v6902, %v6905
      %v6907 = vsel %vm6897, nan, %v6906
      %v6908 = vand.u32 2147483647, %v789
      %vm6909 = vcmp.le.f32.partialorder %v6908, 0.7853982
      %vm6910 = vcmp.lt.s32.totalorder %v789, 0
      %v6911 = vand.u32 %v789, 2139095040
      %v6912 = vshrl.u32 %v6911, 23
      %v6913 = vsub.s32 %v6912, 127
      %v6914 = vand.u32 2147483647, %v789
      %v6915 = vand.u32 %v6914, 8388607
      %v6916 = vor.u32 %v6915, 8388608
      %v6917 = vsub.s32 0, %v6916
      %v6918 = vadd.s32 %v6913, 1
      %vm6919 = vcmp.gt.s32.totalorder %v6918, 0
      %v6920 = vsel %vm6919, %v6918, 0
      %v6921 = vshrl.u32 %v6920, 5
      %v6922 = vand.u32 %v6920, 31
      %v6923 = vsub.s32 32, %v6922
      %v6924 = vshrl.u32 683565275, %v6923
      %v6925 = vshll.u32 683565275, %v6922
      %v6926 = vshrl.u32 2475754826, %v6923
      %v6927 = vor.u32 %v6925, %v6926
      %v6928 = vshll.u32 2475754826, %v6922
      %v6929 = vshrl.u32 2131351028, %v6923
      %v6930 = vor.u32 %v6928, %v6929
      %v6931 = vshll.u32 2131351028, %v6922
      %v6932 = vshrl.u32 2102212464, %v6923
      %v6933 = vor.u32 %v6931, %v6932
      %v6934 = vshll.u32 2102212464, %v6922
      %v6935 = vshrl.u32 920167782, %v6923
      %v6936 = vor.u32 %v6934, %v6935
      %v6937 = vshll.u32 920167782, %v6922
      %v6938 = vshrl.u32 1326507024, %v6923
      %v6939 = vor.u32 %v6937, %v6938
      %vm6940 = vcmp.lt.s32.totalorder %v6921, 1
      %vm6941 = vcmp.lt.s32.totalorder %v6921, 2
      %vm6942 = vcmp.lt.s32.totalorder %v6921, 3
      %vm6943 = vcmp.lt.s32.totalorder %v6921, 4
      %v6944 = vsel %vm6940, %v6924, %v6927
      %v6945 = vsel %vm6943, %v6933, 2102212464
      %v6946 = vsel %vm6942, %v6930, %v6945
      %v6947 = vsel %vm6941, %v6944, %v6946
      %v6948 = vsel %vm6940, %v6927, %v6930
      %v6949 = vsel %vm6943, %v6936, 920167782
      %v6950 = vsel %vm6942, %v6933, %v6949
      %v6951 = vsel %vm6941, %v6948, %v6950
      %v6952 = vsel %vm6940, %v6930, %v6933
      %v6953 = vsel %vm6943, %v6939, 1326507024
      %v6954 = vsel %vm6942, %v6936, %v6953
      %v6955 = vsel %vm6941, %v6952, %v6954
      %v6956 = vshll.u32 %v6916, 8
      %v6957 = vmul.u32.u64.compose %v6956, %v6955
      %v6958 = vextract.low.u32 %v6957
      %v6959 = vextract.high.u32 %v6957
      %v6960 = vmul.u32.u64.compose %v6956, %v6951
      %v6961 = vextract.low.u32 %v6960
      %v6962 = vextract.high.u32 %v6960
      %v6963 = vmul.u32 %v6956, %v6947
      %v6964 = vadd.s32 %v6959, %v6961
      %vm6965 = vc.u32 %v6959, %v6961
      %v6966 = vadd.s32 %v6962, 1
      %v6967 = vsel %vm6965, %v6966, %v6962
      %v6968 = vadd.s32 %v6963, %v6967
      %v6969 = vadd.s32 %v6968, 536870912
      %v6970 = vshrl.u32 %v6969, 30
      %v6971 = vshll.u32 %v6970, 30
      %v6972 = vsub.s32 %v6968, %v6971
      %vm6973 = vcmp.lt.s32.totalorder %v6972, 0
      %v6974 = vsub.s32 0, %v6972
      %v6975 = vsel %vm6973, %v6974, %v6972
      %v6976 = vclz %v6975
      %v6977 = vsub.s32 %v6976, 2
      %vm6978 = vcmp.gt.s32.totalorder 0, %v6977
      %v6979 = vsel %vm6978, 0, %v6977
      %v6980 = vsub.s32 32, %v6979
      %v6981 = vshll.u32 %v6972, %v6979
      %v6982 = vshrl.u32 %v6964, %v6980
      %v6983 = vor.u32 %v6981, %v6982
      %v6984 = vsub.s32 4294967266, %v6979
      %v6985 = vadd.s32 %v6984, 127
      %v6986 = vshll.u32 %v6985, 23
      %v6987 = vor.u32 4788187, %v6986
      %v6988 = vand.u32 2147483647, %v6987
      %v6990 = vcvt.s32.f32 %v6983
      %v6991 = vmul.f32 %v6990, %v6988
      %v6992 = vxor.u32 %v6991, 2147483648
      %v6993 = vsel %vm6910, %v6992, %v6991
      %v6994 = vsub.s32 4, %v6970
      %v6995 = vsel %vm6910, %v6994, %v6970
      %v6996 = vsel %vm6909, %v789, %v6993
      %v6997 = vsel %vm6909, 0, %v6995
      %v6998 = vcosq.f32.pop %v6996
      %v6999 = vsinq.f32.pop %v6996
      %vm7000 = vweird.f32 %v789
      %v7001 = vand.u32 %v6997, 3
      %vm7002 = vcmp.lt.s32.totalorder %v7001, 2
      %vm7003 = vcmp.eq.s32.totalorder %v7001, 0
      %v7004 = vxor.u32 %v6999, 2147483648
      %v7005 = vsel %vm7003, %v6998, %v7004
      %vm7006 = vcmp.eq.s32.totalorder %v7001, 2
      %v7007 = vxor.u32 %v6998, 2147483648
      %v7008 = vsel %vm7006, %v7007, %v6999
      %v7009 = vsel %vm7002, %v7005, %v7008
      %v7010 = vsel %vm7000, nan, %v7009
      %v7011 = vand.u32 2147483647, %v790
      %vm7012 = vcmp.le.f32.partialorder %v7011, 0.7853982
      %vm7013 = vcmp.lt.s32.totalorder %v790, 0
      %v7014 = vand.u32 %v790, 2139095040
      %v7015 = vshrl.u32 %v7014, 23
      %v7016 = vsub.s32 %v7015, 127
      %v7017 = vand.u32 2147483647, %v790
      %v7018 = vand.u32 %v7017, 8388607
      %v7019 = vor.u32 %v7018, 8388608
      %v7020 = vsub.s32 0, %v7019
      %v7021 = vadd.s32 %v7016, 1
      %vm7022 = vcmp.gt.s32.totalorder %v7021, 0
      %v7023 = vsel %vm7022, %v7021, 0
      %v7024 = vshrl.u32 %v7023, 5
      %v7025 = vand.u32 %v7023, 31
      %v7026 = vsub.s32 32, %v7025
      %v7027 = vshrl.u32 683565275, %v7026
      %v7028 = vshll.u32 683565275, %v7025
      %v7029 = vshrl.u32 2475754826, %v7026
      %v7030 = vor.u32 %v7028, %v7029
      %v7031 = vshll.u32 2475754826, %v7025
      %v7032 = vshrl.u32 2131351028, %v7026
      %v7033 = vor.u32 %v7031, %v7032
      %v7034 = vshll.u32 2131351028, %v7025
      %v7035 = vshrl.u32 2102212464, %v7026
      %v7036 = vor.u32 %v7034, %v7035
      %v7037 = vshll.u32 2102212464, %v7025
      %v7038 = vshrl.u32 920167782, %v7026
      %v7039 = vor.u32 %v7037, %v7038
      %v7040 = vshll.u32 920167782, %v7025
      %v7041 = vshrl.u32 1326507024, %v7026
      %v7042 = vor.u32 %v7040, %v7041
      %vm7043 = vcmp.lt.s32.totalorder %v7024, 1
      %vm7044 = vcmp.lt.s32.totalorder %v7024, 2
      %vm7045 = vcmp.lt.s32.totalorder %v7024, 3
      %vm7046 = vcmp.lt.s32.totalorder %v7024, 4
      %v7047 = vsel %vm7043, %v7027, %v7030
      %v7048 = vsel %vm7046, %v7036, 2102212464
      %v7049 = vsel %vm7045, %v7033, %v7048
      %v7050 = vsel %vm7044, %v7047, %v7049
      %v7051 = vsel %vm7043, %v7030, %v7033
      %v7052 = vsel %vm7046, %v7039, 920167782
      %v7053 = vsel %vm7045, %v7036, %v7052
      %v7054 = vsel %vm7044, %v7051, %v7053
      %v7055 = vsel %vm7043, %v7033, %v7036
      %v7056 = vsel %vm7046, %v7042, 1326507024
      %v7057 = vsel %vm7045, %v7039, %v7056
      %v7058 = vsel %vm7044, %v7055, %v7057
      %v7059 = vshll.u32 %v7019, 8
      %v7060 = vmul.u32.u64.compose %v7059, %v7058
      %v7061 = vextract.low.u32 %v7060
      %v7062 = vextract.high.u32 %v7060
      %v7063 = vmul.u32.u64.compose %v7059, %v7054
      %v7064 = vextract.low.u32 %v7063
      %v7065 = vextract.high.u32 %v7063
      %v7066 = vmul.u32 %v7059, %v7050
      %v7067 = vadd.s32 %v7062, %v7064
      %vm7068 = vc.u32 %v7062, %v7064
      %v7069 = vadd.s32 %v7065, 1
      %v7070 = vsel %vm7068, %v7069, %v7065
      %v7071 = vadd.s32 %v7066, %v7070
      %v7072 = vadd.s32 %v7071, 536870912
      %v7073 = vshrl.u32 %v7072, 30
      %v7074 = vshll.u32 %v7073, 30
      %v7075 = vsub.s32 %v7071, %v7074
      %vm7076 = vcmp.lt.s32.totalorder %v7075, 0
      %v7077 = vsub.s32 0, %v7075
      %v7078 = vsel %vm7076, %v7077, %v7075
      %v7079 = vclz %v7078
      %v7080 = vsub.s32 %v7079, 2
      %vm7081 = vcmp.gt.s32.totalorder 0, %v7080
      %v7082 = vsel %vm7081, 0, %v7080
      %v7083 = vsub.s32 32, %v7082
      %v7084 = vshll.u32 %v7075, %v7082
      %v7085 = vshrl.u32 %v7067, %v7083
      %v7086 = vor.u32 %v7084, %v7085
      %v7087 = vsub.s32 4294967266, %v7082
      %v7088 = vadd.s32 %v7087, 127
      %v7089 = vshll.u32 %v7088, 23
      %v7090 = vor.u32 4788187, %v7089
      %v7091 = vand.u32 2147483647, %v7090
      %v7093 = vcvt.s32.f32 %v7086
      %v7094 = vmul.f32 %v7093, %v7091
      %v7095 = vxor.u32 %v7094, 2147483648
      %v7096 = vsel %vm7013, %v7095, %v7094
      %v7097 = vsub.s32 4, %v7073
      %v7098 = vsel %vm7013, %v7097, %v7073
      %v7099 = vsel %vm7012, %v790, %v7096
      %v7100 = vsel %vm7012, 0, %v7098
      %v7101 = vcosq.f32.pop %v7099
      %v7102 = vsinq.f32.pop %v7099
      %vm7103 = vweird.f32 %v790
      %v7104 = vand.u32 %v7100, 3
      %vm7105 = vcmp.lt.s32.totalorder %v7104, 2
      %vm7106 = vcmp.eq.s32.totalorder %v7104, 0
      %v7107 = vxor.u32 %v7102, 2147483648
      %v7108 = vsel %vm7106, %v7101, %v7107
      %vm7109 = vcmp.eq.s32.totalorder %v7104, 2
      %v7110 = vxor.u32 %v7101, 2147483648
      %v7111 = vsel %vm7109, %v7110, %v7102
      %v7112 = vsel %vm7105, %v7108, %v7111
      %v7113 = vsel %vm7103, nan, %v7112
      %v7114 = vand.u32 2147483647, %v791
      %vm7115 = vcmp.le.f32.partialorder %v7114, 0.7853982
      %vm7116 = vcmp.lt.s32.totalorder %v791, 0
      %v7117 = vand.u32 %v791, 2139095040
      %v7118 = vshrl.u32 %v7117, 23
      %v7119 = vsub.s32 %v7118, 127
      %v7120 = vand.u32 2147483647, %v791
      %v7121 = vand.u32 %v7120, 8388607
      %v7122 = vor.u32 %v7121, 8388608
      %v7123 = vsub.s32 0, %v7122
      %v7124 = vadd.s32 %v7119, 1
      %vm7125 = vcmp.gt.s32.totalorder %v7124, 0
      %v7126 = vsel %vm7125, %v7124, 0
      %v7127 = vshrl.u32 %v7126, 5
      %v7128 = vand.u32 %v7126, 31
      %v7129 = vsub.s32 32, %v7128
      %v7130 = vshrl.u32 683565275, %v7129
      %v7131 = vshll.u32 683565275, %v7128
      %v7132 = vshrl.u32 2475754826, %v7129
      %v7133 = vor.u32 %v7131, %v7132
      %v7134 = vshll.u32 2475754826, %v7128
      %v7135 = vshrl.u32 2131351028, %v7129
      %v7136 = vor.u32 %v7134, %v7135
      %v7137 = vshll.u32 2131351028, %v7128
      %v7138 = vshrl.u32 2102212464, %v7129
      %v7139 = vor.u32 %v7137, %v7138
      %v7140 = vshll.u32 2102212464, %v7128
      %v7141 = vshrl.u32 920167782, %v7129
      %v7142 = vor.u32 %v7140, %v7141
      %v7143 = vshll.u32 920167782, %v7128
      %v7144 = vshrl.u32 1326507024, %v7129
      %v7145 = vor.u32 %v7143, %v7144
      %vm7146 = vcmp.lt.s32.totalorder %v7127, 1
      %vm7147 = vcmp.lt.s32.totalorder %v7127, 2
      %vm7148 = vcmp.lt.s32.totalorder %v7127, 3
      %vm7149 = vcmp.lt.s32.totalorder %v7127, 4
      %v7150 = vsel %vm7146, %v7130, %v7133
      %v7151 = vsel %vm7149, %v7139, 2102212464
      %v7152 = vsel %vm7148, %v7136, %v7151
      %v7153 = vsel %vm7147, %v7150, %v7152
      %v7154 = vsel %vm7146, %v7133, %v7136
      %v7155 = vsel %vm7149, %v7142, 920167782
      %v7156 = vsel %vm7148, %v7139, %v7155
      %v7157 = vsel %vm7147, %v7154, %v7156
      %v7158 = vsel %vm7146, %v7136, %v7139
      %v7159 = vsel %vm7149, %v7145, 1326507024
      %v7160 = vsel %vm7148, %v7142, %v7159
      %v7161 = vsel %vm7147, %v7158, %v7160
      %v7162 = vshll.u32 %v7122, 8
      %v7163 = vmul.u32.u64.compose %v7162, %v7161
      %v7164 = vextract.low.u32 %v7163
      %v7165 = vextract.high.u32 %v7163
      %v7166 = vmul.u32.u64.compose %v7162, %v7157
      %v7167 = vextract.low.u32 %v7166
      %v7168 = vextract.high.u32 %v7166
      %v7169 = vmul.u32 %v7162, %v7153
      %v7170 = vadd.s32 %v7165, %v7167
      %vm7171 = vc.u32 %v7165, %v7167
      %v7172 = vadd.s32 %v7168, 1
      %v7173 = vsel %vm7171, %v7172, %v7168
      %v7174 = vadd.s32 %v7169, %v7173
      %v7175 = vadd.s32 %v7174, 536870912
      %v7176 = vshrl.u32 %v7175, 30
      %v7177 = vshll.u32 %v7176, 30
      %v7178 = vsub.s32 %v7174, %v7177
      %vm7179 = vcmp.lt.s32.totalorder %v7178, 0
      %v7180 = vsub.s32 0, %v7178
      %v7181 = vsel %vm7179, %v7180, %v7178
      %v7182 = vclz %v7181
      %v7183 = vsub.s32 %v7182, 2
      %vm7184 = vcmp.gt.s32.totalorder 0, %v7183
      %v7185 = vsel %vm7184, 0, %v7183
      %v7186 = vsub.s32 32, %v7185
      %v7187 = vshll.u32 %v7178, %v7185
      %v7188 = vshrl.u32 %v7170, %v7186
      %v7189 = vor.u32 %v7187, %v7188
      %v7190 = vsub.s32 4294967266, %v7185
      %v7191 = vadd.s32 %v7190, 127
      %v7192 = vshll.u32 %v7191, 23
      %v7193 = vor.u32 4788187, %v7192
      %v7194 = vand.u32 2147483647, %v7193
      %v7196 = vcvt.s32.f32 %v7189
      %v7197 = vmul.f32 %v7196, %v7194
      %v7198 = vxor.u32 %v7197, 2147483648
      %v7199 = vsel %vm7116, %v7198, %v7197
      %v7200 = vsub.s32 4, %v7176
      %v7201 = vsel %vm7116, %v7200, %v7176
      %v7202 = vsel %vm7115, %v791, %v7199
      %v7203 = vsel %vm7115, 0, %v7201
      %v7204 = vcosq.f32.pop %v7202
      %v7205 = vsinq.f32.pop %v7202
      %vm7206 = vweird.f32 %v791
      %v7207 = vand.u32 %v7203, 3
      %vm7208 = vcmp.lt.s32.totalorder %v7207, 2
      %vm7209 = vcmp.eq.s32.totalorder %v7207, 0
      %v7210 = vxor.u32 %v7205, 2147483648
      %v7211 = vsel %vm7209, %v7204, %v7210
      %vm7212 = vcmp.eq.s32.totalorder %v7207, 2
      %v7213 = vxor.u32 %v7204, 2147483648
      %v7214 = vsel %vm7212, %v7213, %v7205
      %v7215 = vsel %vm7208, %v7211, %v7214
      %v7216 = vsel %vm7206, nan, %v7215
      %v7217 = vand.u32 2147483647, %v792
      %vm7218 = vcmp.le.f32.partialorder %v7217, 0.7853982
      %vm7219 = vcmp.lt.s32.totalorder %v792, 0
      %v7220 = vand.u32 %v792, 2139095040
      %v7221 = vshrl.u32 %v7220, 23
      %v7222 = vsub.s32 %v7221, 127
      %v7223 = vand.u32 2147483647, %v792
      %v7224 = vand.u32 %v7223, 8388607
      %v7225 = vor.u32 %v7224, 8388608
      %v7226 = vsub.s32 0, %v7225
      %v7227 = vadd.s32 %v7222, 1
      %vm7228 = vcmp.gt.s32.totalorder %v7227, 0
      %v7229 = vsel %vm7228, %v7227, 0
      %v7230 = vshrl.u32 %v7229, 5
      %v7231 = vand.u32 %v7229, 31
      %v7232 = vsub.s32 32, %v7231
      %v7233 = vshrl.u32 683565275, %v7232
      %v7234 = vshll.u32 683565275, %v7231
      %v7235 = vshrl.u32 2475754826, %v7232
      %v7236 = vor.u32 %v7234, %v7235
      %v7237 = vshll.u32 2475754826, %v7231
      %v7238 = vshrl.u32 2131351028, %v7232
      %v7239 = vor.u32 %v7237, %v7238
      %v7240 = vshll.u32 2131351028, %v7231
      %v7241 = vshrl.u32 2102212464, %v7232
      %v7242 = vor.u32 %v7240, %v7241
      %v7243 = vshll.u32 2102212464, %v7231
      %v7244 = vshrl.u32 920167782, %v7232
      %v7245 = vor.u32 %v7243, %v7244
      %v7246 = vshll.u32 920167782, %v7231
      %v7247 = vshrl.u32 1326507024, %v7232
      %v7248 = vor.u32 %v7246, %v7247
      %vm7249 = vcmp.lt.s32.totalorder %v7230, 1
      %vm7250 = vcmp.lt.s32.totalorder %v7230, 2
      %vm7251 = vcmp.lt.s32.totalorder %v7230, 3
      %vm7252 = vcmp.lt.s32.totalorder %v7230, 4
      %v7253 = vsel %vm7249, %v7233, %v7236
      %v7254 = vsel %vm7252, %v7242, 2102212464
      %v7255 = vsel %vm7251, %v7239, %v7254
      %v7256 = vsel %vm7250, %v7253, %v7255
      %v7257 = vsel %vm7249, %v7236, %v7239
      %v7258 = vsel %vm7252, %v7245, 920167782
      %v7259 = vsel %vm7251, %v7242, %v7258
      %v7260 = vsel %vm7250, %v7257, %v7259
      %v7261 = vsel %vm7249, %v7239, %v7242
      %v7262 = vsel %vm7252, %v7248, 1326507024
      %v7263 = vsel %vm7251, %v7245, %v7262
      %v7264 = vsel %vm7250, %v7261, %v7263
      %v7265 = vshll.u32 %v7225, 8
      %v7266 = vmul.u32.u64.compose %v7265, %v7264
      %v7267 = vextract.low.u32 %v7266
      %v7268 = vextract.high.u32 %v7266
      %v7269 = vmul.u32.u64.compose %v7265, %v7260
      %v7270 = vextract.low.u32 %v7269
      %v7271 = vextract.high.u32 %v7269
      %v7272 = vmul.u32 %v7265, %v7256
      %v7273 = vadd.s32 %v7268, %v7270
      %vm7274 = vc.u32 %v7268, %v7270
      %v7275 = vadd.s32 %v7271, 1
      %v7276 = vsel %vm7274, %v7275, %v7271
      %v7277 = vadd.s32 %v7272, %v7276
      %v7278 = vadd.s32 %v7277, 536870912
      %v7279 = vshrl.u32 %v7278, 30
      %v7280 = vshll.u32 %v7279, 30
      %v7281 = vsub.s32 %v7277, %v7280
      %vm7282 = vcmp.lt.s32.totalorder %v7281, 0
      %v7283 = vsub.s32 0, %v7281
      %v7284 = vsel %vm7282, %v7283, %v7281
      %v7285 = vclz %v7284
      %v7286 = vsub.s32 %v7285, 2
      %vm7287 = vcmp.gt.s32.totalorder 0, %v7286
      %v7288 = vsel %vm7287, 0, %v7286
      %v7289 = vsub.s32 32, %v7288
      %v7290 = vshll.u32 %v7281, %v7288
      %v7291 = vshrl.u32 %v7273, %v7289
      %v7292 = vor.u32 %v7290, %v7291
      %v7293 = vsub.s32 4294967266, %v7288
      %v7294 = vadd.s32 %v7293, 127
      %v7295 = vshll.u32 %v7294, 23
      %v7296 = vor.u32 4788187, %v7295
      %v7297 = vand.u32 2147483647, %v7296
      %v7299 = vcvt.s32.f32 %v7292
      %v7300 = vmul.f32 %v7299, %v7297
      %v7301 = vxor.u32 %v7300, 2147483648
      %v7302 = vsel %vm7219, %v7301, %v7300
      %v7303 = vsub.s32 4, %v7279
      %v7304 = vsel %vm7219, %v7303, %v7279
      %v7305 = vsel %vm7218, %v792, %v7302
      %v7306 = vsel %vm7218, 0, %v7304
      %v7307 = vcosq.f32.pop %v7305
      %v7308 = vsinq.f32.pop %v7305
      %vm7309 = vweird.f32 %v792
      %v7310 = vand.u32 %v7306, 3
      %vm7311 = vcmp.lt.s32.totalorder %v7310, 2
      %vm7312 = vcmp.eq.s32.totalorder %v7310, 0
      %v7313 = vxor.u32 %v7308, 2147483648
      %v7314 = vsel %vm7312, %v7307, %v7313
      %vm7315 = vcmp.eq.s32.totalorder %v7310, 2
      %v7316 = vxor.u32 %v7307, 2147483648
      %v7317 = vsel %vm7315, %v7316, %v7308
      %v7318 = vsel %vm7311, %v7314, %v7317
      %v7319 = vsel %vm7309, nan, %v7318
      %v7320 = vand.u32 2147483647, %v793
      %vm7321 = vcmp.le.f32.partialorder %v7320, 0.7853982
      %vm7322 = vcmp.lt.s32.totalorder %v793, 0
      %v7323 = vand.u32 %v793, 2139095040
      %v7324 = vshrl.u32 %v7323, 23
      %v7325 = vsub.s32 %v7324, 127
      %v7326 = vand.u32 2147483647, %v793
      %v7327 = vand.u32 %v7326, 8388607
      %v7328 = vor.u32 %v7327, 8388608
      %v7329 = vsub.s32 0, %v7328
      %v7330 = vadd.s32 %v7325, 1
      %vm7331 = vcmp.gt.s32.totalorder %v7330, 0
      %v7332 = vsel %vm7331, %v7330, 0
      %v7333 = vshrl.u32 %v7332, 5
      %v7334 = vand.u32 %v7332, 31
      %v7335 = vsub.s32 32, %v7334
      %v7336 = vshrl.u32 683565275, %v7335
      %v7337 = vshll.u32 683565275, %v7334
      %v7338 = vshrl.u32 2475754826, %v7335
      %v7339 = vor.u32 %v7337, %v7338
      %v7340 = vshll.u32 2475754826, %v7334
      %v7341 = vshrl.u32 2131351028, %v7335
      %v7342 = vor.u32 %v7340, %v7341
      %v7343 = vshll.u32 2131351028, %v7334
      %v7344 = vshrl.u32 2102212464, %v7335
      %v7345 = vor.u32 %v7343, %v7344
      %v7346 = vshll.u32 2102212464, %v7334
      %v7347 = vshrl.u32 920167782, %v7335
      %v7348 = vor.u32 %v7346, %v7347
      %v7349 = vshll.u32 920167782, %v7334
      %v7350 = vshrl.u32 1326507024, %v7335
      %v7351 = vor.u32 %v7349, %v7350
      %vm7352 = vcmp.lt.s32.totalorder %v7333, 1
      %vm7353 = vcmp.lt.s32.totalorder %v7333, 2
      %vm7354 = vcmp.lt.s32.totalorder %v7333, 3
      %vm7355 = vcmp.lt.s32.totalorder %v7333, 4
      %v7356 = vsel %vm7352, %v7336, %v7339
      %v7357 = vsel %vm7355, %v7345, 2102212464
      %v7358 = vsel %vm7354, %v7342, %v7357
      %v7359 = vsel %vm7353, %v7356, %v7358
      %v7360 = vsel %vm7352, %v7339, %v7342
      %v7361 = vsel %vm7355, %v7348, 920167782
      %v7362 = vsel %vm7354, %v7345, %v7361
      %v7363 = vsel %vm7353, %v7360, %v7362
      %v7364 = vsel %vm7352, %v7342, %v7345
      %v7365 = vsel %vm7355, %v7351, 1326507024
      %v7366 = vsel %vm7354, %v7348, %v7365
      %v7367 = vsel %vm7353, %v7364, %v7366
      %v7368 = vshll.u32 %v7328, 8
      %v7369 = vmul.u32.u64.compose %v7368, %v7367
      %v7370 = vextract.low.u32 %v7369
      %v7371 = vextract.high.u32 %v7369
      %v7372 = vmul.u32.u64.compose %v7368, %v7363
      %v7373 = vextract.low.u32 %v7372
      %v7374 = vextract.high.u32 %v7372
      %v7375 = vmul.u32 %v7368, %v7359
      %v7376 = vadd.s32 %v7371, %v7373
      %vm7377 = vc.u32 %v7371, %v7373
      %v7378 = vadd.s32 %v7374, 1
      %v7379 = vsel %vm7377, %v7378, %v7374
      %v7380 = vadd.s32 %v7375, %v7379
      %v7381 = vadd.s32 %v7380, 536870912
      %v7382 = vshrl.u32 %v7381, 30
      %v7383 = vshll.u32 %v7382, 30
      %v7384 = vsub.s32 %v7380, %v7383
      %vm7385 = vcmp.lt.s32.totalorder %v7384, 0
      %v7386 = vsub.s32 0, %v7384
      %v7387 = vsel %vm7385, %v7386, %v7384
      %v7388 = vclz %v7387
      %v7389 = vsub.s32 %v7388, 2
      %vm7390 = vcmp.gt.s32.totalorder 0, %v7389
      %v7391 = vsel %vm7390, 0, %v7389
      %v7392 = vsub.s32 32, %v7391
      %v7393 = vshll.u32 %v7384, %v7391
      %v7394 = vshrl.u32 %v7376, %v7392
      %v7395 = vor.u32 %v7393, %v7394
      %v7396 = vsub.s32 4294967266, %v7391
      %v7397 = vadd.s32 %v7396, 127
      %v7398 = vshll.u32 %v7397, 23
      %v7399 = vor.u32 4788187, %v7398
      %v7400 = vand.u32 2147483647, %v7399
      %v7402 = vcvt.s32.f32 %v7395
      %v7403 = vmul.f32 %v7402, %v7400
      %v7404 = vxor.u32 %v7403, 2147483648
      %v7405 = vsel %vm7322, %v7404, %v7403
      %v7406 = vsub.s32 4, %v7382
      %v7407 = vsel %vm7322, %v7406, %v7382
      %v7408 = vsel %vm7321, %v793, %v7405
      %v7409 = vsel %vm7321, 0, %v7407
      %v7410 = vcosq.f32.pop %v7408
      %v7411 = vsinq.f32.pop %v7408
      %vm7412 = vweird.f32 %v793
      %v7413 = vand.u32 %v7409, 3
      %vm7414 = vcmp.lt.s32.totalorder %v7413, 2
      %vm7415 = vcmp.eq.s32.totalorder %v7413, 0
      %v7416 = vxor.u32 %v7411, 2147483648
      %v7417 = vsel %vm7415, %v7410, %v7416
      %vm7418 = vcmp.eq.s32.totalorder %v7413, 2
      %v7419 = vxor.u32 %v7410, 2147483648
      %v7420 = vsel %vm7418, %v7419, %v7411
      %v7421 = vsel %vm7414, %v7417, %v7420
      %v7422 = vsel %vm7412, nan, %v7421
      %v7423 = vand.u32 2147483647, %v794
      %vm7424 = vcmp.le.f32.partialorder %v7423, 0.7853982
      %vm7425 = vcmp.lt.s32.totalorder %v794, 0
      %v7426 = vand.u32 %v794, 2139095040
      %v7427 = vshrl.u32 %v7426, 23
      %v7428 = vsub.s32 %v7427, 127
      %v7429 = vand.u32 2147483647, %v794
      %v7430 = vand.u32 %v7429, 8388607
      %v7431 = vor.u32 %v7430, 8388608
      %v7432 = vsub.s32 0, %v7431
      %v7433 = vadd.s32 %v7428, 1
      %vm7434 = vcmp.gt.s32.totalorder %v7433, 0
      %v7435 = vsel %vm7434, %v7433, 0
      %v7436 = vshrl.u32 %v7435, 5
      %v7437 = vand.u32 %v7435, 31
      %v7438 = vsub.s32 32, %v7437
      %v7439 = vshrl.u32 683565275, %v7438
      %v7440 = vshll.u32 683565275, %v7437
      %v7441 = vshrl.u32 2475754826, %v7438
      %v7442 = vor.u32 %v7440, %v7441
      %v7443 = vshll.u32 2475754826, %v7437
      %v7444 = vshrl.u32 2131351028, %v7438
      %v7445 = vor.u32 %v7443, %v7444
      %v7446 = vshll.u32 2131351028, %v7437
      %v7447 = vshrl.u32 2102212464, %v7438
      %v7448 = vor.u32 %v7446, %v7447
      %v7449 = vshll.u32 2102212464, %v7437
      %v7450 = vshrl.u32 920167782, %v7438
      %v7451 = vor.u32 %v7449, %v7450
      %v7452 = vshll.u32 920167782, %v7437
      %v7453 = vshrl.u32 1326507024, %v7438
      %v7454 = vor.u32 %v7452, %v7453
      %vm7455 = vcmp.lt.s32.totalorder %v7436, 1
      %vm7456 = vcmp.lt.s32.totalorder %v7436, 2
      %vm7457 = vcmp.lt.s32.totalorder %v7436, 3
      %vm7458 = vcmp.lt.s32.totalorder %v7436, 4
      %v7459 = vsel %vm7455, %v7439, %v7442
      %v7460 = vsel %vm7458, %v7448, 2102212464
      %v7461 = vsel %vm7457, %v7445, %v7460
      %v7462 = vsel %vm7456, %v7459, %v7461
      %v7463 = vsel %vm7455, %v7442, %v7445
      %v7464 = vsel %vm7458, %v7451, 920167782
      %v7465 = vsel %vm7457, %v7448, %v7464
      %v7466 = vsel %vm7456, %v7463, %v7465
      %v7467 = vsel %vm7455, %v7445, %v7448
      %v7468 = vsel %vm7458, %v7454, 1326507024
      %v7469 = vsel %vm7457, %v7451, %v7468
      %v7470 = vsel %vm7456, %v7467, %v7469
      %v7471 = vshll.u32 %v7431, 8
      %v7472 = vmul.u32.u64.compose %v7471, %v7470
      %v7473 = vextract.low.u32 %v7472
      %v7474 = vextract.high.u32 %v7472
      %v7475 = vmul.u32.u64.compose %v7471, %v7466
      %v7476 = vextract.low.u32 %v7475
      %v7477 = vextract.high.u32 %v7475
      %v7478 = vmul.u32 %v7471, %v7462
      %v7479 = vadd.s32 %v7474, %v7476
      %vm7480 = vc.u32 %v7474, %v7476
      %v7481 = vadd.s32 %v7477, 1
      %v7482 = vsel %vm7480, %v7481, %v7477
      %v7483 = vadd.s32 %v7478, %v7482
      %v7484 = vadd.s32 %v7483, 536870912
      %v7485 = vshrl.u32 %v7484, 30
      %v7486 = vshll.u32 %v7485, 30
      %v7487 = vsub.s32 %v7483, %v7486
      %vm7488 = vcmp.lt.s32.totalorder %v7487, 0
      %v7489 = vsub.s32 0, %v7487
      %v7490 = vsel %vm7488, %v7489, %v7487
      %v7491 = vclz %v7490
      %v7492 = vsub.s32 %v7491, 2
      %vm7493 = vcmp.gt.s32.totalorder 0, %v7492
      %v7494 = vsel %vm7493, 0, %v7492
      %v7495 = vsub.s32 32, %v7494
      %v7496 = vshll.u32 %v7487, %v7494
      %v7497 = vshrl.u32 %v7479, %v7495
      %v7498 = vor.u32 %v7496, %v7497
      %v7499 = vsub.s32 4294967266, %v7494
      %v7500 = vadd.s32 %v7499, 127
      %v7501 = vshll.u32 %v7500, 23
      %v7502 = vor.u32 4788187, %v7501
      %v7503 = vand.u32 2147483647, %v7502
      %v7505 = vcvt.s32.f32 %v7498
      %v7506 = vmul.f32 %v7505, %v7503
      %v7507 = vxor.u32 %v7506, 2147483648
      %v7508 = vsel %vm7425, %v7507, %v7506
      %v7509 = vsub.s32 4, %v7485
      %v7510 = vsel %vm7425, %v7509, %v7485
      %v7511 = vsel %vm7424, %v794, %v7508
      %v7512 = vsel %vm7424, 0, %v7510
      %v7513 = vcosq.f32.pop %v7511
      %v7514 = vsinq.f32.pop %v7511
      %vm7515 = vweird.f32 %v794
      %v7516 = vand.u32 %v7512, 3
      %vm7517 = vcmp.lt.s32.totalorder %v7516, 2
      %vm7518 = vcmp.eq.s32.totalorder %v7516, 0
      %v7519 = vxor.u32 %v7514, 2147483648
      %v7520 = vsel %vm7518, %v7513, %v7519
      %vm7521 = vcmp.eq.s32.totalorder %v7516, 2
      %v7522 = vxor.u32 %v7513, 2147483648
      %v7523 = vsel %vm7521, %v7522, %v7514
      %v7524 = vsel %vm7517, %v7520, %v7523
      %v7525 = vsel %vm7515, nan, %v7524
      %v7526 = vlaneseq
      %v7527 = vshrl.u32 %v7526, 7
      %v7528 = vsub.s32 0, %v7527
      %v7529 = vrot.slane %v4229, %v7528
      %v7530 = vmul.f32 %v7529, %v4332
      %v7531 = vmul.f32 %v7529, %v4435
      %v7532 = vmul.f32 %v7529, %v4538
      %v7533 = vmul.f32 %v7529, %v4641
      %v7534 = vmul.f32 %v7529, %v4744
      %v7535 = vmul.f32 %v7529, %v4847
      %v7536 = vmul.f32 %v7529, %v4950
      %v7537 = vmul.f32 %v7529, %v5053
      %v7538 = vmul.f32 %v7529, %v5156
      %v7539 = vmul.f32 %v7529, %v5259
      %v7540 = vmul.f32 %v7529, %v5362
      %v7541 = vmul.f32 %v7529, %v5465
      %v7542 = vmul.f32 %v7529, %v5568
      %v7543 = vmul.f32 %v7529, %v5671
      %v7544 = vmul.f32 %v7529, %v5774
      %v7545 = vmul.f32 %v7529, %v5877
      %v7546 = vmul.f32 %v7529, %v5980
      %v7547 = vmul.f32 %v7529, %v6083
      %v7548 = vmul.f32 %v7529, %v6186
      %v7549 = vmul.f32 %v7529, %v6289
      %v7550 = vmul.f32 %v7529, %v6392
      %v7551 = vmul.f32 %v7529, %v6495
      %v7552 = vmul.f32 %v7529, %v6598
      %v7553 = vmul.f32 %v7529, %v6701
      %v7554 = vmul.f32 %v7529, %v6804
      %v7555 = vmul.f32 %v7529, %v6907
      %v7556 = vmul.f32 %v7529, %v7010
      %v7557 = vmul.f32 %v7529, %v7113
      %v7558 = vmul.f32 %v7529, %v7216
      %v7559 = vmul.f32 %v7529, %v7319
      %v7560 = vmul.f32 %v7529, %v7422
      %v7561 = vmul.f32 %v7529, %v7525
      %v7562 = vadd.f32 %v4197, %v7530
      %v7563 = vadd.f32 %v4198, %v7531
      %v7564 = vadd.f32 %v4199, %v7532
      %v7565 = vadd.f32 %v4200, %v7533
      %v7566 = vadd.f32 %v4201, %v7534
      %v7567 = vadd.f32 %v4202, %v7535
      %v7568 = vadd.f32 %v4203, %v7536
      %v7569 = vadd.f32 %v4204, %v7537
      %v7570 = vadd.f32 %v4205, %v7538
      %v7571 = vadd.f32 %v4206, %v7539
      %v7572 = vadd.f32 %v4207, %v7540
      %v7573 = vadd.f32 %v4208, %v7541
      %v7574 = vadd.f32 %v4209, %v7542
      %v7575 = vadd.f32 %v4210, %v7543
      %v7576 = vadd.f32 %v4211, %v7544
      %v7577 = vadd.f32 %v4212, %v7545
      %v7578 = vadd.f32 %v4213, %v7546
      %v7579 = vadd.f32 %v4214, %v7547
      %v7580 = vadd.f32 %v4215, %v7548
      %v7581 = vadd.f32 %v4216, %v7549
      %v7582 = vadd.f32 %v4217, %v7550
      %v7583 = vadd.f32 %v4218, %v7551
      %v7584 = vadd.f32 %v4219, %v7552
      %v7585 = vadd.f32 %v4220, %v7553
      %v7586 = vadd.f32 %v4221, %v7554
      %v7587 = vadd.f32 %v4222, %v7555
      %v7588 = vadd.f32 %v4223, %v7556
      %v7589 = vadd.f32 %v4224, %v7557
      %v7590 = vadd.f32 %v4225, %v7558
      %v7591 = vadd.f32 %v4226, %v7559
      %v7592 = vadd.f32 %v4227, %v7560
      %v7593 = vadd.f32 %v4228, %v7561
      %vm7594 = vcmask 515072
      %7595 = vst.msk [vmem:[%s172] sm:$0xff] %vm7594, %v7562
      %7596 = vst.msk [vmem:[%s172 + $0x8] sm:$0xff] %vm7594, %v7563
      %7597 = vst.msk [vmem:[%s172 + $0x10] sm:$0xff] %vm7594, %v7564
      %7598 = vst.msk [vmem:[%s172 + $0x18] sm:$0xff] %vm7594, %v7565
      %7599 = vst.msk [vmem:[%s172 + $0x20] sm:$0xff] %vm7594, %v7566
      %7600 = vst.msk [vmem:[%s172 + $0x28] sm:$0xff] %vm7594, %v7567
      %7601 = vst.msk [vmem:[%s172 + $0x30] sm:$0xff] %vm7594, %v7568
      %7602 = vst.msk [vmem:[%s172 + $0x38] sm:$0xff] %vm7594, %v7569
      %7603 = vst.msk [vmem:[%s172 + $0x40] sm:$0xff] %vm7594, %v7570
      %7604 = vst.msk [vmem:[%s172 + $0x48] sm:$0xff] %vm7594, %v7571
      %7605 = vst.msk [vmem:[%s172 + $0x50] sm:$0xff] %vm7594, %v7572
      %7606 = vst.msk [vmem:[%s172 + $0x58] sm:$0xff] %vm7594, %v7573
      %7607 = vst.msk [vmem:[%s172 + $0x60] sm:$0xff] %vm7594, %v7574
      %7608 = vst.msk [vmem:[%s172 + $0x68] sm:$0xff] %vm7594, %v7575
      %7609 = vst.msk [vmem:[%s172 + $0x70] sm:$0xff] %vm7594, %v7576
      %7610 = vst.msk [vmem:[%s172 + $0x78] sm:$0xff] %vm7594, %v7577
      %7611 = vst.msk [vmem:[%s172 + $0x80] sm:$0xff] %vm7594, %v7578
      %7612 = vst.msk [vmem:[%s172 + $0x88] sm:$0xff] %vm7594, %v7579
      %7613 = vst.msk [vmem:[%s172 + $0x90] sm:$0xff] %vm7594, %v7580
      %7614 = vst.msk [vmem:[%s172 + $0x98] sm:$0xff] %vm7594, %v7581
      %7615 = vst.msk [vmem:[%s172 + $0xa0] sm:$0xff] %vm7594, %v7582
      %7616 = vst.msk [vmem:[%s172 + $0xa8] sm:$0xff] %vm7594, %v7583
      %7617 = vst.msk [vmem:[%s172 + $0xb0] sm:$0xff] %vm7594, %v7584
      %7618 = vst.msk [vmem:[%s172 + $0xb8] sm:$0xff] %vm7594, %v7585
      %7619 = vst.msk [vmem:[%s172 + $0xc0] sm:$0xff] %vm7594, %v7586
      %7620 = vst.msk [vmem:[%s172 + $0xc8] sm:$0xff] %vm7594, %v7587
      %7621 = vst.msk [vmem:[%s172 + $0xd0] sm:$0xff] %vm7594, %v7588
      %7622 = vst.msk [vmem:[%s172 + $0xd8] sm:$0xff] %vm7594, %v7589
      %7623 = vst.msk [vmem:[%s172 + $0xe0] sm:$0xff] %vm7594, %v7590
      %7624 = vst.msk [vmem:[%s172 + $0xe8] sm:$0xff] %vm7594, %v7591
      %7625 = vst.msk [vmem:[%s172 + $0xf0] sm:$0xff] %vm7594, %v7592
      %7626 = vst.msk [vmem:[%s172 + $0xf8] sm:$0xff] %vm7594, %v7593
      %s7627 = smul.u32 32, %s14
      %p7628 = scmp.lt.s32.totalorder %s7627, 127
      %s7629 = scalar_select %p7628, %s7627, 127
      %s7630 = smul.addr %s7629, 8
      %s7631 = scalar_lea.vmem %s3, %s7630
      // Predicated region
      $region33: #{tpu_custom_call.1} parent=31 // pred_check
        %p7632 = pneg %p100
      $region34: #{tpu_custom_call.1} parent=31 // pred_check_branch
        %7634 = sbr.rel (%p7632) target = $region36
      $region35: #{tpu_custom_call.1} parent=31 // pred_region
        %s7635 = smul.u32 32, %s14
      $region36: #{tpu_custom_call.1} parent=31 // pred_fallthru
        _
    $region32: #{tpu_custom_call.1} parent=5 // pred_fallthru
      _
    %p7636 = scmp.le.s32.totalorder 2, %s9
    // Predicated region
    $region37: #{tpu_custom_call.1} parent=5 // pred_check
      %p7637 = pneg %p7636
    $region38: #{tpu_custom_call.1} parent=5 // pred_check_branch
      %7639 = sbr.rel (%p7637) target = $region40
    $region39: #{tpu_custom_call.1} parent=5 // pred_region
      %s7640 = ssub.s32 %s9, 2
      // Predicated region
      $region41: #{tpu_custom_call.1} parent=39 // pred_check
        %p7641 = pneg %p106
      $region42: #{tpu_custom_call.1} parent=39 // pred_check_branch
        %7643 = sbr.rel (%p7641) target = $region44
      $region43: #{tpu_custom_call.1} parent=39 // pred_region
        %s7644 = smul.u32 32, %s15
        %p7645 = scmp.lt.s32.totalorder %s7644, 127
        %s7646 = scalar_select %p7645, %s7644, 127
        %s7647 = smul.addr %s7646, 8
        %s7648 = scalar_lea.vmem %s3, %s7647
      $region44: #{tpu_custom_call.1} parent=39 // pred_fallthru
        _
    $region40: #{tpu_custom_call.1} parent=5 // pred_fallthru
      _
  $region6: #{tpu_custom_call.1} parent=0 // loop_footer
    %s13 = sadd.s32 1, %s9
  $region7: #{tpu_custom_call.1} parent=0 // loop_footer_branch
    %8 = sbr.rel target = $region3
  $region8: #{tpu_custom_call.1} parent=0 // loop_exit
    _

</llo_original>
